<compile_context>
chip_gen: v6e
topology: v6e:2x2x1
jax: 0.10.0
libtpu: 0.0.40
codegen_flags: <defaults>
</compile_context>

<pallas_src>
import functools

import jax
import jax.numpy as jnp
import numpy as np
from jax.experimental import pallas as pl
from jax.experimental.pallas import tpu as pltpu


_CIN_PAD = 16   # pad RGB (3) -> 16 input channels: bf16 sublane-tile aligned concats
_COUT_PAD = 8   # pad head cout (1/3) -> 8: sublane-dense f32 output store


def _round_up(x, m):
    return (x + m - 1) // m * m


# ------------------------------ kernel ------------------------------------


def fused_model_kernel(mask_ref, x_ref,
                       w1_ref, b1_ref, w2_ref, b2_ref, w3_ref, b3_ref,
                       w4_ref, b4_ref, w5_ref, b5_ref,
                       o_ref, *, WP):
    """One grid step = one (branch, batch-block); full 5-layer conv stack.

    Activations are (C, L) with L = B_blk * SP lanes: each image occupies its
    own 128-aligned SP-lane segment holding the row-major flattened, zero-padded
    (H+2, W+2) grid (flat j = r*WP + c).  Convs are computed at every lane
    position; the interior mask rebuilds the zero halo between layers, so no
    slicing / re-padding is ever needed and tap wrap-around (pltpu.roll is
    circular) only ever lands on masked or wrapper-dropped positions.
    """
    L = x_ref.shape[-1]
    mask = mask_ref[...]                              # (1, L), 1.0 at interior pixels

    def conv(act, w_ref_, b_ref_):
        # act: (cin, L) f32 -> pre-activation (cout, L) f32.
        # im2col via 9 lane rolls (XLU slot) -> one deep bf16 MXU matmul.
        taps = []
        for dy in range(3):
            for dx in range(3):
                off = (dy - 1) * WP + (dx - 1)        # tap offset in the flat grid
                t = act if off == 0 else pltpu.roll(act, shift=(-off) % L, axis=1)
                taps.append(t.astype(jnp.bfloat16))
        patches = jnp.concatenate(taps, axis=0)       # (9*cin, L) bf16
        z = jnp.dot(w_ref_[...], patches, preferred_element_type=jnp.float32)
        return z + b_ref_[...]                        # (cout, L) f32

    act = x_ref[...]                                  # (16, L) f32, halo already zero
    for w_r, b_r in ((w1_ref, b1_ref), (w2_ref, b2_ref),
                     (w3_ref, b3_ref), (w4_ref, b4_ref)):
        # Fused ReLU + interior mask (re-zeroes the 1-pixel halo + padding lanes).
        act = jnp.maximum(conv(act, w_r, b_r), 0.0) * mask
    z = conv(act, w5_ref, b5_ref)                     # (8, L) head pre-activation

    is_noise = pl.program_id(0) == 2                  # branch 2 -> tanh head

    @pl.when(is_noise)
    def _():
        o_ref[...] = jnp.tanh(z)

    @pl.when(jnp.logical_not(is_noise))
    def _():
        o_ref[...] = jax.nn.sigmoid(z)


# ------------------------------ wrapper ------------------------------------


def _prep_input(x_nchw, SP, B_blk, nB):
    """(B, 3, H, W) -> (nB, 16, B_blk*SP) lane-dense flattened zero-padded layout."""
    B, C, H, W = x_nchw.shape
    Bp = nB * B_blk
    x = jnp.pad(x_nchw, ((0, Bp - B), (0, _CIN_PAD - C), (1, 1), (1, 1)))
    x = x.reshape(Bp, _CIN_PAD, (H + 2) * (W + 2))
    x = jnp.pad(x, ((0, 0), (0, 0), (0, SP - (H + 2) * (W + 2))))
    x = x.reshape(nB, B_blk, _CIN_PAD, SP).transpose(0, 2, 1, 3)
    return x.reshape(nB, _CIN_PAD, B_blk * SP)


def _interior_mask(H, W, SP, B_blk):
    j = np.arange(SP)
    r, c = j // (W + 2), j % (W + 2)
    m = ((r >= 1) & (r <= H) & (c >= 1) & (c <= W)).astype(np.float32)
    return jnp.asarray(np.tile(m, B_blk).reshape(1, B_blk * SP))


def _prep_weights(branch_params):
    """Stack per-branch HWIO conv weights into MXU-ready bf16 (cout, 9*cin) matrices."""
    ws, bs = [], []
    for l in range(5):
        wl, bl = [], []
        for br in range(3):
            w, b = branch_params[br][l]               # (3,3,cin,cout), (cout,)
            if l == 0:                                # pad RGB cin 3 -> 16
                w = jnp.pad(w, ((0, 0), (0, 0), (0, _CIN_PAD - w.shape[2]), (0, 0)))
            if l == 4:                                # pad head cout -> 8
                pad = _COUT_PAD - w.shape[-1]
                w = jnp.pad(w, ((0, 0), (0, 0), (0, 0), (0, pad)))
                b = jnp.pad(b, ((0, pad),))
            cout, cin = w.shape[-1], w.shape[2]
            wm = jnp.transpose(w, (3, 0, 1, 2)).reshape(cout, 9 * cin)
            wl.append(wm.astype(jnp.bfloat16))
            bl.append(b.reshape(cout, 1).astype(jnp.float32))
        ws.append(jnp.stack(wl, axis=0))              # (3, cout, 9*cin) bf16
        bs.append(jnp.stack(bl, axis=0))              # (3, cout, 1) f32
    return ws, bs


@jax.jit
def fineture_lumin_forward(x_nchw, ill_params, ref_params, noi_params):
    """x_nchw: (B, 3, H, W). Returns (illumination, reflectance, noise), NCHW."""
    B, _, H, W = x_nchw.shape
    WP = W + 2
    SP = _round_up((H + 2) * WP, 128)                 # per-image lane segment
    # Collapse batch into the lane axis: few fat grid steps instead of many tiny
    # ones (at small H,W the ~0.35us per-step fixed cost dominates the ~MFLOPs).
    B_blk = max(1, min(B, 4096 // SP))
    nB = -(-B // B_blk)
    L = B_blk * SP
    # TODO(synk): add a row-block spatial grid axis (1-row halo) for large images
    # so activations/patches fit v7x's 64 MiB VMEM; unnecessary at tested sizes.

    xf = _prep_input(x_nchw, SP, B_blk, nB)           # (nB, 16, L) f32
    mask = _interior_mask(H, W, SP, B_blk)            # (1, L) f32
    ws, bs = _prep_weights([ill_params, ref_params, noi_params])

    in_specs = [
        pl.BlockSpec((1, L), lambda br, b: (0, 0)),                   # mask
        pl.BlockSpec((None, _CIN_PAD, L), lambda br, b: (b, 0, 0)),   # input block
    ]
    weight_args = []
    for l in range(5):
        _, cout, k9 = ws[l].shape
        in_specs.append(pl.BlockSpec((None, cout, k9), lambda br, b: (br, 0, 0)))
        in_specs.append(pl.BlockSpec((None, cout, 1), lambda br, b: (br, 0, 0)))
        weight_args += [ws[l], bs[l]]

    kernel = functools.partial(fused_model_kernel, WP=WP)
    out = pl.pallas_call(
        kernel,
        out_shape=jax.ShapeDtypeStruct((3, nB, _COUT_PAD, L), jnp.float32),
        grid=(3, nB),                 # branch outermost: weight blocks stay resident
        in_specs=in_specs,
        out_specs=pl.BlockSpec((None, None, _COUT_PAD, L),
                               lambda br, b: (br, b, 0, 0)),
        compiler_params=pltpu.CompilerParams(
            dimension_semantics=("parallel", "parallel")),
    )(mask, xf, *weight_args)

    # Unpack the lane/sublane-dense (8, L) blocks: batch, interior pixels, channels.
    out = out.reshape(3, nB, _COUT_PAD, B_blk, SP).transpose(0, 1, 3, 2, 4)
    out = out.reshape(3, nB * B_blk, _COUT_PAD, SP)[:, :B, :, :(H + 2) * WP]
    out = out.reshape(3, B, _COUT_PAD, H + 2, WP)[..., 1:H + 1, 1:W + 1]
    illumination = out[0, :, :1]                      # (B, 1, H, W)
    reflectance = out[1, :, :3]                       # (B, 3, H, W)
    noise = out[2, :, :3]                             # (B, 3, H, W)
    return illumination, reflectance, noise


# ------------------------- params & pure-JAX reference ---------------------


def make_branch_params(key, cout_last):
    """5-layer conv stack params in HWIO, trunc-normal std=0.05, bias=0."""
    chans = [3, 16, 32, 64, 32, cout_last]
    params = []
    for i in range(5):
        key, wk = jax.random.split(key)
        cin, cout = chans[i], chans[i + 1]
        w = (0.05 * jax.random.truncated_normal(
            wk, -2.0, 2.0, (3, 3, cin, cout))).astype(jnp.float32)
        b = jnp.zeros((cout,), jnp.float32)
        params.append((w, b))
    return params


def _ref_conv(x, w_hwio, b):
    w_oihw = jnp.transpose(w_hwio, (3, 2, 0, 1))
    y = jax.lax.conv_general_dilated(
        x, w_oihw, window_strides=(1, 1), padding=((1, 1), (1, 1)),
        dimension_numbers=("NCHW", "OIHW", "NCHW"),
        precision=jax.lax.Precision.HIGHEST)
    return y + b.reshape(1, -1, 1, 1)


def _ref_branch(x, params, head):
    h = x
    for i, (w, b) in enumerate(params):
        h = _ref_conv(h, w, b)
        if i < 4:
            h = jnp.maximum(h, 0.0)
    return jax.nn.sigmoid(h) if head == "sigmoid" else jnp.tanh(h)


if __name__ == "__main__":
    key = jax.random.PRNGKey(0)
    k_in, k_ill, k_ref, k_noi = jax.random.split(key, 4)

    B, H, W = 2, 16, 16
    x = jax.random.uniform(k_in, (B, 3, H, W), dtype=jnp.float32)   # NCHW, like PyTorch

    ill_params = make_branch_params(k_ill, cout_last=1)
    ref_params = make_branch_params(k_ref, cout_last=3)
    noi_params = make_branch_params(k_noi, cout_last=3)

    illumination, reflectance, noise = fineture_lumin_forward(
        x, ill_params, ref_params, noi_params)
    jax.block_until_ready((illumination, reflectance, noise))

    assert illumination.shape == (B, 1, H, W)
    assert reflectance.shape == (B, 3, H, W)
    assert noise.shape == (B, 3, H, W)

    # Cross-check against a pure-JAX/XLA f32 reference of the same network.
    ill_ref = _ref_branch(x, ill_params, "sigmoid")
    ref_ref = _ref_branch(x, ref_params, "sigmoid")
    noi_ref = _ref_branch(x, noi_params, "tanh")
    max_err = max(
        float(jnp.max(jnp.abs(illumination - ill_ref))),
        float(jnp.max(jnp.abs(reflectance - ref_ref))),
        float(jnp.max(jnp.abs(noise - noi_ref))),
    )
    assert max_err < 5e-3, f"mismatch vs reference: {max_err}"

    print("KERNEL_OK")
</pallas_src>

<mosaic_0001>
module attributes {stable_mosaic.version = 11 : i64} {
  func.func @fused_model_kernel(%arg0: i32, %arg1: i32, %arg2: memref<1x768xf32, #tpu.memory_space<vmem>>, %arg3: memref<1x16x768xf32, #tpu.memory_space<vmem>>, %arg4: memref<1x16x144xbf16, #tpu.memory_space<vmem>>, %arg5: memref<1x16x1xf32, #tpu.memory_space<vmem>>, %arg6: memref<1x32x144xbf16, #tpu.memory_space<vmem>>, %arg7: memref<1x32x1xf32, #tpu.memory_space<vmem>>, %arg8: memref<1x64x288xbf16, #tpu.memory_space<vmem>>, %arg9: memref<1x64x1xf32, #tpu.memory_space<vmem>>, %arg10: memref<1x32x576xbf16, #tpu.memory_space<vmem>>, %arg11: memref<1x32x1xf32, #tpu.memory_space<vmem>>, %arg12: memref<1x8x288xbf16, #tpu.memory_space<vmem>>, %arg13: memref<1x8x1xf32, #tpu.memory_space<vmem>>, %arg14: memref<1x1x8x768xf32, #tpu.memory_space<vmem>>) attributes {dimension_semantics = [#tpu.dimension_semantics<parallel>, #tpu.dimension_semantics<parallel>], iteration_bounds = array<i64: 3, 1>, scalar_prefetch = 0 : i64, scratch_operands = 0 : i64, tpu.core_type = #tpu.core_type<tc>, window_params = [{pipeline_mode = #tpu.pipeline_mode<synchronous>, transform_indices = @transform_0, window_bounds = array<i64: 1, 768>}, {transform_indices = @transform_1, window_bounds = array<i64: 1, 16, 768>}, {transform_indices = @transform_2, window_bounds = array<i64: 1, 16, 144>}, {transform_indices = @transform_3, window_bounds = array<i64: 1, 16, 1>}, {transform_indices = @transform_4, window_bounds = array<i64: 1, 32, 144>}, {transform_indices = @transform_5, window_bounds = array<i64: 1, 32, 1>}, {transform_indices = @transform_6, window_bounds = array<i64: 1, 64, 288>}, {transform_indices = @transform_7, window_bounds = array<i64: 1, 64, 1>}, {transform_indices = @transform_8, window_bounds = array<i64: 1, 32, 576>}, {transform_indices = @transform_9, window_bounds = array<i64: 1, 32, 1>}, {transform_indices = @transform_10, window_bounds = array<i64: 1, 8, 288>}, {transform_indices = @transform_11, window_bounds = array<i64: 1, 8, 1>}, {transform_indices = @transform_12, window_bounds = array<i64: 1, 1, 8, 768>}]} {
    %c0 = arith.constant 0 : index
    %c0_0 = arith.constant 0 : index
    %0 = vector.load %arg2[%c0, %c0_0] : memref<1x768xf32, #tpu.memory_space<vmem>>, vector<1x768xf32>
    %c0_1 = arith.constant 0 : index
    %c0_2 = arith.constant 0 : index
    %c0_3 = arith.constant 0 : index
    %1 = vector.load %arg3[%c0_1, %c0_2, %c0_3] : memref<1x16x768xf32, #tpu.memory_space<vmem>>, vector<1x16x768xf32>
    %2 = vector.shape_cast %1 : vector<1x16x768xf32> to vector<16x768xf32>
    %c19_i32 = arith.constant 19 : i32
    %3 = tpu.dynamic_rotate %2 by %c19_i32 dim 1 : vector<16x768xf32>, i32 -> vector<16x768xf32>
    %4 = arith.truncf %3 : vector<16x768xf32> to vector<16x768xbf16>
    %c18_i32 = arith.constant 18 : i32
    %5 = tpu.dynamic_rotate %2 by %c18_i32 dim 1 : vector<16x768xf32>, i32 -> vector<16x768xf32>
    %6 = arith.truncf %5 : vector<16x768xf32> to vector<16x768xbf16>
    %c17_i32 = arith.constant 17 : i32
    %7 = tpu.dynamic_rotate %2 by %c17_i32 dim 1 : vector<16x768xf32>, i32 -> vector<16x768xf32>
    %8 = arith.truncf %7 : vector<16x768xf32> to vector<16x768xbf16>
    %c1_i32 = arith.constant 1 : i32
    %9 = tpu.dynamic_rotate %2 by %c1_i32 dim 1 : vector<16x768xf32>, i32 -> vector<16x768xf32>
    %10 = arith.truncf %9 : vector<16x768xf32> to vector<16x768xbf16>
    %11 = arith.truncf %2 : vector<16x768xf32> to vector<16x768xbf16>
    %c767_i32 = arith.constant 767 : i32
    %12 = tpu.dynamic_rotate %2 by %c767_i32 dim 1 : vector<16x768xf32>, i32 -> vector<16x768xf32>
    %13 = arith.truncf %12 : vector<16x768xf32> to vector<16x768xbf16>
    %c751_i32 = arith.constant 751 : i32
    %14 = tpu.dynamic_rotate %2 by %c751_i32 dim 1 : vector<16x768xf32>, i32 -> vector<16x768xf32>
    %15 = arith.truncf %14 : vector<16x768xf32> to vector<16x768xbf16>
    %c750_i32 = arith.constant 750 : i32
    %16 = tpu.dynamic_rotate %2 by %c750_i32 dim 1 : vector<16x768xf32>, i32 -> vector<16x768xf32>
    %17 = arith.truncf %16 : vector<16x768xf32> to vector<16x768xbf16>
    %c749_i32 = arith.constant 749 : i32
    %18 = tpu.dynamic_rotate %2 by %c749_i32 dim 1 : vector<16x768xf32>, i32 -> vector<16x768xf32>
    %19 = arith.truncf %18 : vector<16x768xf32> to vector<16x768xbf16>
    %20 = tpu.concatenate %4, %6, %8, %10, %11, %13, %15, %17, %19 in 0 : vector<16x768xbf16>, vector<16x768xbf16>, vector<16x768xbf16>, vector<16x768xbf16>, vector<16x768xbf16>, vector<16x768xbf16>, vector<16x768xbf16>, vector<16x768xbf16>, vector<16x768xbf16> -> vector<144x768xbf16>
    %c0_4 = arith.constant 0 : index
    %c0_5 = arith.constant 0 : index
    %c0_6 = arith.constant 0 : index
    %21 = vector.load %arg4[%c0_4, %c0_5, %c0_6] : memref<1x16x144xbf16, #tpu.memory_space<vmem>>, vector<1x16x144xbf16>
    %22 = vector.shape_cast %21 : vector<1x16x144xbf16> to vector<16x144xbf16>
    %cst = arith.constant dense<0.000000e+00> : vector<16x768xf32>
    %23 = tpu.matmul %22, %20, %cst {dimension_numbers = #tpu.dot_dimension_numbers<[1], [0], [0], [1], [0, 0, 1, 1], [], []>} : vector<16x144xbf16>, vector<144x768xbf16>, vector<16x768xf32> -> vector<16x768xf32>
    %c0_7 = arith.constant 0 : index
    %c0_8 = arith.constant 0 : index
    %c0_9 = arith.constant 0 : index
    %24 = vector.load %arg5[%c0_7, %c0_8, %c0_9] : memref<1x16x1xf32, #tpu.memory_space<vmem>>, vector<1x16x1xf32>
    %25 = vector.shape_cast %24 : vector<1x16x1xf32> to vector<16x1xf32>
    %26 = vector.broadcast %25 : vector<16x1xf32> to vector<16x768xf32>
    %27 = arith.addf %23, %26 : vector<16x768xf32>
    %cst_10 = arith.constant 0.000000e+00 : f32
    %28 = vector.broadcast %cst_10 : f32 to vector<16x768xf32>
    %29 = arith.maximumf %27, %28 : vector<16x768xf32>
    %30 = vector.broadcast %0 : vector<1x768xf32> to vector<16x768xf32>
    %31 = arith.mulf %29, %30 : vector<16x768xf32>
    %c19_i32_11 = arith.constant 19 : i32
    %32 = tpu.dynamic_rotate %31 by %c19_i32_11 dim 1 : vector<16x768xf32>, i32 -> vector<16x768xf32>
    %33 = arith.truncf %32 : vector<16x768xf32> to vector<16x768xbf16>
    %c18_i32_12 = arith.constant 18 : i32
    %34 = tpu.dynamic_rotate %31 by %c18_i32_12 dim 1 : vector<16x768xf32>, i32 -> vector<16x768xf32>
    %35 = arith.truncf %34 : vector<16x768xf32> to vector<16x768xbf16>
    %c17_i32_13 = arith.constant 17 : i32
    %36 = tpu.dynamic_rotate %31 by %c17_i32_13 dim 1 : vector<16x768xf32>, i32 -> vector<16x768xf32>
    %37 = arith.truncf %36 : vector<16x768xf32> to vector<16x768xbf16>
    %c1_i32_14 = arith.constant 1 : i32
    %38 = tpu.dynamic_rotate %31 by %c1_i32_14 dim 1 : vector<16x768xf32>, i32 -> vector<16x768xf32>
    %39 = arith.truncf %38 : vector<16x768xf32> to vector<16x768xbf16>
    %40 = arith.truncf %31 : vector<16x768xf32> to vector<16x768xbf16>
    %c767_i32_15 = arith.constant 767 : i32
    %41 = tpu.dynamic_rotate %31 by %c767_i32_15 dim 1 : vector<16x768xf32>, i32 -> vector<16x768xf32>
    %42 = arith.truncf %41 : vector<16x768xf32> to vector<16x768xbf16>
    %c751_i32_16 = arith.constant 751 : i32
    %43 = tpu.dynamic_rotate %31 by %c751_i32_16 dim 1 : vector<16x768xf32>, i32 -> vector<16x768xf32>
    %44 = arith.truncf %43 : vector<16x768xf32> to vector<16x768xbf16>
    %c750_i32_17 = arith.constant 750 : i32
    %45 = tpu.dynamic_rotate %31 by %c750_i32_17 dim 1 : vector<16x768xf32>, i32 -> vector<16x768xf32>
    %46 = arith.truncf %45 : vector<16x768xf32> to vector<16x768xbf16>
    %c749_i32_18 = arith.constant 749 : i32
    %47 = tpu.dynamic_rotate %31 by %c749_i32_18 dim 1 : vector<16x768xf32>, i32 -> vector<16x768xf32>
    %48 = arith.truncf %47 : vector<16x768xf32> to vector<16x768xbf16>
    %49 = tpu.concatenate %33, %35, %37, %39, %40, %42, %44, %46, %48 in 0 : vector<16x768xbf16>, vector<16x768xbf16>, vector<16x768xbf16>, vector<16x768xbf16>, vector<16x768xbf16>, vector<16x768xbf16>, vector<16x768xbf16>, vector<16x768xbf16>, vector<16x768xbf16> -> vector<144x768xbf16>
    %c0_19 = arith.constant 0 : index
    %c0_20 = arith.constant 0 : index
    %c0_21 = arith.constant 0 : index
    %50 = vector.load %arg6[%c0_19, %c0_20, %c0_21] : memref<1x32x144xbf16, #tpu.memory_space<vmem>>, vector<1x32x144xbf16>
    %51 = vector.shape_cast %50 : vector<1x32x144xbf16> to vector<32x144xbf16>
    %cst_22 = arith.constant dense<0.000000e+00> : vector<32x768xf32>
    %52 = tpu.matmul %51, %49, %cst_22 {dimension_numbers = #tpu.dot_dimension_numbers<[1], [0], [0], [1], [0, 0, 1, 1], [], []>} : vector<32x144xbf16>, vector<144x768xbf16>, vector<32x768xf32> -> vector<32x768xf32>
    %c0_23 = arith.constant 0 : index
    %c0_24 = arith.constant 0 : index
    %c0_25 = arith.constant 0 : index
    %53 = vector.load %arg7[%c0_23, %c0_24, %c0_25] : memref<1x32x1xf32, #tpu.memory_space<vmem>>, vector<1x32x1xf32>
    %54 = vector.shape_cast %53 : vector<1x32x1xf32> to vector<32x1xf32>
    %55 = vector.broadcast %54 : vector<32x1xf32> to vector<32x768xf32>
    %56 = arith.addf %52, %55 : vector<32x768xf32>
    %cst_26 = arith.constant 0.000000e+00 : f32
    %57 = vector.broadcast %cst_26 : f32 to vector<32x768xf32>
    %58 = arith.maximumf %56, %57 : vector<32x768xf32>
    %59 = vector.broadcast %0 : vector<1x768xf32> to vector<32x768xf32>
    %60 = arith.mulf %58, %59 : vector<32x768xf32>
    %c19_i32_27 = arith.constant 19 : i32
    %61 = tpu.dynamic_rotate %60 by %c19_i32_27 dim 1 : vector<32x768xf32>, i32 -> vector<32x768xf32>
    %62 = arith.truncf %61 : vector<32x768xf32> to vector<32x768xbf16>
    %c18_i32_28 = arith.constant 18 : i32
    %63 = tpu.dynamic_rotate %60 by %c18_i32_28 dim 1 : vector<32x768xf32>, i32 -> vector<32x768xf32>
    %64 = arith.truncf %63 : vector<32x768xf32> to vector<32x768xbf16>
    %c17_i32_29 = arith.constant 17 : i32
    %65 = tpu.dynamic_rotate %60 by %c17_i32_29 dim 1 : vector<32x768xf32>, i32 -> vector<32x768xf32>
    %66 = arith.truncf %65 : vector<32x768xf32> to vector<32x768xbf16>
    %c1_i32_30 = arith.constant 1 : i32
    %67 = tpu.dynamic_rotate %60 by %c1_i32_30 dim 1 : vector<32x768xf32>, i32 -> vector<32x768xf32>
    %68 = arith.truncf %67 : vector<32x768xf32> to vector<32x768xbf16>
    %69 = arith.truncf %60 : vector<32x768xf32> to vector<32x768xbf16>
    %c767_i32_31 = arith.constant 767 : i32
    %70 = tpu.dynamic_rotate %60 by %c767_i32_31 dim 1 : vector<32x768xf32>, i32 -> vector<32x768xf32>
    %71 = arith.truncf %70 : vector<32x768xf32> to vector<32x768xbf16>
    %c751_i32_32 = arith.constant 751 : i32
    %72 = tpu.dynamic_rotate %60 by %c751_i32_32 dim 1 : vector<32x768xf32>, i32 -> vector<32x768xf32>
    %73 = arith.truncf %72 : vector<32x768xf32> to vector<32x768xbf16>
    %c750_i32_33 = arith.constant 750 : i32
    %74 = tpu.dynamic_rotate %60 by %c750_i32_33 dim 1 : vector<32x768xf32>, i32 -> vector<32x768xf32>
    %75 = arith.truncf %74 : vector<32x768xf32> to vector<32x768xbf16>
    %c749_i32_34 = arith.constant 749 : i32
    %76 = tpu.dynamic_rotate %60 by %c749_i32_34 dim 1 : vector<32x768xf32>, i32 -> vector<32x768xf32>
    %77 = arith.truncf %76 : vector<32x768xf32> to vector<32x768xbf16>
    %78 = tpu.concatenate %62, %64, %66, %68, %69, %71, %73, %75, %77 in 0 : vector<32x768xbf16>, vector<32x768xbf16>, vector<32x768xbf16>, vector<32x768xbf16>, vector<32x768xbf16>, vector<32x768xbf16>, vector<32x768xbf16>, vector<32x768xbf16>, vector<32x768xbf16> -> vector<288x768xbf16>
    %c0_35 = arith.constant 0 : index
    %c0_36 = arith.constant 0 : index
    %c0_37 = arith.constant 0 : index
    %79 = vector.load %arg8[%c0_35, %c0_36, %c0_37] : memref<1x64x288xbf16, #tpu.memory_space<vmem>>, vector<1x64x288xbf16>
    %80 = vector.shape_cast %79 : vector<1x64x288xbf16> to vector<64x288xbf16>
    %cst_38 = arith.constant dense<0.000000e+00> : vector<64x768xf32>
    %81 = tpu.matmul %80, %78, %cst_38 {dimension_numbers = #tpu.dot_dimension_numbers<[1], [0], [0], [1], [0, 0, 1, 1], [], []>} : vector<64x288xbf16>, vector<288x768xbf16>, vector<64x768xf32> -> vector<64x768xf32>
    %c0_39 = arith.constant 0 : index
    %c0_40 = arith.constant 0 : index
    %c0_41 = arith.constant 0 : index
    %82 = vector.load %arg9[%c0_39, %c0_40, %c0_41] : memref<1x64x1xf32, #tpu.memory_space<vmem>>, vector<1x64x1xf32>
    %83 = vector.shape_cast %82 : vector<1x64x1xf32> to vector<64x1xf32>
    %84 = vector.broadcast %83 : vector<64x1xf32> to vector<64x768xf32>
    %85 = arith.addf %81, %84 : vector<64x768xf32>
    %cst_42 = arith.constant 0.000000e+00 : f32
    %86 = vector.broadcast %cst_42 : f32 to vector<64x768xf32>
    %87 = arith.maximumf %85, %86 : vector<64x768xf32>
    %88 = vector.broadcast %0 : vector<1x768xf32> to vector<64x768xf32>
    %89 = arith.mulf %87, %88 : vector<64x768xf32>
    %c19_i32_43 = arith.constant 19 : i32
    %90 = tpu.dynamic_rotate %89 by %c19_i32_43 dim 1 : vector<64x768xf32>, i32 -> vector<64x768xf32>
    %91 = arith.truncf %90 : vector<64x768xf32> to vector<64x768xbf16>
    %c18_i32_44 = arith.constant 18 : i32
    %92 = tpu.dynamic_rotate %89 by %c18_i32_44 dim 1 : vector<64x768xf32>, i32 -> vector<64x768xf32>
    %93 = arith.truncf %92 : vector<64x768xf32> to vector<64x768xbf16>
    %c17_i32_45 = arith.constant 17 : i32
    %94 = tpu.dynamic_rotate %89 by %c17_i32_45 dim 1 : vector<64x768xf32>, i32 -> vector<64x768xf32>
    %95 = arith.truncf %94 : vector<64x768xf32> to vector<64x768xbf16>
    %c1_i32_46 = arith.constant 1 : i32
    %96 = tpu.dynamic_rotate %89 by %c1_i32_46 dim 1 : vector<64x768xf32>, i32 -> vector<64x768xf32>
    %97 = arith.truncf %96 : vector<64x768xf32> to vector<64x768xbf16>
    %98 = arith.truncf %89 : vector<64x768xf32> to vector<64x768xbf16>
    %c767_i32_47 = arith.constant 767 : i32
    %99 = tpu.dynamic_rotate %89 by %c767_i32_47 dim 1 : vector<64x768xf32>, i32 -> vector<64x768xf32>
    %100 = arith.truncf %99 : vector<64x768xf32> to vector<64x768xbf16>
    %c751_i32_48 = arith.constant 751 : i32
    %101 = tpu.dynamic_rotate %89 by %c751_i32_48 dim 1 : vector<64x768xf32>, i32 -> vector<64x768xf32>
    %102 = arith.truncf %101 : vector<64x768xf32> to vector<64x768xbf16>
    %c750_i32_49 = arith.constant 750 : i32
    %103 = tpu.dynamic_rotate %89 by %c750_i32_49 dim 1 : vector<64x768xf32>, i32 -> vector<64x768xf32>
    %104 = arith.truncf %103 : vector<64x768xf32> to vector<64x768xbf16>
    %c749_i32_50 = arith.constant 749 : i32
    %105 = tpu.dynamic_rotate %89 by %c749_i32_50 dim 1 : vector<64x768xf32>, i32 -> vector<64x768xf32>
    %106 = arith.truncf %105 : vector<64x768xf32> to vector<64x768xbf16>
    %107 = tpu.concatenate %91, %93, %95, %97, %98, %100, %102, %104, %106 in 0 : vector<64x768xbf16>, vector<64x768xbf16>, vector<64x768xbf16>, vector<64x768xbf16>, vector<64x768xbf16>, vector<64x768xbf16>, vector<64x768xbf16>, vector<64x768xbf16>, vector<64x768xbf16> -> vector<576x768xbf16>
    %c0_51 = arith.constant 0 : index
    %c0_52 = arith.constant 0 : index
    %c0_53 = arith.constant 0 : index
    %108 = vector.load %arg10[%c0_51, %c0_52, %c0_53] : memref<1x32x576xbf16, #tpu.memory_space<vmem>>, vector<1x32x576xbf16>
    %109 = vector.shape_cast %108 : vector<1x32x576xbf16> to vector<32x576xbf16>
    %cst_54 = arith.constant dense<0.000000e+00> : vector<32x768xf32>
    %110 = tpu.matmul %109, %107, %cst_54 {dimension_numbers = #tpu.dot_dimension_numbers<[1], [0], [0], [1], [0, 0, 1, 1], [], []>} : vector<32x576xbf16>, vector<576x768xbf16>, vector<32x768xf32> -> vector<32x768xf32>
    %c0_55 = arith.constant 0 : index
    %c0_56 = arith.constant 0 : index
    %c0_57 = arith.constant 0 : index
    %111 = vector.load %arg11[%c0_55, %c0_56, %c0_57] : memref<1x32x1xf32, #tpu.memory_space<vmem>>, vector<1x32x1xf32>
    %112 = vector.shape_cast %111 : vector<1x32x1xf32> to vector<32x1xf32>
    %113 = vector.broadcast %112 : vector<32x1xf32> to vector<32x768xf32>
    %114 = arith.addf %110, %113 : vector<32x768xf32>
    %cst_58 = arith.constant 0.000000e+00 : f32
    %115 = vector.broadcast %cst_58 : f32 to vector<32x768xf32>
    %116 = arith.maximumf %114, %115 : vector<32x768xf32>
    %117 = vector.broadcast %0 : vector<1x768xf32> to vector<32x768xf32>
    %118 = arith.mulf %116, %117 : vector<32x768xf32>
    %c19_i32_59 = arith.constant 19 : i32
    %119 = tpu.dynamic_rotate %118 by %c19_i32_59 dim 1 : vector<32x768xf32>, i32 -> vector<32x768xf32>
    %120 = arith.truncf %119 : vector<32x768xf32> to vector<32x768xbf16>
    %c18_i32_60 = arith.constant 18 : i32
    %121 = tpu.dynamic_rotate %118 by %c18_i32_60 dim 1 : vector<32x768xf32>, i32 -> vector<32x768xf32>
    %122 = arith.truncf %121 : vector<32x768xf32> to vector<32x768xbf16>
    %c17_i32_61 = arith.constant 17 : i32
    %123 = tpu.dynamic_rotate %118 by %c17_i32_61 dim 1 : vector<32x768xf32>, i32 -> vector<32x768xf32>
    %124 = arith.truncf %123 : vector<32x768xf32> to vector<32x768xbf16>
    %c1_i32_62 = arith.constant 1 : i32
    %125 = tpu.dynamic_rotate %118 by %c1_i32_62 dim 1 : vector<32x768xf32>, i32 -> vector<32x768xf32>
    %126 = arith.truncf %125 : vector<32x768xf32> to vector<32x768xbf16>
    %127 = arith.truncf %118 : vector<32x768xf32> to vector<32x768xbf16>
    %c767_i32_63 = arith.constant 767 : i32
    %128 = tpu.dynamic_rotate %118 by %c767_i32_63 dim 1 : vector<32x768xf32>, i32 -> vector<32x768xf32>
    %129 = arith.truncf %128 : vector<32x768xf32> to vector<32x768xbf16>
    %c751_i32_64 = arith.constant 751 : i32
    %130 = tpu.dynamic_rotate %118 by %c751_i32_64 dim 1 : vector<32x768xf32>, i32 -> vector<32x768xf32>
    %131 = arith.truncf %130 : vector<32x768xf32> to vector<32x768xbf16>
    %c750_i32_65 = arith.constant 750 : i32
    %132 = tpu.dynamic_rotate %118 by %c750_i32_65 dim 1 : vector<32x768xf32>, i32 -> vector<32x768xf32>
    %133 = arith.truncf %132 : vector<32x768xf32> to vector<32x768xbf16>
    %c749_i32_66 = arith.constant 749 : i32
    %134 = tpu.dynamic_rotate %118 by %c749_i32_66 dim 1 : vector<32x768xf32>, i32 -> vector<32x768xf32>
    %135 = arith.truncf %134 : vector<32x768xf32> to vector<32x768xbf16>
    %136 = tpu.concatenate %120, %122, %124, %126, %127, %129, %131, %133, %135 in 0 : vector<32x768xbf16>, vector<32x768xbf16>, vector<32x768xbf16>, vector<32x768xbf16>, vector<32x768xbf16>, vector<32x768xbf16>, vector<32x768xbf16>, vector<32x768xbf16>, vector<32x768xbf16> -> vector<288x768xbf16>
    %c0_67 = arith.constant 0 : index
    %c0_68 = arith.constant 0 : index
    %c0_69 = arith.constant 0 : index
    %137 = vector.load %arg12[%c0_67, %c0_68, %c0_69] : memref<1x8x288xbf16, #tpu.memory_space<vmem>>, vector<1x8x288xbf16>
    %138 = vector.shape_cast %137 : vector<1x8x288xbf16> to vector<8x288xbf16>
    %cst_70 = arith.constant dense<0.000000e+00> : vector<8x768xf32>
    %139 = tpu.matmul %138, %136, %cst_70 {dimension_numbers = #tpu.dot_dimension_numbers<[1], [0], [0], [1], [0, 0, 1, 1], [], []>} : vector<8x288xbf16>, vector<288x768xbf16>, vector<8x768xf32> -> vector<8x768xf32>
    %c0_71 = arith.constant 0 : index
    %c0_72 = arith.constant 0 : index
    %c0_73 = arith.constant 0 : index
    %140 = vector.load %arg13[%c0_71, %c0_72, %c0_73] : memref<1x8x1xf32, #tpu.memory_space<vmem>>, vector<1x8x1xf32>
    %141 = vector.shape_cast %140 : vector<1x8x1xf32> to vector<8x1xf32>
    %142 = vector.broadcast %141 : vector<8x1xf32> to vector<8x768xf32>
    %143 = arith.addf %139, %142 : vector<8x768xf32>
    %c2_i32 = arith.constant 2 : i32
    %144 = arith.cmpi eq, %arg0, %c2_i32 : i32
    %145 = arith.extui %144 : i1 to i32
    %c0_i32 = arith.constant 0 : i32
    %146 = arith.cmpi ne, %145, %c0_i32 : i32
    scf.if %146 {
      %150 = math.tanh %143 : vector<8x768xf32>
      %c0_75 = arith.constant 0 : index
      %c0_76 = arith.constant 0 : index
      %c0_77 = arith.constant 0 : index
      %c0_78 = arith.constant 0 : index
      %151 = vector.load %arg14[%c0_75, %c0_76, %c0_77, %c0_78] : memref<1x1x8x768xf32, #tpu.memory_space<vmem>>, vector<1x1x8x768xf32>
      %152 = vector.shape_cast %151 : vector<1x1x8x768xf32> to vector<8x768xf32>
      %153 = vector.shape_cast %150 : vector<8x768xf32> to vector<1x1x8x768xf32>
      tpu.vector_store %arg14[%c0_75, %c0_76, %c0_77, %c0_78], %153 {strides = array<i32>} : memref<1x1x8x768xf32, #tpu.memory_space<vmem>>, vector<1x1x8x768xf32>,
    } else {
    }
    %true = arith.constant true
    %147 = arith.xori %144, %true : i1
    %148 = arith.extui %147 : i1 to i32
    %c0_i32_74 = arith.constant 0 : i32
    %149 = arith.cmpi ne, %148, %c0_i32_74 : i32
    scf.if %149 {
      %150 = arith.negf %143 : vector<8x768xf32>
      %151 = math.exp %150 : vector<8x768xf32>
      %cst_75 = arith.constant 1.000000e+00 : f32
      %152 = vector.broadcast %cst_75 : f32 to vector<8x768xf32>
      %153 = arith.addf %152, %151 : vector<8x768xf32>
      %154 = arith.divf %152, %153 : vector<8x768xf32>
      %c0_76 = arith.constant 0 : index
      %c0_77 = arith.constant 0 : index
      %c0_78 = arith.constant 0 : index
      %c0_79 = arith.constant 0 : index
      %155 = vector.load %arg14[%c0_76, %c0_77, %c0_78, %c0_79] : memref<1x1x8x768xf32, #tpu.memory_space<vmem>>, vector<1x1x8x768xf32>
      %156 = vector.shape_cast %155 : vector<1x1x8x768xf32> to vector<8x768xf32>
      %157 = vector.shape_cast %154 : vector<8x768xf32> to vector<1x1x8x768xf32>
      tpu.vector_store %arg14[%c0_76, %c0_77, %c0_78, %c0_79], %157 {strides = array<i32>} : memref<1x1x8x768xf32, #tpu.memory_space<vmem>>, vector<1x1x8x768xf32>,
    } else {
    }
    return
  }
  func.func @transform_0(%arg0: i32, %arg1: i32) -> (i32, i32) {
    %c0_i32 = arith.constant 0 : i32
    %c0_i32_0 = arith.constant 0 : i32
    %c0_i32_1 = arith.constant 0 : i32
    return %c0_i32, %c0_i32_0 : i32, i32
  }
  func.func @transform_1(%arg0: i32, %arg1: i32) -> (i32, i32, i32) {
    %c0_i32 = arith.constant 0 : i32
    %c0_i32_0 = arith.constant 0 : i32
    %c0_i32_1 = arith.constant 0 : i32
    return %arg1, %c0_i32, %c0_i32_0 : i32, i32, i32
  }
  func.func @transform_2(%arg0: i32, %arg1: i32) -> (i32, i32, i32) {
    %c0_i32 = arith.constant 0 : i32
    %c0_i32_0 = arith.constant 0 : i32
    %c0_i32_1 = arith.constant 0 : i32
    return %arg0, %c0_i32, %c0_i32_0 : i32, i32, i32
  }
  func.func @transform_3(%arg0: i32, %arg1: i32) -> (i32, i32, i32) {
    %c0_i32 = arith.constant 0 : i32
    %c0_i32_0 = arith.constant 0 : i32
    %c0_i32_1 = arith.constant 0 : i32
    return %arg0, %c0_i32, %c0_i32_0 : i32, i32, i32
  }
  func.func @transform_4(%arg0: i32, %arg1: i32) -> (i32, i32, i32) {
    %c0_i32 = arith.constant 0 : i32
    %c0_i32_0 = arith.constant 0 : i32
    %c0_i32_1 = arith.constant 0 : i32
    return %arg0, %c0_i32, %c0_i32_0 : i32, i32, i32
  }
  func.func @transform_5(%arg0: i32, %arg1: i32) -> (i32, i32, i32) {
    %c0_i32 = arith.constant 0 : i32
    %c0_i32_0 = arith.constant 0 : i32
    %c0_i32_1 = arith.constant 0 : i32
    return %arg0, %c0_i32, %c0_i32_0 : i32, i32, i32
  }
  func.func @transform_6(%arg0: i32, %arg1: i32) -> (i32, i32, i32) {
    %c0_i32 = arith.constant 0 : i32
    %c0_i32_0 = arith.constant 0 : i32
    %c0_i32_1 = arith.constant 0 : i32
    return %arg0, %c0_i32, %c0_i32_0 : i32, i32, i32
  }
  func.func @transform_7(%arg0: i32, %arg1: i32) -> (i32, i32, i32) {
    %c0_i32 = arith.constant 0 : i32
    %c0_i32_0 = arith.constant 0 : i32
    %c0_i32_1 = arith.constant 0 : i32
    return %arg0, %c0_i32, %c0_i32_0 : i32, i32, i32
  }
  func.func @transform_8(%arg0: i32, %arg1: i32) -> (i32, i32, i32) {
    %c0_i32 = arith.constant 0 : i32
    %c0_i32_0 = arith.constant 0 : i32
    %c0_i32_1 = arith.constant 0 : i32
    return %arg0, %c0_i32, %c0_i32_0 : i32, i32, i32
  }
  func.func @transform_9(%arg0: i32, %arg1: i32) -> (i32, i32, i32) {
    %c0_i32 = arith.constant 0 : i32
    %c0_i32_0 = arith.constant 0 : i32
    %c0_i32_1 = arith.constant 0 : i32
    return %arg0, %c0_i32, %c0_i32_0 : i32, i32, i32
  }
  func.func @transform_10(%arg0: i32, %arg1: i32) -> (i32, i32, i32) {
    %c0_i32 = arith.constant 0 : i32
    %c0_i32_0 = arith.constant 0 : i32
    %c0_i32_1 = arith.constant 0 : i32
    return %arg0, %c0_i32, %c0_i32_0 : i32, i32, i32
  }
  func.func @transform_11(%arg0: i32, %arg1: i32) -> (i32, i32, i32) {
    %c0_i32 = arith.constant 0 : i32
    %c0_i32_0 = arith.constant 0 : i32
    %c0_i32_1 = arith.constant 0 : i32
    return %arg0, %c0_i32, %c0_i32_0 : i32, i32, i32
  }
  func.func @transform_12(%arg0: i32, %arg1: i32) -> (i32, i32, i32, i32) {
    %c0_i32 = arith.constant 0 : i32
    %c0_i32_0 = arith.constant 0 : i32
    %c0_i32_1 = arith.constant 0 : i32
    return %arg0, %arg1, %c0_i32, %c0_i32_0 : i32, i32, i32, i32
  }
}

</mosaic_0001>

<llo_original>
// kernel: fineture_lumin_forward.1
$region0: #{fineture_lumin_forward.1}
  #allocation0 [shape = 'u32[]', space=smem, size = 0x4, offset = 0x4, fixed_abs, tag = 'smem constant byte address 0x4 - core index']
  #allocation1 [shape = 'u32[144,128]{1,0:T(1,128)}', space=vmem, size = 0x12000, scoped, tag = 'internal scratch']
  %s0 = inlined_call_operand.vmem [shape: f32[1,768], index: 0, kind: input, shape index: {}]
  %s1 = inlined_call_operand.vmem [shape: f32[1,16,768], index: 1, kind: input, shape index: {}]
  %s2 = inlined_call_operand.vmem [shape: bf16[3,16,144], index: 2, kind: input, shape index: {}]
  %s3 = inlined_call_operand.vmem [shape: f32[3,16,1], index: 3, kind: input, shape index: {}]
  %s4 = inlined_call_operand.vmem [shape: bf16[3,32,144], index: 4, kind: input, shape index: {}]
  %s5 = inlined_call_operand.vmem [shape: f32[3,32,1], index: 5, kind: input, shape index: {}]
  %s6 = inlined_call_operand.vmem [shape: bf16[3,64,288], index: 6, kind: input, shape index: {}]
  %s7 = inlined_call_operand.vmem [shape: f32[3,64,1], index: 7, kind: input, shape index: {}]
  %s8 = inlined_call_operand.vmem [shape: bf16[3,32,576], index: 8, kind: input, shape index: {}]
  %s9 = inlined_call_operand.vmem [shape: f32[3,32,1], index: 9, kind: input, shape index: {}]
  %s10 = inlined_call_operand.vmem [shape: bf16[3,8,288], index: 10, kind: input, shape index: {}]
  %s11 = inlined_call_operand.vmem [shape: f32[3,8,1], index: 11, kind: input, shape index: {}]
  %s12 = inlined_call_operand.vmem [shape: f32[3,1,8,768], index: 12, kind: output, shape index: {}]
  %s13 = sld [smem:[#allocation0]]
  $region89: #{fineture_lumin_forward.1} parent=0
    _
  %s15 = ssub.s32 1, %s13
  %s16 = scalar_select 0, %s15, %s13
  loop: start=0, step=1, limit=5
  $region2: #{fineture_lumin_forward.1} parent=0 // loop_pre_header
    _
  $region3: #{fineture_lumin_forward.1} parent=0 // loop_header
    %s18 = sphi 0, %s22
    %p19 = scmp.ge.s32.totalorder %s18, 5
    %s25 = sphi 0, %s37
    %s26 = sphi 0, %s33
    %s27 = sphi 0, %s25
    %s28 = sphi 0, %s26
    %s29 = sphi 0, %s27
    %s30 = sphi 0, %s28
    %s38 = sphi 0, %s38
    %s40 = sphi 0, %s38
    %s41 = sphi 0, %s40
    %s55 = sphi 0, %s41
    %s61 = sphi 0, %s63
    %s64 = sphi 0, %s61
    %s65 = sphi 0, %s64
    %s81 = sphi 0, %s65
    %s87 = sphi 0, %s89
    %s90 = sphi 0, %s87
    %s91 = sphi 0, %s90
    %s107 = sphi 0, %s91
    %s113 = sphi 0, %s115
    %s116 = sphi 0, %s113
    %s117 = sphi 0, %s116
    %s133 = sphi 0, %s117
    %s139 = sphi 0, %s141
    %s142 = sphi 0, %s139
    %s143 = sphi 0, %s142
    %s159 = sphi 0, %s143
    %s165 = sphi 0, %s167
    %s168 = sphi 0, %s165
    %s169 = sphi 0, %s168
    %s185 = sphi 0, %s169
    %s191 = sphi 0, %s193
    %s194 = sphi 0, %s191
    %s195 = sphi 0, %s194
    %s211 = sphi 0, %s195
    %s217 = sphi 0, %s219
    %s220 = sphi 0, %s217
    %s221 = sphi 0, %s220
    %s237 = sphi 0, %s221
    %s243 = sphi 0, %s245
    %s246 = sphi 0, %s243
    %s247 = sphi 0, %s246
    %s263 = sphi 0, %s247
    %s269 = sphi 0, %s271
    %s272 = sphi 0, %s269
    %s273 = sphi 0, %s272
    %s289 = sphi 0, %s273
    %s295 = sphi 0, %s297
    %s298 = sphi 0, %s295
    %s299 = sphi 0, %s298
    %s315 = sphi 0, %s299
    %s321 = sphi 0, %s323
    %s324 = sphi 0, %s321
    %s325 = sphi 0, %s324
    %s341 = sphi 0, %s325
    %s349 = sphi 0, %s351
    %s352 = sphi 0, %s349
    %s353 = sphi 0, %s352
    %s369 = sphi 0, %s353
  $region4: #{fineture_lumin_forward.1} parent=0 // loop_header_branch
    %21 = sbr.rel (%p19) target = $region8
  $region5: #{fineture_lumin_forward.1} parent=0 // loop_body
    %s23 = ssub.s32 %s18, 1
    %s24 = ssub.s32 %s18, 2
    %s31 = sadd.s32 1, %s26
    %p32 = scmp.ge.s32.totalorder %s31, 1
    %s33 = scalar_select %p32, 0, %s31
    %s34 = sadd.s32 1, %s25
    %s35 = scalar_select %p32, %s34, %s25
    %p36 = scmp.ge.s32.totalorder %s35, 3
    %s37 = scalar_select %p36, 0, %s35
    %s39 = sadd.s32 %s38, 1
    %p42 = scmp.eq.s32.totalorder %s18, 2
    %p43 = scmp.ne.s32.totalorder %s38, %s40
    %p44 = scmp.eq.s32.totalorder %s18, 0
    %p45 = por %p43, %p44
    %p46 = scmp.ne.s32.totalorder %s38, %s40
    %p47 = scmp.eq.s32.totalorder %s23, 2
    %p48 = por %p46, %p47
    %p49 = scmp.ne.s32.totalorder %s40, %s41
    %p50 = scmp.eq.s32.totalorder %s23, 0
    %p51 = por %p49, %p50
    %p52 = scmp.ne.s32.totalorder %s40, %s41
    %p53 = scmp.eq.s32.totalorder %s24, 2
    %p54 = por %p52, %p53
    %p56 = scmp.ne.s32.totalorder %s41, %s55
    %p57 = scmp.eq.s32.totalorder %s24, 0
    %p58 = por %p56, %p57
    %s59 = ssub.s32 %s26, %s33
    %p60 = scmp.eq.s32.totalorder %s59, 0
    %s62 = sadd.s32 %s61, 1
    %s63 = scalar_select %p60, %s61, %s62
    %p66 = pneg %p60
    %p67 = scmp.eq.s32.totalorder %s18, 2
    %p68 = por %p66, %p67
    %p69 = scmp.ne.s32.totalorder %s61, %s64
    %p70 = scmp.eq.s32.totalorder %s18, 0
    %p71 = por %p69, %p70
    %p72 = scmp.ne.s32.totalorder %s61, %s64
    %p73 = scmp.eq.s32.totalorder %s23, 2
    %p74 = por %p72, %p73
    %p75 = scmp.ne.s32.totalorder %s64, %s65
    %p76 = scmp.eq.s32.totalorder %s23, 0
    %p77 = por %p75, %p76
    %p78 = scmp.ne.s32.totalorder %s64, %s65
    %p79 = scmp.eq.s32.totalorder %s24, 2
    %p80 = por %p78, %p79
    %p82 = scmp.ne.s32.totalorder %s65, %s81
    %p83 = scmp.eq.s32.totalorder %s24, 0
    %p84 = por %p82, %p83
    %s85 = ssub.s32 %s25, %s37
    %p86 = scmp.eq.s32.totalorder %s85, 0
    %s88 = sadd.s32 %s87, 1
    %s89 = scalar_select %p86, %s87, %s88
    %p92 = pneg %p86
    %p93 = scmp.eq.s32.totalorder %s18, 2
    %p94 = por %p92, %p93
    %p95 = scmp.ne.s32.totalorder %s87, %s90
    %p96 = scmp.eq.s32.totalorder %s18, 0
    %p97 = por %p95, %p96
    %p98 = scmp.ne.s32.totalorder %s87, %s90
    %p99 = scmp.eq.s32.totalorder %s23, 2
    %p100 = por %p98, %p99
    %p101 = scmp.ne.s32.totalorder %s90, %s91
    %p102 = scmp.eq.s32.totalorder %s23, 0
    %p103 = por %p101, %p102
    %p104 = scmp.ne.s32.totalorder %s90, %s91
    %p105 = scmp.eq.s32.totalorder %s24, 2
    %p106 = por %p104, %p105
    %p108 = scmp.ne.s32.totalorder %s91, %s107
    %p109 = scmp.eq.s32.totalorder %s24, 0
    %p110 = por %p108, %p109
    %s111 = ssub.s32 %s25, %s37
    %p112 = scmp.eq.s32.totalorder %s111, 0
    %s114 = sadd.s32 %s113, 1
    %s115 = scalar_select %p112, %s113, %s114
    %p118 = pneg %p112
    %p119 = scmp.eq.s32.totalorder %s18, 2
    %p120 = por %p118, %p119
    %p121 = scmp.ne.s32.totalorder %s113, %s116
    %p122 = scmp.eq.s32.totalorder %s18, 0
    %p123 = por %p121, %p122
    %p124 = scmp.ne.s32.totalorder %s113, %s116
    %p125 = scmp.eq.s32.totalorder %s23, 2
    %p126 = por %p124, %p125
    %p127 = scmp.ne.s32.totalorder %s116, %s117
    %p128 = scmp.eq.s32.totalorder %s23, 0
    %p129 = por %p127, %p128
    %p130 = scmp.ne.s32.totalorder %s116, %s117
    %p131 = scmp.eq.s32.totalorder %s24, 2
    %p132 = por %p130, %p131
    %p134 = scmp.ne.s32.totalorder %s117, %s133
    %p135 = scmp.eq.s32.totalorder %s24, 0
    %p136 = por %p134, %p135
    %s137 = ssub.s32 %s25, %s37
    %p138 = scmp.eq.s32.totalorder %s137, 0
    %s140 = sadd.s32 %s139, 1
    %s141 = scalar_select %p138, %s139, %s140
    %p144 = pneg %p138
    %p145 = scmp.eq.s32.totalorder %s18, 2
    %p146 = por %p144, %p145
    %p147 = scmp.ne.s32.totalorder %s139, %s142
    %p148 = scmp.eq.s32.totalorder %s18, 0
    %p149 = por %p147, %p148
    %p150 = scmp.ne.s32.totalorder %s139, %s142
    %p151 = scmp.eq.s32.totalorder %s23, 2
    %p152 = por %p150, %p151
    %p153 = scmp.ne.s32.totalorder %s142, %s143
    %p154 = scmp.eq.s32.totalorder %s23, 0
    %p155 = por %p153, %p154
    %p156 = scmp.ne.s32.totalorder %s142, %s143
    %p157 = scmp.eq.s32.totalorder %s24, 2
    %p158 = por %p156, %p157
    %p160 = scmp.ne.s32.totalorder %s143, %s159
    %p161 = scmp.eq.s32.totalorder %s24, 0
    %p162 = por %p160, %p161
    %s163 = ssub.s32 %s25, %s37
    %p164 = scmp.eq.s32.totalorder %s163, 0
    %s166 = sadd.s32 %s165, 1
    %s167 = scalar_select %p164, %s165, %s166
    %p170 = pneg %p164
    %p171 = scmp.eq.s32.totalorder %s18, 2
    %p172 = por %p170, %p171
    %p173 = scmp.ne.s32.totalorder %s165, %s168
    %p174 = scmp.eq.s32.totalorder %s18, 0
    %p175 = por %p173, %p174
    %p176 = scmp.ne.s32.totalorder %s165, %s168
    %p177 = scmp.eq.s32.totalorder %s23, 2
    %p178 = por %p176, %p177
    %p179 = scmp.ne.s32.totalorder %s168, %s169
    %p180 = scmp.eq.s32.totalorder %s23, 0
    %p181 = por %p179, %p180
    %p182 = scmp.ne.s32.totalorder %s168, %s169
    %p183 = scmp.eq.s32.totalorder %s24, 2
    %p184 = por %p182, %p183
    %p186 = scmp.ne.s32.totalorder %s169, %s185
    %p187 = scmp.eq.s32.totalorder %s24, 0
    %p188 = por %p186, %p187
    %s189 = ssub.s32 %s25, %s37
    %p190 = scmp.eq.s32.totalorder %s189, 0
    %s192 = sadd.s32 %s191, 1
    %s193 = scalar_select %p190, %s191, %s192
    %p196 = pneg %p190
    %p197 = scmp.eq.s32.totalorder %s18, 2
    %p198 = por %p196, %p197
    %p199 = scmp.ne.s32.totalorder %s191, %s194
    %p200 = scmp.eq.s32.totalorder %s18, 0
    %p201 = por %p199, %p200
    %p202 = scmp.ne.s32.totalorder %s191, %s194
    %p203 = scmp.eq.s32.totalorder %s23, 2
    %p204 = por %p202, %p203
    %p205 = scmp.ne.s32.totalorder %s194, %s195
    %p206 = scmp.eq.s32.totalorder %s23, 0
    %p207 = por %p205, %p206
    %p208 = scmp.ne.s32.totalorder %s194, %s195
    %p209 = scmp.eq.s32.totalorder %s24, 2
    %p210 = por %p208, %p209
    %p212 = scmp.ne.s32.totalorder %s195, %s211
    %p213 = scmp.eq.s32.totalorder %s24, 0
    %p214 = por %p212, %p213
    %s215 = ssub.s32 %s25, %s37
    %p216 = scmp.eq.s32.totalorder %s215, 0
    %s218 = sadd.s32 %s217, 1
    %s219 = scalar_select %p216, %s217, %s218
    %p222 = pneg %p216
    %p223 = scmp.eq.s32.totalorder %s18, 2
    %p224 = por %p222, %p223
    %p225 = scmp.ne.s32.totalorder %s217, %s220
    %p226 = scmp.eq.s32.totalorder %s18, 0
    %p227 = por %p225, %p226
    %p228 = scmp.ne.s32.totalorder %s217, %s220
    %p229 = scmp.eq.s32.totalorder %s23, 2
    %p230 = por %p228, %p229
    %p231 = scmp.ne.s32.totalorder %s220, %s221
    %p232 = scmp.eq.s32.totalorder %s23, 0
    %p233 = por %p231, %p232
    %p234 = scmp.ne.s32.totalorder %s220, %s221
    %p235 = scmp.eq.s32.totalorder %s24, 2
    %p236 = por %p234, %p235
    %p238 = scmp.ne.s32.totalorder %s221, %s237
    %p239 = scmp.eq.s32.totalorder %s24, 0
    %p240 = por %p238, %p239
    %s241 = ssub.s32 %s25, %s37
    %p242 = scmp.eq.s32.totalorder %s241, 0
    %s244 = sadd.s32 %s243, 1
    %s245 = scalar_select %p242, %s243, %s244
    %p248 = pneg %p242
    %p249 = scmp.eq.s32.totalorder %s18, 2
    %p250 = por %p248, %p249
    %p251 = scmp.ne.s32.totalorder %s243, %s246
    %p252 = scmp.eq.s32.totalorder %s18, 0
    %p253 = por %p251, %p252
    %p254 = scmp.ne.s32.totalorder %s243, %s246
    %p255 = scmp.eq.s32.totalorder %s23, 2
    %p256 = por %p254, %p255
    %p257 = scmp.ne.s32.totalorder %s246, %s247
    %p258 = scmp.eq.s32.totalorder %s23, 0
    %p259 = por %p257, %p258
    %p260 = scmp.ne.s32.totalorder %s246, %s247
    %p261 = scmp.eq.s32.totalorder %s24, 2
    %p262 = por %p260, %p261
    %p264 = scmp.ne.s32.totalorder %s247, %s263
    %p265 = scmp.eq.s32.totalorder %s24, 0
    %p266 = por %p264, %p265
    %s267 = ssub.s32 %s25, %s37
    %p268 = scmp.eq.s32.totalorder %s267, 0
    %s270 = sadd.s32 %s269, 1
    %s271 = scalar_select %p268, %s269, %s270
    %p274 = pneg %p268
    %p275 = scmp.eq.s32.totalorder %s18, 2
    %p276 = por %p274, %p275
    %p277 = scmp.ne.s32.totalorder %s269, %s272
    %p278 = scmp.eq.s32.totalorder %s18, 0
    %p279 = por %p277, %p278
    %p280 = scmp.ne.s32.totalorder %s269, %s272
    %p281 = scmp.eq.s32.totalorder %s23, 2
    %p282 = por %p280, %p281
    %p283 = scmp.ne.s32.totalorder %s272, %s273
    %p284 = scmp.eq.s32.totalorder %s23, 0
    %p285 = por %p283, %p284
    %p286 = scmp.ne.s32.totalorder %s272, %s273
    %p287 = scmp.eq.s32.totalorder %s24, 2
    %p288 = por %p286, %p287
    %p290 = scmp.ne.s32.totalorder %s273, %s289
    %p291 = scmp.eq.s32.totalorder %s24, 0
    %p292 = por %p290, %p291
    %s293 = ssub.s32 %s25, %s37
    %p294 = scmp.eq.s32.totalorder %s293, 0
    %s296 = sadd.s32 %s295, 1
    %s297 = scalar_select %p294, %s295, %s296
    %p300 = pneg %p294
    %p301 = scmp.eq.s32.totalorder %s18, 2
    %p302 = por %p300, %p301
    %p303 = scmp.ne.s32.totalorder %s295, %s298
    %p304 = scmp.eq.s32.totalorder %s18, 0
    %p305 = por %p303, %p304
    %p306 = scmp.ne.s32.totalorder %s295, %s298
    %p307 = scmp.eq.s32.totalorder %s23, 2
    %p308 = por %p306, %p307
    %p309 = scmp.ne.s32.totalorder %s298, %s299
    %p310 = scmp.eq.s32.totalorder %s23, 0
    %p311 = por %p309, %p310
    %p312 = scmp.ne.s32.totalorder %s298, %s299
    %p313 = scmp.eq.s32.totalorder %s24, 2
    %p314 = por %p312, %p313
    %p316 = scmp.ne.s32.totalorder %s299, %s315
    %p317 = scmp.eq.s32.totalorder %s24, 0
    %p318 = por %p316, %p317
    %s319 = ssub.s32 %s25, %s37
    %p320 = scmp.eq.s32.totalorder %s319, 0
    %s322 = sadd.s32 %s321, 1
    %s323 = scalar_select %p320, %s321, %s322
    %p326 = pneg %p320
    %p327 = scmp.eq.s32.totalorder %s18, 2
    %p328 = por %p326, %p327
    %p329 = scmp.ne.s32.totalorder %s321, %s324
    %p330 = scmp.eq.s32.totalorder %s18, 0
    %p331 = por %p329, %p330
    %p332 = scmp.ne.s32.totalorder %s321, %s324
    %p333 = scmp.eq.s32.totalorder %s23, 2
    %p334 = por %p332, %p333
    %p335 = scmp.ne.s32.totalorder %s324, %s325
    %p336 = scmp.eq.s32.totalorder %s23, 0
    %p337 = por %p335, %p336
    %p338 = scmp.ne.s32.totalorder %s324, %s325
    %p339 = scmp.eq.s32.totalorder %s24, 2
    %p340 = por %p338, %p339
    %p342 = scmp.ne.s32.totalorder %s325, %s341
    %p343 = scmp.eq.s32.totalorder %s24, 0
    %p344 = por %p342, %p343
    %s345 = ssub.s32 %s25, %s37
    %s346 = ssub.s32 %s26, %s33
    %s347 = sor.u32 %s345, %s346
    %p348 = scmp.eq.s32.totalorder %s347, 0
    %s350 = sadd.s32 %s349, 1
    %s351 = scalar_select %p348, %s349, %s350
    %p354 = pneg %p348
    %p355 = scmp.eq.s32.totalorder %s18, 2
    %p356 = por %p354, %p355
    %p357 = scmp.ne.s32.totalorder %s349, %s352
    %p358 = scmp.eq.s32.totalorder %s18, 0
    %p359 = por %p357, %p358
    %p360 = scmp.ne.s32.totalorder %s349, %s352
    %p361 = scmp.eq.s32.totalorder %s23, 2
    %p362 = por %p360, %p361
    %p363 = scmp.ne.s32.totalorder %s352, %s353
    %p364 = scmp.eq.s32.totalorder %s23, 0
    %p365 = por %p363, %p364
    %p366 = scmp.ne.s32.totalorder %s352, %s353
    %p367 = scmp.eq.s32.totalorder %s24, 2
    %p368 = por %p366, %p367
    %p370 = scmp.ne.s32.totalorder %s353, %s369
    %p371 = scmp.eq.s32.totalorder %s24, 0
    %p372 = por %p370, %p371
    %p373 = scmp.le.s32.totalorder 1, %s18
    %p374 = scmp.lt.s32.totalorder %s18, 4
    %p375 = pnand %p373, %p374
    %p376 = pneg %p375
    // Predicated region
    $region9: #{fineture_lumin_forward.1} parent=5 // pred_check
      _
    $region10: #{fineture_lumin_forward.1} parent=5 // pred_check_branch
      %378 = sbr.rel (%p375) target = $region12
    $region11: #{fineture_lumin_forward.1} parent=5 // pred_region
      %s379 = ssub.s32 %s18, 1
      // Predicated region
      $region13: #{fineture_lumin_forward.1} parent=11 // pred_check
        %p380 = pneg %p51
      $region14: #{fineture_lumin_forward.1} parent=11 // pred_check_branch
        %382 = sbr.rel (%p380) target = $region16
      $region15: #{fineture_lumin_forward.1} parent=11 // pred_region
        _
      $region16: #{fineture_lumin_forward.1} parent=11 // pred_fallthru
        _
      // Predicated region
      $region17: #{fineture_lumin_forward.1} parent=11 // pred_check
        %p383 = pneg %p77
      $region18: #{fineture_lumin_forward.1} parent=11 // pred_check_branch
        %385 = sbr.rel (%p383) target = $region20
      $region19: #{fineture_lumin_forward.1} parent=11 // pred_region
        %p386 = scmp.lt.s32.totalorder %s28, 0
        %s387 = scalar_select %p386, %s28, 0
        %s388 = smul.addr %s387, 12
        %s389 = smul.addr %s388, 8
        %s390 = scalar_lea.vmem %s1, %s389
      $region20: #{fineture_lumin_forward.1} parent=11 // pred_fallthru
        _
    $region12: #{fineture_lumin_forward.1} parent=5 // pred_fallthru
      _
    %p391 = scmp.lt.s32.totalorder %s18, 3
    // Predicated region
    $region21: #{fineture_lumin_forward.1} parent=5 // pred_check
      %p392 = pneg %p391
    $region22: #{fineture_lumin_forward.1} parent=5 // pred_check_branch
      %394 = sbr.rel (%p392) target = $region24
    $region23: #{fineture_lumin_forward.1} parent=5 // pred_region
      // Predicated region
      $region25: #{fineture_lumin_forward.1} parent=23 // pred_check
        %p395 = pneg %p97
      $region26: #{fineture_lumin_forward.1} parent=23 // pred_check_branch
        %397 = sbr.rel (%p395) target = $region28
      $region27: #{fineture_lumin_forward.1} parent=23 // pred_region
        %p398 = scmp.lt.s32.totalorder %s25, 2
        %s399 = scalar_select %p398, %s25, 2
        %s400 = smul.addr %s399, 4
        %s401 = smul.addr %s400, 4
        %s402 = scalar_lea.vmem %s2, %s401
      $region28: #{fineture_lumin_forward.1} parent=23 // pred_fallthru
        _
      // Predicated region
      $region29: #{fineture_lumin_forward.1} parent=23 // pred_check
        %p403 = pneg %p123
      $region30: #{fineture_lumin_forward.1} parent=23 // pred_check_branch
        %405 = sbr.rel (%p403) target = $region32
      $region31: #{fineture_lumin_forward.1} parent=23 // pred_region
        %p406 = scmp.lt.s32.totalorder %s25, 2
        %s407 = scalar_select %p406, %s25, 2
        %s408 = smul.addr %s407, 2
        %s409 = smul.addr %s408, 8
        %s410 = scalar_lea.vmem %s3, %s409
      $region32: #{fineture_lumin_forward.1} parent=23 // pred_fallthru
        _
      // Predicated region
      $region33: #{fineture_lumin_forward.1} parent=23 // pred_check
        %p411 = pneg %p149
      $region34: #{fineture_lumin_forward.1} parent=23 // pred_check_branch
        %413 = sbr.rel (%p411) target = $region36
      $region35: #{fineture_lumin_forward.1} parent=23 // pred_region
        %p414 = scmp.lt.s32.totalorder %s25, 2
        %s415 = scalar_select %p414, %s25, 2
        %s416 = smul.addr %s415, 8
        %s417 = smul.addr %s416, 4
        %s418 = scalar_lea.vmem %s4, %s417
      $region36: #{fineture_lumin_forward.1} parent=23 // pred_fallthru
        _
      // Predicated region
      $region37: #{fineture_lumin_forward.1} parent=23 // pred_check
        %p419 = pneg %p175
      $region38: #{fineture_lumin_forward.1} parent=23 // pred_check_branch
        %421 = sbr.rel (%p419) target = $region40
      $region39: #{fineture_lumin_forward.1} parent=23 // pred_region
        %p422 = scmp.lt.s32.totalorder %s25, 2
        %s423 = scalar_select %p422, %s25, 2
        %s424 = smul.addr %s423, 4
        %s425 = smul.addr %s424, 8
        %s426 = scalar_lea.vmem %s5, %s425
      $region40: #{fineture_lumin_forward.1} parent=23 // pred_fallthru
        _
      // Predicated region
      $region41: #{fineture_lumin_forward.1} parent=23 // pred_check
        %p427 = pneg %p201
      $region42: #{fineture_lumin_forward.1} parent=23 // pred_check_branch
        %429 = sbr.rel (%p427) target = $region44
      $region43: #{fineture_lumin_forward.1} parent=23 // pred_region
        %p430 = scmp.lt.s32.totalorder %s25, 2
        %s431 = scalar_select %p430, %s25, 2
        %s432 = smul.addr %s431, 24
        %s433 = smul.addr %s432, 4
        %s434 = scalar_lea.vmem %s6, %s433
      $region44: #{fineture_lumin_forward.1} parent=23 // pred_fallthru
        _
      // Predicated region
      $region45: #{fineture_lumin_forward.1} parent=23 // pred_check
        %p435 = pneg %p227
      $region46: #{fineture_lumin_forward.1} parent=23 // pred_check_branch
        %437 = sbr.rel (%p435) target = $region48
      $region47: #{fineture_lumin_forward.1} parent=23 // pred_region
        %p438 = scmp.lt.s32.totalorder %s25, 2
        %s439 = scalar_select %p438, %s25, 2
        %s440 = smul.addr %s439, 8
        %s441 = smul.addr %s440, 8
        %s442 = scalar_lea.vmem %s7, %s441
      $region48: #{fineture_lumin_forward.1} parent=23 // pred_fallthru
        _
      // Predicated region
      $region49: #{fineture_lumin_forward.1} parent=23 // pred_check
        %p443 = pneg %p253
      $region50: #{fineture_lumin_forward.1} parent=23 // pred_check_branch
        %445 = sbr.rel (%p443) target = $region52
      $region51: #{fineture_lumin_forward.1} parent=23 // pred_region
        %p446 = scmp.lt.s32.totalorder %s25, 2
        %s447 = scalar_select %p446, %s25, 2
        %s448 = smul.addr %s447, 20
        %s449 = smul.addr %s448, 4
        %s450 = scalar_lea.vmem %s8, %s449
      $region52: #{fineture_lumin_forward.1} parent=23 // pred_fallthru
        _
      // Predicated region
      $region53: #{fineture_lumin_forward.1} parent=23 // pred_check
        %p451 = pneg %p279
      $region54: #{fineture_lumin_forward.1} parent=23 // pred_check_branch
        %453 = sbr.rel (%p451) target = $region56
      $region55: #{fineture_lumin_forward.1} parent=23 // pred_region
        %p454 = scmp.lt.s32.totalorder %s25, 2
        %s455 = scalar_select %p454, %s25, 2
        %s456 = smul.addr %s455, 4
        %s457 = smul.addr %s456, 8
        %s458 = scalar_lea.vmem %s9, %s457
      $region56: #{fineture_lumin_forward.1} parent=23 // pred_fallthru
        _
      // Predicated region
      $region57: #{fineture_lumin_forward.1} parent=23 // pred_check
        %p459 = pneg %p305
      $region58: #{fineture_lumin_forward.1} parent=23 // pred_check_branch
        %461 = sbr.rel (%p459) target = $region60
      $region59: #{fineture_lumin_forward.1} parent=23 // pred_region
        %p462 = scmp.lt.s32.totalorder %s25, 2
        %s463 = scalar_select %p462, %s25, 2
        %s464 = smul.addr %s463, 3
        %s465 = smul.addr %s464, 4
        %s466 = scalar_lea.vmem %s10, %s465
      $region60: #{fineture_lumin_forward.1} parent=23 // pred_fallthru
        _
      // Predicated region
      $region61: #{fineture_lumin_forward.1} parent=23 // pred_check
        %p467 = pneg %p331
      $region62: #{fineture_lumin_forward.1} parent=23 // pred_check_branch
        %469 = sbr.rel (%p467) target = $region64
      $region63: #{fineture_lumin_forward.1} parent=23 // pred_region
        %p470 = scmp.lt.s32.totalorder %s25, 2
        %s471 = scalar_select %p470, %s25, 2
        %s472 = smul.addr %s471, 8
        %s473 = scalar_lea.vmem %s11, %s472
      $region64: #{fineture_lumin_forward.1} parent=23 // pred_fallthru
        _
    $region24: #{fineture_lumin_forward.1} parent=5 // pred_fallthru
      _
    %p474 = scmp.le.s32.totalorder 1, %s18
    %p475 = scmp.lt.s32.totalorder %s18, 4
    %p476 = pnand %p474, %p475
    %p477 = pneg %p476
    // Predicated region
    $region65: #{fineture_lumin_forward.1} parent=5 // pred_check
      _
    $region66: #{fineture_lumin_forward.1} parent=5 // pred_check_branch
      %479 = sbr.rel (%p476) target = $region68
    $region67: #{fineture_lumin_forward.1} parent=5 // pred_region
      %s480 = ssub.s32 %s18, 1
      %p481 = pneg %p51
      %p482 = pneg %p48
      %p483 = scmp.lt.s32.totalorder %s28, 0
      %s484 = scalar_select %p483, %s28, 0
      %s485 = smul.addr %s484, 12
      %s486 = smul.addr %s485, 8
      %s487 = scalar_lea.vmem %s1, %s486
      %p488 = pneg %p77
      %p489 = pneg %p74
      %p490 = scmp.lt.s32.totalorder %s27, 2
      %s491 = scalar_select %p490, %s27, 2
      %s492 = smul.addr %s491, 4
      %s493 = smul.addr %s492, 4
      %s494 = scalar_lea.vmem %s2, %s493
      %p495 = pneg %p103
      %p496 = pneg %p100
      %p497 = scmp.lt.s32.totalorder %s27, 2
      %s498 = scalar_select %p497, %s27, 2
      %s499 = smul.addr %s498, 2
      %s500 = smul.addr %s499, 8
      %s501 = scalar_lea.vmem %s3, %s500
      %p502 = pneg %p129
      %p503 = pneg %p126
      %p504 = scmp.lt.s32.totalorder %s27, 2
      %s505 = scalar_select %p504, %s27, 2
      %s506 = smul.addr %s505, 8
      %s507 = smul.addr %s506, 4
      %s508 = scalar_lea.vmem %s4, %s507
      %p509 = pneg %p155
      %p510 = pneg %p152
      %p511 = scmp.lt.s32.totalorder %s27, 2
      %s512 = scalar_select %p511, %s27, 2
      %s513 = smul.addr %s512, 4
      %s514 = smul.addr %s513, 8
      %s515 = scalar_lea.vmem %s5, %s514
      %p516 = pneg %p181
      %p517 = pneg %p178
      %p518 = scmp.lt.s32.totalorder %s27, 2
      %s519 = scalar_select %p518, %s27, 2
      %s520 = smul.addr %s519, 24
      %s521 = smul.addr %s520, 4
      %s522 = scalar_lea.vmem %s6, %s521
      %p523 = pneg %p207
      %p524 = pneg %p204
      %p525 = scmp.lt.s32.totalorder %s27, 2
      %s526 = scalar_select %p525, %s27, 2
      %s527 = smul.addr %s526, 8
      %s528 = smul.addr %s527, 8
      %s529 = scalar_lea.vmem %s7, %s528
      %p530 = pneg %p233
      %p531 = pneg %p230
      %p532 = scmp.lt.s32.totalorder %s27, 2
      %s533 = scalar_select %p532, %s27, 2
      %s534 = smul.addr %s533, 20
      %s535 = smul.addr %s534, 4
      %s536 = scalar_lea.vmem %s8, %s535
      %p537 = pneg %p259
      %p538 = pneg %p256
      %p539 = scmp.lt.s32.totalorder %s27, 2
      %s540 = scalar_select %p539, %s27, 2
      %s541 = smul.addr %s540, 4
      %s542 = smul.addr %s541, 8
      %s543 = scalar_lea.vmem %s9, %s542
      %p544 = pneg %p285
      %p545 = pneg %p282
      %p546 = scmp.lt.s32.totalorder %s27, 2
      %s547 = scalar_select %p546, %s27, 2
      %s548 = smul.addr %s547, 3
      %s549 = smul.addr %s548, 4
      %s550 = scalar_lea.vmem %s10, %s549
      %p551 = pneg %p311
      %p552 = pneg %p308
      %p553 = scmp.lt.s32.totalorder %s27, 2
      %s554 = scalar_select %p553, %s27, 2
      %s555 = smul.addr %s554, 8
      %s556 = scalar_lea.vmem %s11, %s555
      %p557 = pneg %p337
      %p558 = pneg %p334
      %p559 = pneg %p365
      %p560 = pneg %p362
      %p561 = scmp.lt.s32.totalorder %s27, 2
      %s562 = scalar_select %p561, %s27, 2
      %p563 = scmp.lt.s32.totalorder %s28, 0
      %s564 = scalar_select %p563, %s28, 0
      %s565 = smul.addr %s564, 6
      %s566 = smul.addr %s562, 6
      %s567 = sadd.s32 %s565, %s566
      %s568 = smul.addr %s567, 8
      %s569 = scalar_lea.vmem %s12, %s568
      %p570 = scmp.lt.s32.totalorder %s28, 0
      %s571 = scalar_select %p570, %s28, 0
      %s572 = smul.addr %s571, 12
      %s573 = smul.addr %s572, 8
      %s574 = scalar_lea.vmem %s1, %s573
      %p575 = scmp.lt.s32.totalorder %s27, 2
      %s576 = scalar_select %p575, %s27, 2
      %s577 = smul.addr %s576, 4
      %s578 = smul.addr %s577, 4
      %s579 = scalar_lea.vmem %s2, %s578
      %p580 = scmp.lt.s32.totalorder %s27, 2
      %s581 = scalar_select %p580, %s27, 2
      %s582 = smul.addr %s581, 2
      %s583 = smul.addr %s582, 8
      %s584 = scalar_lea.vmem %s3, %s583
      %p585 = scmp.lt.s32.totalorder %s27, 2
      %s586 = scalar_select %p585, %s27, 2
      %s587 = smul.addr %s586, 8
      %s588 = smul.addr %s587, 4
      %s589 = scalar_lea.vmem %s4, %s588
      %p590 = scmp.lt.s32.totalorder %s27, 2
      %s591 = scalar_select %p590, %s27, 2
      %s592 = smul.addr %s591, 4
      %s593 = smul.addr %s592, 8
      %s594 = scalar_lea.vmem %s5, %s593
      %p595 = scmp.lt.s32.totalorder %s27, 2
      %s596 = scalar_select %p595, %s27, 2
      %s597 = smul.addr %s596, 24
      %s598 = smul.addr %s597, 4
      %s599 = scalar_lea.vmem %s6, %s598
      %p600 = scmp.lt.s32.totalorder %s27, 2
      %s601 = scalar_select %p600, %s27, 2
      %s602 = smul.addr %s601, 8
      %s603 = smul.addr %s602, 8
      %s604 = scalar_lea.vmem %s7, %s603
      %p605 = scmp.lt.s32.totalorder %s27, 2
      %s606 = scalar_select %p605, %s27, 2
      %s607 = smul.addr %s606, 20
      %s608 = smul.addr %s607, 4
      %s609 = scalar_lea.vmem %s8, %s608
      %p610 = scmp.lt.s32.totalorder %s27, 2
      %s611 = scalar_select %p610, %s27, 2
      %s612 = smul.addr %s611, 4
      %s613 = smul.addr %s612, 8
      %s614 = scalar_lea.vmem %s9, %s613
      %p615 = scmp.lt.s32.totalorder %s27, 2
      %s616 = scalar_select %p615, %s27, 2
      %s617 = smul.addr %s616, 3
      %s618 = smul.addr %s617, 4
      %s619 = scalar_lea.vmem %s10, %s618
      %p620 = scmp.lt.s32.totalorder %s27, 2
      %s621 = scalar_select %p620, %s27, 2
      %s622 = smul.addr %s621, 8
      %s623 = scalar_lea.vmem %s11, %s622
      %p624 = scmp.lt.s32.totalorder %s27, 2
      %s625 = scalar_select %p624, %s27, 2
      %p626 = scmp.lt.s32.totalorder %s28, 0
      %s627 = scalar_select %p626, %s28, 0
      %s628 = smul.addr %s627, 6
      %s629 = smul.addr %s625, 6
      %s630 = sadd.s32 %s628, %s629
      %s631 = smul.addr %s630, 8
      %s632 = scalar_lea.vmem %s12, %s631
      %v634 = vld [vmem:[%s0] sm:$0x3f]
      %v635 = vld [vmem:[%s574] sm:$0xff]
      %v636 = vld [vmem:[%s574 + $0x8] sm:$0xff]
      %v637 = vld [vmem:[%s574 + $0x10] sm:$0xff]
      %v638 = vld [vmem:[%s574 + $0x18] sm:$0xff]
      %v639 = vld [vmem:[%s574 + $0x20] sm:$0xff]
      %v640 = vld [vmem:[%s574 + $0x28] sm:$0xff]
      %v641 = vld [vmem:[%s574 + $0x30] sm:$0xff]
      %v642 = vld [vmem:[%s574 + $0x38] sm:$0xff]
      %v643 = vld [vmem:[%s574 + $0x40] sm:$0xff]
      %v644 = vld [vmem:[%s574 + $0x48] sm:$0xff]
      %v645 = vld [vmem:[%s574 + $0x50] sm:$0xff]
      %v646 = vld [vmem:[%s574 + $0x58] sm:$0xff]
      %647 = vrot.lane.b32.xlu0 %v635, 19
      %v648 = vpop.permute.xlu0 %647
      %649 = vrot.lane.b32.xlu0 %v641, 19
      %v650 = vpop.permute.xlu0 %649
      %651 = vrot.lane.b32.xlu0 %v636, 19
      %v652 = vpop.permute.xlu0 %651
      %653 = vrot.lane.b32.xlu0 %v642, 19
      %v654 = vpop.permute.xlu0 %653
      %655 = vrot.lane.b32.xlu0 %v637, 19
      %v656 = vpop.permute.xlu0 %655
      %657 = vrot.lane.b32.xlu0 %v643, 19
      %v658 = vpop.permute.xlu0 %657
      %659 = vrot.lane.b32.xlu0 %v638, 19
      %v660 = vpop.permute.xlu0 %659
      %661 = vrot.lane.b32.xlu0 %v644, 19
      %v662 = vpop.permute.xlu0 %661
      %663 = vrot.lane.b32.xlu0 %v639, 19
      %v664 = vpop.permute.xlu0 %663
      %665 = vrot.lane.b32.xlu0 %v645, 19
      %v666 = vpop.permute.xlu0 %665
      %667 = vrot.lane.b32.xlu0 %v640, 19
      %v668 = vpop.permute.xlu0 %667
      %669 = vrot.lane.b32.xlu0 %v646, 19
      %v670 = vpop.permute.xlu0 %669
      %v671 = vlaneseq
      %v672 = vand.u32 %v671, 127
      %vm673 = vcmp.lt.s32.totalorder %v672, 19
      %v674 = vsel %vm673, %v664, %v668
      %v675 = vsel %vm673, %v666, %v670
      %v676 = vsel %vm673, %v660, %v664
      %v677 = vsel %vm673, %v662, %v666
      %v678 = vsel %vm673, %v656, %v660
      %v679 = vsel %vm673, %v658, %v662
      %v680 = vsel %vm673, %v652, %v656
      %v681 = vsel %vm673, %v654, %v658
      %v682 = vsel %vm673, %v648, %v652
      %v683 = vsel %vm673, %v650, %v654
      %v684 = vsel %vm673, %v668, %v648
      %v685 = vsel %vm673, %v670, %v650
      %v686 = vpack.c.bf16 %v685, %v684
      %v687 = vpack.c.bf16 %v683, %v682
      %v688 = vpack.c.bf16 %v681, %v680
      %v689 = vpack.c.bf16 %v679, %v678
      %v690 = vpack.c.bf16 %v677, %v676
      %v691 = vpack.c.bf16 %v675, %v674
      %692 = vrot.lane.b32.xlu0 %v635, 18
      %v693 = vpop.permute.xlu0 %692
      %694 = vrot.lane.b32.xlu0 %v641, 18
      %v695 = vpop.permute.xlu0 %694
      %696 = vrot.lane.b32.xlu0 %v636, 18
      %v697 = vpop.permute.xlu0 %696
      %698 = vrot.lane.b32.xlu0 %v642, 18
      %v699 = vpop.permute.xlu0 %698
      %700 = vrot.lane.b32.xlu0 %v637, 18
      %v701 = vpop.permute.xlu0 %700
      %702 = vrot.lane.b32.xlu0 %v643, 18
      %v703 = vpop.permute.xlu0 %702
      %704 = vrot.lane.b32.xlu0 %v638, 18
      %v705 = vpop.permute.xlu0 %704
      %706 = vrot.lane.b32.xlu0 %v644, 18
      %v707 = vpop.permute.xlu0 %706
      %708 = vrot.lane.b32.xlu0 %v639, 18
      %v709 = vpop.permute.xlu0 %708
      %710 = vrot.lane.b32.xlu0 %v645, 18
      %v711 = vpop.permute.xlu0 %710
      %712 = vrot.lane.b32.xlu0 %v640, 18
      %v713 = vpop.permute.xlu0 %712
      %714 = vrot.lane.b32.xlu0 %v646, 18
      %v715 = vpop.permute.xlu0 %714
      %vm716 = vcmp.lt.s32.totalorder %v672, 18
      %v717 = vsel %vm716, %v709, %v713
      %v718 = vsel %vm716, %v711, %v715
      %v719 = vsel %vm716, %v705, %v709
      %v720 = vsel %vm716, %v707, %v711
      %v721 = vsel %vm716, %v701, %v705
      %v722 = vsel %vm716, %v703, %v707
      %v723 = vsel %vm716, %v697, %v701
      %v724 = vsel %vm716, %v699, %v703
      %v725 = vsel %vm716, %v693, %v697
      %v726 = vsel %vm716, %v695, %v699
      %v727 = vsel %vm716, %v713, %v693
      %v728 = vsel %vm716, %v715, %v695
      %v729 = vpack.c.bf16 %v728, %v727
      %v730 = vpack.c.bf16 %v726, %v725
      %v731 = vpack.c.bf16 %v724, %v723
      %v732 = vpack.c.bf16 %v722, %v721
      %v733 = vpack.c.bf16 %v720, %v719
      %v734 = vpack.c.bf16 %v718, %v717
      %735 = vrot.lane.b32.xlu0 %v635, 17
      %v736 = vpop.permute.xlu0 %735
      %737 = vrot.lane.b32.xlu0 %v641, 17
      %v738 = vpop.permute.xlu0 %737
      %739 = vrot.lane.b32.xlu0 %v636, 17
      %v740 = vpop.permute.xlu0 %739
      %741 = vrot.lane.b32.xlu0 %v642, 17
      %v742 = vpop.permute.xlu0 %741
      %743 = vrot.lane.b32.xlu0 %v637, 17
      %v744 = vpop.permute.xlu0 %743
      %745 = vrot.lane.b32.xlu0 %v643, 17
      %v746 = vpop.permute.xlu0 %745
      %747 = vrot.lane.b32.xlu0 %v638, 17
      %v748 = vpop.permute.xlu0 %747
      %749 = vrot.lane.b32.xlu0 %v644, 17
      %v750 = vpop.permute.xlu0 %749
      %751 = vrot.lane.b32.xlu0 %v639, 17
      %v752 = vpop.permute.xlu0 %751
      %753 = vrot.lane.b32.xlu0 %v645, 17
      %v754 = vpop.permute.xlu0 %753
      %755 = vrot.lane.b32.xlu0 %v640, 17
      %v756 = vpop.permute.xlu0 %755
      %757 = vrot.lane.b32.xlu0 %v646, 17
      %v758 = vpop.permute.xlu0 %757
      %vm759 = vcmp.lt.s32.totalorder %v672, 17
      %v760 = vsel %vm759, %v752, %v756
      %v761 = vsel %vm759, %v754, %v758
      %v762 = vsel %vm759, %v748, %v752
      %v763 = vsel %vm759, %v750, %v754
      %v764 = vsel %vm759, %v744, %v748
      %v765 = vsel %vm759, %v746, %v750
      %v766 = vsel %vm759, %v740, %v744
      %v767 = vsel %vm759, %v742, %v746
      %v768 = vsel %vm759, %v736, %v740
      %v769 = vsel %vm759, %v738, %v742
      %v770 = vsel %vm759, %v756, %v736
      %v771 = vsel %vm759, %v758, %v738
      %v772 = vpack.c.bf16 %v771, %v770
      %v773 = vpack.c.bf16 %v769, %v768
      %v774 = vpack.c.bf16 %v767, %v766
      %v775 = vpack.c.bf16 %v765, %v764
      %v776 = vpack.c.bf16 %v763, %v762
      %v777 = vpack.c.bf16 %v761, %v760
      %778 = vrot.lane.b32.xlu0 %v635, 1
      %v779 = vpop.permute.xlu0 %778
      %780 = vrot.lane.b32.xlu0 %v641, 1
      %v781 = vpop.permute.xlu0 %780
      %782 = vrot.lane.b32.xlu0 %v636, 1
      %v783 = vpop.permute.xlu0 %782
      %784 = vrot.lane.b32.xlu0 %v642, 1
      %v785 = vpop.permute.xlu0 %784
      %786 = vrot.lane.b32.xlu0 %v637, 1
      %v787 = vpop.permute.xlu0 %786
      %788 = vrot.lane.b32.xlu0 %v643, 1
      %v789 = vpop.permute.xlu0 %788
      %790 = vrot.lane.b32.xlu0 %v638, 1
      %v791 = vpop.permute.xlu0 %790
      %792 = vrot.lane.b32.xlu0 %v644, 1
      %v793 = vpop.permute.xlu0 %792
      %794 = vrot.lane.b32.xlu0 %v639, 1
      %v795 = vpop.permute.xlu0 %794
      %796 = vrot.lane.b32.xlu0 %v645, 1
      %v797 = vpop.permute.xlu0 %796
      %798 = vrot.lane.b32.xlu0 %v640, 1
      %v799 = vpop.permute.xlu0 %798
      %800 = vrot.lane.b32.xlu0 %v646, 1
      %v801 = vpop.permute.xlu0 %800
      %vm802 = vcmp.lt.s32.totalorder %v672, 1
      %v803 = vsel %vm802, %v795, %v799
      %v804 = vsel %vm802, %v797, %v801
      %v805 = vsel %vm802, %v791, %v795
      %v806 = vsel %vm802, %v793, %v797
      %v807 = vsel %vm802, %v787, %v791
      %v808 = vsel %vm802, %v789, %v793
      %v809 = vsel %vm802, %v783, %v787
      %v810 = vsel %vm802, %v785, %v789
      %v811 = vsel %vm802, %v779, %v783
      %v812 = vsel %vm802, %v781, %v785
      %v813 = vsel %vm802, %v799, %v779
      %v814 = vsel %vm802, %v801, %v781
      %v815 = vpack.c.bf16 %v814, %v813
      %v816 = vpack.c.bf16 %v812, %v811
      %v817 = vpack.c.bf16 %v810, %v809
      %v818 = vpack.c.bf16 %v808, %v807
      %v819 = vpack.c.bf16 %v806, %v805
      %v820 = vpack.c.bf16 %v804, %v803
      %v821 = vpack.c.bf16 %v641, %v635
      %v822 = vpack.c.bf16 %v642, %v636
      %v823 = vpack.c.bf16 %v643, %v637
      %v824 = vpack.c.bf16 %v644, %v638
      %v825 = vpack.c.bf16 %v645, %v639
      %v826 = vpack.c.bf16 %v646, %v640
      %827 = vrot.lane.b32.xlu0 %v635, 127
      %v828 = vpop.permute.xlu0 %827
      %829 = vrot.lane.b32.xlu0 %v641, 127
      %v830 = vpop.permute.xlu0 %829
      %831 = vrot.lane.b32.xlu0 %v636, 127
      %v832 = vpop.permute.xlu0 %831
      %833 = vrot.lane.b32.xlu0 %v642, 127
      %v834 = vpop.permute.xlu0 %833
      %835 = vrot.lane.b32.xlu0 %v637, 127
      %v836 = vpop.permute.xlu0 %835
      %837 = vrot.lane.b32.xlu0 %v643, 127
      %v838 = vpop.permute.xlu0 %837
      %839 = vrot.lane.b32.xlu0 %v638, 127
      %v840 = vpop.permute.xlu0 %839
      %841 = vrot.lane.b32.xlu0 %v644, 127
      %v842 = vpop.permute.xlu0 %841
      %843 = vrot.lane.b32.xlu0 %v639, 127
      %v844 = vpop.permute.xlu0 %843
      %845 = vrot.lane.b32.xlu0 %v645, 127
      %v846 = vpop.permute.xlu0 %845
      %847 = vrot.lane.b32.xlu0 %v640, 127
      %v848 = vpop.permute.xlu0 %847
      %849 = vrot.lane.b32.xlu0 %v646, 127
      %v850 = vpop.permute.xlu0 %849
      %vm851 = vcmp.lt.s32.totalorder %v672, 127
      %v852 = vsel %vm851, %v844, %v848
      %v853 = vsel %vm851, %v846, %v850
      %v854 = vsel %vm851, %v840, %v844
      %v855 = vsel %vm851, %v842, %v846
      %v856 = vsel %vm851, %v836, %v840
      %v857 = vsel %vm851, %v838, %v842
      %v858 = vsel %vm851, %v832, %v836
      %v859 = vsel %vm851, %v834, %v838
      %v860 = vsel %vm851, %v828, %v832
      %v861 = vsel %vm851, %v830, %v834
      %v862 = vsel %vm851, %v848, %v828
      %v863 = vsel %vm851, %v850, %v830
      %v864 = vpack.c.bf16 %v861, %v860
      %v865 = vpack.c.bf16 %v859, %v858
      %v866 = vpack.c.bf16 %v857, %v856
      %v867 = vpack.c.bf16 %v855, %v854
      %v868 = vpack.c.bf16 %v853, %v852
      %v869 = vpack.c.bf16 %v863, %v862
      %870 = vrot.lane.b32.xlu0 %v635, 111
      %v871 = vpop.permute.xlu0 %870
      %872 = vrot.lane.b32.xlu0 %v641, 111
      %v873 = vpop.permute.xlu0 %872
      %874 = vrot.lane.b32.xlu0 %v636, 111
      %v875 = vpop.permute.xlu0 %874
      %876 = vrot.lane.b32.xlu0 %v642, 111
      %v877 = vpop.permute.xlu0 %876
      %878 = vrot.lane.b32.xlu0 %v637, 111
      %v879 = vpop.permute.xlu0 %878
      %880 = vrot.lane.b32.xlu0 %v643, 111
      %v881 = vpop.permute.xlu0 %880
      %882 = vrot.lane.b32.xlu0 %v638, 111
      %v883 = vpop.permute.xlu0 %882
      %884 = vrot.lane.b32.xlu0 %v644, 111
      %v885 = vpop.permute.xlu0 %884
      %886 = vrot.lane.b32.xlu0 %v639, 111
      %v887 = vpop.permute.xlu0 %886
      %888 = vrot.lane.b32.xlu0 %v645, 111
      %v889 = vpop.permute.xlu0 %888
      %890 = vrot.lane.b32.xlu0 %v640, 111
      %v891 = vpop.permute.xlu0 %890
      %892 = vrot.lane.b32.xlu0 %v646, 111
      %v893 = vpop.permute.xlu0 %892
      %vm894 = vcmp.lt.s32.totalorder %v672, 111
      %v895 = vsel %vm894, %v887, %v891
      %v896 = vsel %vm894, %v889, %v893
      %v897 = vsel %vm894, %v883, %v887
      %v898 = vsel %vm894, %v885, %v889
      %v899 = vsel %vm894, %v879, %v883
      %v900 = vsel %vm894, %v881, %v885
      %v901 = vsel %vm894, %v875, %v879
      %v902 = vsel %vm894, %v877, %v881
      %v903 = vsel %vm894, %v871, %v875
      %v904 = vsel %vm894, %v873, %v877
      %v905 = vsel %vm894, %v891, %v871
      %v906 = vsel %vm894, %v893, %v873
      %v907 = vpack.c.bf16 %v904, %v903
      %v908 = vpack.c.bf16 %v902, %v901
      %v909 = vpack.c.bf16 %v900, %v899
      %v910 = vpack.c.bf16 %v898, %v897
      %v911 = vpack.c.bf16 %v896, %v895
      %v912 = vpack.c.bf16 %v906, %v905
      %913 = vrot.lane.b32.xlu0 %v635, 110
      %v914 = vpop.permute.xlu0 %913
      %915 = vrot.lane.b32.xlu0 %v641, 110
      %v916 = vpop.permute.xlu0 %915
      %917 = vrot.lane.b32.xlu0 %v636, 110
      %v918 = vpop.permute.xlu0 %917
      %919 = vrot.lane.b32.xlu0 %v642, 110
      %v920 = vpop.permute.xlu0 %919
      %921 = vrot.lane.b32.xlu0 %v637, 110
      %v922 = vpop.permute.xlu0 %921
      %923 = vrot.lane.b32.xlu0 %v643, 110
      %v924 = vpop.permute.xlu0 %923
      %925 = vrot.lane.b32.xlu0 %v638, 110
      %v926 = vpop.permute.xlu0 %925
      %927 = vrot.lane.b32.xlu0 %v644, 110
      %v928 = vpop.permute.xlu0 %927
      %929 = vrot.lane.b32.xlu0 %v639, 110
      %v930 = vpop.permute.xlu0 %929
      %931 = vrot.lane.b32.xlu0 %v645, 110
      %v932 = vpop.permute.xlu0 %931
      %933 = vrot.lane.b32.xlu0 %v640, 110
      %v934 = vpop.permute.xlu0 %933
      %935 = vrot.lane.b32.xlu0 %v646, 110
      %v936 = vpop.permute.xlu0 %935
      %vm937 = vcmp.lt.s32.totalorder %v672, 110
      %v938 = vsel %vm937, %v930, %v934
      %v939 = vsel %vm937, %v932, %v936
      %v940 = vsel %vm937, %v926, %v930
      %v941 = vsel %vm937, %v928, %v932
      %v942 = vsel %vm937, %v922, %v926
      %v943 = vsel %vm937, %v924, %v928
      %v944 = vsel %vm937, %v918, %v922
      %v945 = vsel %vm937, %v920, %v924
      %v946 = vsel %vm937, %v914, %v918
      %v947 = vsel %vm937, %v916, %v920
      %v948 = vsel %vm937, %v934, %v914
      %v949 = vsel %vm937, %v936, %v916
      %v950 = vpack.c.bf16 %v947, %v946
      %v951 = vpack.c.bf16 %v945, %v944
      %v952 = vpack.c.bf16 %v943, %v942
      %v953 = vpack.c.bf16 %v941, %v940
      %v954 = vpack.c.bf16 %v939, %v938
      %v955 = vpack.c.bf16 %v949, %v948
      %956 = vrot.lane.b32.xlu0 %v635, 109
      %v957 = vpop.permute.xlu0 %956
      %958 = vrot.lane.b32.xlu0 %v641, 109
      %v959 = vpop.permute.xlu0 %958
      %960 = vrot.lane.b32.xlu0 %v636, 109
      %v961 = vpop.permute.xlu0 %960
      %962 = vrot.lane.b32.xlu0 %v642, 109
      %v963 = vpop.permute.xlu0 %962
      %964 = vrot.lane.b32.xlu0 %v637, 109
      %v965 = vpop.permute.xlu0 %964
      %966 = vrot.lane.b32.xlu0 %v643, 109
      %v967 = vpop.permute.xlu0 %966
      %968 = vrot.lane.b32.xlu0 %v638, 109
      %v969 = vpop.permute.xlu0 %968
      %970 = vrot.lane.b32.xlu0 %v644, 109
      %v971 = vpop.permute.xlu0 %970
      %972 = vrot.lane.b32.xlu0 %v639, 109
      %v973 = vpop.permute.xlu0 %972
      %974 = vrot.lane.b32.xlu0 %v645, 109
      %v975 = vpop.permute.xlu0 %974
      %976 = vrot.lane.b32.xlu0 %v640, 109
      %v977 = vpop.permute.xlu0 %976
      %978 = vrot.lane.b32.xlu0 %v646, 109
      %v979 = vpop.permute.xlu0 %978
      %vm980 = vcmp.lt.s32.totalorder %v672, 109
      %v981 = vsel %vm980, %v973, %v977
      %v982 = vsel %vm980, %v975, %v979
      %v983 = vsel %vm980, %v969, %v973
      %v984 = vsel %vm980, %v971, %v975
      %v985 = vsel %vm980, %v965, %v969
      %v986 = vsel %vm980, %v967, %v971
      %v987 = vsel %vm980, %v961, %v965
      %v988 = vsel %vm980, %v963, %v967
      %v989 = vsel %vm980, %v957, %v961
      %v990 = vsel %vm980, %v959, %v963
      %v991 = vsel %vm980, %v977, %v957
      %v992 = vsel %vm980, %v979, %v959
      %v993 = vpack.c.bf16 %v990, %v989
      %v994 = vpack.c.bf16 %v988, %v987
      %v995 = vpack.c.bf16 %v986, %v985
      %v996 = vpack.c.bf16 %v984, %v983
      %v997 = vpack.c.bf16 %v982, %v981
      %v998 = vpack.c.bf16 %v992, %v991
      %v999 = vld [vmem:[%s579] sm:$0xff]
      %v1000 = vld [vmem:[%s579 + $0x8] sm:$0xff]
      %v1001 = vld [vmem:[%s584] sm:$0xff]
      %v1002 = vld [vmem:[%s584 + $0x8] sm:$0xff]
      %1004 = vset.pattern.permute.xlu0 0
      %1005 = vperm.xlu0 %1004, %v1001
      %v1006 = vpop.permute.xlu0 %1005
      %1009 = vset.pattern.permute.xlu0 0
      %1010 = vperm.xlu0 %1009, %v1002
      %v1011 = vpop.permute.xlu0 %1010
      %v1015 = vunpack.c.l.b16 %v999
      %v1016 = vunpack.c.h.b16 %v999
      %v1017 = vunpack.c.l.b16 %v1000
      %v1018 = vunpack.c.h.b16 %v1000
      %v1019 = vpack.c.b16 %v1017, %v1015
      %v1020 = vpack.c.b16 %v1018, %v1016
      %vm1022 = vcmask 130048
      %v1024 = vsel %vm1022, %v1020, 0
      %1026 = vmatprep.subr.bf16.mxu0 %v951
      %1027 = vmatpush1.bf16.msra.mxu0 %v950
      %1028 = vmatprep.subr.bf16.mxu0 %v908
      %1029 = vmatpush1.bf16.msra.mxu0 %v907
      %1030 = vmatprep.subr.bf16.mxu0 %v865
      %1031 = vmatpush1.bf16.msra.mxu0 %v864
      %1032 = vmatprep.subr.bf16.mxu0 %v822
      %1033 = vmatpush1.bf16.msra.mxu0 %v821
      %1034 = vmatprep.subr.bf16.mxu0 %v816
      %1035 = vmatpush1.bf16.msra.mxu0 %v815
      %1036 = vmatprep.subr.bf16.mxu0 %v773
      %1037 = vmatpush1.bf16.msra.mxu0 %v772
      %1038 = vmatprep.subr.bf16.mxu0 %v730
      %1039 = vmatpush1.bf16.msra.mxu0 %v729
      %1040 = vmatprep.subr.bf16.mxu0 %v687
      %1041 = vmatpush1.bf16.msra.mxu0 %v686
      %1042 = vmatprep.subr.bf16.mxu0 0
      %1043 = vmatpush2.bf16.msra.mxu0 0
      %1044 = vmatprep.subr.bf16.mxu0 0
      %1045 = vmatpush2.bf16.msra.mxu0 0
      %1046 = vmatprep.subr.bf16.mxu0 0
      %1047 = vmatpush2.bf16.msra.mxu0 0
      %1048 = vmatprep.subr.bf16.mxu0 0
      %1049 = vmatpush2.bf16.msra.mxu0 0
      %1050 = vmatprep.subr.bf16.mxu0 0
      %1051 = vmatpush2.bf16.msra.mxu0 0
      %1052 = vmatprep.subr.bf16.mxu0 0
      %1053 = vmatpush2.bf16.msra.mxu0 0
      %1054 = vmatprep.subr.bf16.mxu0 0
      %1055 = vmatpush2.bf16.msra.mxu0 0
      %1056 = vmatprep.subr.bf16.mxu0 %v994
      %1057 = vmatpush2.bf16.msra.mxu0 %v993
      %1058 = vmatprep.mubr.bf16.mxu0 %v1024
      %1059 = vmatmul.mubr.bf16.gmra.mxu0 %v1019
      %v1060 = vpop.f32.mrf.mxu0
      %v1061 = vadd.f32 %v1006, %v1060
      %v1062 = vpop.f32.mrf.mxu0
      %v1063 = vadd.f32 %v1006, %v1062
      %v1064 = vpop.f32.mrf.mxu0
      %v1065 = vadd.f32 %v1011, %v1064
      %v1066 = vpop.f32.mrf.mxu0
      %v1067 = vadd.f32 %v1011, %v1066
      %1068 = vdwg.mxu0
      %1069 = vmatprep.subr.bf16.mxu0 %v953
      %1070 = vmatpush1.bf16.msra.mxu0 %v952
      %1071 = vmatprep.subr.bf16.mxu0 %v910
      %1072 = vmatpush1.bf16.msra.mxu0 %v909
      %1073 = vmatprep.subr.bf16.mxu0 %v867
      %1074 = vmatpush1.bf16.msra.mxu0 %v866
      %1075 = vmatprep.subr.bf16.mxu0 %v824
      %1076 = vmatpush1.bf16.msra.mxu0 %v823
      %1077 = vmatprep.subr.bf16.mxu0 %v818
      %1078 = vmatpush1.bf16.msra.mxu0 %v817
      %1079 = vmatprep.subr.bf16.mxu0 %v775
      %1080 = vmatpush1.bf16.msra.mxu0 %v774
      %1081 = vmatprep.subr.bf16.mxu0 %v732
      %1082 = vmatpush1.bf16.msra.mxu0 %v731
      %1083 = vmatprep.subr.bf16.mxu0 %v689
      %1084 = vmatpush1.bf16.msra.mxu0 %v688
      %1085 = vmatprep.subr.bf16.mxu0 0
      %1086 = vmatpush2.bf16.msra.mxu0 0
      %1087 = vmatprep.subr.bf16.mxu0 0
      %1088 = vmatpush2.bf16.msra.mxu0 0
      %1089 = vmatprep.subr.bf16.mxu0 0
      %1090 = vmatpush2.bf16.msra.mxu0 0
      %1091 = vmatprep.subr.bf16.mxu0 0
      %1092 = vmatpush2.bf16.msra.mxu0 0
      %1093 = vmatprep.subr.bf16.mxu0 0
      %1094 = vmatpush2.bf16.msra.mxu0 0
      %1095 = vmatprep.subr.bf16.mxu0 0
      %1096 = vmatpush2.bf16.msra.mxu0 0
      %1097 = vmatprep.subr.bf16.mxu0 0
      %1098 = vmatpush2.bf16.msra.mxu0 0
      %1099 = vmatprep.subr.bf16.mxu0 %v996
      %1100 = vmatpush2.bf16.msra.mxu0 %v995
      %1101 = vmatprep.mubr.bf16.mxu0 %v1024
      %1102 = vmatmul.mubr.bf16.gmra.mxu0 %v1019
      %v1103 = vpop.f32.mrf.mxu0
      %v1104 = vadd.f32 %v1006, %v1103
      %v1105 = vpop.f32.mrf.mxu0
      %v1106 = vadd.f32 %v1006, %v1105
      %v1107 = vpop.f32.mrf.mxu0
      %v1108 = vadd.f32 %v1011, %v1107
      %v1109 = vpop.f32.mrf.mxu0
      %v1110 = vadd.f32 %v1011, %v1109
      %1111 = vdwg.mxu0
      %1112 = vmatprep.subr.bf16.mxu0 %v955
      %1113 = vmatpush1.bf16.msra.mxu0 %v954
      %1114 = vmatprep.subr.bf16.mxu0 %v912
      %1115 = vmatpush1.bf16.msra.mxu0 %v911
      %1116 = vmatprep.subr.bf16.mxu0 %v869
      %1117 = vmatpush1.bf16.msra.mxu0 %v868
      %1118 = vmatprep.subr.bf16.mxu0 %v826
      %1119 = vmatpush1.bf16.msra.mxu0 %v825
      %1120 = vmatprep.subr.bf16.mxu0 %v820
      %1121 = vmatpush1.bf16.msra.mxu0 %v819
      %1122 = vmatprep.subr.bf16.mxu0 %v777
      %1123 = vmatpush1.bf16.msra.mxu0 %v776
      %1124 = vmatprep.subr.bf16.mxu0 %v734
      %1125 = vmatpush1.bf16.msra.mxu0 %v733
      %1126 = vmatprep.subr.bf16.mxu0 %v691
      %1127 = vmatpush1.bf16.msra.mxu0 %v690
      %1128 = vmatprep.subr.bf16.mxu0 0
      %1129 = vmatpush2.bf16.msra.mxu0 0
      %1130 = vmatprep.subr.bf16.mxu0 0
      %1131 = vmatpush2.bf16.msra.mxu0 0
      %1132 = vmatprep.subr.bf16.mxu0 0
      %1133 = vmatpush2.bf16.msra.mxu0 0
      %1134 = vmatprep.subr.bf16.mxu0 0
      %1135 = vmatpush2.bf16.msra.mxu0 0
      %1136 = vmatprep.subr.bf16.mxu0 0
      %1137 = vmatpush2.bf16.msra.mxu0 0
      %1138 = vmatprep.subr.bf16.mxu0 0
      %1139 = vmatpush2.bf16.msra.mxu0 0
      %1140 = vmatprep.subr.bf16.mxu0 0
      %1141 = vmatpush2.bf16.msra.mxu0 0
      %1142 = vmatprep.subr.bf16.mxu0 %v998
      %1143 = vmatpush2.bf16.msra.mxu0 %v997
      %1144 = vmatprep.mubr.bf16.mxu0 %v1024
      %1145 = vmatmul.mubr.bf16.gmra.mxu0 %v1019
      %v1146 = vpop.f32.mrf.mxu0
      %v1147 = vadd.f32 %v1006, %v1146
      %v1148 = vpop.f32.mrf.mxu0
      %v1149 = vadd.f32 %v1006, %v1148
      %v1150 = vpop.f32.mrf.mxu0
      %v1151 = vadd.f32 %v1011, %v1150
      %v1152 = vpop.f32.mrf.mxu0
      %v1153 = vadd.f32 %v1011, %v1152
      %1154 = vdwg.mxu0
      %v1155 = vmax.f32 %v1061, 0.0
      %v1156 = vmax.f32 %v1063, 0.0
      %v1157 = vmax.f32 %v1104, 0.0
      %v1158 = vmax.f32 %v1106, 0.0
      %v1159 = vmax.f32 %v1147, 0.0
      %v1160 = vmax.f32 %v1149, 0.0
      %v1161 = vmax.f32 %v1065, 0.0
      %v1162 = vmax.f32 %v1067, 0.0
      %v1163 = vmax.f32 %v1108, 0.0
      %v1164 = vmax.f32 %v1110, 0.0
      %v1165 = vmax.f32 %v1151, 0.0
      %v1166 = vmax.f32 %v1153, 0.0
      %v1168 = vlaneseq
      %v1169 = vshrl.u32 %v1168, 7
      %v1170 = vsub.s32 0, %v1169
      %v1171 = vrot.slane %v634, %v1170
      %v1172 = vlaneseq
      %v1173 = vshrl.u32 %v1172, 7
      %v1174 = vsub.s32 1, %v1173
      %v1175 = vrot.slane %v634, %v1174
      %v1176 = vlaneseq
      %v1177 = vshrl.u32 %v1176, 7
      %v1178 = vsub.s32 2, %v1177
      %v1179 = vrot.slane %v634, %v1178
      %v1180 = vlaneseq
      %v1181 = vshrl.u32 %v1180, 7
      %v1182 = vsub.s32 3, %v1181
      %v1183 = vrot.slane %v634, %v1182
      %v1184 = vlaneseq
      %v1185 = vshrl.u32 %v1184, 7
      %v1186 = vsub.s32 4, %v1185
      %v1187 = vrot.slane %v634, %v1186
      %v1188 = vlaneseq
      %v1189 = vshrl.u32 %v1188, 7
      %v1190 = vsub.s32 5, %v1189
      %v1191 = vrot.slane %v634, %v1190
      %v1198 = vmul.f32 %v1155, %v1171
      %v1199 = vmul.f32 %v1156, %v1175
      %v1200 = vmul.f32 %v1157, %v1179
      %v1201 = vmul.f32 %v1158, %v1183
      %v1202 = vmul.f32 %v1159, %v1187
      %v1203 = vmul.f32 %v1160, %v1191
      %v1204 = vmul.f32 %v1161, %v1171
      %v1205 = vmul.f32 %v1162, %v1175
      %v1206 = vmul.f32 %v1163, %v1179
      %v1207 = vmul.f32 %v1164, %v1183
      %v1208 = vmul.f32 %v1165, %v1187
      %v1209 = vmul.f32 %v1166, %v1191
      %1210 = vrot.lane.b32.xlu0 %v1198, 19
      %v1211 = vpop.permute.xlu0 %1210
      %1212 = vrot.lane.b32.xlu0 %v1204, 19
      %v1213 = vpop.permute.xlu0 %1212
      %1214 = vrot.lane.b32.xlu0 %v1199, 19
      %v1215 = vpop.permute.xlu0 %1214
      %1216 = vrot.lane.b32.xlu0 %v1205, 19
      %v1217 = vpop.permute.xlu0 %1216
      %1218 = vrot.lane.b32.xlu0 %v1200, 19
      %v1219 = vpop.permute.xlu0 %1218
      %1220 = vrot.lane.b32.xlu0 %v1206, 19
      %v1221 = vpop.permute.xlu0 %1220
      %1222 = vrot.lane.b32.xlu0 %v1201, 19
      %v1223 = vpop.permute.xlu0 %1222
      %1224 = vrot.lane.b32.xlu0 %v1207, 19
      %v1225 = vpop.permute.xlu0 %1224
      %1226 = vrot.lane.b32.xlu0 %v1202, 19
      %v1227 = vpop.permute.xlu0 %1226
      %1228 = vrot.lane.b32.xlu0 %v1208, 19
      %v1229 = vpop.permute.xlu0 %1228
      %1230 = vrot.lane.b32.xlu0 %v1203, 19
      %v1231 = vpop.permute.xlu0 %1230
      %1232 = vrot.lane.b32.xlu0 %v1209, 19
      %v1233 = vpop.permute.xlu0 %1232
      %v1234 = vsel %vm673, %v1227, %v1231
      %v1235 = vsel %vm673, %v1229, %v1233
      %v1236 = vsel %vm673, %v1223, %v1227
      %v1237 = vsel %vm673, %v1225, %v1229
      %v1238 = vsel %vm673, %v1219, %v1223
      %v1239 = vsel %vm673, %v1221, %v1225
      %v1240 = vsel %vm673, %v1215, %v1219
      %v1241 = vsel %vm673, %v1217, %v1221
      %v1242 = vsel %vm673, %v1211, %v1215
      %v1243 = vsel %vm673, %v1213, %v1217
      %v1244 = vsel %vm673, %v1231, %v1211
      %v1245 = vsel %vm673, %v1233, %v1213
      %v1246 = vpack.c.bf16 %v1245, %v1244
      %v1247 = vpack.c.bf16 %v1243, %v1242
      %v1248 = vpack.c.bf16 %v1241, %v1240
      %v1249 = vpack.c.bf16 %v1239, %v1238
      %v1250 = vpack.c.bf16 %v1237, %v1236
      %v1251 = vpack.c.bf16 %v1235, %v1234
      %1252 = vrot.lane.b32.xlu0 %v1198, 18
      %v1253 = vpop.permute.xlu0 %1252
      %1254 = vrot.lane.b32.xlu0 %v1204, 18
      %v1255 = vpop.permute.xlu0 %1254
      %1256 = vrot.lane.b32.xlu0 %v1199, 18
      %v1257 = vpop.permute.xlu0 %1256
      %1258 = vrot.lane.b32.xlu0 %v1205, 18
      %v1259 = vpop.permute.xlu0 %1258
      %1260 = vrot.lane.b32.xlu0 %v1200, 18
      %v1261 = vpop.permute.xlu0 %1260
      %1262 = vrot.lane.b32.xlu0 %v1206, 18
      %v1263 = vpop.permute.xlu0 %1262
      %1264 = vrot.lane.b32.xlu0 %v1201, 18
      %v1265 = vpop.permute.xlu0 %1264
      %1266 = vrot.lane.b32.xlu0 %v1207, 18
      %v1267 = vpop.permute.xlu0 %1266
      %1268 = vrot.lane.b32.xlu0 %v1202, 18
      %v1269 = vpop.permute.xlu0 %1268
      %1270 = vrot.lane.b32.xlu0 %v1208, 18
      %v1271 = vpop.permute.xlu0 %1270
      %1272 = vrot.lane.b32.xlu0 %v1203, 18
      %v1273 = vpop.permute.xlu0 %1272
      %1274 = vrot.lane.b32.xlu0 %v1209, 18
      %v1275 = vpop.permute.xlu0 %1274
      %v1276 = vsel %vm716, %v1269, %v1273
      %v1277 = vsel %vm716, %v1271, %v1275
      %v1278 = vsel %vm716, %v1265, %v1269
      %v1279 = vsel %vm716, %v1267, %v1271
      %v1280 = vsel %vm716, %v1261, %v1265
      %v1281 = vsel %vm716, %v1263, %v1267
      %v1282 = vsel %vm716, %v1257, %v1261
      %v1283 = vsel %vm716, %v1259, %v1263
      %v1284 = vsel %vm716, %v1253, %v1257
      %v1285 = vsel %vm716, %v1255, %v1259
      %v1286 = vsel %vm716, %v1273, %v1253
      %v1287 = vsel %vm716, %v1275, %v1255
      %v1288 = vpack.c.bf16 %v1287, %v1286
      %v1289 = vpack.c.bf16 %v1285, %v1284
      %v1290 = vpack.c.bf16 %v1283, %v1282
      %v1291 = vpack.c.bf16 %v1281, %v1280
      %v1292 = vpack.c.bf16 %v1279, %v1278
      %v1293 = vpack.c.bf16 %v1277, %v1276
      %1294 = vrot.lane.b32.xlu0 %v1198, 17
      %v1295 = vpop.permute.xlu0 %1294
      %1296 = vrot.lane.b32.xlu0 %v1204, 17
      %v1297 = vpop.permute.xlu0 %1296
      %1298 = vrot.lane.b32.xlu0 %v1199, 17
      %v1299 = vpop.permute.xlu0 %1298
      %1300 = vrot.lane.b32.xlu0 %v1205, 17
      %v1301 = vpop.permute.xlu0 %1300
      %1302 = vrot.lane.b32.xlu0 %v1200, 17
      %v1303 = vpop.permute.xlu0 %1302
      %1304 = vrot.lane.b32.xlu0 %v1206, 17
      %v1305 = vpop.permute.xlu0 %1304
      %1306 = vrot.lane.b32.xlu0 %v1201, 17
      %v1307 = vpop.permute.xlu0 %1306
      %1308 = vrot.lane.b32.xlu0 %v1207, 17
      %v1309 = vpop.permute.xlu0 %1308
      %1310 = vrot.lane.b32.xlu0 %v1202, 17
      %v1311 = vpop.permute.xlu0 %1310
      %1312 = vrot.lane.b32.xlu0 %v1208, 17
      %v1313 = vpop.permute.xlu0 %1312
      %1314 = vrot.lane.b32.xlu0 %v1203, 17
      %v1315 = vpop.permute.xlu0 %1314
      %1316 = vrot.lane.b32.xlu0 %v1209, 17
      %v1317 = vpop.permute.xlu0 %1316
      %v1318 = vsel %vm759, %v1311, %v1315
      %v1319 = vsel %vm759, %v1313, %v1317
      %v1320 = vsel %vm759, %v1307, %v1311
      %v1321 = vsel %vm759, %v1309, %v1313
      %v1322 = vsel %vm759, %v1303, %v1307
      %v1323 = vsel %vm759, %v1305, %v1309
      %v1324 = vsel %vm759, %v1299, %v1303
      %v1325 = vsel %vm759, %v1301, %v1305
      %v1326 = vsel %vm759, %v1295, %v1299
      %v1327 = vsel %vm759, %v1297, %v1301
      %v1328 = vsel %vm759, %v1315, %v1295
      %v1329 = vsel %vm759, %v1317, %v1297
      %v1330 = vpack.c.bf16 %v1329, %v1328
      %v1331 = vpack.c.bf16 %v1327, %v1326
      %v1332 = vpack.c.bf16 %v1325, %v1324
      %v1333 = vpack.c.bf16 %v1323, %v1322
      %v1334 = vpack.c.bf16 %v1321, %v1320
      %v1335 = vpack.c.bf16 %v1319, %v1318
      %1336 = vrot.lane.b32.xlu0 %v1198, 1
      %v1337 = vpop.permute.xlu0 %1336
      %1338 = vrot.lane.b32.xlu0 %v1204, 1
      %v1339 = vpop.permute.xlu0 %1338
      %1340 = vrot.lane.b32.xlu0 %v1199, 1
      %v1341 = vpop.permute.xlu0 %1340
      %1342 = vrot.lane.b32.xlu0 %v1205, 1
      %v1343 = vpop.permute.xlu0 %1342
      %1344 = vrot.lane.b32.xlu0 %v1200, 1
      %v1345 = vpop.permute.xlu0 %1344
      %1346 = vrot.lane.b32.xlu0 %v1206, 1
      %v1347 = vpop.permute.xlu0 %1346
      %1348 = vrot.lane.b32.xlu0 %v1201, 1
      %v1349 = vpop.permute.xlu0 %1348
      %1350 = vrot.lane.b32.xlu0 %v1207, 1
      %v1351 = vpop.permute.xlu0 %1350
      %1352 = vrot.lane.b32.xlu0 %v1202, 1
      %v1353 = vpop.permute.xlu0 %1352
      %1354 = vrot.lane.b32.xlu0 %v1208, 1
      %v1355 = vpop.permute.xlu0 %1354
      %1356 = vrot.lane.b32.xlu0 %v1203, 1
      %v1357 = vpop.permute.xlu0 %1356
      %1358 = vrot.lane.b32.xlu0 %v1209, 1
      %v1359 = vpop.permute.xlu0 %1358
      %v1360 = vsel %vm802, %v1353, %v1357
      %v1361 = vsel %vm802, %v1355, %v1359
      %v1362 = vsel %vm802, %v1349, %v1353
      %v1363 = vsel %vm802, %v1351, %v1355
      %v1364 = vsel %vm802, %v1345, %v1349
      %v1365 = vsel %vm802, %v1347, %v1351
      %v1366 = vsel %vm802, %v1341, %v1345
      %v1367 = vsel %vm802, %v1343, %v1347
      %v1368 = vsel %vm802, %v1337, %v1341
      %v1369 = vsel %vm802, %v1339, %v1343
      %v1370 = vsel %vm802, %v1357, %v1337
      %v1371 = vsel %vm802, %v1359, %v1339
      %v1372 = vpack.c.bf16 %v1371, %v1370
      %v1373 = vpack.c.bf16 %v1369, %v1368
      %v1374 = vpack.c.bf16 %v1367, %v1366
      %v1375 = vpack.c.bf16 %v1365, %v1364
      %v1376 = vpack.c.bf16 %v1363, %v1362
      %v1377 = vpack.c.bf16 %v1361, %v1360
      %v1378 = vpack.c.bf16 %v1204, %v1198
      %v1379 = vpack.c.bf16 %v1205, %v1199
      %v1380 = vpack.c.bf16 %v1206, %v1200
      %v1381 = vpack.c.bf16 %v1207, %v1201
      %v1382 = vpack.c.bf16 %v1208, %v1202
      %v1383 = vpack.c.bf16 %v1209, %v1203
      %1384 = vrot.lane.b32.xlu0 %v1198, 127
      %v1385 = vpop.permute.xlu0 %1384
      %1386 = vrot.lane.b32.xlu0 %v1204, 127
      %v1387 = vpop.permute.xlu0 %1386
      %1388 = vrot.lane.b32.xlu0 %v1199, 127
      %v1389 = vpop.permute.xlu0 %1388
      %1390 = vrot.lane.b32.xlu0 %v1205, 127
      %v1391 = vpop.permute.xlu0 %1390
      %1392 = vrot.lane.b32.xlu0 %v1200, 127
      %v1393 = vpop.permute.xlu0 %1392
      %1394 = vrot.lane.b32.xlu0 %v1206, 127
      %v1395 = vpop.permute.xlu0 %1394
      %1396 = vrot.lane.b32.xlu0 %v1201, 127
      %v1397 = vpop.permute.xlu0 %1396
      %1398 = vrot.lane.b32.xlu0 %v1207, 127
      %v1399 = vpop.permute.xlu0 %1398
      %1400 = vrot.lane.b32.xlu0 %v1202, 127
      %v1401 = vpop.permute.xlu0 %1400
      %1402 = vrot.lane.b32.xlu0 %v1208, 127
      %v1403 = vpop.permute.xlu0 %1402
      %1404 = vrot.lane.b32.xlu0 %v1203, 127
      %v1405 = vpop.permute.xlu0 %1404
      %1406 = vrot.lane.b32.xlu0 %v1209, 127
      %v1407 = vpop.permute.xlu0 %1406
      %v1408 = vsel %vm851, %v1401, %v1405
      %v1409 = vsel %vm851, %v1403, %v1407
      %v1410 = vsel %vm851, %v1397, %v1401
      %v1411 = vsel %vm851, %v1399, %v1403
      %v1412 = vsel %vm851, %v1393, %v1397
      %v1413 = vsel %vm851, %v1395, %v1399
      %v1414 = vsel %vm851, %v1389, %v1393
      %v1415 = vsel %vm851, %v1391, %v1395
      %v1416 = vsel %vm851, %v1385, %v1389
      %v1417 = vsel %vm851, %v1387, %v1391
      %v1418 = vsel %vm851, %v1405, %v1385
      %v1419 = vsel %vm851, %v1407, %v1387
      %v1420 = vpack.c.bf16 %v1417, %v1416
      %v1421 = vpack.c.bf16 %v1415, %v1414
      %v1422 = vpack.c.bf16 %v1413, %v1412
      %v1423 = vpack.c.bf16 %v1411, %v1410
      %v1424 = vpack.c.bf16 %v1409, %v1408
      %v1425 = vpack.c.bf16 %v1419, %v1418
      %1426 = vrot.lane.b32.xlu0 %v1198, 111
      %v1427 = vpop.permute.xlu0 %1426
      %1428 = vrot.lane.b32.xlu0 %v1204, 111
      %v1429 = vpop.permute.xlu0 %1428
      %1430 = vrot.lane.b32.xlu0 %v1199, 111
      %v1431 = vpop.permute.xlu0 %1430
      %1432 = vrot.lane.b32.xlu0 %v1205, 111
      %v1433 = vpop.permute.xlu0 %1432
      %1434 = vrot.lane.b32.xlu0 %v1200, 111
      %v1435 = vpop.permute.xlu0 %1434
      %1436 = vrot.lane.b32.xlu0 %v1206, 111
      %v1437 = vpop.permute.xlu0 %1436
      %1438 = vrot.lane.b32.xlu0 %v1201, 111
      %v1439 = vpop.permute.xlu0 %1438
      %1440 = vrot.lane.b32.xlu0 %v1207, 111
      %v1441 = vpop.permute.xlu0 %1440
      %1442 = vrot.lane.b32.xlu0 %v1202, 111
      %v1443 = vpop.permute.xlu0 %1442
      %1444 = vrot.lane.b32.xlu0 %v1208, 111
      %v1445 = vpop.permute.xlu0 %1444
      %1446 = vrot.lane.b32.xlu0 %v1203, 111
      %v1447 = vpop.permute.xlu0 %1446
      %1448 = vrot.lane.b32.xlu0 %v1209, 111
      %v1449 = vpop.permute.xlu0 %1448
      %v1450 = vsel %vm894, %v1443, %v1447
      %v1451 = vsel %vm894, %v1445, %v1449
      %v1452 = vsel %vm894, %v1439, %v1443
      %v1453 = vsel %vm894, %v1441, %v1445
      %v1454 = vsel %vm894, %v1435, %v1439
      %v1455 = vsel %vm894, %v1437, %v1441
      %v1456 = vsel %vm894, %v1431, %v1435
      %v1457 = vsel %vm894, %v1433, %v1437
      %v1458 = vsel %vm894, %v1427, %v1431
      %v1459 = vsel %vm894, %v1429, %v1433
      %v1460 = vsel %vm894, %v1447, %v1427
      %v1461 = vsel %vm894, %v1449, %v1429
      %v1462 = vpack.c.bf16 %v1459, %v1458
      %v1463 = vpack.c.bf16 %v1457, %v1456
      %v1464 = vpack.c.bf16 %v1455, %v1454
      %v1465 = vpack.c.bf16 %v1453, %v1452
      %v1466 = vpack.c.bf16 %v1451, %v1450
      %v1467 = vpack.c.bf16 %v1461, %v1460
      %1468 = vrot.lane.b32.xlu0 %v1198, 110
      %v1469 = vpop.permute.xlu0 %1468
      %1470 = vrot.lane.b32.xlu0 %v1204, 110
      %v1471 = vpop.permute.xlu0 %1470
      %1472 = vrot.lane.b32.xlu0 %v1199, 110
      %v1473 = vpop.permute.xlu0 %1472
      %1474 = vrot.lane.b32.xlu0 %v1205, 110
      %v1475 = vpop.permute.xlu0 %1474
      %1476 = vrot.lane.b32.xlu0 %v1200, 110
      %v1477 = vpop.permute.xlu0 %1476
      %1478 = vrot.lane.b32.xlu0 %v1206, 110
      %v1479 = vpop.permute.xlu0 %1478
      %1480 = vrot.lane.b32.xlu0 %v1201, 110
      %v1481 = vpop.permute.xlu0 %1480
      %1482 = vrot.lane.b32.xlu0 %v1207, 110
      %v1483 = vpop.permute.xlu0 %1482
      %1484 = vrot.lane.b32.xlu0 %v1202, 110
      %v1485 = vpop.permute.xlu0 %1484
      %1486 = vrot.lane.b32.xlu0 %v1208, 110
      %v1487 = vpop.permute.xlu0 %1486
      %1488 = vrot.lane.b32.xlu0 %v1203, 110
      %v1489 = vpop.permute.xlu0 %1488
      %1490 = vrot.lane.b32.xlu0 %v1209, 110
      %v1491 = vpop.permute.xlu0 %1490
      %v1492 = vsel %vm937, %v1485, %v1489
      %v1493 = vsel %vm937, %v1487, %v1491
      %v1494 = vsel %vm937, %v1481, %v1485
      %v1495 = vsel %vm937, %v1483, %v1487
      %v1496 = vsel %vm937, %v1477, %v1481
      %v1497 = vsel %vm937, %v1479, %v1483
      %v1498 = vsel %vm937, %v1473, %v1477
      %v1499 = vsel %vm937, %v1475, %v1479
      %v1500 = vsel %vm937, %v1469, %v1473
      %v1501 = vsel %vm937, %v1471, %v1475
      %v1502 = vsel %vm937, %v1489, %v1469
      %v1503 = vsel %vm937, %v1491, %v1471
      %v1504 = vpack.c.bf16 %v1501, %v1500
      %v1505 = vpack.c.bf16 %v1499, %v1498
      %v1506 = vpack.c.bf16 %v1497, %v1496
      %v1507 = vpack.c.bf16 %v1495, %v1494
      %v1508 = vpack.c.bf16 %v1493, %v1492
      %v1509 = vpack.c.bf16 %v1503, %v1502
      %1510 = vrot.lane.b32.xlu0 %v1198, 109
      %v1511 = vpop.permute.xlu0 %1510
      %1512 = vrot.lane.b32.xlu0 %v1204, 109
      %v1513 = vpop.permute.xlu0 %1512
      %1514 = vrot.lane.b32.xlu0 %v1199, 109
      %v1515 = vpop.permute.xlu0 %1514
      %1516 = vrot.lane.b32.xlu0 %v1205, 109
      %v1517 = vpop.permute.xlu0 %1516
      %1518 = vrot.lane.b32.xlu0 %v1200, 109
      %v1519 = vpop.permute.xlu0 %1518
      %1520 = vrot.lane.b32.xlu0 %v1206, 109
      %v1521 = vpop.permute.xlu0 %1520
      %1522 = vrot.lane.b32.xlu0 %v1201, 109
      %v1523 = vpop.permute.xlu0 %1522
      %1524 = vrot.lane.b32.xlu0 %v1207, 109
      %v1525 = vpop.permute.xlu0 %1524
      %1526 = vrot.lane.b32.xlu0 %v1202, 109
      %v1527 = vpop.permute.xlu0 %1526
      %1528 = vrot.lane.b32.xlu0 %v1208, 109
      %v1529 = vpop.permute.xlu0 %1528
      %1530 = vrot.lane.b32.xlu0 %v1203, 109
      %v1531 = vpop.permute.xlu0 %1530
      %1532 = vrot.lane.b32.xlu0 %v1209, 109
      %v1533 = vpop.permute.xlu0 %1532
      %v1534 = vsel %vm980, %v1527, %v1531
      %v1535 = vsel %vm980, %v1529, %v1533
      %v1536 = vsel %vm980, %v1523, %v1527
      %v1537 = vsel %vm980, %v1525, %v1529
      %v1538 = vsel %vm980, %v1519, %v1523
      %v1539 = vsel %vm980, %v1521, %v1525
      %v1540 = vsel %vm980, %v1515, %v1519
      %v1541 = vsel %vm980, %v1517, %v1521
      %v1542 = vsel %vm980, %v1511, %v1515
      %v1543 = vsel %vm980, %v1513, %v1517
      %v1544 = vsel %vm980, %v1531, %v1511
      %v1545 = vsel %vm980, %v1533, %v1513
      %v1546 = vpack.c.bf16 %v1543, %v1542
      %v1547 = vpack.c.bf16 %v1541, %v1540
      %v1548 = vpack.c.bf16 %v1539, %v1538
      %v1549 = vpack.c.bf16 %v1537, %v1536
      %v1550 = vpack.c.bf16 %v1535, %v1534
      %v1551 = vpack.c.bf16 %v1545, %v1544
      %v1552 = vld [vmem:[%s589] sm:$0xff]
      %v1553 = vld [vmem:[%s589 + $0x8] sm:$0xff]
      %v1554 = vld [vmem:[%s589 + $0x10] sm:$0xff]
      %v1555 = vld [vmem:[%s589 + $0x18] sm:$0xff]
      %v1556 = vld [vmem:[%s594] sm:$0xff]
      %v1557 = vld [vmem:[%s594 + $0x8] sm:$0xff]
      %v1558 = vld [vmem:[%s594 + $0x10] sm:$0xff]
      %v1559 = vld [vmem:[%s594 + $0x18] sm:$0xff]
      %1561 = vset.pattern.permute.xlu0 0
      %1562 = vperm.xlu0 %1561, %v1556
      %v1563 = vpop.permute.xlu0 %1562
      %1566 = vset.pattern.permute.xlu0 0
      %1567 = vperm.xlu0 %1566, %v1557
      %v1568 = vpop.permute.xlu0 %1567
      %1571 = vset.pattern.permute.xlu0 0
      %1572 = vperm.xlu0 %1571, %v1558
      %v1573 = vpop.permute.xlu0 %1572
      %1576 = vset.pattern.permute.xlu0 0
      %1577 = vperm.xlu0 %1576, %v1559
      %v1578 = vpop.permute.xlu0 %1577
      %v1584 = vunpack.c.l.b16 %v1552
      %v1585 = vunpack.c.h.b16 %v1552
      %v1586 = vunpack.c.l.b16 %v1553
      %v1587 = vunpack.c.h.b16 %v1553
      %v1588 = vunpack.c.l.b16 %v1554
      %v1589 = vunpack.c.h.b16 %v1554
      %v1590 = vunpack.c.l.b16 %v1555
      %v1591 = vunpack.c.h.b16 %v1555
      %v1592 = vpack.c.b16 %v1586, %v1584
      %v1593 = vpack.c.b16 %v1587, %v1585
      %v1594 = vpack.c.b16 %v1590, %v1588
      %v1595 = vpack.c.b16 %v1591, %v1589
      %v1599 = vsel %vm1022, %v1593, 0
      %v1602 = vsel %vm1022, %v1595, 0
      %1604 = vmatprep.subr.bf16.mxu0 %v1505
      %1605 = vmatpush1.bf16.msra.mxu0 %v1504
      %1606 = vmatprep.subr.bf16.mxu0 %v1463
      %1607 = vmatpush1.bf16.msra.mxu0 %v1462
      %1608 = vmatprep.subr.bf16.mxu0 %v1421
      %1609 = vmatpush1.bf16.msra.mxu0 %v1420
      %1610 = vmatprep.subr.bf16.mxu0 %v1379
      %1611 = vmatpush1.bf16.msra.mxu0 %v1378
      %1612 = vmatprep.subr.bf16.mxu0 %v1373
      %1613 = vmatpush1.bf16.msra.mxu0 %v1372
      %1614 = vmatprep.subr.bf16.mxu0 %v1331
      %1615 = vmatpush1.bf16.msra.mxu0 %v1330
      %1616 = vmatprep.subr.bf16.mxu0 %v1289
      %1617 = vmatpush1.bf16.msra.mxu0 %v1288
      %1618 = vmatprep.subr.bf16.mxu0 %v1247
      %1619 = vmatpush1.bf16.msra.mxu0 %v1246
      %1620 = vmatprep.subr.bf16.mxu0 0
      %1621 = vmatpush2.bf16.msra.mxu0 0
      %1622 = vmatprep.subr.bf16.mxu0 0
      %1623 = vmatpush2.bf16.msra.mxu0 0
      %1624 = vmatprep.subr.bf16.mxu0 0
      %1625 = vmatpush2.bf16.msra.mxu0 0
      %1626 = vmatprep.subr.bf16.mxu0 0
      %1627 = vmatpush2.bf16.msra.mxu0 0
      %1628 = vmatprep.subr.bf16.mxu0 0
      %1629 = vmatpush2.bf16.msra.mxu0 0
      %1630 = vmatprep.subr.bf16.mxu0 0
      %1631 = vmatpush2.bf16.msra.mxu0 0
      %1632 = vmatprep.subr.bf16.mxu0 0
      %1633 = vmatpush2.bf16.msra.mxu0 0
      %1634 = vmatprep.subr.bf16.mxu0 %v1547
      %1635 = vmatpush2.bf16.msra.mxu0 %v1546
      %1636 = vmatprep.mubr.bf16.mxu0 %v1599
      %1637 = vmatmul.mubr.bf16.gmra.mxu0 %v1592
      %v1638 = vpop.f32.mrf.mxu0
      %v1639 = vadd.f32 %v1563, %v1638
      %v1640 = vpop.f32.mrf.mxu0
      %v1641 = vadd.f32 %v1563, %v1640
      %v1642 = vpop.f32.mrf.mxu0
      %v1643 = vadd.f32 %v1568, %v1642
      %v1644 = vpop.f32.mrf.mxu0
      %v1645 = vadd.f32 %v1568, %v1644
      %1646 = vmatprep.mubr.bf16.mxu0 %v1602
      %1647 = vmatmul.mubr.bf16.gmra.mxu0 %v1594
      %v1648 = vpop.f32.mrf.mxu0
      %v1649 = vadd.f32 %v1573, %v1648
      %v1650 = vpop.f32.mrf.mxu0
      %v1651 = vadd.f32 %v1573, %v1650
      %v1652 = vpop.f32.mrf.mxu0
      %v1653 = vadd.f32 %v1578, %v1652
      %v1654 = vpop.f32.mrf.mxu0
      %v1655 = vadd.f32 %v1578, %v1654
      %1656 = vdwg.mxu0
      %1657 = vmatprep.subr.bf16.mxu0 %v1507
      %1658 = vmatpush1.bf16.msra.mxu0 %v1506
      %1659 = vmatprep.subr.bf16.mxu0 %v1465
      %1660 = vmatpush1.bf16.msra.mxu0 %v1464
      %1661 = vmatprep.subr.bf16.mxu0 %v1423
      %1662 = vmatpush1.bf16.msra.mxu0 %v1422
      %1663 = vmatprep.subr.bf16.mxu0 %v1381
      %1664 = vmatpush1.bf16.msra.mxu0 %v1380
      %1665 = vmatprep.subr.bf16.mxu0 %v1375
      %1666 = vmatpush1.bf16.msra.mxu0 %v1374
      %1667 = vmatprep.subr.bf16.mxu0 %v1333
      %1668 = vmatpush1.bf16.msra.mxu0 %v1332
      %1669 = vmatprep.subr.bf16.mxu0 %v1291
      %1670 = vmatpush1.bf16.msra.mxu0 %v1290
      %1671 = vmatprep.subr.bf16.mxu0 %v1249
      %1672 = vmatpush1.bf16.msra.mxu0 %v1248
      %1673 = vmatprep.subr.bf16.mxu0 0
      %1674 = vmatpush2.bf16.msra.mxu0 0
      %1675 = vmatprep.subr.bf16.mxu0 0
      %1676 = vmatpush2.bf16.msra.mxu0 0
      %1677 = vmatprep.subr.bf16.mxu0 0
      %1678 = vmatpush2.bf16.msra.mxu0 0
      %1679 = vmatprep.subr.bf16.mxu0 0
      %1680 = vmatpush2.bf16.msra.mxu0 0
      %1681 = vmatprep.subr.bf16.mxu0 0
      %1682 = vmatpush2.bf16.msra.mxu0 0
      %1683 = vmatprep.subr.bf16.mxu0 0
      %1684 = vmatpush2.bf16.msra.mxu0 0
      %1685 = vmatprep.subr.bf16.mxu0 0
      %1686 = vmatpush2.bf16.msra.mxu0 0
      %1687 = vmatprep.subr.bf16.mxu0 %v1549
      %1688 = vmatpush2.bf16.msra.mxu0 %v1548
      %1689 = vmatprep.mubr.bf16.mxu0 %v1599
      %1690 = vmatmul.mubr.bf16.gmra.mxu0 %v1592
      %v1691 = vpop.f32.mrf.mxu0
      %v1692 = vadd.f32 %v1563, %v1691
      %v1693 = vpop.f32.mrf.mxu0
      %v1694 = vadd.f32 %v1563, %v1693
      %v1695 = vpop.f32.mrf.mxu0
      %v1696 = vadd.f32 %v1568, %v1695
      %v1697 = vpop.f32.mrf.mxu0
      %v1698 = vadd.f32 %v1568, %v1697
      %1699 = vmatprep.mubr.bf16.mxu0 %v1602
      %1700 = vmatmul.mubr.bf16.gmra.mxu0 %v1594
      %v1701 = vpop.f32.mrf.mxu0
      %v1702 = vadd.f32 %v1573, %v1701
      %v1703 = vpop.f32.mrf.mxu0
      %v1704 = vadd.f32 %v1573, %v1703
      %v1705 = vpop.f32.mrf.mxu0
      %v1706 = vadd.f32 %v1578, %v1705
      %v1707 = vpop.f32.mrf.mxu0
      %v1708 = vadd.f32 %v1578, %v1707
      %1709 = vdwg.mxu0
      %1710 = vmatprep.subr.bf16.mxu0 %v1509
      %1711 = vmatpush1.bf16.msra.mxu0 %v1508
      %1712 = vmatprep.subr.bf16.mxu0 %v1467
      %1713 = vmatpush1.bf16.msra.mxu0 %v1466
      %1714 = vmatprep.subr.bf16.mxu0 %v1425
      %1715 = vmatpush1.bf16.msra.mxu0 %v1424
      %1716 = vmatprep.subr.bf16.mxu0 %v1383
      %1717 = vmatpush1.bf16.msra.mxu0 %v1382
      %1718 = vmatprep.subr.bf16.mxu0 %v1377
      %1719 = vmatpush1.bf16.msra.mxu0 %v1376
      %1720 = vmatprep.subr.bf16.mxu0 %v1335
      %1721 = vmatpush1.bf16.msra.mxu0 %v1334
      %1722 = vmatprep.subr.bf16.mxu0 %v1293
      %1723 = vmatpush1.bf16.msra.mxu0 %v1292
      %1724 = vmatprep.subr.bf16.mxu0 %v1251
      %1725 = vmatpush1.bf16.msra.mxu0 %v1250
      %1726 = vmatprep.subr.bf16.mxu0 0
      %1727 = vmatpush2.bf16.msra.mxu0 0
      %1728 = vmatprep.subr.bf16.mxu0 0
      %1729 = vmatpush2.bf16.msra.mxu0 0
      %1730 = vmatprep.subr.bf16.mxu0 0
      %1731 = vmatpush2.bf16.msra.mxu0 0
      %1732 = vmatprep.subr.bf16.mxu0 0
      %1733 = vmatpush2.bf16.msra.mxu0 0
      %1734 = vmatprep.subr.bf16.mxu0 0
      %1735 = vmatpush2.bf16.msra.mxu0 0
      %1736 = vmatprep.subr.bf16.mxu0 0
      %1737 = vmatpush2.bf16.msra.mxu0 0
      %1738 = vmatprep.subr.bf16.mxu0 0
      %1739 = vmatpush2.bf16.msra.mxu0 0
      %1740 = vmatprep.subr.bf16.mxu0 %v1551
      %1741 = vmatpush2.bf16.msra.mxu0 %v1550
      %1742 = vmatprep.mubr.bf16.mxu0 %v1599
      %1743 = vmatmul.mubr.bf16.gmra.mxu0 %v1592
      %v1744 = vpop.f32.mrf.mxu0
      %v1745 = vadd.f32 %v1563, %v1744
      %v1746 = vpop.f32.mrf.mxu0
      %v1747 = vadd.f32 %v1563, %v1746
      %v1748 = vpop.f32.mrf.mxu0
      %v1749 = vadd.f32 %v1568, %v1748
      %v1750 = vpop.f32.mrf.mxu0
      %v1751 = vadd.f32 %v1568, %v1750
      %1752 = vmatprep.mubr.bf16.mxu0 %v1602
      %1753 = vmatmul.mubr.bf16.gmra.mxu0 %v1594
      %v1754 = vpop.f32.mrf.mxu0
      %v1755 = vadd.f32 %v1573, %v1754
      %v1756 = vpop.f32.mrf.mxu0
      %v1757 = vadd.f32 %v1573, %v1756
      %v1758 = vpop.f32.mrf.mxu0
      %v1759 = vadd.f32 %v1578, %v1758
      %v1760 = vpop.f32.mrf.mxu0
      %v1761 = vadd.f32 %v1578, %v1760
      %1762 = vdwg.mxu0
      %v1763 = vmax.f32 %v1639, 0.0
      %v1764 = vmax.f32 %v1641, 0.0
      %v1765 = vmax.f32 %v1692, 0.0
      %v1766 = vmax.f32 %v1694, 0.0
      %v1767 = vmax.f32 %v1745, 0.0
      %v1768 = vmax.f32 %v1747, 0.0
      %v1769 = vmax.f32 %v1643, 0.0
      %v1770 = vmax.f32 %v1645, 0.0
      %v1771 = vmax.f32 %v1696, 0.0
      %v1772 = vmax.f32 %v1698, 0.0
      %v1773 = vmax.f32 %v1749, 0.0
      %v1774 = vmax.f32 %v1751, 0.0
      %v1775 = vmax.f32 %v1649, 0.0
      %v1776 = vmax.f32 %v1651, 0.0
      %v1777 = vmax.f32 %v1702, 0.0
      %v1778 = vmax.f32 %v1704, 0.0
      %v1779 = vmax.f32 %v1755, 0.0
      %v1780 = vmax.f32 %v1757, 0.0
      %v1781 = vmax.f32 %v1653, 0.0
      %v1782 = vmax.f32 %v1655, 0.0
      %v1783 = vmax.f32 %v1706, 0.0
      %v1784 = vmax.f32 %v1708, 0.0
      %v1785 = vmax.f32 %v1759, 0.0
      %v1786 = vmax.f32 %v1761, 0.0
      %v1787 = vmul.f32 %v1763, %v1171
      %v1788 = vmul.f32 %v1764, %v1175
      %v1789 = vmul.f32 %v1765, %v1179
      %v1790 = vmul.f32 %v1766, %v1183
      %v1791 = vmul.f32 %v1767, %v1187
      %v1792 = vmul.f32 %v1768, %v1191
      %v1793 = vmul.f32 %v1769, %v1171
      %v1794 = vmul.f32 %v1770, %v1175
      %v1795 = vmul.f32 %v1771, %v1179
      %v1796 = vmul.f32 %v1772, %v1183
      %v1797 = vmul.f32 %v1773, %v1187
      %v1798 = vmul.f32 %v1774, %v1191
      %v1799 = vmul.f32 %v1775, %v1171
      %v1800 = vmul.f32 %v1776, %v1175
      %v1801 = vmul.f32 %v1777, %v1179
      %v1802 = vmul.f32 %v1778, %v1183
      %v1803 = vmul.f32 %v1779, %v1187
      %v1804 = vmul.f32 %v1780, %v1191
      %v1805 = vmul.f32 %v1781, %v1171
      %v1806 = vmul.f32 %v1782, %v1175
      %v1807 = vmul.f32 %v1783, %v1179
      %v1808 = vmul.f32 %v1784, %v1183
      %v1809 = vmul.f32 %v1785, %v1187
      %v1810 = vmul.f32 %v1786, %v1191
      %1811 = vrot.lane.b32.xlu0 %v1787, 19
      %v1812 = vpop.permute.xlu0 %1811
      %1813 = vrot.lane.b32.xlu0 %v1793, 19
      %v1814 = vpop.permute.xlu0 %1813
      %1815 = vrot.lane.b32.xlu0 %v1799, 19
      %v1816 = vpop.permute.xlu0 %1815
      %1817 = vrot.lane.b32.xlu0 %v1805, 19
      %v1818 = vpop.permute.xlu0 %1817
      %1819 = vrot.lane.b32.xlu0 %v1788, 19
      %v1820 = vpop.permute.xlu0 %1819
      %1821 = vrot.lane.b32.xlu0 %v1794, 19
      %v1822 = vpop.permute.xlu0 %1821
      %1823 = vrot.lane.b32.xlu0 %v1800, 19
      %v1824 = vpop.permute.xlu0 %1823
      %1825 = vrot.lane.b32.xlu0 %v1806, 19
      %v1826 = vpop.permute.xlu0 %1825
      %1827 = vrot.lane.b32.xlu0 %v1789, 19
      %v1828 = vpop.permute.xlu0 %1827
      %1829 = vrot.lane.b32.xlu0 %v1795, 19
      %v1830 = vpop.permute.xlu0 %1829
      %1831 = vrot.lane.b32.xlu0 %v1801, 19
      %v1832 = vpop.permute.xlu0 %1831
      %1833 = vrot.lane.b32.xlu0 %v1807, 19
      %v1834 = vpop.permute.xlu0 %1833
      %1835 = vrot.lane.b32.xlu0 %v1790, 19
      %v1836 = vpop.permute.xlu0 %1835
      %1837 = vrot.lane.b32.xlu0 %v1796, 19
      %v1838 = vpop.permute.xlu0 %1837
      %1839 = vrot.lane.b32.xlu0 %v1802, 19
      %v1840 = vpop.permute.xlu0 %1839
      %1841 = vrot.lane.b32.xlu0 %v1808, 19
      %v1842 = vpop.permute.xlu0 %1841
      %1843 = vrot.lane.b32.xlu0 %v1791, 19
      %v1844 = vpop.permute.xlu0 %1843
      %1845 = vrot.lane.b32.xlu0 %v1797, 19
      %v1846 = vpop.permute.xlu0 %1845
      %1847 = vrot.lane.b32.xlu0 %v1803, 19
      %v1848 = vpop.permute.xlu0 %1847
      %1849 = vrot.lane.b32.xlu0 %v1809, 19
      %v1850 = vpop.permute.xlu0 %1849
      %1851 = vrot.lane.b32.xlu0 %v1792, 19
      %v1852 = vpop.permute.xlu0 %1851
      %1853 = vrot.lane.b32.xlu0 %v1798, 19
      %v1854 = vpop.permute.xlu0 %1853
      %1855 = vrot.lane.b32.xlu0 %v1804, 19
      %v1856 = vpop.permute.xlu0 %1855
      %1857 = vrot.lane.b32.xlu0 %v1810, 19
      %v1858 = vpop.permute.xlu0 %1857
      %v1859 = vsel %vm673, %v1844, %v1852
      %v1860 = vsel %vm673, %v1846, %v1854
      %v1861 = vsel %vm673, %v1848, %v1856
      %v1862 = vsel %vm673, %v1850, %v1858
      %v1863 = vsel %vm673, %v1836, %v1844
      %v1864 = vsel %vm673, %v1838, %v1846
      %v1865 = vsel %vm673, %v1840, %v1848
      %v1866 = vsel %vm673, %v1842, %v1850
      %v1867 = vsel %vm673, %v1828, %v1836
      %v1868 = vsel %vm673, %v1830, %v1838
      %v1869 = vsel %vm673, %v1832, %v1840
      %v1870 = vsel %vm673, %v1834, %v1842
      %v1871 = vsel %vm673, %v1820, %v1828
      %v1872 = vsel %vm673, %v1822, %v1830
      %v1873 = vsel %vm673, %v1824, %v1832
      %v1874 = vsel %vm673, %v1826, %v1834
      %v1875 = vsel %vm673, %v1812, %v1820
      %v1876 = vsel %vm673, %v1814, %v1822
      %v1877 = vsel %vm673, %v1816, %v1824
      %v1878 = vsel %vm673, %v1818, %v1826
      %v1879 = vsel %vm673, %v1852, %v1812
      %v1880 = vsel %vm673, %v1854, %v1814
      %v1881 = vsel %vm673, %v1856, %v1816
      %v1882 = vsel %vm673, %v1858, %v1818
      %v1883 = vpack.c.bf16 %v1880, %v1879
      %v1884 = vpack.c.bf16 %v1876, %v1875
      %v1885 = vpack.c.bf16 %v1872, %v1871
      %v1886 = vpack.c.bf16 %v1868, %v1867
      %v1887 = vpack.c.bf16 %v1864, %v1863
      %v1888 = vpack.c.bf16 %v1860, %v1859
      %v1889 = vpack.c.bf16 %v1882, %v1881
      %v1890 = vpack.c.bf16 %v1878, %v1877
      %v1891 = vpack.c.bf16 %v1874, %v1873
      %v1892 = vpack.c.bf16 %v1870, %v1869
      %v1893 = vpack.c.bf16 %v1866, %v1865
      %v1894 = vpack.c.bf16 %v1862, %v1861
      %1895 = vrot.lane.b32.xlu0 %v1787, 18
      %v1896 = vpop.permute.xlu0 %1895
      %1897 = vrot.lane.b32.xlu0 %v1793, 18
      %v1898 = vpop.permute.xlu0 %1897
      %1899 = vrot.lane.b32.xlu0 %v1799, 18
      %v1900 = vpop.permute.xlu0 %1899
      %1901 = vrot.lane.b32.xlu0 %v1805, 18
      %v1902 = vpop.permute.xlu0 %1901
      %1903 = vrot.lane.b32.xlu0 %v1788, 18
      %v1904 = vpop.permute.xlu0 %1903
      %1905 = vrot.lane.b32.xlu0 %v1794, 18
      %v1906 = vpop.permute.xlu0 %1905
      %1907 = vrot.lane.b32.xlu0 %v1800, 18
      %v1908 = vpop.permute.xlu0 %1907
      %1909 = vrot.lane.b32.xlu0 %v1806, 18
      %v1910 = vpop.permute.xlu0 %1909
      %1911 = vrot.lane.b32.xlu0 %v1789, 18
      %v1912 = vpop.permute.xlu0 %1911
      %1913 = vrot.lane.b32.xlu0 %v1795, 18
      %v1914 = vpop.permute.xlu0 %1913
      %1915 = vrot.lane.b32.xlu0 %v1801, 18
      %v1916 = vpop.permute.xlu0 %1915
      %1917 = vrot.lane.b32.xlu0 %v1807, 18
      %v1918 = vpop.permute.xlu0 %1917
      %1919 = vrot.lane.b32.xlu0 %v1790, 18
      %v1920 = vpop.permute.xlu0 %1919
      %1921 = vrot.lane.b32.xlu0 %v1796, 18
      %v1922 = vpop.permute.xlu0 %1921
      %1923 = vrot.lane.b32.xlu0 %v1802, 18
      %v1924 = vpop.permute.xlu0 %1923
      %1925 = vrot.lane.b32.xlu0 %v1808, 18
      %v1926 = vpop.permute.xlu0 %1925
      %1927 = vrot.lane.b32.xlu0 %v1791, 18
      %v1928 = vpop.permute.xlu0 %1927
      %1929 = vrot.lane.b32.xlu0 %v1797, 18
      %v1930 = vpop.permute.xlu0 %1929
      %1931 = vrot.lane.b32.xlu0 %v1803, 18
      %v1932 = vpop.permute.xlu0 %1931
      %1933 = vrot.lane.b32.xlu0 %v1809, 18
      %v1934 = vpop.permute.xlu0 %1933
      %1935 = vrot.lane.b32.xlu0 %v1792, 18
      %v1936 = vpop.permute.xlu0 %1935
      %1937 = vrot.lane.b32.xlu0 %v1798, 18
      %v1938 = vpop.permute.xlu0 %1937
      %1939 = vrot.lane.b32.xlu0 %v1804, 18
      %v1940 = vpop.permute.xlu0 %1939
      %1941 = vrot.lane.b32.xlu0 %v1810, 18
      %v1942 = vpop.permute.xlu0 %1941
      %v1943 = vsel %vm716, %v1928, %v1936
      %v1944 = vsel %vm716, %v1930, %v1938
      %v1945 = vsel %vm716, %v1932, %v1940
      %v1946 = vsel %vm716, %v1934, %v1942
      %v1947 = vsel %vm716, %v1920, %v1928
      %v1948 = vsel %vm716, %v1922, %v1930
      %v1949 = vsel %vm716, %v1924, %v1932
      %v1950 = vsel %vm716, %v1926, %v1934
      %v1951 = vsel %vm716, %v1912, %v1920
      %v1952 = vsel %vm716, %v1914, %v1922
      %v1953 = vsel %vm716, %v1916, %v1924
      %v1954 = vsel %vm716, %v1918, %v1926
      %v1955 = vsel %vm716, %v1904, %v1912
      %v1956 = vsel %vm716, %v1906, %v1914
      %v1957 = vsel %vm716, %v1908, %v1916
      %v1958 = vsel %vm716, %v1910, %v1918
      %v1959 = vsel %vm716, %v1896, %v1904
      %v1960 = vsel %vm716, %v1898, %v1906
      %v1961 = vsel %vm716, %v1900, %v1908
      %v1962 = vsel %vm716, %v1902, %v1910
      %v1963 = vsel %vm716, %v1936, %v1896
      %v1964 = vsel %vm716, %v1938, %v1898
      %v1965 = vsel %vm716, %v1940, %v1900
      %v1966 = vsel %vm716, %v1942, %v1902
      %v1967 = vpack.c.bf16 %v1964, %v1963
      %v1968 = vpack.c.bf16 %v1960, %v1959
      %v1969 = vpack.c.bf16 %v1956, %v1955
      %v1970 = vpack.c.bf16 %v1952, %v1951
      %v1971 = vpack.c.bf16 %v1948, %v1947
      %v1972 = vpack.c.bf16 %v1944, %v1943
      %v1973 = vpack.c.bf16 %v1966, %v1965
      %v1974 = vpack.c.bf16 %v1962, %v1961
      %v1975 = vpack.c.bf16 %v1958, %v1957
      %v1976 = vpack.c.bf16 %v1954, %v1953
      %v1977 = vpack.c.bf16 %v1950, %v1949
      %v1978 = vpack.c.bf16 %v1946, %v1945
      %1979 = vrot.lane.b32.xlu0 %v1787, 17
      %v1980 = vpop.permute.xlu0 %1979
      %1981 = vrot.lane.b32.xlu0 %v1793, 17
      %v1982 = vpop.permute.xlu0 %1981
      %1983 = vrot.lane.b32.xlu0 %v1799, 17
      %v1984 = vpop.permute.xlu0 %1983
      %1985 = vrot.lane.b32.xlu0 %v1805, 17
      %v1986 = vpop.permute.xlu0 %1985
      %1987 = vrot.lane.b32.xlu0 %v1788, 17
      %v1988 = vpop.permute.xlu0 %1987
      %1989 = vrot.lane.b32.xlu0 %v1794, 17
      %v1990 = vpop.permute.xlu0 %1989
      %1991 = vrot.lane.b32.xlu0 %v1800, 17
      %v1992 = vpop.permute.xlu0 %1991
      %1993 = vrot.lane.b32.xlu0 %v1806, 17
      %v1994 = vpop.permute.xlu0 %1993
      %1995 = vrot.lane.b32.xlu0 %v1789, 17
      %v1996 = vpop.permute.xlu0 %1995
      %1997 = vrot.lane.b32.xlu0 %v1795, 17
      %v1998 = vpop.permute.xlu0 %1997
      %1999 = vrot.lane.b32.xlu0 %v1801, 17
      %v2000 = vpop.permute.xlu0 %1999
      %2001 = vrot.lane.b32.xlu0 %v1807, 17
      %v2002 = vpop.permute.xlu0 %2001
      %2003 = vrot.lane.b32.xlu0 %v1790, 17
      %v2004 = vpop.permute.xlu0 %2003
      %2005 = vrot.lane.b32.xlu0 %v1796, 17
      %v2006 = vpop.permute.xlu0 %2005
      %2007 = vrot.lane.b32.xlu0 %v1802, 17
      %v2008 = vpop.permute.xlu0 %2007
      %2009 = vrot.lane.b32.xlu0 %v1808, 17
      %v2010 = vpop.permute.xlu0 %2009
      %2011 = vrot.lane.b32.xlu0 %v1791, 17
      %v2012 = vpop.permute.xlu0 %2011
      %2013 = vrot.lane.b32.xlu0 %v1797, 17
      %v2014 = vpop.permute.xlu0 %2013
      %2015 = vrot.lane.b32.xlu0 %v1803, 17
      %v2016 = vpop.permute.xlu0 %2015
      %2017 = vrot.lane.b32.xlu0 %v1809, 17
      %v2018 = vpop.permute.xlu0 %2017
      %2019 = vrot.lane.b32.xlu0 %v1792, 17
      %v2020 = vpop.permute.xlu0 %2019
      %2021 = vrot.lane.b32.xlu0 %v1798, 17
      %v2022 = vpop.permute.xlu0 %2021
      %2023 = vrot.lane.b32.xlu0 %v1804, 17
      %v2024 = vpop.permute.xlu0 %2023
      %2025 = vrot.lane.b32.xlu0 %v1810, 17
      %v2026 = vpop.permute.xlu0 %2025
      %v2027 = vsel %vm759, %v2012, %v2020
      %v2028 = vsel %vm759, %v2014, %v2022
      %v2029 = vsel %vm759, %v2016, %v2024
      %v2030 = vsel %vm759, %v2018, %v2026
      %v2031 = vsel %vm759, %v2004, %v2012
      %v2032 = vsel %vm759, %v2006, %v2014
      %v2033 = vsel %vm759, %v2008, %v2016
      %v2034 = vsel %vm759, %v2010, %v2018
      %v2035 = vsel %vm759, %v1996, %v2004
      %v2036 = vsel %vm759, %v1998, %v2006
      %v2037 = vsel %vm759, %v2000, %v2008
      %v2038 = vsel %vm759, %v2002, %v2010
      %v2039 = vsel %vm759, %v1988, %v1996
      %v2040 = vsel %vm759, %v1990, %v1998
      %v2041 = vsel %vm759, %v1992, %v2000
      %v2042 = vsel %vm759, %v1994, %v2002
      %v2043 = vsel %vm759, %v1980, %v1988
      %v2044 = vsel %vm759, %v1982, %v1990
      %v2045 = vsel %vm759, %v1984, %v1992
      %v2046 = vsel %vm759, %v1986, %v1994
      %v2047 = vsel %vm759, %v2020, %v1980
      %v2048 = vsel %vm759, %v2022, %v1982
      %v2049 = vsel %vm759, %v2024, %v1984
      %v2050 = vsel %vm759, %v2026, %v1986
      %v2051 = vpack.c.bf16 %v2048, %v2047
      %v2052 = vpack.c.bf16 %v2044, %v2043
      %v2053 = vpack.c.bf16 %v2040, %v2039
      %v2054 = vpack.c.bf16 %v2036, %v2035
      %v2055 = vpack.c.bf16 %v2032, %v2031
      %v2056 = vpack.c.bf16 %v2028, %v2027
      %v2057 = vpack.c.bf16 %v2050, %v2049
      %v2058 = vpack.c.bf16 %v2046, %v2045
      %v2059 = vpack.c.bf16 %v2042, %v2041
      %v2060 = vpack.c.bf16 %v2038, %v2037
      %v2061 = vpack.c.bf16 %v2034, %v2033
      %v2062 = vpack.c.bf16 %v2030, %v2029
      %2063 = vrot.lane.b32.xlu0 %v1787, 1
      %v2064 = vpop.permute.xlu0 %2063
      %2065 = vrot.lane.b32.xlu0 %v1793, 1
      %v2066 = vpop.permute.xlu0 %2065
      %2067 = vrot.lane.b32.xlu0 %v1799, 1
      %v2068 = vpop.permute.xlu0 %2067
      %2069 = vrot.lane.b32.xlu0 %v1805, 1
      %v2070 = vpop.permute.xlu0 %2069
      %2071 = vrot.lane.b32.xlu0 %v1788, 1
      %v2072 = vpop.permute.xlu0 %2071
      %2073 = vrot.lane.b32.xlu0 %v1794, 1
      %v2074 = vpop.permute.xlu0 %2073
      %2075 = vrot.lane.b32.xlu0 %v1800, 1
      %v2076 = vpop.permute.xlu0 %2075
      %2077 = vrot.lane.b32.xlu0 %v1806, 1
      %v2078 = vpop.permute.xlu0 %2077
      %2079 = vrot.lane.b32.xlu0 %v1789, 1
      %v2080 = vpop.permute.xlu0 %2079
      %2081 = vrot.lane.b32.xlu0 %v1795, 1
      %v2082 = vpop.permute.xlu0 %2081
      %2083 = vrot.lane.b32.xlu0 %v1801, 1
      %v2084 = vpop.permute.xlu0 %2083
      %2085 = vrot.lane.b32.xlu0 %v1807, 1
      %v2086 = vpop.permute.xlu0 %2085
      %2087 = vrot.lane.b32.xlu0 %v1790, 1
      %v2088 = vpop.permute.xlu0 %2087
      %2089 = vrot.lane.b32.xlu0 %v1796, 1
      %v2090 = vpop.permute.xlu0 %2089
      %2091 = vrot.lane.b32.xlu0 %v1802, 1
      %v2092 = vpop.permute.xlu0 %2091
      %2093 = vrot.lane.b32.xlu0 %v1808, 1
      %v2094 = vpop.permute.xlu0 %2093
      %2095 = vrot.lane.b32.xlu0 %v1791, 1
      %v2096 = vpop.permute.xlu0 %2095
      %2097 = vrot.lane.b32.xlu0 %v1797, 1
      %v2098 = vpop.permute.xlu0 %2097
      %2099 = vrot.lane.b32.xlu0 %v1803, 1
      %v2100 = vpop.permute.xlu0 %2099
      %2101 = vrot.lane.b32.xlu0 %v1809, 1
      %v2102 = vpop.permute.xlu0 %2101
      %2103 = vrot.lane.b32.xlu0 %v1792, 1
      %v2104 = vpop.permute.xlu0 %2103
      %2105 = vrot.lane.b32.xlu0 %v1798, 1
      %v2106 = vpop.permute.xlu0 %2105
      %2107 = vrot.lane.b32.xlu0 %v1804, 1
      %v2108 = vpop.permute.xlu0 %2107
      %2109 = vrot.lane.b32.xlu0 %v1810, 1
      %v2110 = vpop.permute.xlu0 %2109
      %v2111 = vsel %vm802, %v2096, %v2104
      %v2112 = vsel %vm802, %v2098, %v2106
      %v2113 = vsel %vm802, %v2100, %v2108
      %v2114 = vsel %vm802, %v2102, %v2110
      %v2115 = vsel %vm802, %v2088, %v2096
      %v2116 = vsel %vm802, %v2090, %v2098
      %v2117 = vsel %vm802, %v2092, %v2100
      %v2118 = vsel %vm802, %v2094, %v2102
      %v2119 = vsel %vm802, %v2080, %v2088
      %v2120 = vsel %vm802, %v2082, %v2090
      %v2121 = vsel %vm802, %v2084, %v2092
      %v2122 = vsel %vm802, %v2086, %v2094
      %v2123 = vsel %vm802, %v2072, %v2080
      %v2124 = vsel %vm802, %v2074, %v2082
      %v2125 = vsel %vm802, %v2076, %v2084
      %v2126 = vsel %vm802, %v2078, %v2086
      %v2127 = vsel %vm802, %v2064, %v2072
      %v2128 = vsel %vm802, %v2066, %v2074
      %v2129 = vsel %vm802, %v2068, %v2076
      %v2130 = vsel %vm802, %v2070, %v2078
      %v2131 = vsel %vm802, %v2104, %v2064
      %v2132 = vsel %vm802, %v2106, %v2066
      %v2133 = vsel %vm802, %v2108, %v2068
      %v2134 = vsel %vm802, %v2110, %v2070
      %v2135 = vpack.c.bf16 %v2132, %v2131
      %v2136 = vpack.c.bf16 %v2128, %v2127
      %v2137 = vpack.c.bf16 %v2124, %v2123
      %v2138 = vpack.c.bf16 %v2120, %v2119
      %v2139 = vpack.c.bf16 %v2116, %v2115
      %v2140 = vpack.c.bf16 %v2112, %v2111
      %v2141 = vpack.c.bf16 %v2134, %v2133
      %v2142 = vpack.c.bf16 %v2130, %v2129
      %v2143 = vpack.c.bf16 %v2126, %v2125
      %v2144 = vpack.c.bf16 %v2122, %v2121
      %v2145 = vpack.c.bf16 %v2118, %v2117
      %v2146 = vpack.c.bf16 %v2114, %v2113
      %v2147 = vpack.c.bf16 %v1793, %v1787
      %v2148 = vpack.c.bf16 %v1794, %v1788
      %v2149 = vpack.c.bf16 %v1795, %v1789
      %v2150 = vpack.c.bf16 %v1796, %v1790
      %v2151 = vpack.c.bf16 %v1797, %v1791
      %v2152 = vpack.c.bf16 %v1798, %v1792
      %v2153 = vpack.c.bf16 %v1805, %v1799
      %v2154 = vpack.c.bf16 %v1806, %v1800
      %v2155 = vpack.c.bf16 %v1807, %v1801
      %v2156 = vpack.c.bf16 %v1808, %v1802
      %v2157 = vpack.c.bf16 %v1809, %v1803
      %v2158 = vpack.c.bf16 %v1810, %v1804
      %2159 = vrot.lane.b32.xlu0 %v1787, 127
      %v2160 = vpop.permute.xlu0 %2159
      %2161 = vrot.lane.b32.xlu0 %v1793, 127
      %v2162 = vpop.permute.xlu0 %2161
      %2163 = vrot.lane.b32.xlu0 %v1799, 127
      %v2164 = vpop.permute.xlu0 %2163
      %2165 = vrot.lane.b32.xlu0 %v1805, 127
      %v2166 = vpop.permute.xlu0 %2165
      %2167 = vrot.lane.b32.xlu0 %v1788, 127
      %v2168 = vpop.permute.xlu0 %2167
      %2169 = vrot.lane.b32.xlu0 %v1794, 127
      %v2170 = vpop.permute.xlu0 %2169
      %2171 = vrot.lane.b32.xlu0 %v1800, 127
      %v2172 = vpop.permute.xlu0 %2171
      %2173 = vrot.lane.b32.xlu0 %v1806, 127
      %v2174 = vpop.permute.xlu0 %2173
      %2175 = vrot.lane.b32.xlu0 %v1789, 127
      %v2176 = vpop.permute.xlu0 %2175
      %2177 = vrot.lane.b32.xlu0 %v1795, 127
      %v2178 = vpop.permute.xlu0 %2177
      %2179 = vrot.lane.b32.xlu0 %v1801, 127
      %v2180 = vpop.permute.xlu0 %2179
      %2181 = vrot.lane.b32.xlu0 %v1807, 127
      %v2182 = vpop.permute.xlu0 %2181
      %2183 = vrot.lane.b32.xlu0 %v1790, 127
      %v2184 = vpop.permute.xlu0 %2183
      %2185 = vrot.lane.b32.xlu0 %v1796, 127
      %v2186 = vpop.permute.xlu0 %2185
      %2187 = vrot.lane.b32.xlu0 %v1802, 127
      %v2188 = vpop.permute.xlu0 %2187
      %2189 = vrot.lane.b32.xlu0 %v1808, 127
      %v2190 = vpop.permute.xlu0 %2189
      %2191 = vrot.lane.b32.xlu0 %v1791, 127
      %v2192 = vpop.permute.xlu0 %2191
      %2193 = vrot.lane.b32.xlu0 %v1797, 127
      %v2194 = vpop.permute.xlu0 %2193
      %2195 = vrot.lane.b32.xlu0 %v1803, 127
      %v2196 = vpop.permute.xlu0 %2195
      %2197 = vrot.lane.b32.xlu0 %v1809, 127
      %v2198 = vpop.permute.xlu0 %2197
      %2199 = vrot.lane.b32.xlu0 %v1792, 127
      %v2200 = vpop.permute.xlu0 %2199
      %2201 = vrot.lane.b32.xlu0 %v1798, 127
      %v2202 = vpop.permute.xlu0 %2201
      %2203 = vrot.lane.b32.xlu0 %v1804, 127
      %v2204 = vpop.permute.xlu0 %2203
      %2205 = vrot.lane.b32.xlu0 %v1810, 127
      %v2206 = vpop.permute.xlu0 %2205
      %v2207 = vsel %vm851, %v2192, %v2200
      %v2208 = vsel %vm851, %v2194, %v2202
      %v2209 = vsel %vm851, %v2196, %v2204
      %v2210 = vsel %vm851, %v2198, %v2206
      %v2211 = vsel %vm851, %v2184, %v2192
      %v2212 = vsel %vm851, %v2186, %v2194
      %v2213 = vsel %vm851, %v2188, %v2196
      %v2214 = vsel %vm851, %v2190, %v2198
      %v2215 = vsel %vm851, %v2176, %v2184
      %v2216 = vsel %vm851, %v2178, %v2186
      %v2217 = vsel %vm851, %v2180, %v2188
      %v2218 = vsel %vm851, %v2182, %v2190
      %v2219 = vsel %vm851, %v2168, %v2176
      %v2220 = vsel %vm851, %v2170, %v2178
      %v2221 = vsel %vm851, %v2172, %v2180
      %v2222 = vsel %vm851, %v2174, %v2182
      %v2223 = vsel %vm851, %v2160, %v2168
      %v2224 = vsel %vm851, %v2162, %v2170
      %v2225 = vsel %vm851, %v2164, %v2172
      %v2226 = vsel %vm851, %v2166, %v2174
      %v2227 = vsel %vm851, %v2200, %v2160
      %v2228 = vsel %vm851, %v2202, %v2162
      %v2229 = vsel %vm851, %v2204, %v2164
      %v2230 = vsel %vm851, %v2206, %v2166
      %v2231 = vpack.c.bf16 %v2224, %v2223
      %v2232 = vpack.c.bf16 %v2220, %v2219
      %v2233 = vpack.c.bf16 %v2216, %v2215
      %v2234 = vpack.c.bf16 %v2212, %v2211
      %v2235 = vpack.c.bf16 %v2208, %v2207
      %v2236 = vpack.c.bf16 %v2228, %v2227
      %v2237 = vpack.c.bf16 %v2226, %v2225
      %v2238 = vpack.c.bf16 %v2222, %v2221
      %v2239 = vpack.c.bf16 %v2218, %v2217
      %v2240 = vpack.c.bf16 %v2214, %v2213
      %v2241 = vpack.c.bf16 %v2210, %v2209
      %v2242 = vpack.c.bf16 %v2230, %v2229
      %2243 = vrot.lane.b32.xlu0 %v1787, 111
      %v2244 = vpop.permute.xlu0 %2243
      %2245 = vrot.lane.b32.xlu0 %v1793, 111
      %v2246 = vpop.permute.xlu0 %2245
      %2247 = vrot.lane.b32.xlu0 %v1799, 111
      %v2248 = vpop.permute.xlu0 %2247
      %2249 = vrot.lane.b32.xlu0 %v1805, 111
      %v2250 = vpop.permute.xlu0 %2249
      %2251 = vrot.lane.b32.xlu0 %v1788, 111
      %v2252 = vpop.permute.xlu0 %2251
      %2253 = vrot.lane.b32.xlu0 %v1794, 111
      %v2254 = vpop.permute.xlu0 %2253
      %2255 = vrot.lane.b32.xlu0 %v1800, 111
      %v2256 = vpop.permute.xlu0 %2255
      %2257 = vrot.lane.b32.xlu0 %v1806, 111
      %v2258 = vpop.permute.xlu0 %2257
      %2259 = vrot.lane.b32.xlu0 %v1789, 111
      %v2260 = vpop.permute.xlu0 %2259
      %2261 = vrot.lane.b32.xlu0 %v1795, 111
      %v2262 = vpop.permute.xlu0 %2261
      %2263 = vrot.lane.b32.xlu0 %v1801, 111
      %v2264 = vpop.permute.xlu0 %2263
      %2265 = vrot.lane.b32.xlu0 %v1807, 111
      %v2266 = vpop.permute.xlu0 %2265
      %2267 = vrot.lane.b32.xlu0 %v1790, 111
      %v2268 = vpop.permute.xlu0 %2267
      %2269 = vrot.lane.b32.xlu0 %v1796, 111
      %v2270 = vpop.permute.xlu0 %2269
      %2271 = vrot.lane.b32.xlu0 %v1802, 111
      %v2272 = vpop.permute.xlu0 %2271
      %2273 = vrot.lane.b32.xlu0 %v1808, 111
      %v2274 = vpop.permute.xlu0 %2273
      %2275 = vrot.lane.b32.xlu0 %v1791, 111
      %v2276 = vpop.permute.xlu0 %2275
      %2277 = vrot.lane.b32.xlu0 %v1797, 111
      %v2278 = vpop.permute.xlu0 %2277
      %2279 = vrot.lane.b32.xlu0 %v1803, 111
      %v2280 = vpop.permute.xlu0 %2279
      %2281 = vrot.lane.b32.xlu0 %v1809, 111
      %v2282 = vpop.permute.xlu0 %2281
      %2283 = vrot.lane.b32.xlu0 %v1792, 111
      %v2284 = vpop.permute.xlu0 %2283
      %2285 = vrot.lane.b32.xlu0 %v1798, 111
      %v2286 = vpop.permute.xlu0 %2285
      %2287 = vrot.lane.b32.xlu0 %v1804, 111
      %v2288 = vpop.permute.xlu0 %2287
      %2289 = vrot.lane.b32.xlu0 %v1810, 111
      %v2290 = vpop.permute.xlu0 %2289
      %v2291 = vsel %vm894, %v2276, %v2284
      %v2292 = vsel %vm894, %v2278, %v2286
      %v2293 = vsel %vm894, %v2280, %v2288
      %v2294 = vsel %vm894, %v2282, %v2290
      %v2295 = vsel %vm894, %v2268, %v2276
      %v2296 = vsel %vm894, %v2270, %v2278
      %v2297 = vsel %vm894, %v2272, %v2280
      %v2298 = vsel %vm894, %v2274, %v2282
      %v2299 = vsel %vm894, %v2260, %v2268
      %v2300 = vsel %vm894, %v2262, %v2270
      %v2301 = vsel %vm894, %v2264, %v2272
      %v2302 = vsel %vm894, %v2266, %v2274
      %v2303 = vsel %vm894, %v2252, %v2260
      %v2304 = vsel %vm894, %v2254, %v2262
      %v2305 = vsel %vm894, %v2256, %v2264
      %v2306 = vsel %vm894, %v2258, %v2266
      %v2307 = vsel %vm894, %v2244, %v2252
      %v2308 = vsel %vm894, %v2246, %v2254
      %v2309 = vsel %vm894, %v2248, %v2256
      %v2310 = vsel %vm894, %v2250, %v2258
      %v2311 = vsel %vm894, %v2284, %v2244
      %v2312 = vsel %vm894, %v2286, %v2246
      %v2313 = vsel %vm894, %v2288, %v2248
      %v2314 = vsel %vm894, %v2290, %v2250
      %v2315 = vpack.c.bf16 %v2308, %v2307
      %v2316 = vpack.c.bf16 %v2304, %v2303
      %v2317 = vpack.c.bf16 %v2300, %v2299
      %v2318 = vpack.c.bf16 %v2296, %v2295
      %v2319 = vpack.c.bf16 %v2292, %v2291
      %v2320 = vpack.c.bf16 %v2312, %v2311
      %v2321 = vpack.c.bf16 %v2310, %v2309
      %v2322 = vpack.c.bf16 %v2306, %v2305
      %v2323 = vpack.c.bf16 %v2302, %v2301
      %v2324 = vpack.c.bf16 %v2298, %v2297
      %v2325 = vpack.c.bf16 %v2294, %v2293
      %v2326 = vpack.c.bf16 %v2314, %v2313
      %2327 = vrot.lane.b32.xlu0 %v1787, 110
      %v2328 = vpop.permute.xlu0 %2327
      %2329 = vrot.lane.b32.xlu0 %v1793, 110
      %v2330 = vpop.permute.xlu0 %2329
      %2331 = vrot.lane.b32.xlu0 %v1799, 110
      %v2332 = vpop.permute.xlu0 %2331
      %2333 = vrot.lane.b32.xlu0 %v1805, 110
      %v2334 = vpop.permute.xlu0 %2333
      %2335 = vrot.lane.b32.xlu0 %v1788, 110
      %v2336 = vpop.permute.xlu0 %2335
      %2337 = vrot.lane.b32.xlu0 %v1794, 110
      %v2338 = vpop.permute.xlu0 %2337
      %2339 = vrot.lane.b32.xlu0 %v1800, 110
      %v2340 = vpop.permute.xlu0 %2339
      %2341 = vrot.lane.b32.xlu0 %v1806, 110
      %v2342 = vpop.permute.xlu0 %2341
      %2343 = vrot.lane.b32.xlu0 %v1789, 110
      %v2344 = vpop.permute.xlu0 %2343
      %2345 = vrot.lane.b32.xlu0 %v1795, 110
      %v2346 = vpop.permute.xlu0 %2345
      %2347 = vrot.lane.b32.xlu0 %v1801, 110
      %v2348 = vpop.permute.xlu0 %2347
      %2349 = vrot.lane.b32.xlu0 %v1807, 110
      %v2350 = vpop.permute.xlu0 %2349
      %2351 = vrot.lane.b32.xlu0 %v1790, 110
      %v2352 = vpop.permute.xlu0 %2351
      %2353 = vrot.lane.b32.xlu0 %v1796, 110
      %v2354 = vpop.permute.xlu0 %2353
      %2355 = vrot.lane.b32.xlu0 %v1802, 110
      %v2356 = vpop.permute.xlu0 %2355
      %2357 = vrot.lane.b32.xlu0 %v1808, 110
      %v2358 = vpop.permute.xlu0 %2357
      %2359 = vrot.lane.b32.xlu0 %v1791, 110
      %v2360 = vpop.permute.xlu0 %2359
      %2361 = vrot.lane.b32.xlu0 %v1797, 110
      %v2362 = vpop.permute.xlu0 %2361
      %2363 = vrot.lane.b32.xlu0 %v1803, 110
      %v2364 = vpop.permute.xlu0 %2363
      %2365 = vrot.lane.b32.xlu0 %v1809, 110
      %v2366 = vpop.permute.xlu0 %2365
      %2367 = vrot.lane.b32.xlu0 %v1792, 110
      %v2368 = vpop.permute.xlu0 %2367
      %2369 = vrot.lane.b32.xlu0 %v1798, 110
      %v2370 = vpop.permute.xlu0 %2369
      %2371 = vrot.lane.b32.xlu0 %v1804, 110
      %v2372 = vpop.permute.xlu0 %2371
      %2373 = vrot.lane.b32.xlu0 %v1810, 110
      %v2374 = vpop.permute.xlu0 %2373
      %v2375 = vsel %vm937, %v2360, %v2368
      %v2376 = vsel %vm937, %v2362, %v2370
      %v2377 = vsel %vm937, %v2364, %v2372
      %v2378 = vsel %vm937, %v2366, %v2374
      %v2379 = vsel %vm937, %v2352, %v2360
      %v2380 = vsel %vm937, %v2354, %v2362
      %v2381 = vsel %vm937, %v2356, %v2364
      %v2382 = vsel %vm937, %v2358, %v2366
      %v2383 = vsel %vm937, %v2344, %v2352
      %v2384 = vsel %vm937, %v2346, %v2354
      %v2385 = vsel %vm937, %v2348, %v2356
      %v2386 = vsel %vm937, %v2350, %v2358
      %v2387 = vsel %vm937, %v2336, %v2344
      %v2388 = vsel %vm937, %v2338, %v2346
      %v2389 = vsel %vm937, %v2340, %v2348
      %v2390 = vsel %vm937, %v2342, %v2350
      %v2391 = vsel %vm937, %v2328, %v2336
      %v2392 = vsel %vm937, %v2330, %v2338
      %v2393 = vsel %vm937, %v2332, %v2340
      %v2394 = vsel %vm937, %v2334, %v2342
      %v2395 = vsel %vm937, %v2368, %v2328
      %v2396 = vsel %vm937, %v2370, %v2330
      %v2397 = vsel %vm937, %v2372, %v2332
      %v2398 = vsel %vm937, %v2374, %v2334
      %v2399 = vpack.c.bf16 %v2392, %v2391
      %v2400 = vpack.c.bf16 %v2388, %v2387
      %v2401 = vpack.c.bf16 %v2384, %v2383
      %v2402 = vpack.c.bf16 %v2380, %v2379
      %v2403 = vpack.c.bf16 %v2376, %v2375
      %v2404 = vpack.c.bf16 %v2396, %v2395
      %v2405 = vpack.c.bf16 %v2394, %v2393
      %v2406 = vpack.c.bf16 %v2390, %v2389
      %v2407 = vpack.c.bf16 %v2386, %v2385
      %v2408 = vpack.c.bf16 %v2382, %v2381
      %v2409 = vpack.c.bf16 %v2378, %v2377
      %v2410 = vpack.c.bf16 %v2398, %v2397
      %2411 = vrot.lane.b32.xlu0 %v1787, 109
      %v2412 = vpop.permute.xlu0 %2411
      %2413 = vrot.lane.b32.xlu0 %v1793, 109
      %v2414 = vpop.permute.xlu0 %2413
      %2415 = vrot.lane.b32.xlu0 %v1799, 109
      %v2416 = vpop.permute.xlu0 %2415
      %2417 = vrot.lane.b32.xlu0 %v1805, 109
      %v2418 = vpop.permute.xlu0 %2417
      %2419 = vrot.lane.b32.xlu0 %v1788, 109
      %v2420 = vpop.permute.xlu0 %2419
      %2421 = vrot.lane.b32.xlu0 %v1794, 109
      %v2422 = vpop.permute.xlu0 %2421
      %2423 = vrot.lane.b32.xlu0 %v1800, 109
      %v2424 = vpop.permute.xlu0 %2423
      %2425 = vrot.lane.b32.xlu0 %v1806, 109
      %v2426 = vpop.permute.xlu0 %2425
      %2427 = vrot.lane.b32.xlu0 %v1789, 109
      %v2428 = vpop.permute.xlu0 %2427
      %2429 = vrot.lane.b32.xlu0 %v1795, 109
      %v2430 = vpop.permute.xlu0 %2429
      %2431 = vrot.lane.b32.xlu0 %v1801, 109
      %v2432 = vpop.permute.xlu0 %2431
      %2433 = vrot.lane.b32.xlu0 %v1807, 109
      %v2434 = vpop.permute.xlu0 %2433
      %2435 = vrot.lane.b32.xlu0 %v1790, 109
      %v2436 = vpop.permute.xlu0 %2435
      %2437 = vrot.lane.b32.xlu0 %v1796, 109
      %v2438 = vpop.permute.xlu0 %2437
      %2439 = vrot.lane.b32.xlu0 %v1802, 109
      %v2440 = vpop.permute.xlu0 %2439
      %2441 = vrot.lane.b32.xlu0 %v1808, 109
      %v2442 = vpop.permute.xlu0 %2441
      %2443 = vrot.lane.b32.xlu0 %v1791, 109
      %v2444 = vpop.permute.xlu0 %2443
      %2445 = vrot.lane.b32.xlu0 %v1797, 109
      %v2446 = vpop.permute.xlu0 %2445
      %2447 = vrot.lane.b32.xlu0 %v1803, 109
      %v2448 = vpop.permute.xlu0 %2447
      %2449 = vrot.lane.b32.xlu0 %v1809, 109
      %v2450 = vpop.permute.xlu0 %2449
      %2451 = vrot.lane.b32.xlu0 %v1792, 109
      %v2452 = vpop.permute.xlu0 %2451
      %2453 = vrot.lane.b32.xlu0 %v1798, 109
      %v2454 = vpop.permute.xlu0 %2453
      %2455 = vrot.lane.b32.xlu0 %v1804, 109
      %v2456 = vpop.permute.xlu0 %2455
      %2457 = vrot.lane.b32.xlu0 %v1810, 109
      %v2458 = vpop.permute.xlu0 %2457
      %v2459 = vsel %vm980, %v2444, %v2452
      %v2460 = vsel %vm980, %v2446, %v2454
      %v2461 = vsel %vm980, %v2448, %v2456
      %v2462 = vsel %vm980, %v2450, %v2458
      %v2463 = vsel %vm980, %v2436, %v2444
      %v2464 = vsel %vm980, %v2438, %v2446
      %v2465 = vsel %vm980, %v2440, %v2448
      %v2466 = vsel %vm980, %v2442, %v2450
      %v2467 = vsel %vm980, %v2428, %v2436
      %v2468 = vsel %vm980, %v2430, %v2438
      %v2469 = vsel %vm980, %v2432, %v2440
      %v2470 = vsel %vm980, %v2434, %v2442
      %v2471 = vsel %vm980, %v2420, %v2428
      %v2472 = vsel %vm980, %v2422, %v2430
      %v2473 = vsel %vm980, %v2424, %v2432
      %v2474 = vsel %vm980, %v2426, %v2434
      %v2475 = vsel %vm980, %v2412, %v2420
      %v2476 = vsel %vm980, %v2414, %v2422
      %v2477 = vsel %vm980, %v2416, %v2424
      %v2478 = vsel %vm980, %v2418, %v2426
      %v2479 = vsel %vm980, %v2452, %v2412
      %v2480 = vsel %vm980, %v2454, %v2414
      %v2481 = vsel %vm980, %v2456, %v2416
      %v2482 = vsel %vm980, %v2458, %v2418
      %v2483 = vpack.c.bf16 %v2476, %v2475
      %v2484 = vpack.c.bf16 %v2472, %v2471
      %v2485 = vpack.c.bf16 %v2468, %v2467
      %v2486 = vpack.c.bf16 %v2464, %v2463
      %v2487 = vpack.c.bf16 %v2460, %v2459
      %v2488 = vpack.c.bf16 %v2480, %v2479
      %v2489 = vpack.c.bf16 %v2478, %v2477
      %v2490 = vpack.c.bf16 %v2474, %v2473
      %v2491 = vpack.c.bf16 %v2470, %v2469
      %v2492 = vpack.c.bf16 %v2466, %v2465
      %v2493 = vpack.c.bf16 %v2462, %v2461
      %v2494 = vpack.c.bf16 %v2482, %v2481
      %v2495 = vld [vmem:[%s599] sm:$0xff]
      %v2496 = vld [vmem:[%s599 + $0x8] sm:$0xf]
      %v2497 = vld [vmem:[%s599 + $0xc] sm:$0xff]
      %v2498 = vld [vmem:[%s599 + $0x14] sm:$0xf]
      %v2499 = vld [vmem:[%s599 + $0x18] sm:$0xff]
      %v2500 = vld [vmem:[%s599 + $0x20] sm:$0xf]
      %v2501 = vld [vmem:[%s599 + $0x24] sm:$0xff]
      %v2502 = vld [vmem:[%s599 + $0x2c] sm:$0xf]
      %v2503 = vld [vmem:[%s599 + $0x30] sm:$0xff]
      %v2504 = vld [vmem:[%s599 + $0x38] sm:$0xf]
      %v2505 = vld [vmem:[%s599 + $0x3c] sm:$0xff]
      %v2506 = vld [vmem:[%s599 + $0x44] sm:$0xf]
      %v2507 = vld [vmem:[%s599 + $0x48] sm:$0xff]
      %v2508 = vld [vmem:[%s599 + $0x50] sm:$0xf]
      %v2509 = vld [vmem:[%s599 + $0x54] sm:$0xff]
      %v2510 = vld [vmem:[%s599 + $0x5c] sm:$0xf]
      %v2511 = vld [vmem:[%s604] sm:$0xff]
      %v2512 = vld [vmem:[%s604 + $0x8] sm:$0xff]
      %v2513 = vld [vmem:[%s604 + $0x10] sm:$0xff]
      %v2514 = vld [vmem:[%s604 + $0x18] sm:$0xff]
      %v2515 = vld [vmem:[%s604 + $0x20] sm:$0xff]
      %v2516 = vld [vmem:[%s604 + $0x28] sm:$0xff]
      %v2517 = vld [vmem:[%s604 + $0x30] sm:$0xff]
      %v2518 = vld [vmem:[%s604 + $0x38] sm:$0xff]
      %2520 = vset.pattern.permute.xlu0 0
      %2521 = vperm.xlu0 %2520, %v2511
      %v2522 = vpop.permute.xlu0 %2521
      %2525 = vset.pattern.permute.xlu0 0
      %2526 = vperm.xlu0 %2525, %v2512
      %v2527 = vpop.permute.xlu0 %2526
      %2530 = vset.pattern.permute.xlu0 0
      %2531 = vperm.xlu0 %2530, %v2513
      %v2532 = vpop.permute.xlu0 %2531
      %2535 = vset.pattern.permute.xlu0 0
      %2536 = vperm.xlu0 %2535, %v2514
      %v2537 = vpop.permute.xlu0 %2536
      %2540 = vset.pattern.permute.xlu0 0
      %2541 = vperm.xlu0 %2540, %v2515
      %v2542 = vpop.permute.xlu0 %2541
      %2545 = vset.pattern.permute.xlu0 0
      %2546 = vperm.xlu0 %2545, %v2516
      %v2547 = vpop.permute.xlu0 %2546
      %2550 = vset.pattern.permute.xlu0 0
      %2551 = vperm.xlu0 %2550, %v2517
      %v2552 = vpop.permute.xlu0 %2551
      %2555 = vset.pattern.permute.xlu0 0
      %2556 = vperm.xlu0 %2555, %v2518
      %v2557 = vpop.permute.xlu0 %2556
      %v2575 = vunpack.c.l.b16 %v2495
      %v2576 = vunpack.c.h.b16 %v2495
      %v2577 = vunpack.c.l.b16 %v2496
      %v2578 = vunpack.c.l.b16 %v2497
      %v2579 = vunpack.c.h.b16 %v2497
      %v2580 = vunpack.c.l.b16 %v2498
      %v2581 = vunpack.c.l.b16 %v2499
      %v2582 = vunpack.c.h.b16 %v2499
      %v2583 = vunpack.c.l.b16 %v2500
      %v2584 = vunpack.c.l.b16 %v2501
      %v2585 = vunpack.c.h.b16 %v2501
      %v2586 = vunpack.c.l.b16 %v2502
      %v2587 = vunpack.c.l.b16 %v2503
      %v2588 = vunpack.c.h.b16 %v2503
      %v2589 = vunpack.c.l.b16 %v2504
      %v2590 = vunpack.c.l.b16 %v2505
      %v2591 = vunpack.c.h.b16 %v2505
      %v2592 = vunpack.c.l.b16 %v2506
      %v2593 = vunpack.c.l.b16 %v2507
      %v2594 = vunpack.c.h.b16 %v2507
      %v2595 = vunpack.c.l.b16 %v2508
      %v2596 = vunpack.c.l.b16 %v2509
      %v2597 = vunpack.c.h.b16 %v2509
      %v2598 = vunpack.c.l.b16 %v2510
      %v2599 = vpack.c.b16 %v2578, %v2575
      %v2600 = vpack.c.b16 %v2579, %v2576
      %v2601 = vpack.c.b16 %v2580, %v2577
      %v2602 = vpack.c.b16 %v2584, %v2581
      %v2603 = vpack.c.b16 %v2585, %v2582
      %v2604 = vpack.c.b16 %v2586, %v2583
      %v2605 = vpack.c.b16 %v2590, %v2587
      %v2606 = vpack.c.b16 %v2591, %v2588
      %v2607 = vpack.c.b16 %v2592, %v2589
      %v2608 = vpack.c.b16 %v2596, %v2593
      %v2609 = vpack.c.b16 %v2597, %v2594
      %v2610 = vpack.c.b16 %v2598, %v2595
      %vm2619 = vcmask 261120
      %v2621 = vsel %vm2619, %v2601, 0
      %v2624 = vsel %vm2619, %v2604, 0
      %v2627 = vsel %vm2619, %v2607, 0
      %v2630 = vsel %vm2619, %v2610, 0
      %2632 = vmatprep.subr.bf16.mxu0 %v2142
      %2633 = vmatpush1.bf16.msra.mxu0 %v2141
      %2634 = vmatprep.subr.bf16.mxu0 %v2136
      %2635 = vmatpush1.bf16.msra.mxu0 %v2135
      %2636 = vmatprep.subr.bf16.mxu0 %v2058
      %2637 = vmatpush1.bf16.msra.mxu0 %v2057
      %2638 = vmatprep.subr.bf16.mxu0 %v2052
      %2639 = vmatpush1.bf16.msra.mxu0 %v2051
      %2640 = vmatprep.subr.bf16.mxu0 %v1974
      %2641 = vmatpush1.bf16.msra.mxu0 %v1973
      %2642 = vmatprep.subr.bf16.mxu0 %v1968
      %2643 = vmatpush1.bf16.msra.mxu0 %v1967
      %2644 = vmatprep.subr.bf16.mxu0 %v1890
      %2645 = vmatpush1.bf16.msra.mxu0 %v1889
      %2646 = vmatprep.subr.bf16.mxu0 %v1884
      %2647 = vmatpush1.bf16.msra.mxu0 %v1883
      %2648 = vmatprep.subr.bf16.mxu0 %v2406
      %2649 = vmatpush2.bf16.msra.mxu0 %v2405
      %2650 = vmatprep.subr.bf16.mxu0 %v2400
      %2651 = vmatpush2.bf16.msra.mxu0 %v2399
      %2652 = vmatprep.subr.bf16.mxu0 %v2322
      %2653 = vmatpush2.bf16.msra.mxu0 %v2321
      %2654 = vmatprep.subr.bf16.mxu0 %v2316
      %2655 = vmatpush2.bf16.msra.mxu0 %v2315
      %2656 = vmatprep.subr.bf16.mxu0 %v2238
      %2657 = vmatpush2.bf16.msra.mxu0 %v2237
      %2658 = vmatprep.subr.bf16.mxu0 %v2232
      %2659 = vmatpush2.bf16.msra.mxu0 %v2231
      %2660 = vmatprep.subr.bf16.mxu0 %v2154
      %2661 = vmatpush2.bf16.msra.mxu0 %v2153
      %2662 = vmatprep.subr.bf16.mxu0 %v2148
      %2663 = vmatpush2.bf16.msra.mxu0 %v2147
      %2664 = vmatprep.mubr.bf16.mxu0 %v2600
      %2665 = vmatmul.mubr.bf16.gmra.mxu0 %v2599
      %v2666 = vpop.f32.mrf.mxu0
      %v2667 = vadd.f32 %v2522, %v2666
      %v2668 = vpop.f32.mrf.mxu0
      %v2669 = vadd.f32 %v2522, %v2668
      %v2670 = vpop.f32.mrf.mxu0
      %v2671 = vadd.f32 %v2527, %v2670
      %v2672 = vpop.f32.mrf.mxu0
      %v2673 = vadd.f32 %v2527, %v2672
      %2674 = vmatprep.mubr.bf16.mxu0 %v2603
      %2675 = vmatmul.mubr.bf16.gmra.mxu0 %v2602
      %v2676 = vpop.f32.mrf.mxu0
      %v2677 = vadd.f32 %v2532, %v2676
      %v2678 = vpop.f32.mrf.mxu0
      %v2679 = vadd.f32 %v2532, %v2678
      %v2680 = vpop.f32.mrf.mxu0
      %v2681 = vadd.f32 %v2537, %v2680
      %v2682 = vpop.f32.mrf.mxu0
      %v2683 = vadd.f32 %v2537, %v2682
      %2684 = vmatprep.mubr.bf16.mxu0 %v2606
      %2685 = vmatmul.mubr.bf16.gmra.mxu0 %v2605
      %v2686 = vpop.f32.mrf.mxu0
      %v2687 = vadd.f32 %v2542, %v2686
      %v2688 = vpop.f32.mrf.mxu0
      %v2689 = vadd.f32 %v2542, %v2688
      %v2690 = vpop.f32.mrf.mxu0
      %v2691 = vadd.f32 %v2547, %v2690
      %v2692 = vpop.f32.mrf.mxu0
      %v2693 = vadd.f32 %v2547, %v2692
      %2694 = vmatprep.mubr.bf16.mxu0 %v2609
      %2695 = vmatmul.mubr.bf16.gmra.mxu0 %v2608
      %v2696 = vpop.f32.mrf.mxu0
      %v2697 = vadd.f32 %v2552, %v2696
      %v2698 = vpop.f32.mrf.mxu0
      %v2699 = vadd.f32 %v2552, %v2698
      %v2700 = vpop.f32.mrf.mxu0
      %v2701 = vadd.f32 %v2557, %v2700
      %v2702 = vpop.f32.mrf.mxu0
      %v2703 = vadd.f32 %v2557, %v2702
      %2704 = vdwg.mxu0
      %2705 = vmatprep.subr.bf16.mxu0 0
      %2706 = vmatpush1.bf16.msra.mxu0 0
      %2707 = vmatprep.subr.bf16.mxu0 0
      %2708 = vmatpush1.bf16.msra.mxu0 0
      %2709 = vmatprep.subr.bf16.mxu0 0
      %2710 = vmatpush1.bf16.msra.mxu0 0
      %2711 = vmatprep.subr.bf16.mxu0 0
      %2712 = vmatpush1.bf16.msra.mxu0 0
      %2713 = vmatprep.subr.bf16.mxu0 0
      %2714 = vmatpush1.bf16.msra.mxu0 0
      %2715 = vmatprep.subr.bf16.mxu0 0
      %2716 = vmatpush1.bf16.msra.mxu0 0
      %2717 = vmatprep.subr.bf16.mxu0 %v2490
      %2718 = vmatpush1.bf16.msra.mxu0 %v2489
      %2719 = vmatprep.subr.bf16.mxu0 %v2484
      %2720 = vmatpush1.bf16.msra.mxu0 %v2483
      %2721 = vmatprep.subr.bf16.mxu0 0
      %2722 = vmatpush2.bf16.msra.mxu0 0
      %2723 = vmatprep.subr.bf16.mxu0 0
      %2724 = vmatpush2.bf16.msra.mxu0 0
      %2725 = vmatprep.subr.bf16.mxu0 0
      %2726 = vmatpush2.bf16.msra.mxu0 0
      %2727 = vmatprep.subr.bf16.mxu0 0
      %2728 = vmatpush2.bf16.msra.mxu0 0
      %2729 = vmatprep.subr.bf16.mxu0 0
      %2730 = vmatpush2.bf16.msra.mxu0 0
      %2731 = vmatprep.subr.bf16.mxu0 0
      %2732 = vmatpush2.bf16.msra.mxu0 0
      %2733 = vmatprep.subr.bf16.mxu0 0
      %2734 = vmatpush2.bf16.msra.mxu0 0
      %2735 = vmatprep.subr.bf16.mxu0 0
      %2736 = vmatpush2.bf16.msra.mxu0 0
      %2737 = vmatprep.mubr.bf16.mxu0 0
      %2738 = vmatmul.mubr.bf16.gmra.mxu0 %v2621
      %v2739 = vpop.f32.mrf.mxu0
      %v2740 = vadd.f32 %v2667, %v2739
      %v2741 = vpop.f32.mrf.mxu0
      %v2742 = vadd.f32 %v2669, %v2741
      %v2743 = vpop.f32.mrf.mxu0
      %v2744 = vadd.f32 %v2671, %v2743
      %v2745 = vpop.f32.mrf.mxu0
      %v2746 = vadd.f32 %v2673, %v2745
      %2747 = vmatprep.mubr.bf16.mxu0 0
      %2748 = vmatmul.mubr.bf16.gmra.mxu0 %v2624
      %v2749 = vpop.f32.mrf.mxu0
      %v2750 = vadd.f32 %v2677, %v2749
      %v2751 = vpop.f32.mrf.mxu0
      %v2752 = vadd.f32 %v2679, %v2751
      %v2753 = vpop.f32.mrf.mxu0
      %v2754 = vadd.f32 %v2681, %v2753
      %v2755 = vpop.f32.mrf.mxu0
      %v2756 = vadd.f32 %v2683, %v2755
      %2757 = vmatprep.mubr.bf16.mxu0 0
      %2758 = vmatmul.mubr.bf16.gmra.mxu0 %v2627
      %v2759 = vpop.f32.mrf.mxu0
      %v2760 = vadd.f32 %v2687, %v2759
      %v2761 = vpop.f32.mrf.mxu0
      %v2762 = vadd.f32 %v2689, %v2761
      %v2763 = vpop.f32.mrf.mxu0
      %v2764 = vadd.f32 %v2691, %v2763
      %v2765 = vpop.f32.mrf.mxu0
      %v2766 = vadd.f32 %v2693, %v2765
      %2767 = vmatprep.mubr.bf16.mxu0 0
      %2768 = vmatmul.mubr.bf16.gmra.mxu0 %v2630
      %v2769 = vpop.f32.mrf.mxu0
      %v2770 = vadd.f32 %v2697, %v2769
      %v2771 = vpop.f32.mrf.mxu0
      %v2772 = vadd.f32 %v2699, %v2771
      %v2773 = vpop.f32.mrf.mxu0
      %v2774 = vadd.f32 %v2701, %v2773
      %v2775 = vpop.f32.mrf.mxu0
      %v2776 = vadd.f32 %v2703, %v2775
      %2777 = vdwg.mxu0
      %2778 = vmatprep.subr.bf16.mxu0 %v2144
      %2779 = vmatpush1.bf16.msra.mxu0 %v2143
      %2780 = vmatprep.subr.bf16.mxu0 %v2138
      %2781 = vmatpush1.bf16.msra.mxu0 %v2137
      %2782 = vmatprep.subr.bf16.mxu0 %v2060
      %2783 = vmatpush1.bf16.msra.mxu0 %v2059
      %2784 = vmatprep.subr.bf16.mxu0 %v2054
      %2785 = vmatpush1.bf16.msra.mxu0 %v2053
      %2786 = vmatprep.subr.bf16.mxu0 %v1976
      %2787 = vmatpush1.bf16.msra.mxu0 %v1975
      %2788 = vmatprep.subr.bf16.mxu0 %v1970
      %2789 = vmatpush1.bf16.msra.mxu0 %v1969
      %2790 = vmatprep.subr.bf16.mxu0 %v1892
      %2791 = vmatpush1.bf16.msra.mxu0 %v1891
      %2792 = vmatprep.subr.bf16.mxu0 %v1886
      %2793 = vmatpush1.bf16.msra.mxu0 %v1885
      %2794 = vmatprep.subr.bf16.mxu0 %v2408
      %2795 = vmatpush2.bf16.msra.mxu0 %v2407
      %2796 = vmatprep.subr.bf16.mxu0 %v2402
      %2797 = vmatpush2.bf16.msra.mxu0 %v2401
      %2798 = vmatprep.subr.bf16.mxu0 %v2324
      %2799 = vmatpush2.bf16.msra.mxu0 %v2323
      %2800 = vmatprep.subr.bf16.mxu0 %v2318
      %2801 = vmatpush2.bf16.msra.mxu0 %v2317
      %2802 = vmatprep.subr.bf16.mxu0 %v2240
      %2803 = vmatpush2.bf16.msra.mxu0 %v2239
      %2804 = vmatprep.subr.bf16.mxu0 %v2234
      %2805 = vmatpush2.bf16.msra.mxu0 %v2233
      %2806 = vmatprep.subr.bf16.mxu0 %v2156
      %2807 = vmatpush2.bf16.msra.mxu0 %v2155
      %2808 = vmatprep.subr.bf16.mxu0 %v2150
      %2809 = vmatpush2.bf16.msra.mxu0 %v2149
      %2810 = vmatprep.mubr.bf16.mxu0 %v2600
      %2811 = vmatmul.mubr.bf16.gmra.mxu0 %v2599
      %v2812 = vpop.f32.mrf.mxu0
      %v2813 = vadd.f32 %v2522, %v2812
      %v2814 = vpop.f32.mrf.mxu0
      %v2815 = vadd.f32 %v2522, %v2814
      %v2816 = vpop.f32.mrf.mxu0
      %v2817 = vadd.f32 %v2527, %v2816
      %v2818 = vpop.f32.mrf.mxu0
      %v2819 = vadd.f32 %v2527, %v2818
      %2820 = vmatprep.mubr.bf16.mxu0 %v2603
      %2821 = vmatmul.mubr.bf16.gmra.mxu0 %v2602
      %v2822 = vpop.f32.mrf.mxu0
      %v2823 = vadd.f32 %v2532, %v2822
      %v2824 = vpop.f32.mrf.mxu0
      %v2825 = vadd.f32 %v2532, %v2824
      %v2826 = vpop.f32.mrf.mxu0
      %v2827 = vadd.f32 %v2537, %v2826
      %v2828 = vpop.f32.mrf.mxu0
      %v2829 = vadd.f32 %v2537, %v2828
      %2830 = vmatprep.mubr.bf16.mxu0 %v2606
      %2831 = vmatmul.mubr.bf16.gmra.mxu0 %v2605
      %v2832 = vpop.f32.mrf.mxu0
      %v2833 = vadd.f32 %v2542, %v2832
      %v2834 = vpop.f32.mrf.mxu0
      %v2835 = vadd.f32 %v2542, %v2834
      %v2836 = vpop.f32.mrf.mxu0
      %v2837 = vadd.f32 %v2547, %v2836
      %v2838 = vpop.f32.mrf.mxu0
      %v2839 = vadd.f32 %v2547, %v2838
      %2840 = vmatprep.mubr.bf16.mxu0 %v2609
      %2841 = vmatmul.mubr.bf16.gmra.mxu0 %v2608
      %v2842 = vpop.f32.mrf.mxu0
      %v2843 = vadd.f32 %v2552, %v2842
      %v2844 = vpop.f32.mrf.mxu0
      %v2845 = vadd.f32 %v2552, %v2844
      %v2846 = vpop.f32.mrf.mxu0
      %v2847 = vadd.f32 %v2557, %v2846
      %v2848 = vpop.f32.mrf.mxu0
      %v2849 = vadd.f32 %v2557, %v2848
      %2850 = vdwg.mxu0
      %2851 = vmatprep.subr.bf16.mxu0 0
      %2852 = vmatpush1.bf16.msra.mxu0 0
      %2853 = vmatprep.subr.bf16.mxu0 0
      %2854 = vmatpush1.bf16.msra.mxu0 0
      %2855 = vmatprep.subr.bf16.mxu0 0
      %2856 = vmatpush1.bf16.msra.mxu0 0
      %2857 = vmatprep.subr.bf16.mxu0 0
      %2858 = vmatpush1.bf16.msra.mxu0 0
      %2859 = vmatprep.subr.bf16.mxu0 0
      %2860 = vmatpush1.bf16.msra.mxu0 0
      %2861 = vmatprep.subr.bf16.mxu0 0
      %2862 = vmatpush1.bf16.msra.mxu0 0
      %2863 = vmatprep.subr.bf16.mxu0 %v2492
      %2864 = vmatpush1.bf16.msra.mxu0 %v2491
      %2865 = vmatprep.subr.bf16.mxu0 %v2486
      %2866 = vmatpush1.bf16.msra.mxu0 %v2485
      %2867 = vmatprep.subr.bf16.mxu0 0
      %2868 = vmatpush2.bf16.msra.mxu0 0
      %2869 = vmatprep.subr.bf16.mxu0 0
      %2870 = vmatpush2.bf16.msra.mxu0 0
      %2871 = vmatprep.subr.bf16.mxu0 0
      %2872 = vmatpush2.bf16.msra.mxu0 0
      %2873 = vmatprep.subr.bf16.mxu0 0
      %2874 = vmatpush2.bf16.msra.mxu0 0
      %2875 = vmatprep.subr.bf16.mxu0 0
      %2876 = vmatpush2.bf16.msra.mxu0 0
      %2877 = vmatprep.subr.bf16.mxu0 0
      %2878 = vmatpush2.bf16.msra.mxu0 0
      %2879 = vmatprep.subr.bf16.mxu0 0
      %2880 = vmatpush2.bf16.msra.mxu0 0
      %2881 = vmatprep.subr.bf16.mxu0 0
      %2882 = vmatpush2.bf16.msra.mxu0 0
      %2883 = vmatprep.mubr.bf16.mxu0 0
      %2884 = vmatmul.mubr.bf16.gmra.mxu0 %v2621
      %v2885 = vpop.f32.mrf.mxu0
      %v2886 = vadd.f32 %v2813, %v2885
      %v2887 = vpop.f32.mrf.mxu0
      %v2888 = vadd.f32 %v2815, %v2887
      %v2889 = vpop.f32.mrf.mxu0
      %v2890 = vadd.f32 %v2817, %v2889
      %v2891 = vpop.f32.mrf.mxu0
      %v2892 = vadd.f32 %v2819, %v2891
      %2893 = vmatprep.mubr.bf16.mxu0 0
      %2894 = vmatmul.mubr.bf16.gmra.mxu0 %v2624
      %v2895 = vpop.f32.mrf.mxu0
      %v2896 = vadd.f32 %v2823, %v2895
      %v2897 = vpop.f32.mrf.mxu0
      %v2898 = vadd.f32 %v2825, %v2897
      %v2899 = vpop.f32.mrf.mxu0
      %v2900 = vadd.f32 %v2827, %v2899
      %v2901 = vpop.f32.mrf.mxu0
      %v2902 = vadd.f32 %v2829, %v2901
      %2903 = vmatprep.mubr.bf16.mxu0 0
      %2904 = vmatmul.mubr.bf16.gmra.mxu0 %v2627
      %v2905 = vpop.f32.mrf.mxu0
      %v2906 = vadd.f32 %v2833, %v2905
      %v2907 = vpop.f32.mrf.mxu0
      %v2908 = vadd.f32 %v2835, %v2907
      %v2909 = vpop.f32.mrf.mxu0
      %v2910 = vadd.f32 %v2837, %v2909
      %v2911 = vpop.f32.mrf.mxu0
      %v2912 = vadd.f32 %v2839, %v2911
      %2913 = vmatprep.mubr.bf16.mxu0 0
      %2914 = vmatmul.mubr.bf16.gmra.mxu0 %v2630
      %v2915 = vpop.f32.mrf.mxu0
      %v2916 = vadd.f32 %v2843, %v2915
      %v2917 = vpop.f32.mrf.mxu0
      %v2918 = vadd.f32 %v2845, %v2917
      %v2919 = vpop.f32.mrf.mxu0
      %v2920 = vadd.f32 %v2847, %v2919
      %v2921 = vpop.f32.mrf.mxu0
      %v2922 = vadd.f32 %v2849, %v2921
      %2923 = vdwg.mxu0
      %2924 = vmatprep.subr.bf16.mxu0 %v2146
      %2925 = vmatpush1.bf16.msra.mxu0 %v2145
      %2926 = vmatprep.subr.bf16.mxu0 %v2140
      %2927 = vmatpush1.bf16.msra.mxu0 %v2139
      %2928 = vmatprep.subr.bf16.mxu0 %v2062
      %2929 = vmatpush1.bf16.msra.mxu0 %v2061
      %2930 = vmatprep.subr.bf16.mxu0 %v2056
      %2931 = vmatpush1.bf16.msra.mxu0 %v2055
      %2932 = vmatprep.subr.bf16.mxu0 %v1978
      %2933 = vmatpush1.bf16.msra.mxu0 %v1977
      %2934 = vmatprep.subr.bf16.mxu0 %v1972
      %2935 = vmatpush1.bf16.msra.mxu0 %v1971
      %2936 = vmatprep.subr.bf16.mxu0 %v1894
      %2937 = vmatpush1.bf16.msra.mxu0 %v1893
      %2938 = vmatprep.subr.bf16.mxu0 %v1888
      %2939 = vmatpush1.bf16.msra.mxu0 %v1887
      %2940 = vmatprep.subr.bf16.mxu0 %v2410
      %2941 = vmatpush2.bf16.msra.mxu0 %v2409
      %2942 = vmatprep.subr.bf16.mxu0 %v2404
      %2943 = vmatpush2.bf16.msra.mxu0 %v2403
      %2944 = vmatprep.subr.bf16.mxu0 %v2326
      %2945 = vmatpush2.bf16.msra.mxu0 %v2325
      %2946 = vmatprep.subr.bf16.mxu0 %v2320
      %2947 = vmatpush2.bf16.msra.mxu0 %v2319
      %2948 = vmatprep.subr.bf16.mxu0 %v2242
      %2949 = vmatpush2.bf16.msra.mxu0 %v2241
      %2950 = vmatprep.subr.bf16.mxu0 %v2236
      %2951 = vmatpush2.bf16.msra.mxu0 %v2235
      %2952 = vmatprep.subr.bf16.mxu0 %v2158
      %2953 = vmatpush2.bf16.msra.mxu0 %v2157
      %2954 = vmatprep.subr.bf16.mxu0 %v2152
      %2955 = vmatpush2.bf16.msra.mxu0 %v2151
      %2956 = vmatprep.mubr.bf16.mxu0 %v2600
      %2957 = vmatmul.mubr.bf16.gmra.mxu0 %v2599
      %v2958 = vpop.f32.mrf.mxu0
      %v2959 = vadd.f32 %v2522, %v2958
      %v2960 = vpop.f32.mrf.mxu0
      %v2961 = vadd.f32 %v2522, %v2960
      %v2962 = vpop.f32.mrf.mxu0
      %v2963 = vadd.f32 %v2527, %v2962
      %v2964 = vpop.f32.mrf.mxu0
      %v2965 = vadd.f32 %v2527, %v2964
      %2966 = vmatprep.mubr.bf16.mxu0 %v2603
      %2967 = vmatmul.mubr.bf16.gmra.mxu0 %v2602
      %v2968 = vpop.f32.mrf.mxu0
      %v2969 = vadd.f32 %v2532, %v2968
      %v2970 = vpop.f32.mrf.mxu0
      %v2971 = vadd.f32 %v2532, %v2970
      %v2972 = vpop.f32.mrf.mxu0
      %v2973 = vadd.f32 %v2537, %v2972
      %v2974 = vpop.f32.mrf.mxu0
      %v2975 = vadd.f32 %v2537, %v2974
      %2976 = vmatprep.mubr.bf16.mxu0 %v2606
      %2977 = vmatmul.mubr.bf16.gmra.mxu0 %v2605
      %v2978 = vpop.f32.mrf.mxu0
      %v2979 = vadd.f32 %v2542, %v2978
      %v2980 = vpop.f32.mrf.mxu0
      %v2981 = vadd.f32 %v2542, %v2980
      %v2982 = vpop.f32.mrf.mxu0
      %v2983 = vadd.f32 %v2547, %v2982
      %v2984 = vpop.f32.mrf.mxu0
      %v2985 = vadd.f32 %v2547, %v2984
      %2986 = vmatprep.mubr.bf16.mxu0 %v2609
      %2987 = vmatmul.mubr.bf16.gmra.mxu0 %v2608
      %v2988 = vpop.f32.mrf.mxu0
      %v2989 = vadd.f32 %v2552, %v2988
      %v2990 = vpop.f32.mrf.mxu0
      %v2991 = vadd.f32 %v2552, %v2990
      %v2992 = vpop.f32.mrf.mxu0
      %v2993 = vadd.f32 %v2557, %v2992
      %v2994 = vpop.f32.mrf.mxu0
      %v2995 = vadd.f32 %v2557, %v2994
      %2996 = vdwg.mxu0
      %2997 = vmatprep.subr.bf16.mxu0 0
      %2998 = vmatpush1.bf16.msra.mxu0 0
      %2999 = vmatprep.subr.bf16.mxu0 0
      %3000 = vmatpush1.bf16.msra.mxu0 0
      %3001 = vmatprep.subr.bf16.mxu0 0
      %3002 = vmatpush1.bf16.msra.mxu0 0
      %3003 = vmatprep.subr.bf16.mxu0 0
      %3004 = vmatpush1.bf16.msra.mxu0 0
      %3005 = vmatprep.subr.bf16.mxu0 0
      %3006 = vmatpush1.bf16.msra.mxu0 0
      %3007 = vmatprep.subr.bf16.mxu0 0
      %3008 = vmatpush1.bf16.msra.mxu0 0
      %3009 = vmatprep.subr.bf16.mxu0 %v2494
      %3010 = vmatpush1.bf16.msra.mxu0 %v2493
      %3011 = vmatprep.subr.bf16.mxu0 %v2488
      %3012 = vmatpush1.bf16.msra.mxu0 %v2487
      %3013 = vmatprep.subr.bf16.mxu0 0
      %3014 = vmatpush2.bf16.msra.mxu0 0
      %3015 = vmatprep.subr.bf16.mxu0 0
      %3016 = vmatpush2.bf16.msra.mxu0 0
      %3017 = vmatprep.subr.bf16.mxu0 0
      %3018 = vmatpush2.bf16.msra.mxu0 0
      %3019 = vmatprep.subr.bf16.mxu0 0
      %3020 = vmatpush2.bf16.msra.mxu0 0
      %3021 = vmatprep.subr.bf16.mxu0 0
      %3022 = vmatpush2.bf16.msra.mxu0 0
      %3023 = vmatprep.subr.bf16.mxu0 0
      %3024 = vmatpush2.bf16.msra.mxu0 0
      %3025 = vmatprep.subr.bf16.mxu0 0
      %3026 = vmatpush2.bf16.msra.mxu0 0
      %3027 = vmatprep.subr.bf16.mxu0 0
      %3028 = vmatpush2.bf16.msra.mxu0 0
      %3029 = vmatprep.mubr.bf16.mxu0 0
      %3030 = vmatmul.mubr.bf16.gmra.mxu0 %v2621
      %v3031 = vpop.f32.mrf.mxu0
      %v3032 = vadd.f32 %v2959, %v3031
      %v3033 = vpop.f32.mrf.mxu0
      %v3034 = vadd.f32 %v2961, %v3033
      %v3035 = vpop.f32.mrf.mxu0
      %v3036 = vadd.f32 %v2963, %v3035
      %v3037 = vpop.f32.mrf.mxu0
      %v3038 = vadd.f32 %v2965, %v3037
      %3039 = vmatprep.mubr.bf16.mxu0 0
      %3040 = vmatmul.mubr.bf16.gmra.mxu0 %v2624
      %v3041 = vpop.f32.mrf.mxu0
      %v3042 = vadd.f32 %v2969, %v3041
      %v3043 = vpop.f32.mrf.mxu0
      %v3044 = vadd.f32 %v2971, %v3043
      %v3045 = vpop.f32.mrf.mxu0
      %v3046 = vadd.f32 %v2973, %v3045
      %v3047 = vpop.f32.mrf.mxu0
      %v3048 = vadd.f32 %v2975, %v3047
      %3049 = vmatprep.mubr.bf16.mxu0 0
      %3050 = vmatmul.mubr.bf16.gmra.mxu0 %v2627
      %v3051 = vpop.f32.mrf.mxu0
      %v3052 = vadd.f32 %v2979, %v3051
      %v3053 = vpop.f32.mrf.mxu0
      %v3054 = vadd.f32 %v2981, %v3053
      %v3055 = vpop.f32.mrf.mxu0
      %v3056 = vadd.f32 %v2983, %v3055
      %v3057 = vpop.f32.mrf.mxu0
      %v3058 = vadd.f32 %v2985, %v3057
      %3059 = vmatprep.mubr.bf16.mxu0 0
      %3060 = vmatmul.mubr.bf16.gmra.mxu0 %v2630
      %v3061 = vpop.f32.mrf.mxu0
      %v3062 = vadd.f32 %v2989, %v3061
      %v3063 = vpop.f32.mrf.mxu0
      %v3064 = vadd.f32 %v2991, %v3063
      %v3065 = vpop.f32.mrf.mxu0
      %v3066 = vadd.f32 %v2993, %v3065
      %v3067 = vpop.f32.mrf.mxu0
      %v3068 = vadd.f32 %v2995, %v3067
      %3069 = vdwg.mxu0
      %v3070 = vmax.f32 %v2740, 0.0
      %v3071 = vmax.f32 %v2742, 0.0
      %v3072 = vmax.f32 %v2886, 0.0
      %v3073 = vmax.f32 %v2888, 0.0
      %v3074 = vmax.f32 %v3032, 0.0
      %v3075 = vmax.f32 %v3034, 0.0
      %v3076 = vmax.f32 %v2744, 0.0
      %v3077 = vmax.f32 %v2746, 0.0
      %v3078 = vmax.f32 %v2890, 0.0
      %v3079 = vmax.f32 %v2892, 0.0
      %v3080 = vmax.f32 %v3036, 0.0
      %v3081 = vmax.f32 %v3038, 0.0
      %v3082 = vmax.f32 %v2750, 0.0
      %v3083 = vmax.f32 %v2752, 0.0
      %v3084 = vmax.f32 %v2896, 0.0
      %v3085 = vmax.f32 %v2898, 0.0
      %v3086 = vmax.f32 %v3042, 0.0
      %v3087 = vmax.f32 %v3044, 0.0
      %v3088 = vmax.f32 %v2754, 0.0
      %v3089 = vmax.f32 %v2756, 0.0
      %v3090 = vmax.f32 %v2900, 0.0
      %v3091 = vmax.f32 %v2902, 0.0
      %v3092 = vmax.f32 %v3046, 0.0
      %v3093 = vmax.f32 %v3048, 0.0
      %v3094 = vmax.f32 %v2760, 0.0
      %v3095 = vmax.f32 %v2762, 0.0
      %v3096 = vmax.f32 %v2906, 0.0
      %v3097 = vmax.f32 %v2908, 0.0
      %v3098 = vmax.f32 %v3052, 0.0
      %v3099 = vmax.f32 %v3054, 0.0
      %v3100 = vmax.f32 %v2764, 0.0
      %v3101 = vmax.f32 %v2766, 0.0
      %v3102 = vmax.f32 %v2910, 0.0
      %v3103 = vmax.f32 %v2912, 0.0
      %v3104 = vmax.f32 %v3056, 0.0
      %v3105 = vmax.f32 %v3058, 0.0
      %v3106 = vmax.f32 %v2770, 0.0
      %v3107 = vmax.f32 %v2772, 0.0
      %v3108 = vmax.f32 %v2916, 0.0
      %v3109 = vmax.f32 %v2918, 0.0
      %v3110 = vmax.f32 %v3062, 0.0
      %v3111 = vmax.f32 %v3064, 0.0
      %v3112 = vmax.f32 %v2774, 0.0
      %v3113 = vmax.f32 %v2776, 0.0
      %v3114 = vmax.f32 %v2920, 0.0
      %v3115 = vmax.f32 %v2922, 0.0
      %v3116 = vmax.f32 %v3066, 0.0
      %v3117 = vmax.f32 %v3068, 0.0
      %v3118 = vmul.f32 %v3070, %v1171
      %v3119 = vmul.f32 %v3071, %v1175
      %v3120 = vmul.f32 %v3072, %v1179
      %v3121 = vmul.f32 %v3073, %v1183
      %v3122 = vmul.f32 %v3074, %v1187
      %v3123 = vmul.f32 %v3075, %v1191
      %v3124 = vmul.f32 %v3076, %v1171
      %v3125 = vmul.f32 %v3077, %v1175
      %v3126 = vmul.f32 %v3078, %v1179
      %v3127 = vmul.f32 %v3079, %v1183
      %v3128 = vmul.f32 %v3080, %v1187
      %v3129 = vmul.f32 %v3081, %v1191
      %v3130 = vmul.f32 %v3082, %v1171
      %v3131 = vmul.f32 %v3083, %v1175
      %v3132 = vmul.f32 %v3084, %v1179
      %v3133 = vmul.f32 %v3085, %v1183
      %v3134 = vmul.f32 %v3086, %v1187
      %v3135 = vmul.f32 %v3087, %v1191
      %v3136 = vmul.f32 %v3088, %v1171
      %v3137 = vmul.f32 %v3089, %v1175
      %v3138 = vmul.f32 %v3090, %v1179
      %v3139 = vmul.f32 %v3091, %v1183
      %v3140 = vmul.f32 %v3092, %v1187
      %v3141 = vmul.f32 %v3093, %v1191
      %v3142 = vmul.f32 %v3094, %v1171
      %v3143 = vmul.f32 %v3095, %v1175
      %v3144 = vmul.f32 %v3096, %v1179
      %v3145 = vmul.f32 %v3097, %v1183
      %v3146 = vmul.f32 %v3098, %v1187
      %v3147 = vmul.f32 %v3099, %v1191
      %v3148 = vmul.f32 %v3100, %v1171
      %v3149 = vmul.f32 %v3101, %v1175
      %v3150 = vmul.f32 %v3102, %v1179
      %v3151 = vmul.f32 %v3103, %v1183
      %v3152 = vmul.f32 %v3104, %v1187
      %v3153 = vmul.f32 %v3105, %v1191
      %v3154 = vmul.f32 %v3106, %v1171
      %v3155 = vmul.f32 %v3107, %v1175
      %v3156 = vmul.f32 %v3108, %v1179
      %v3157 = vmul.f32 %v3109, %v1183
      %v3158 = vmul.f32 %v3110, %v1187
      %v3159 = vmul.f32 %v3111, %v1191
      %v3160 = vmul.f32 %v3112, %v1171
      %v3161 = vmul.f32 %v3113, %v1175
      %v3162 = vmul.f32 %v3114, %v1179
      %v3163 = vmul.f32 %v3115, %v1183
      %v3164 = vmul.f32 %v3116, %v1187
      %v3165 = vmul.f32 %v3117, %v1191
      %3166 = vrot.lane.b32.xlu0 %v3118, 19
      %v3167 = vpop.permute.xlu0 %3166
      %3168 = vrot.lane.b32.xlu0 %v3124, 19
      %v3169 = vpop.permute.xlu0 %3168
      %3170 = vrot.lane.b32.xlu0 %v3130, 19
      %v3171 = vpop.permute.xlu0 %3170
      %3172 = vrot.lane.b32.xlu0 %v3136, 19
      %v3173 = vpop.permute.xlu0 %3172
      %3174 = vrot.lane.b32.xlu0 %v3142, 19
      %v3175 = vpop.permute.xlu0 %3174
      %3176 = vrot.lane.b32.xlu0 %v3148, 19
      %v3177 = vpop.permute.xlu0 %3176
      %3178 = vrot.lane.b32.xlu0 %v3154, 19
      %v3179 = vpop.permute.xlu0 %3178
      %3180 = vrot.lane.b32.xlu0 %v3160, 19
      %v3181 = vpop.permute.xlu0 %3180
      %3182 = vrot.lane.b32.xlu0 %v3119, 19
      %v3183 = vpop.permute.xlu0 %3182
      %3184 = vrot.lane.b32.xlu0 %v3125, 19
      %v3185 = vpop.permute.xlu0 %3184
      %3186 = vrot.lane.b32.xlu0 %v3131, 19
      %v3187 = vpop.permute.xlu0 %3186
      %3188 = vrot.lane.b32.xlu0 %v3137, 19
      %v3189 = vpop.permute.xlu0 %3188
      %3190 = vrot.lane.b32.xlu0 %v3143, 19
      %v3191 = vpop.permute.xlu0 %3190
      %3192 = vrot.lane.b32.xlu0 %v3149, 19
      %v3193 = vpop.permute.xlu0 %3192
      %3194 = vrot.lane.b32.xlu0 %v3155, 19
      %v3195 = vpop.permute.xlu0 %3194
      %3196 = vrot.lane.b32.xlu0 %v3161, 19
      %v3197 = vpop.permute.xlu0 %3196
      %3198 = vrot.lane.b32.xlu0 %v3120, 19
      %v3199 = vpop.permute.xlu0 %3198
      %3200 = vrot.lane.b32.xlu0 %v3126, 19
      %v3201 = vpop.permute.xlu0 %3200
      %3202 = vrot.lane.b32.xlu0 %v3132, 19
      %v3203 = vpop.permute.xlu0 %3202
      %3204 = vrot.lane.b32.xlu0 %v3138, 19
      %v3205 = vpop.permute.xlu0 %3204
      %3206 = vrot.lane.b32.xlu0 %v3144, 19
      %v3207 = vpop.permute.xlu0 %3206
      %3208 = vrot.lane.b32.xlu0 %v3150, 19
      %v3209 = vpop.permute.xlu0 %3208
      %3210 = vrot.lane.b32.xlu0 %v3156, 19
      %v3211 = vpop.permute.xlu0 %3210
      %3212 = vrot.lane.b32.xlu0 %v3162, 19
      %v3213 = vpop.permute.xlu0 %3212
      %3214 = vrot.lane.b32.xlu0 %v3121, 19
      %v3215 = vpop.permute.xlu0 %3214
      %3216 = vrot.lane.b32.xlu0 %v3127, 19
      %v3217 = vpop.permute.xlu0 %3216
      %3218 = vrot.lane.b32.xlu0 %v3133, 19
      %v3219 = vpop.permute.xlu0 %3218
      %3220 = vrot.lane.b32.xlu0 %v3139, 19
      %v3221 = vpop.permute.xlu0 %3220
      %3222 = vrot.lane.b32.xlu0 %v3145, 19
      %v3223 = vpop.permute.xlu0 %3222
      %3224 = vrot.lane.b32.xlu0 %v3151, 19
      %v3225 = vpop.permute.xlu0 %3224
      %3226 = vrot.lane.b32.xlu0 %v3157, 19
      %v3227 = vpop.permute.xlu0 %3226
      %3228 = vrot.lane.b32.xlu0 %v3163, 19
      %v3229 = vpop.permute.xlu0 %3228
      %3230 = vrot.lane.b32.xlu0 %v3122, 19
      %v3231 = vpop.permute.xlu0 %3230
      %3232 = vrot.lane.b32.xlu0 %v3128, 19
      %v3233 = vpop.permute.xlu0 %3232
      %3234 = vrot.lane.b32.xlu0 %v3134, 19
      %v3235 = vpop.permute.xlu0 %3234
      %3236 = vrot.lane.b32.xlu0 %v3140, 19
      %v3237 = vpop.permute.xlu0 %3236
      %3238 = vrot.lane.b32.xlu0 %v3146, 19
      %v3239 = vpop.permute.xlu0 %3238
      %3240 = vrot.lane.b32.xlu0 %v3152, 19
      %v3241 = vpop.permute.xlu0 %3240
      %3242 = vrot.lane.b32.xlu0 %v3158, 19
      %v3243 = vpop.permute.xlu0 %3242
      %3244 = vrot.lane.b32.xlu0 %v3164, 19
      %v3245 = vpop.permute.xlu0 %3244
      %3246 = vrot.lane.b32.xlu0 %v3123, 19
      %v3247 = vpop.permute.xlu0 %3246
      %3248 = vrot.lane.b32.xlu0 %v3129, 19
      %v3249 = vpop.permute.xlu0 %3248
      %3250 = vrot.lane.b32.xlu0 %v3135, 19
      %v3251 = vpop.permute.xlu0 %3250
      %3252 = vrot.lane.b32.xlu0 %v3141, 19
      %v3253 = vpop.permute.xlu0 %3252
      %3254 = vrot.lane.b32.xlu0 %v3147, 19
      %v3255 = vpop.permute.xlu0 %3254
      %3256 = vrot.lane.b32.xlu0 %v3153, 19
      %v3257 = vpop.permute.xlu0 %3256
      %3258 = vrot.lane.b32.xlu0 %v3159, 19
      %v3259 = vpop.permute.xlu0 %3258
      %3260 = vrot.lane.b32.xlu0 %v3165, 19
      %v3261 = vpop.permute.xlu0 %3260
      %v3262 = vsel %vm673, %v3231, %v3247
      %v3263 = vsel %vm673, %v3233, %v3249
      %v3264 = vsel %vm673, %v3235, %v3251
      %v3265 = vsel %vm673, %v3237, %v3253
      %v3266 = vsel %vm673, %v3239, %v3255
      %v3267 = vsel %vm673, %v3241, %v3257
      %v3268 = vsel %vm673, %v3243, %v3259
      %v3269 = vsel %vm673, %v3245, %v3261
      %v3270 = vsel %vm673, %v3215, %v3231
      %v3271 = vsel %vm673, %v3217, %v3233
      %v3272 = vsel %vm673, %v3219, %v3235
      %v3273 = vsel %vm673, %v3221, %v3237
      %v3274 = vsel %vm673, %v3223, %v3239
      %v3275 = vsel %vm673, %v3225, %v3241
      %v3276 = vsel %vm673, %v3227, %v3243
      %v3277 = vsel %vm673, %v3229, %v3245
      %v3278 = vsel %vm673, %v3199, %v3215
      %v3279 = vsel %vm673, %v3201, %v3217
      %v3280 = vsel %vm673, %v3203, %v3219
      %v3281 = vsel %vm673, %v3205, %v3221
      %v3282 = vsel %vm673, %v3207, %v3223
      %v3283 = vsel %vm673, %v3209, %v3225
      %v3284 = vsel %vm673, %v3211, %v3227
      %v3285 = vsel %vm673, %v3213, %v3229
      %v3286 = vsel %vm673, %v3183, %v3199
      %v3287 = vsel %vm673, %v3185, %v3201
      %v3288 = vsel %vm673, %v3187, %v3203
      %v3289 = vsel %vm673, %v3189, %v3205
      %v3290 = vsel %vm673, %v3191, %v3207
      %v3291 = vsel %vm673, %v3193, %v3209
      %v3292 = vsel %vm673, %v3195, %v3211
      %v3293 = vsel %vm673, %v3197, %v3213
      %v3294 = vsel %vm673, %v3167, %v3183
      %v3295 = vsel %vm673, %v3169, %v3185
      %v3296 = vsel %vm673, %v3171, %v3187
      %v3297 = vsel %vm673, %v3173, %v3189
      %v3298 = vsel %vm673, %v3175, %v3191
      %v3299 = vsel %vm673, %v3177, %v3193
      %v3300 = vsel %vm673, %v3179, %v3195
      %v3301 = vsel %vm673, %v3181, %v3197
      %v3302 = vsel %vm673, %v3247, %v3167
      %v3303 = vsel %vm673, %v3249, %v3169
      %v3304 = vsel %vm673, %v3251, %v3171
      %v3305 = vsel %vm673, %v3253, %v3173
      %v3306 = vsel %vm673, %v3255, %v3175
      %v3307 = vsel %vm673, %v3257, %v3177
      %v3308 = vsel %vm673, %v3259, %v3179
      %v3309 = vsel %vm673, %v3261, %v3181
      %v3310 = vpack.c.bf16 %v3303, %v3302
      %v3311 = vpack.c.bf16 %v3295, %v3294
      %v3312 = vpack.c.bf16 %v3287, %v3286
      %v3313 = vpack.c.bf16 %v3279, %v3278
      %v3314 = vpack.c.bf16 %v3271, %v3270
      %v3315 = vpack.c.bf16 %v3263, %v3262
      %v3316 = vpack.c.bf16 %v3305, %v3304
      %v3317 = vpack.c.bf16 %v3297, %v3296
      %v3318 = vpack.c.bf16 %v3289, %v3288
      %v3319 = vpack.c.bf16 %v3281, %v3280
      %v3320 = vpack.c.bf16 %v3273, %v3272
      %v3321 = vpack.c.bf16 %v3265, %v3264
      %v3322 = vpack.c.bf16 %v3307, %v3306
      %v3323 = vpack.c.bf16 %v3299, %v3298
      %v3324 = vpack.c.bf16 %v3291, %v3290
      %v3325 = vpack.c.bf16 %v3283, %v3282
      %v3326 = vpack.c.bf16 %v3275, %v3274
      %v3327 = vpack.c.bf16 %v3267, %v3266
      %v3328 = vpack.c.bf16 %v3309, %v3308
      %v3329 = vpack.c.bf16 %v3301, %v3300
      %v3330 = vpack.c.bf16 %v3293, %v3292
      %v3331 = vpack.c.bf16 %v3285, %v3284
      %v3332 = vpack.c.bf16 %v3277, %v3276
      %v3333 = vpack.c.bf16 %v3269, %v3268
      %3334 = vrot.lane.b32.xlu0 %v3118, 18
      %v3335 = vpop.permute.xlu0 %3334
      %3336 = vrot.lane.b32.xlu0 %v3124, 18
      %v3337 = vpop.permute.xlu0 %3336
      %3338 = vrot.lane.b32.xlu0 %v3130, 18
      %v3339 = vpop.permute.xlu0 %3338
      %3340 = vrot.lane.b32.xlu0 %v3136, 18
      %v3341 = vpop.permute.xlu0 %3340
      %3342 = vrot.lane.b32.xlu0 %v3142, 18
      %v3343 = vpop.permute.xlu0 %3342
      %3344 = vrot.lane.b32.xlu0 %v3148, 18
      %v3345 = vpop.permute.xlu0 %3344
      %3346 = vrot.lane.b32.xlu0 %v3154, 18
      %v3347 = vpop.permute.xlu0 %3346
      %3348 = vrot.lane.b32.xlu0 %v3160, 18
      %v3349 = vpop.permute.xlu0 %3348
      %3350 = vrot.lane.b32.xlu0 %v3119, 18
      %v3351 = vpop.permute.xlu0 %3350
      %3352 = vrot.lane.b32.xlu0 %v3125, 18
      %v3353 = vpop.permute.xlu0 %3352
      %3354 = vrot.lane.b32.xlu0 %v3131, 18
      %v3355 = vpop.permute.xlu0 %3354
      %3356 = vrot.lane.b32.xlu0 %v3137, 18
      %v3357 = vpop.permute.xlu0 %3356
      %3358 = vrot.lane.b32.xlu0 %v3143, 18
      %v3359 = vpop.permute.xlu0 %3358
      %3360 = vrot.lane.b32.xlu0 %v3149, 18
      %v3361 = vpop.permute.xlu0 %3360
      %3362 = vrot.lane.b32.xlu0 %v3155, 18
      %v3363 = vpop.permute.xlu0 %3362
      %3364 = vrot.lane.b32.xlu0 %v3161, 18
      %v3365 = vpop.permute.xlu0 %3364
      %3366 = vrot.lane.b32.xlu0 %v3120, 18
      %v3367 = vpop.permute.xlu0 %3366
      %3368 = vrot.lane.b32.xlu0 %v3126, 18
      %v3369 = vpop.permute.xlu0 %3368
      %3370 = vrot.lane.b32.xlu0 %v3132, 18
      %v3371 = vpop.permute.xlu0 %3370
      %3372 = vrot.lane.b32.xlu0 %v3138, 18
      %v3373 = vpop.permute.xlu0 %3372
      %3374 = vrot.lane.b32.xlu0 %v3144, 18
      %v3375 = vpop.permute.xlu0 %3374
      %3376 = vrot.lane.b32.xlu0 %v3150, 18
      %v3377 = vpop.permute.xlu0 %3376
      %3378 = vrot.lane.b32.xlu0 %v3156, 18
      %v3379 = vpop.permute.xlu0 %3378
      %3380 = vrot.lane.b32.xlu0 %v3162, 18
      %v3381 = vpop.permute.xlu0 %3380
      %3382 = vrot.lane.b32.xlu0 %v3121, 18
      %v3383 = vpop.permute.xlu0 %3382
      %3384 = vrot.lane.b32.xlu0 %v3127, 18
      %v3385 = vpop.permute.xlu0 %3384
      %3386 = vrot.lane.b32.xlu0 %v3133, 18
      %v3387 = vpop.permute.xlu0 %3386
      %3388 = vrot.lane.b32.xlu0 %v3139, 18
      %v3389 = vpop.permute.xlu0 %3388
      %3390 = vrot.lane.b32.xlu0 %v3145, 18
      %v3391 = vpop.permute.xlu0 %3390
      %3392 = vrot.lane.b32.xlu0 %v3151, 18
      %v3393 = vpop.permute.xlu0 %3392
      %3394 = vrot.lane.b32.xlu0 %v3157, 18
      %v3395 = vpop.permute.xlu0 %3394
      %3396 = vrot.lane.b32.xlu0 %v3163, 18
      %v3397 = vpop.permute.xlu0 %3396
      %3398 = vrot.lane.b32.xlu0 %v3122, 18
      %v3399 = vpop.permute.xlu0 %3398
      %3400 = vrot.lane.b32.xlu0 %v3128, 18
      %v3401 = vpop.permute.xlu0 %3400
      %3402 = vrot.lane.b32.xlu0 %v3134, 18
      %v3403 = vpop.permute.xlu0 %3402
      %3404 = vrot.lane.b32.xlu0 %v3140, 18
      %v3405 = vpop.permute.xlu0 %3404
      %3406 = vrot.lane.b32.xlu0 %v3146, 18
      %v3407 = vpop.permute.xlu0 %3406
      %3408 = vrot.lane.b32.xlu0 %v3152, 18
      %v3409 = vpop.permute.xlu0 %3408
      %3410 = vrot.lane.b32.xlu0 %v3158, 18
      %v3411 = vpop.permute.xlu0 %3410
      %3412 = vrot.lane.b32.xlu0 %v3164, 18
      %v3413 = vpop.permute.xlu0 %3412
      %3414 = vrot.lane.b32.xlu0 %v3123, 18
      %v3415 = vpop.permute.xlu0 %3414
      %3416 = vrot.lane.b32.xlu0 %v3129, 18
      %v3417 = vpop.permute.xlu0 %3416
      %3418 = vrot.lane.b32.xlu0 %v3135, 18
      %v3419 = vpop.permute.xlu0 %3418
      %3420 = vrot.lane.b32.xlu0 %v3141, 18
      %v3421 = vpop.permute.xlu0 %3420
      %3422 = vrot.lane.b32.xlu0 %v3147, 18
      %v3423 = vpop.permute.xlu0 %3422
      %3424 = vrot.lane.b32.xlu0 %v3153, 18
      %v3425 = vpop.permute.xlu0 %3424
      %3426 = vrot.lane.b32.xlu0 %v3159, 18
      %v3427 = vpop.permute.xlu0 %3426
      %3428 = vrot.lane.b32.xlu0 %v3165, 18
      %v3429 = vpop.permute.xlu0 %3428
      %v3430 = vsel %vm716, %v3399, %v3415
      %v3431 = vsel %vm716, %v3401, %v3417
      %v3432 = vsel %vm716, %v3403, %v3419
      %v3433 = vsel %vm716, %v3405, %v3421
      %v3434 = vsel %vm716, %v3407, %v3423
      %v3435 = vsel %vm716, %v3409, %v3425
      %v3436 = vsel %vm716, %v3411, %v3427
      %v3437 = vsel %vm716, %v3413, %v3429
      %v3438 = vsel %vm716, %v3383, %v3399
      %v3439 = vsel %vm716, %v3385, %v3401
      %v3440 = vsel %vm716, %v3387, %v3403
      %v3441 = vsel %vm716, %v3389, %v3405
      %v3442 = vsel %vm716, %v3391, %v3407
      %v3443 = vsel %vm716, %v3393, %v3409
      %v3444 = vsel %vm716, %v3395, %v3411
      %v3445 = vsel %vm716, %v3397, %v3413
      %v3446 = vsel %vm716, %v3367, %v3383
      %v3447 = vsel %vm716, %v3369, %v3385
      %v3448 = vsel %vm716, %v3371, %v3387
      %v3449 = vsel %vm716, %v3373, %v3389
      %v3450 = vsel %vm716, %v3375, %v3391
      %v3451 = vsel %vm716, %v3377, %v3393
      %v3452 = vsel %vm716, %v3379, %v3395
      %v3453 = vsel %vm716, %v3381, %v3397
      %v3454 = vsel %vm716, %v3351, %v3367
      %v3455 = vsel %vm716, %v3353, %v3369
      %v3456 = vsel %vm716, %v3355, %v3371
      %v3457 = vsel %vm716, %v3357, %v3373
      %v3458 = vsel %vm716, %v3359, %v3375
      %v3459 = vsel %vm716, %v3361, %v3377
      %v3460 = vsel %vm716, %v3363, %v3379
      %v3461 = vsel %vm716, %v3365, %v3381
      %v3462 = vsel %vm716, %v3335, %v3351
      %v3463 = vsel %vm716, %v3337, %v3353
      %v3464 = vsel %vm716, %v3339, %v3355
      %v3465 = vsel %vm716, %v3341, %v3357
      %v3466 = vsel %vm716, %v3343, %v3359
      %v3467 = vsel %vm716, %v3345, %v3361
      %v3468 = vsel %vm716, %v3347, %v3363
      %v3469 = vsel %vm716, %v3349, %v3365
      %v3470 = vsel %vm716, %v3415, %v3335
      %v3471 = vsel %vm716, %v3417, %v3337
      %v3472 = vsel %vm716, %v3419, %v3339
      %v3473 = vsel %vm716, %v3421, %v3341
      %v3474 = vsel %vm716, %v3423, %v3343
      %v3475 = vsel %vm716, %v3425, %v3345
      %v3476 = vsel %vm716, %v3427, %v3347
      %v3477 = vsel %vm716, %v3429, %v3349
      %v3478 = vpack.c.bf16 %v3471, %v3470
      %v3479 = vpack.c.bf16 %v3463, %v3462
      %v3480 = vpack.c.bf16 %v3455, %v3454
      %v3481 = vpack.c.bf16 %v3447, %v3446
      %v3482 = vpack.c.bf16 %v3439, %v3438
      %v3483 = vpack.c.bf16 %v3431, %v3430
      %v3484 = vpack.c.bf16 %v3473, %v3472
      %v3485 = vpack.c.bf16 %v3465, %v3464
      %v3486 = vpack.c.bf16 %v3457, %v3456
      %v3487 = vpack.c.bf16 %v3449, %v3448
      %v3488 = vpack.c.bf16 %v3441, %v3440
      %v3489 = vpack.c.bf16 %v3433, %v3432
      %v3490 = vpack.c.bf16 %v3475, %v3474
      %v3491 = vpack.c.bf16 %v3467, %v3466
      %v3492 = vpack.c.bf16 %v3459, %v3458
      %v3493 = vpack.c.bf16 %v3451, %v3450
      %v3494 = vpack.c.bf16 %v3443, %v3442
      %v3495 = vpack.c.bf16 %v3435, %v3434
      %v3496 = vpack.c.bf16 %v3477, %v3476
      %v3497 = vpack.c.bf16 %v3469, %v3468
      %v3498 = vpack.c.bf16 %v3461, %v3460
      %v3499 = vpack.c.bf16 %v3453, %v3452
      %v3500 = vpack.c.bf16 %v3445, %v3444
      %v3501 = vpack.c.bf16 %v3437, %v3436
      %3502 = vrot.lane.b32.xlu0 %v3118, 17
      %v3503 = vpop.permute.xlu0 %3502
      %3504 = vrot.lane.b32.xlu0 %v3124, 17
      %v3505 = vpop.permute.xlu0 %3504
      %3506 = vrot.lane.b32.xlu0 %v3130, 17
      %v3507 = vpop.permute.xlu0 %3506
      %3508 = vrot.lane.b32.xlu0 %v3136, 17
      %v3509 = vpop.permute.xlu0 %3508
      %3510 = vrot.lane.b32.xlu0 %v3142, 17
      %v3511 = vpop.permute.xlu0 %3510
      %3512 = vrot.lane.b32.xlu0 %v3148, 17
      %v3513 = vpop.permute.xlu0 %3512
      %3514 = vrot.lane.b32.xlu0 %v3154, 17
      %v3515 = vpop.permute.xlu0 %3514
      %3516 = vrot.lane.b32.xlu0 %v3160, 17
      %v3517 = vpop.permute.xlu0 %3516
      %3518 = vrot.lane.b32.xlu0 %v3119, 17
      %v3519 = vpop.permute.xlu0 %3518
      %3520 = vrot.lane.b32.xlu0 %v3125, 17
      %v3521 = vpop.permute.xlu0 %3520
      %3522 = vrot.lane.b32.xlu0 %v3131, 17
      %v3523 = vpop.permute.xlu0 %3522
      %3524 = vrot.lane.b32.xlu0 %v3137, 17
      %v3525 = vpop.permute.xlu0 %3524
      %3526 = vrot.lane.b32.xlu0 %v3143, 17
      %v3527 = vpop.permute.xlu0 %3526
      %3528 = vrot.lane.b32.xlu0 %v3149, 17
      %v3529 = vpop.permute.xlu0 %3528
      %3530 = vrot.lane.b32.xlu0 %v3155, 17
      %v3531 = vpop.permute.xlu0 %3530
      %3532 = vrot.lane.b32.xlu0 %v3161, 17
      %v3533 = vpop.permute.xlu0 %3532
      %3534 = vrot.lane.b32.xlu0 %v3120, 17
      %v3535 = vpop.permute.xlu0 %3534
      %3536 = vrot.lane.b32.xlu0 %v3126, 17
      %v3537 = vpop.permute.xlu0 %3536
      %3538 = vrot.lane.b32.xlu0 %v3132, 17
      %v3539 = vpop.permute.xlu0 %3538
      %3540 = vrot.lane.b32.xlu0 %v3138, 17
      %v3541 = vpop.permute.xlu0 %3540
      %3542 = vrot.lane.b32.xlu0 %v3144, 17
      %v3543 = vpop.permute.xlu0 %3542
      %3544 = vrot.lane.b32.xlu0 %v3150, 17
      %v3545 = vpop.permute.xlu0 %3544
      %3546 = vrot.lane.b32.xlu0 %v3156, 17
      %v3547 = vpop.permute.xlu0 %3546
      %3548 = vrot.lane.b32.xlu0 %v3162, 17
      %v3549 = vpop.permute.xlu0 %3548
      %3550 = vrot.lane.b32.xlu0 %v3121, 17
      %v3551 = vpop.permute.xlu0 %3550
      %3552 = vrot.lane.b32.xlu0 %v3127, 17
      %v3553 = vpop.permute.xlu0 %3552
      %3554 = vrot.lane.b32.xlu0 %v3133, 17
      %v3555 = vpop.permute.xlu0 %3554
      %3556 = vrot.lane.b32.xlu0 %v3139, 17
      %v3557 = vpop.permute.xlu0 %3556
      %3558 = vrot.lane.b32.xlu0 %v3145, 17
      %v3559 = vpop.permute.xlu0 %3558
      %3560 = vrot.lane.b32.xlu0 %v3151, 17
      %v3561 = vpop.permute.xlu0 %3560
      %3562 = vrot.lane.b32.xlu0 %v3157, 17
      %v3563 = vpop.permute.xlu0 %3562
      %3564 = vrot.lane.b32.xlu0 %v3163, 17
      %v3565 = vpop.permute.xlu0 %3564
      %3566 = vrot.lane.b32.xlu0 %v3122, 17
      %v3567 = vpop.permute.xlu0 %3566
      %3568 = vrot.lane.b32.xlu0 %v3128, 17
      %v3569 = vpop.permute.xlu0 %3568
      %3570 = vrot.lane.b32.xlu0 %v3134, 17
      %v3571 = vpop.permute.xlu0 %3570
      %3572 = vrot.lane.b32.xlu0 %v3140, 17
      %v3573 = vpop.permute.xlu0 %3572
      %3574 = vrot.lane.b32.xlu0 %v3146, 17
      %v3575 = vpop.permute.xlu0 %3574
      %3576 = vrot.lane.b32.xlu0 %v3152, 17
      %v3577 = vpop.permute.xlu0 %3576
      %3578 = vrot.lane.b32.xlu0 %v3158, 17
      %v3579 = vpop.permute.xlu0 %3578
      %3580 = vrot.lane.b32.xlu0 %v3164, 17
      %v3581 = vpop.permute.xlu0 %3580
      %3582 = vrot.lane.b32.xlu0 %v3123, 17
      %v3583 = vpop.permute.xlu0 %3582
      %3584 = vrot.lane.b32.xlu0 %v3129, 17
      %v3585 = vpop.permute.xlu0 %3584
      %3586 = vrot.lane.b32.xlu0 %v3135, 17
      %v3587 = vpop.permute.xlu0 %3586
      %3588 = vrot.lane.b32.xlu0 %v3141, 17
      %v3589 = vpop.permute.xlu0 %3588
      %3590 = vrot.lane.b32.xlu0 %v3147, 17
      %v3591 = vpop.permute.xlu0 %3590
      %3592 = vrot.lane.b32.xlu0 %v3153, 17
      %v3593 = vpop.permute.xlu0 %3592
      %3594 = vrot.lane.b32.xlu0 %v3159, 17
      %v3595 = vpop.permute.xlu0 %3594
      %3596 = vrot.lane.b32.xlu0 %v3165, 17
      %v3597 = vpop.permute.xlu0 %3596
      %v3598 = vsel %vm759, %v3567, %v3583
      %v3599 = vsel %vm759, %v3569, %v3585
      %v3600 = vsel %vm759, %v3571, %v3587
      %v3601 = vsel %vm759, %v3573, %v3589
      %v3602 = vsel %vm759, %v3575, %v3591
      %v3603 = vsel %vm759, %v3577, %v3593
      %v3604 = vsel %vm759, %v3579, %v3595
      %v3605 = vsel %vm759, %v3581, %v3597
      %v3606 = vsel %vm759, %v3551, %v3567
      %v3607 = vsel %vm759, %v3553, %v3569
      %v3608 = vsel %vm759, %v3555, %v3571
      %v3609 = vsel %vm759, %v3557, %v3573
      %v3610 = vsel %vm759, %v3559, %v3575
      %v3611 = vsel %vm759, %v3561, %v3577
      %v3612 = vsel %vm759, %v3563, %v3579
      %v3613 = vsel %vm759, %v3565, %v3581
      %v3614 = vsel %vm759, %v3535, %v3551
      %v3615 = vsel %vm759, %v3537, %v3553
      %v3616 = vsel %vm759, %v3539, %v3555
      %v3617 = vsel %vm759, %v3541, %v3557
      %v3618 = vsel %vm759, %v3543, %v3559
      %v3619 = vsel %vm759, %v3545, %v3561
      %v3620 = vsel %vm759, %v3547, %v3563
      %v3621 = vsel %vm759, %v3549, %v3565
      %v3622 = vsel %vm759, %v3519, %v3535
      %v3623 = vsel %vm759, %v3521, %v3537
      %v3624 = vsel %vm759, %v3523, %v3539
      %v3625 = vsel %vm759, %v3525, %v3541
      %v3626 = vsel %vm759, %v3527, %v3543
      %v3627 = vsel %vm759, %v3529, %v3545
      %v3628 = vsel %vm759, %v3531, %v3547
      %v3629 = vsel %vm759, %v3533, %v3549
      %v3630 = vsel %vm759, %v3503, %v3519
      %v3631 = vsel %vm759, %v3505, %v3521
      %v3632 = vsel %vm759, %v3507, %v3523
      %v3633 = vsel %vm759, %v3509, %v3525
      %v3634 = vsel %vm759, %v3511, %v3527
      %v3635 = vsel %vm759, %v3513, %v3529
      %v3636 = vsel %vm759, %v3515, %v3531
      %v3637 = vsel %vm759, %v3517, %v3533
      %v3638 = vsel %vm759, %v3583, %v3503
      %v3639 = vsel %vm759, %v3585, %v3505
      %v3640 = vsel %vm759, %v3587, %v3507
      %v3641 = vsel %vm759, %v3589, %v3509
      %v3642 = vsel %vm759, %v3591, %v3511
      %v3643 = vsel %vm759, %v3593, %v3513
      %v3644 = vsel %vm759, %v3595, %v3515
      %v3645 = vsel %vm759, %v3597, %v3517
      %v3646 = vpack.c.bf16 %v3639, %v3638
      %v3647 = vpack.c.bf16 %v3631, %v3630
      %v3648 = vpack.c.bf16 %v3623, %v3622
      %v3649 = vpack.c.bf16 %v3615, %v3614
      %v3650 = vpack.c.bf16 %v3607, %v3606
      %v3651 = vpack.c.bf16 %v3599, %v3598
      %v3652 = vpack.c.bf16 %v3641, %v3640
      %v3653 = vpack.c.bf16 %v3633, %v3632
      %v3654 = vpack.c.bf16 %v3625, %v3624
      %v3655 = vpack.c.bf16 %v3617, %v3616
      %v3656 = vpack.c.bf16 %v3609, %v3608
      %v3657 = vpack.c.bf16 %v3601, %v3600
      %v3658 = vpack.c.bf16 %v3643, %v3642
      %v3659 = vpack.c.bf16 %v3635, %v3634
      %v3660 = vpack.c.bf16 %v3627, %v3626
      %v3661 = vpack.c.bf16 %v3619, %v3618
      %v3662 = vpack.c.bf16 %v3611, %v3610
      %v3663 = vpack.c.bf16 %v3603, %v3602
      %v3664 = vpack.c.bf16 %v3645, %v3644
      %v3665 = vpack.c.bf16 %v3637, %v3636
      %v3666 = vpack.c.bf16 %v3629, %v3628
      %v3667 = vpack.c.bf16 %v3621, %v3620
      %v3668 = vpack.c.bf16 %v3613, %v3612
      %v3669 = vpack.c.bf16 %v3605, %v3604
      %3670 = vrot.lane.b32.xlu0 %v3118, 1
      %v3671 = vpop.permute.xlu0 %3670
      %3672 = vrot.lane.b32.xlu0 %v3124, 1
      %v3673 = vpop.permute.xlu0 %3672
      %3674 = vrot.lane.b32.xlu0 %v3130, 1
      %v3675 = vpop.permute.xlu0 %3674
      %3676 = vrot.lane.b32.xlu0 %v3136, 1
      %v3677 = vpop.permute.xlu0 %3676
      %3678 = vrot.lane.b32.xlu0 %v3142, 1
      %v3679 = vpop.permute.xlu0 %3678
      %3680 = vrot.lane.b32.xlu0 %v3148, 1
      %v3681 = vpop.permute.xlu0 %3680
      %3682 = vrot.lane.b32.xlu0 %v3154, 1
      %v3683 = vpop.permute.xlu0 %3682
      %3684 = vrot.lane.b32.xlu0 %v3160, 1
      %v3685 = vpop.permute.xlu0 %3684
      %3686 = vrot.lane.b32.xlu0 %v3119, 1
      %v3687 = vpop.permute.xlu0 %3686
      %3688 = vrot.lane.b32.xlu0 %v3125, 1
      %v3689 = vpop.permute.xlu0 %3688
      %3690 = vrot.lane.b32.xlu0 %v3131, 1
      %v3691 = vpop.permute.xlu0 %3690
      %3692 = vrot.lane.b32.xlu0 %v3137, 1
      %v3693 = vpop.permute.xlu0 %3692
      %3694 = vrot.lane.b32.xlu0 %v3143, 1
      %v3695 = vpop.permute.xlu0 %3694
      %3696 = vrot.lane.b32.xlu0 %v3149, 1
      %v3697 = vpop.permute.xlu0 %3696
      %3698 = vrot.lane.b32.xlu0 %v3155, 1
      %v3699 = vpop.permute.xlu0 %3698
      %3700 = vrot.lane.b32.xlu0 %v3161, 1
      %v3701 = vpop.permute.xlu0 %3700
      %3702 = vrot.lane.b32.xlu0 %v3120, 1
      %v3703 = vpop.permute.xlu0 %3702
      %3704 = vrot.lane.b32.xlu0 %v3126, 1
      %v3705 = vpop.permute.xlu0 %3704
      %3706 = vrot.lane.b32.xlu0 %v3132, 1
      %v3707 = vpop.permute.xlu0 %3706
      %3708 = vrot.lane.b32.xlu0 %v3138, 1
      %v3709 = vpop.permute.xlu0 %3708
      %3710 = vrot.lane.b32.xlu0 %v3144, 1
      %v3711 = vpop.permute.xlu0 %3710
      %3712 = vrot.lane.b32.xlu0 %v3150, 1
      %v3713 = vpop.permute.xlu0 %3712
      %3714 = vrot.lane.b32.xlu0 %v3156, 1
      %v3715 = vpop.permute.xlu0 %3714
      %3716 = vrot.lane.b32.xlu0 %v3162, 1
      %v3717 = vpop.permute.xlu0 %3716
      %3718 = vrot.lane.b32.xlu0 %v3121, 1
      %v3719 = vpop.permute.xlu0 %3718
      %3720 = vrot.lane.b32.xlu0 %v3127, 1
      %v3721 = vpop.permute.xlu0 %3720
      %3722 = vrot.lane.b32.xlu0 %v3133, 1
      %v3723 = vpop.permute.xlu0 %3722
      %3724 = vrot.lane.b32.xlu0 %v3139, 1
      %v3725 = vpop.permute.xlu0 %3724
      %3726 = vrot.lane.b32.xlu0 %v3145, 1
      %v3727 = vpop.permute.xlu0 %3726
      %3728 = vrot.lane.b32.xlu0 %v3151, 1
      %v3729 = vpop.permute.xlu0 %3728
      %3730 = vrot.lane.b32.xlu0 %v3157, 1
      %v3731 = vpop.permute.xlu0 %3730
      %3732 = vrot.lane.b32.xlu0 %v3163, 1
      %v3733 = vpop.permute.xlu0 %3732
      %3734 = vrot.lane.b32.xlu0 %v3122, 1
      %v3735 = vpop.permute.xlu0 %3734
      %3736 = vrot.lane.b32.xlu0 %v3128, 1
      %v3737 = vpop.permute.xlu0 %3736
      %3738 = vrot.lane.b32.xlu0 %v3134, 1
      %v3739 = vpop.permute.xlu0 %3738
      %3740 = vrot.lane.b32.xlu0 %v3140, 1
      %v3741 = vpop.permute.xlu0 %3740
      %3742 = vrot.lane.b32.xlu0 %v3146, 1
      %v3743 = vpop.permute.xlu0 %3742
      %3744 = vrot.lane.b32.xlu0 %v3152, 1
      %v3745 = vpop.permute.xlu0 %3744
      %3746 = vrot.lane.b32.xlu0 %v3158, 1
      %v3747 = vpop.permute.xlu0 %3746
      %3748 = vrot.lane.b32.xlu0 %v3164, 1
      %v3749 = vpop.permute.xlu0 %3748
      %3750 = vrot.lane.b32.xlu0 %v3123, 1
      %v3751 = vpop.permute.xlu0 %3750
      %3752 = vrot.lane.b32.xlu0 %v3129, 1
      %v3753 = vpop.permute.xlu0 %3752
      %3754 = vrot.lane.b32.xlu0 %v3135, 1
      %v3755 = vpop.permute.xlu0 %3754
      %3756 = vrot.lane.b32.xlu0 %v3141, 1
      %v3757 = vpop.permute.xlu0 %3756
      %3758 = vrot.lane.b32.xlu0 %v3147, 1
      %v3759 = vpop.permute.xlu0 %3758
      %3760 = vrot.lane.b32.xlu0 %v3153, 1
      %v3761 = vpop.permute.xlu0 %3760
      %3762 = vrot.lane.b32.xlu0 %v3159, 1
      %v3763 = vpop.permute.xlu0 %3762
      %3764 = vrot.lane.b32.xlu0 %v3165, 1
      %v3765 = vpop.permute.xlu0 %3764
      %v3766 = vsel %vm802, %v3735, %v3751
      %v3767 = vsel %vm802, %v3737, %v3753
      %v3768 = vsel %vm802, %v3739, %v3755
      %v3769 = vsel %vm802, %v3741, %v3757
      %v3770 = vsel %vm802, %v3743, %v3759
      %v3771 = vsel %vm802, %v3745, %v3761
      %v3772 = vsel %vm802, %v3747, %v3763
      %v3773 = vsel %vm802, %v3749, %v3765
      %v3774 = vsel %vm802, %v3719, %v3735
      %v3775 = vsel %vm802, %v3721, %v3737
      %v3776 = vsel %vm802, %v3723, %v3739
      %v3777 = vsel %vm802, %v3725, %v3741
      %v3778 = vsel %vm802, %v3727, %v3743
      %v3779 = vsel %vm802, %v3729, %v3745
      %v3780 = vsel %vm802, %v3731, %v3747
      %v3781 = vsel %vm802, %v3733, %v3749
      %v3782 = vsel %vm802, %v3703, %v3719
      %v3783 = vsel %vm802, %v3705, %v3721
      %v3784 = vsel %vm802, %v3707, %v3723
      %v3785 = vsel %vm802, %v3709, %v3725
      %v3786 = vsel %vm802, %v3711, %v3727
      %v3787 = vsel %vm802, %v3713, %v3729
      %v3788 = vsel %vm802, %v3715, %v3731
      %v3789 = vsel %vm802, %v3717, %v3733
      %v3790 = vsel %vm802, %v3687, %v3703
      %v3791 = vsel %vm802, %v3689, %v3705
      %v3792 = vsel %vm802, %v3691, %v3707
      %v3793 = vsel %vm802, %v3693, %v3709
      %v3794 = vsel %vm802, %v3695, %v3711
      %v3795 = vsel %vm802, %v3697, %v3713
      %v3796 = vsel %vm802, %v3699, %v3715
      %v3797 = vsel %vm802, %v3701, %v3717
      %v3798 = vsel %vm802, %v3671, %v3687
      %v3799 = vsel %vm802, %v3673, %v3689
      %v3800 = vsel %vm802, %v3675, %v3691
      %v3801 = vsel %vm802, %v3677, %v3693
      %v3802 = vsel %vm802, %v3679, %v3695
      %v3803 = vsel %vm802, %v3681, %v3697
      %v3804 = vsel %vm802, %v3683, %v3699
      %v3805 = vsel %vm802, %v3685, %v3701
      %v3806 = vsel %vm802, %v3751, %v3671
      %v3807 = vsel %vm802, %v3753, %v3673
      %v3808 = vsel %vm802, %v3755, %v3675
      %v3809 = vsel %vm802, %v3757, %v3677
      %v3810 = vsel %vm802, %v3759, %v3679
      %v3811 = vsel %vm802, %v3761, %v3681
      %v3812 = vsel %vm802, %v3763, %v3683
      %v3813 = vsel %vm802, %v3765, %v3685
      %v3814 = vpack.c.bf16 %v3807, %v3806
      %v3815 = vpack.c.bf16 %v3799, %v3798
      %v3816 = vpack.c.bf16 %v3791, %v3790
      %v3817 = vpack.c.bf16 %v3783, %v3782
      %v3818 = vpack.c.bf16 %v3775, %v3774
      %v3819 = vpack.c.bf16 %v3767, %v3766
      %v3820 = vpack.c.bf16 %v3809, %v3808
      %v3821 = vpack.c.bf16 %v3801, %v3800
      %v3822 = vpack.c.bf16 %v3793, %v3792
      %v3823 = vpack.c.bf16 %v3785, %v3784
      %v3824 = vpack.c.bf16 %v3777, %v3776
      %v3825 = vpack.c.bf16 %v3769, %v3768
      %v3826 = vpack.c.bf16 %v3811, %v3810
      %v3827 = vpack.c.bf16 %v3803, %v3802
      %v3828 = vpack.c.bf16 %v3795, %v3794
      %v3829 = vpack.c.bf16 %v3787, %v3786
      %v3830 = vpack.c.bf16 %v3779, %v3778
      %v3831 = vpack.c.bf16 %v3771, %v3770
      %v3832 = vpack.c.bf16 %v3813, %v3812
      %v3833 = vpack.c.bf16 %v3805, %v3804
      %v3834 = vpack.c.bf16 %v3797, %v3796
      %v3835 = vpack.c.bf16 %v3789, %v3788
      %v3836 = vpack.c.bf16 %v3781, %v3780
      %v3837 = vpack.c.bf16 %v3773, %v3772
      %v3838 = vpack.c.bf16 %v3124, %v3118
      %v3839 = vpack.c.bf16 %v3125, %v3119
      %v3840 = vpack.c.bf16 %v3126, %v3120
      %v3841 = vpack.c.bf16 %v3127, %v3121
      %v3842 = vpack.c.bf16 %v3128, %v3122
      %v3843 = vpack.c.bf16 %v3129, %v3123
      %v3844 = vpack.c.bf16 %v3136, %v3130
      %v3845 = vpack.c.bf16 %v3137, %v3131
      %v3846 = vpack.c.bf16 %v3138, %v3132
      %v3847 = vpack.c.bf16 %v3139, %v3133
      %v3848 = vpack.c.bf16 %v3140, %v3134
      %v3849 = vpack.c.bf16 %v3141, %v3135
      %v3850 = vpack.c.bf16 %v3148, %v3142
      %v3851 = vpack.c.bf16 %v3149, %v3143
      %v3852 = vpack.c.bf16 %v3150, %v3144
      %v3853 = vpack.c.bf16 %v3151, %v3145
      %v3854 = vpack.c.bf16 %v3152, %v3146
      %v3855 = vpack.c.bf16 %v3153, %v3147
      %v3856 = vpack.c.bf16 %v3160, %v3154
      %v3857 = vpack.c.bf16 %v3161, %v3155
      %v3858 = vpack.c.bf16 %v3162, %v3156
      %v3859 = vpack.c.bf16 %v3163, %v3157
      %v3860 = vpack.c.bf16 %v3164, %v3158
      %v3861 = vpack.c.bf16 %v3165, %v3159
      %3862 = vrot.lane.b32.xlu0 %v3118, 127
      %v3863 = vpop.permute.xlu0 %3862
      %3864 = vrot.lane.b32.xlu0 %v3124, 127
      %v3865 = vpop.permute.xlu0 %3864
      %3866 = vrot.lane.b32.xlu0 %v3130, 127
      %v3867 = vpop.permute.xlu0 %3866
      %3868 = vrot.lane.b32.xlu0 %v3136, 127
      %v3869 = vpop.permute.xlu0 %3868
      %3870 = vrot.lane.b32.xlu0 %v3142, 127
      %v3871 = vpop.permute.xlu0 %3870
      %3872 = vrot.lane.b32.xlu0 %v3148, 127
      %v3873 = vpop.permute.xlu0 %3872
      %3874 = vrot.lane.b32.xlu0 %v3154, 127
      %v3875 = vpop.permute.xlu0 %3874
      %3876 = vrot.lane.b32.xlu0 %v3160, 127
      %v3877 = vpop.permute.xlu0 %3876
      %3878 = vrot.lane.b32.xlu0 %v3119, 127
      %v3879 = vpop.permute.xlu0 %3878
      %3880 = vrot.lane.b32.xlu0 %v3125, 127
      %v3881 = vpop.permute.xlu0 %3880
      %3882 = vrot.lane.b32.xlu0 %v3131, 127
      %v3883 = vpop.permute.xlu0 %3882
      %3884 = vrot.lane.b32.xlu0 %v3137, 127
      %v3885 = vpop.permute.xlu0 %3884
      %3886 = vrot.lane.b32.xlu0 %v3143, 127
      %v3887 = vpop.permute.xlu0 %3886
      %3888 = vrot.lane.b32.xlu0 %v3149, 127
      %v3889 = vpop.permute.xlu0 %3888
      %3890 = vrot.lane.b32.xlu0 %v3155, 127
      %v3891 = vpop.permute.xlu0 %3890
      %3892 = vrot.lane.b32.xlu0 %v3161, 127
      %v3893 = vpop.permute.xlu0 %3892
      %3894 = vrot.lane.b32.xlu0 %v3120, 127
      %v3895 = vpop.permute.xlu0 %3894
      %3896 = vrot.lane.b32.xlu0 %v3126, 127
      %v3897 = vpop.permute.xlu0 %3896
      %3898 = vrot.lane.b32.xlu0 %v3132, 127
      %v3899 = vpop.permute.xlu0 %3898
      %3900 = vrot.lane.b32.xlu0 %v3138, 127
      %v3901 = vpop.permute.xlu0 %3900
      %3902 = vrot.lane.b32.xlu0 %v3144, 127
      %v3903 = vpop.permute.xlu0 %3902
      %3904 = vrot.lane.b32.xlu0 %v3150, 127
      %v3905 = vpop.permute.xlu0 %3904
      %3906 = vrot.lane.b32.xlu0 %v3156, 127
      %v3907 = vpop.permute.xlu0 %3906
      %3908 = vrot.lane.b32.xlu0 %v3162, 127
      %v3909 = vpop.permute.xlu0 %3908
      %3910 = vrot.lane.b32.xlu0 %v3121, 127
      %v3911 = vpop.permute.xlu0 %3910
      %3912 = vrot.lane.b32.xlu0 %v3127, 127
      %v3913 = vpop.permute.xlu0 %3912
      %3914 = vrot.lane.b32.xlu0 %v3133, 127
      %v3915 = vpop.permute.xlu0 %3914
      %3916 = vrot.lane.b32.xlu0 %v3139, 127
      %v3917 = vpop.permute.xlu0 %3916
      %3918 = vrot.lane.b32.xlu0 %v3145, 127
      %v3919 = vpop.permute.xlu0 %3918
      %3920 = vrot.lane.b32.xlu0 %v3151, 127
      %v3921 = vpop.permute.xlu0 %3920
      %3922 = vrot.lane.b32.xlu0 %v3157, 127
      %v3923 = vpop.permute.xlu0 %3922
      %3924 = vrot.lane.b32.xlu0 %v3163, 127
      %v3925 = vpop.permute.xlu0 %3924
      %3926 = vrot.lane.b32.xlu0 %v3122, 127
      %v3927 = vpop.permute.xlu0 %3926
      %3928 = vrot.lane.b32.xlu0 %v3128, 127
      %v3929 = vpop.permute.xlu0 %3928
      %3930 = vrot.lane.b32.xlu0 %v3134, 127
      %v3931 = vpop.permute.xlu0 %3930
      %3932 = vrot.lane.b32.xlu0 %v3140, 127
      %v3933 = vpop.permute.xlu0 %3932
      %3934 = vrot.lane.b32.xlu0 %v3146, 127
      %v3935 = vpop.permute.xlu0 %3934
      %3936 = vrot.lane.b32.xlu0 %v3152, 127
      %v3937 = vpop.permute.xlu0 %3936
      %3938 = vrot.lane.b32.xlu0 %v3158, 127
      %v3939 = vpop.permute.xlu0 %3938
      %3940 = vrot.lane.b32.xlu0 %v3164, 127
      %v3941 = vpop.permute.xlu0 %3940
      %3942 = vrot.lane.b32.xlu0 %v3123, 127
      %v3943 = vpop.permute.xlu0 %3942
      %3944 = vrot.lane.b32.xlu0 %v3129, 127
      %v3945 = vpop.permute.xlu0 %3944
      %3946 = vrot.lane.b32.xlu0 %v3135, 127
      %v3947 = vpop.permute.xlu0 %3946
      %3948 = vrot.lane.b32.xlu0 %v3141, 127
      %v3949 = vpop.permute.xlu0 %3948
      %3950 = vrot.lane.b32.xlu0 %v3147, 127
      %v3951 = vpop.permute.xlu0 %3950
      %3952 = vrot.lane.b32.xlu0 %v3153, 127
      %v3953 = vpop.permute.xlu0 %3952
      %3954 = vrot.lane.b32.xlu0 %v3159, 127
      %v3955 = vpop.permute.xlu0 %3954
      %3956 = vrot.lane.b32.xlu0 %v3165, 127
      %v3957 = vpop.permute.xlu0 %3956
      %v3958 = vsel %vm851, %v3927, %v3943
      %v3959 = vsel %vm851, %v3929, %v3945
      %v3960 = vsel %vm851, %v3931, %v3947
      %v3961 = vsel %vm851, %v3933, %v3949
      %v3962 = vsel %vm851, %v3935, %v3951
      %v3963 = vsel %vm851, %v3937, %v3953
      %v3964 = vsel %vm851, %v3939, %v3955
      %v3965 = vsel %vm851, %v3941, %v3957
      %v3966 = vsel %vm851, %v3911, %v3927
      %v3967 = vsel %vm851, %v3913, %v3929
      %v3968 = vsel %vm851, %v3915, %v3931
      %v3969 = vsel %vm851, %v3917, %v3933
      %v3970 = vsel %vm851, %v3919, %v3935
      %v3971 = vsel %vm851, %v3921, %v3937
      %v3972 = vsel %vm851, %v3923, %v3939
      %v3973 = vsel %vm851, %v3925, %v3941
      %v3974 = vsel %vm851, %v3895, %v3911
      %v3975 = vsel %vm851, %v3897, %v3913
      %v3976 = vsel %vm851, %v3899, %v3915
      %v3977 = vsel %vm851, %v3901, %v3917
      %v3978 = vsel %vm851, %v3903, %v3919
      %v3979 = vsel %vm851, %v3905, %v3921
      %v3980 = vsel %vm851, %v3907, %v3923
      %v3981 = vsel %vm851, %v3909, %v3925
      %v3982 = vsel %vm851, %v3879, %v3895
      %v3983 = vsel %vm851, %v3881, %v3897
      %v3984 = vsel %vm851, %v3883, %v3899
      %v3985 = vsel %vm851, %v3885, %v3901
      %v3986 = vsel %vm851, %v3887, %v3903
      %v3987 = vsel %vm851, %v3889, %v3905
      %v3988 = vsel %vm851, %v3891, %v3907
      %v3989 = vsel %vm851, %v3893, %v3909
      %v3990 = vsel %vm851, %v3863, %v3879
      %v3991 = vsel %vm851, %v3865, %v3881
      %v3992 = vsel %vm851, %v3867, %v3883
      %v3993 = vsel %vm851, %v3869, %v3885
      %v3994 = vsel %vm851, %v3871, %v3887
      %v3995 = vsel %vm851, %v3873, %v3889
      %v3996 = vsel %vm851, %v3875, %v3891
      %v3997 = vsel %vm851, %v3877, %v3893
      %v3998 = vsel %vm851, %v3943, %v3863
      %v3999 = vsel %vm851, %v3945, %v3865
      %v4000 = vsel %vm851, %v3947, %v3867
      %v4001 = vsel %vm851, %v3949, %v3869
      %v4002 = vsel %vm851, %v3951, %v3871
      %v4003 = vsel %vm851, %v3953, %v3873
      %v4004 = vsel %vm851, %v3955, %v3875
      %v4005 = vsel %vm851, %v3957, %v3877
      %v4006 = vpack.c.bf16 %v3991, %v3990
      %v4007 = vpack.c.bf16 %v3983, %v3982
      %v4008 = vpack.c.bf16 %v3975, %v3974
      %v4009 = vpack.c.bf16 %v3967, %v3966
      %v4010 = vpack.c.bf16 %v3959, %v3958
      %v4011 = vpack.c.bf16 %v3999, %v3998
      %v4012 = vpack.c.bf16 %v3993, %v3992
      %v4013 = vpack.c.bf16 %v3985, %v3984
      %v4014 = vpack.c.bf16 %v3977, %v3976
      %v4015 = vpack.c.bf16 %v3969, %v3968
      %v4016 = vpack.c.bf16 %v3961, %v3960
      %v4017 = vpack.c.bf16 %v4001, %v4000
      %v4018 = vpack.c.bf16 %v3995, %v3994
      %v4019 = vpack.c.bf16 %v3987, %v3986
      %v4020 = vpack.c.bf16 %v3979, %v3978
      %v4021 = vpack.c.bf16 %v3971, %v3970
      %v4022 = vpack.c.bf16 %v3963, %v3962
      %v4023 = vpack.c.bf16 %v4003, %v4002
      %v4024 = vpack.c.bf16 %v3997, %v3996
      %v4025 = vpack.c.bf16 %v3989, %v3988
      %v4026 = vpack.c.bf16 %v3981, %v3980
      %v4027 = vpack.c.bf16 %v3973, %v3972
      %v4028 = vpack.c.bf16 %v3965, %v3964
      %v4029 = vpack.c.bf16 %v4005, %v4004
      %4030 = vrot.lane.b32.xlu0 %v3118, 111
      %v4031 = vpop.permute.xlu0 %4030
      %4032 = vrot.lane.b32.xlu0 %v3124, 111
      %v4033 = vpop.permute.xlu0 %4032
      %4034 = vrot.lane.b32.xlu0 %v3130, 111
      %v4035 = vpop.permute.xlu0 %4034
      %4036 = vrot.lane.b32.xlu0 %v3136, 111
      %v4037 = vpop.permute.xlu0 %4036
      %4038 = vrot.lane.b32.xlu0 %v3142, 111
      %v4039 = vpop.permute.xlu0 %4038
      %4040 = vrot.lane.b32.xlu0 %v3148, 111
      %v4041 = vpop.permute.xlu0 %4040
      %4042 = vrot.lane.b32.xlu0 %v3154, 111
      %v4043 = vpop.permute.xlu0 %4042
      %4044 = vrot.lane.b32.xlu0 %v3160, 111
      %v4045 = vpop.permute.xlu0 %4044
      %4046 = vrot.lane.b32.xlu0 %v3119, 111
      %v4047 = vpop.permute.xlu0 %4046
      %4048 = vrot.lane.b32.xlu0 %v3125, 111
      %v4049 = vpop.permute.xlu0 %4048
      %4050 = vrot.lane.b32.xlu0 %v3131, 111
      %v4051 = vpop.permute.xlu0 %4050
      %4052 = vrot.lane.b32.xlu0 %v3137, 111
      %v4053 = vpop.permute.xlu0 %4052
      %4054 = vrot.lane.b32.xlu0 %v3143, 111
      %v4055 = vpop.permute.xlu0 %4054
      %4056 = vrot.lane.b32.xlu0 %v3149, 111
      %v4057 = vpop.permute.xlu0 %4056
      %4058 = vrot.lane.b32.xlu0 %v3155, 111
      %v4059 = vpop.permute.xlu0 %4058
      %4060 = vrot.lane.b32.xlu0 %v3161, 111
      %v4061 = vpop.permute.xlu0 %4060
      %4062 = vrot.lane.b32.xlu0 %v3120, 111
      %v4063 = vpop.permute.xlu0 %4062
      %4064 = vrot.lane.b32.xlu0 %v3126, 111
      %v4065 = vpop.permute.xlu0 %4064
      %4066 = vrot.lane.b32.xlu0 %v3132, 111
      %v4067 = vpop.permute.xlu0 %4066
      %4068 = vrot.lane.b32.xlu0 %v3138, 111
      %v4069 = vpop.permute.xlu0 %4068
      %4070 = vrot.lane.b32.xlu0 %v3144, 111
      %v4071 = vpop.permute.xlu0 %4070
      %4072 = vrot.lane.b32.xlu0 %v3150, 111
      %v4073 = vpop.permute.xlu0 %4072
      %4074 = vrot.lane.b32.xlu0 %v3156, 111
      %v4075 = vpop.permute.xlu0 %4074
      %4076 = vrot.lane.b32.xlu0 %v3162, 111
      %v4077 = vpop.permute.xlu0 %4076
      %4078 = vrot.lane.b32.xlu0 %v3121, 111
      %v4079 = vpop.permute.xlu0 %4078
      %4080 = vrot.lane.b32.xlu0 %v3127, 111
      %v4081 = vpop.permute.xlu0 %4080
      %4082 = vrot.lane.b32.xlu0 %v3133, 111
      %v4083 = vpop.permute.xlu0 %4082
      %4084 = vrot.lane.b32.xlu0 %v3139, 111
      %v4085 = vpop.permute.xlu0 %4084
      %4086 = vrot.lane.b32.xlu0 %v3145, 111
      %v4087 = vpop.permute.xlu0 %4086
      %4088 = vrot.lane.b32.xlu0 %v3151, 111
      %v4089 = vpop.permute.xlu0 %4088
      %4090 = vrot.lane.b32.xlu0 %v3157, 111
      %v4091 = vpop.permute.xlu0 %4090
      %4092 = vrot.lane.b32.xlu0 %v3163, 111
      %v4093 = vpop.permute.xlu0 %4092
      %4094 = vrot.lane.b32.xlu0 %v3122, 111
      %v4095 = vpop.permute.xlu0 %4094
      %4096 = vrot.lane.b32.xlu0 %v3128, 111
      %v4097 = vpop.permute.xlu0 %4096
      %4098 = vrot.lane.b32.xlu0 %v3134, 111
      %v4099 = vpop.permute.xlu0 %4098
      %4100 = vrot.lane.b32.xlu0 %v3140, 111
      %v4101 = vpop.permute.xlu0 %4100
      %4102 = vrot.lane.b32.xlu0 %v3146, 111
      %v4103 = vpop.permute.xlu0 %4102
      %4104 = vrot.lane.b32.xlu0 %v3152, 111
      %v4105 = vpop.permute.xlu0 %4104
      %4106 = vrot.lane.b32.xlu0 %v3158, 111
      %v4107 = vpop.permute.xlu0 %4106
      %4108 = vrot.lane.b32.xlu0 %v3164, 111
      %v4109 = vpop.permute.xlu0 %4108
      %4110 = vrot.lane.b32.xlu0 %v3123, 111
      %v4111 = vpop.permute.xlu0 %4110
      %4112 = vrot.lane.b32.xlu0 %v3129, 111
      %v4113 = vpop.permute.xlu0 %4112
      %4114 = vrot.lane.b32.xlu0 %v3135, 111
      %v4115 = vpop.permute.xlu0 %4114
      %4116 = vrot.lane.b32.xlu0 %v3141, 111
      %v4117 = vpop.permute.xlu0 %4116
      %4118 = vrot.lane.b32.xlu0 %v3147, 111
      %v4119 = vpop.permute.xlu0 %4118
      %4120 = vrot.lane.b32.xlu0 %v3153, 111
      %v4121 = vpop.permute.xlu0 %4120
      %4122 = vrot.lane.b32.xlu0 %v3159, 111
      %v4123 = vpop.permute.xlu0 %4122
      %4124 = vrot.lane.b32.xlu0 %v3165, 111
      %v4125 = vpop.permute.xlu0 %4124
      %v4126 = vsel %vm894, %v4095, %v4111
      %v4127 = vsel %vm894, %v4097, %v4113
      %v4128 = vsel %vm894, %v4099, %v4115
      %v4129 = vsel %vm894, %v4101, %v4117
      %v4130 = vsel %vm894, %v4103, %v4119
      %v4131 = vsel %vm894, %v4105, %v4121
      %v4132 = vsel %vm894, %v4107, %v4123
      %v4133 = vsel %vm894, %v4109, %v4125
      %v4134 = vsel %vm894, %v4079, %v4095
      %v4135 = vsel %vm894, %v4081, %v4097
      %v4136 = vsel %vm894, %v4083, %v4099
      %v4137 = vsel %vm894, %v4085, %v4101
      %v4138 = vsel %vm894, %v4087, %v4103
      %v4139 = vsel %vm894, %v4089, %v4105
      %v4140 = vsel %vm894, %v4091, %v4107
      %v4141 = vsel %vm894, %v4093, %v4109
      %v4142 = vsel %vm894, %v4063, %v4079
      %v4143 = vsel %vm894, %v4065, %v4081
      %v4144 = vsel %vm894, %v4067, %v4083
      %v4145 = vsel %vm894, %v4069, %v4085
      %v4146 = vsel %vm894, %v4071, %v4087
      %v4147 = vsel %vm894, %v4073, %v4089
      %v4148 = vsel %vm894, %v4075, %v4091
      %v4149 = vsel %vm894, %v4077, %v4093
      %v4150 = vsel %vm894, %v4047, %v4063
      %v4151 = vsel %vm894, %v4049, %v4065
      %v4152 = vsel %vm894, %v4051, %v4067
      %v4153 = vsel %vm894, %v4053, %v4069
      %v4154 = vsel %vm894, %v4055, %v4071
      %v4155 = vsel %vm894, %v4057, %v4073
      %v4156 = vsel %vm894, %v4059, %v4075
      %v4157 = vsel %vm894, %v4061, %v4077
      %v4158 = vsel %vm894, %v4031, %v4047
      %v4159 = vsel %vm894, %v4033, %v4049
      %v4160 = vsel %vm894, %v4035, %v4051
      %v4161 = vsel %vm894, %v4037, %v4053
      %v4162 = vsel %vm894, %v4039, %v4055
      %v4163 = vsel %vm894, %v4041, %v4057
      %v4164 = vsel %vm894, %v4043, %v4059
      %v4165 = vsel %vm894, %v4045, %v4061
      %v4166 = vsel %vm894, %v4111, %v4031
      %v4167 = vsel %vm894, %v4113, %v4033
      %v4168 = vsel %vm894, %v4115, %v4035
      %v4169 = vsel %vm894, %v4117, %v4037
      %v4170 = vsel %vm894, %v4119, %v4039
      %v4171 = vsel %vm894, %v4121, %v4041
      %v4172 = vsel %vm894, %v4123, %v4043
      %v4173 = vsel %vm894, %v4125, %v4045
      %v4174 = vpack.c.bf16 %v4159, %v4158
      %v4175 = vpack.c.bf16 %v4151, %v4150
      %v4176 = vpack.c.bf16 %v4143, %v4142
      %v4177 = vpack.c.bf16 %v4135, %v4134
      %v4178 = vpack.c.bf16 %v4127, %v4126
      %v4179 = vpack.c.bf16 %v4167, %v4166
      %v4180 = vpack.c.bf16 %v4161, %v4160
      %v4181 = vpack.c.bf16 %v4153, %v4152
      %v4182 = vpack.c.bf16 %v4145, %v4144
      %v4183 = vpack.c.bf16 %v4137, %v4136
      %v4184 = vpack.c.bf16 %v4129, %v4128
      %v4185 = vpack.c.bf16 %v4169, %v4168
      %v4186 = vpack.c.bf16 %v4163, %v4162
      %v4187 = vpack.c.bf16 %v4155, %v4154
      %v4188 = vpack.c.bf16 %v4147, %v4146
      %v4189 = vpack.c.bf16 %v4139, %v4138
      %v4190 = vpack.c.bf16 %v4131, %v4130
      %v4191 = vpack.c.bf16 %v4171, %v4170
      %v4192 = vpack.c.bf16 %v4165, %v4164
      %v4193 = vpack.c.bf16 %v4157, %v4156
      %v4194 = vpack.c.bf16 %v4149, %v4148
      %v4195 = vpack.c.bf16 %v4141, %v4140
      %v4196 = vpack.c.bf16 %v4133, %v4132
      %v4197 = vpack.c.bf16 %v4173, %v4172
      %4198 = vrot.lane.b32.xlu0 %v3118, 110
      %v4199 = vpop.permute.xlu0 %4198
      %4200 = vrot.lane.b32.xlu0 %v3124, 110
      %v4201 = vpop.permute.xlu0 %4200
      %4202 = vrot.lane.b32.xlu0 %v3130, 110
      %v4203 = vpop.permute.xlu0 %4202
      %4204 = vrot.lane.b32.xlu0 %v3136, 110
      %v4205 = vpop.permute.xlu0 %4204
      %4206 = vrot.lane.b32.xlu0 %v3142, 110
      %v4207 = vpop.permute.xlu0 %4206
      %4208 = vrot.lane.b32.xlu0 %v3148, 110
      %v4209 = vpop.permute.xlu0 %4208
      %4210 = vrot.lane.b32.xlu0 %v3154, 110
      %v4211 = vpop.permute.xlu0 %4210
      %4212 = vrot.lane.b32.xlu0 %v3160, 110
      %v4213 = vpop.permute.xlu0 %4212
      %4214 = vrot.lane.b32.xlu0 %v3119, 110
      %v4215 = vpop.permute.xlu0 %4214
      %4216 = vrot.lane.b32.xlu0 %v3125, 110
      %v4217 = vpop.permute.xlu0 %4216
      %4218 = vrot.lane.b32.xlu0 %v3131, 110
      %v4219 = vpop.permute.xlu0 %4218
      %4220 = vrot.lane.b32.xlu0 %v3137, 110
      %v4221 = vpop.permute.xlu0 %4220
      %4222 = vrot.lane.b32.xlu0 %v3143, 110
      %v4223 = vpop.permute.xlu0 %4222
      %4224 = vrot.lane.b32.xlu0 %v3149, 110
      %v4225 = vpop.permute.xlu0 %4224
      %4226 = vrot.lane.b32.xlu0 %v3155, 110
      %v4227 = vpop.permute.xlu0 %4226
      %4228 = vrot.lane.b32.xlu0 %v3161, 110
      %v4229 = vpop.permute.xlu0 %4228
      %4230 = vrot.lane.b32.xlu0 %v3120, 110
      %v4231 = vpop.permute.xlu0 %4230
      %4232 = vrot.lane.b32.xlu0 %v3126, 110
      %v4233 = vpop.permute.xlu0 %4232
      %4234 = vrot.lane.b32.xlu0 %v3132, 110
      %v4235 = vpop.permute.xlu0 %4234
      %4236 = vrot.lane.b32.xlu0 %v3138, 110
      %v4237 = vpop.permute.xlu0 %4236
      %4238 = vrot.lane.b32.xlu0 %v3144, 110
      %v4239 = vpop.permute.xlu0 %4238
      %4240 = vrot.lane.b32.xlu0 %v3150, 110
      %v4241 = vpop.permute.xlu0 %4240
      %4242 = vrot.lane.b32.xlu0 %v3156, 110
      %v4243 = vpop.permute.xlu0 %4242
      %4244 = vrot.lane.b32.xlu0 %v3162, 110
      %v4245 = vpop.permute.xlu0 %4244
      %4246 = vrot.lane.b32.xlu0 %v3121, 110
      %v4247 = vpop.permute.xlu0 %4246
      %4248 = vrot.lane.b32.xlu0 %v3127, 110
      %v4249 = vpop.permute.xlu0 %4248
      %4250 = vrot.lane.b32.xlu0 %v3133, 110
      %v4251 = vpop.permute.xlu0 %4250
      %4252 = vrot.lane.b32.xlu0 %v3139, 110
      %v4253 = vpop.permute.xlu0 %4252
      %4254 = vrot.lane.b32.xlu0 %v3145, 110
      %v4255 = vpop.permute.xlu0 %4254
      %4256 = vrot.lane.b32.xlu0 %v3151, 110
      %v4257 = vpop.permute.xlu0 %4256
      %4258 = vrot.lane.b32.xlu0 %v3157, 110
      %v4259 = vpop.permute.xlu0 %4258
      %4260 = vrot.lane.b32.xlu0 %v3163, 110
      %v4261 = vpop.permute.xlu0 %4260
      %4262 = vrot.lane.b32.xlu0 %v3122, 110
      %v4263 = vpop.permute.xlu0 %4262
      %4264 = vrot.lane.b32.xlu0 %v3128, 110
      %v4265 = vpop.permute.xlu0 %4264
      %4266 = vrot.lane.b32.xlu0 %v3134, 110
      %v4267 = vpop.permute.xlu0 %4266
      %4268 = vrot.lane.b32.xlu0 %v3140, 110
      %v4269 = vpop.permute.xlu0 %4268
      %4270 = vrot.lane.b32.xlu0 %v3146, 110
      %v4271 = vpop.permute.xlu0 %4270
      %4272 = vrot.lane.b32.xlu0 %v3152, 110
      %v4273 = vpop.permute.xlu0 %4272
      %4274 = vrot.lane.b32.xlu0 %v3158, 110
      %v4275 = vpop.permute.xlu0 %4274
      %4276 = vrot.lane.b32.xlu0 %v3164, 110
      %v4277 = vpop.permute.xlu0 %4276
      %4278 = vrot.lane.b32.xlu0 %v3123, 110
      %v4279 = vpop.permute.xlu0 %4278
      %4280 = vrot.lane.b32.xlu0 %v3129, 110
      %v4281 = vpop.permute.xlu0 %4280
      %4282 = vrot.lane.b32.xlu0 %v3135, 110
      %v4283 = vpop.permute.xlu0 %4282
      %4284 = vrot.lane.b32.xlu0 %v3141, 110
      %v4285 = vpop.permute.xlu0 %4284
      %4286 = vrot.lane.b32.xlu0 %v3147, 110
      %v4287 = vpop.permute.xlu0 %4286
      %4288 = vrot.lane.b32.xlu0 %v3153, 110
      %v4289 = vpop.permute.xlu0 %4288
      %4290 = vrot.lane.b32.xlu0 %v3159, 110
      %v4291 = vpop.permute.xlu0 %4290
      %4292 = vrot.lane.b32.xlu0 %v3165, 110
      %v4293 = vpop.permute.xlu0 %4292
      %v4294 = vsel %vm937, %v4263, %v4279
      %v4295 = vsel %vm937, %v4265, %v4281
      %v4296 = vsel %vm937, %v4267, %v4283
      %v4297 = vsel %vm937, %v4269, %v4285
      %v4298 = vsel %vm937, %v4271, %v4287
      %v4299 = vsel %vm937, %v4273, %v4289
      %v4300 = vsel %vm937, %v4275, %v4291
      %v4301 = vsel %vm937, %v4277, %v4293
      %v4302 = vsel %vm937, %v4247, %v4263
      %v4303 = vsel %vm937, %v4249, %v4265
      %v4304 = vsel %vm937, %v4251, %v4267
      %v4305 = vsel %vm937, %v4253, %v4269
      %v4306 = vsel %vm937, %v4255, %v4271
      %v4307 = vsel %vm937, %v4257, %v4273
      %v4308 = vsel %vm937, %v4259, %v4275
      %v4309 = vsel %vm937, %v4261, %v4277
      %v4310 = vsel %vm937, %v4231, %v4247
      %v4311 = vsel %vm937, %v4233, %v4249
      %v4312 = vsel %vm937, %v4235, %v4251
      %v4313 = vsel %vm937, %v4237, %v4253
      %v4314 = vsel %vm937, %v4239, %v4255
      %v4315 = vsel %vm937, %v4241, %v4257
      %v4316 = vsel %vm937, %v4243, %v4259
      %v4317 = vsel %vm937, %v4245, %v4261
      %v4318 = vsel %vm937, %v4215, %v4231
      %v4319 = vsel %vm937, %v4217, %v4233
      %v4320 = vsel %vm937, %v4219, %v4235
      %v4321 = vsel %vm937, %v4221, %v4237
      %v4322 = vsel %vm937, %v4223, %v4239
      %v4323 = vsel %vm937, %v4225, %v4241
      %v4324 = vsel %vm937, %v4227, %v4243
      %v4325 = vsel %vm937, %v4229, %v4245
      %v4326 = vsel %vm937, %v4199, %v4215
      %v4327 = vsel %vm937, %v4201, %v4217
      %v4328 = vsel %vm937, %v4203, %v4219
      %v4329 = vsel %vm937, %v4205, %v4221
      %v4330 = vsel %vm937, %v4207, %v4223
      %v4331 = vsel %vm937, %v4209, %v4225
      %v4332 = vsel %vm937, %v4211, %v4227
      %v4333 = vsel %vm937, %v4213, %v4229
      %v4334 = vsel %vm937, %v4279, %v4199
      %v4335 = vsel %vm937, %v4281, %v4201
      %v4336 = vsel %vm937, %v4283, %v4203
      %v4337 = vsel %vm937, %v4285, %v4205
      %v4338 = vsel %vm937, %v4287, %v4207
      %v4339 = vsel %vm937, %v4289, %v4209
      %v4340 = vsel %vm937, %v4291, %v4211
      %v4341 = vsel %vm937, %v4293, %v4213
      %v4342 = vpack.c.bf16 %v4327, %v4326
      %v4343 = vpack.c.bf16 %v4319, %v4318
      %v4344 = vpack.c.bf16 %v4311, %v4310
      %v4345 = vpack.c.bf16 %v4303, %v4302
      %v4346 = vpack.c.bf16 %v4295, %v4294
      %v4347 = vpack.c.bf16 %v4335, %v4334
      %v4348 = vpack.c.bf16 %v4329, %v4328
      %v4349 = vpack.c.bf16 %v4321, %v4320
      %v4350 = vpack.c.bf16 %v4313, %v4312
      %v4351 = vpack.c.bf16 %v4305, %v4304
      %v4352 = vpack.c.bf16 %v4297, %v4296
      %v4353 = vpack.c.bf16 %v4337, %v4336
      %v4354 = vpack.c.bf16 %v4331, %v4330
      %v4355 = vpack.c.bf16 %v4323, %v4322
      %v4356 = vpack.c.bf16 %v4315, %v4314
      %v4357 = vpack.c.bf16 %v4307, %v4306
      %v4358 = vpack.c.bf16 %v4299, %v4298
      %v4359 = vpack.c.bf16 %v4339, %v4338
      %v4360 = vpack.c.bf16 %v4333, %v4332
      %v4361 = vpack.c.bf16 %v4325, %v4324
      %v4362 = vpack.c.bf16 %v4317, %v4316
      %v4363 = vpack.c.bf16 %v4309, %v4308
      %v4364 = vpack.c.bf16 %v4301, %v4300
      %v4365 = vpack.c.bf16 %v4341, %v4340
      %4366 = vrot.lane.b32.xlu0 %v3118, 109
      %v4367 = vpop.permute.xlu0 %4366
      %4368 = vrot.lane.b32.xlu0 %v3124, 109
      %v4369 = vpop.permute.xlu0 %4368
      %4370 = vrot.lane.b32.xlu0 %v3130, 109
      %v4371 = vpop.permute.xlu0 %4370
      %4372 = vrot.lane.b32.xlu0 %v3136, 109
      %v4373 = vpop.permute.xlu0 %4372
      %4374 = vrot.lane.b32.xlu0 %v3142, 109
      %v4375 = vpop.permute.xlu0 %4374
      %4376 = vrot.lane.b32.xlu0 %v3148, 109
      %v4377 = vpop.permute.xlu0 %4376
      %4378 = vrot.lane.b32.xlu0 %v3154, 109
      %v4379 = vpop.permute.xlu0 %4378
      %4380 = vrot.lane.b32.xlu0 %v3160, 109
      %v4381 = vpop.permute.xlu0 %4380
      %4382 = vrot.lane.b32.xlu0 %v3119, 109
      %v4383 = vpop.permute.xlu0 %4382
      %4384 = vrot.lane.b32.xlu0 %v3125, 109
      %v4385 = vpop.permute.xlu0 %4384
      %4386 = vrot.lane.b32.xlu0 %v3131, 109
      %v4387 = vpop.permute.xlu0 %4386
      %4388 = vrot.lane.b32.xlu0 %v3137, 109
      %v4389 = vpop.permute.xlu0 %4388
      %4390 = vrot.lane.b32.xlu0 %v3143, 109
      %v4391 = vpop.permute.xlu0 %4390
      %4392 = vrot.lane.b32.xlu0 %v3149, 109
      %v4393 = vpop.permute.xlu0 %4392
      %4394 = vrot.lane.b32.xlu0 %v3155, 109
      %v4395 = vpop.permute.xlu0 %4394
      %4396 = vrot.lane.b32.xlu0 %v3161, 109
      %v4397 = vpop.permute.xlu0 %4396
      %4398 = vrot.lane.b32.xlu0 %v3120, 109
      %v4399 = vpop.permute.xlu0 %4398
      %4400 = vrot.lane.b32.xlu0 %v3126, 109
      %v4401 = vpop.permute.xlu0 %4400
      %4402 = vrot.lane.b32.xlu0 %v3132, 109
      %v4403 = vpop.permute.xlu0 %4402
      %4404 = vrot.lane.b32.xlu0 %v3138, 109
      %v4405 = vpop.permute.xlu0 %4404
      %4406 = vrot.lane.b32.xlu0 %v3144, 109
      %v4407 = vpop.permute.xlu0 %4406
      %4408 = vrot.lane.b32.xlu0 %v3150, 109
      %v4409 = vpop.permute.xlu0 %4408
      %4410 = vrot.lane.b32.xlu0 %v3156, 109
      %v4411 = vpop.permute.xlu0 %4410
      %4412 = vrot.lane.b32.xlu0 %v3162, 109
      %v4413 = vpop.permute.xlu0 %4412
      %4414 = vrot.lane.b32.xlu0 %v3121, 109
      %v4415 = vpop.permute.xlu0 %4414
      %4416 = vrot.lane.b32.xlu0 %v3127, 109
      %v4417 = vpop.permute.xlu0 %4416
      %4418 = vrot.lane.b32.xlu0 %v3133, 109
      %v4419 = vpop.permute.xlu0 %4418
      %4420 = vrot.lane.b32.xlu0 %v3139, 109
      %v4421 = vpop.permute.xlu0 %4420
      %4422 = vrot.lane.b32.xlu0 %v3145, 109
      %v4423 = vpop.permute.xlu0 %4422
      %4424 = vrot.lane.b32.xlu0 %v3151, 109
      %v4425 = vpop.permute.xlu0 %4424
      %4426 = vrot.lane.b32.xlu0 %v3157, 109
      %v4427 = vpop.permute.xlu0 %4426
      %4428 = vrot.lane.b32.xlu0 %v3163, 109
      %v4429 = vpop.permute.xlu0 %4428
      %4430 = vrot.lane.b32.xlu0 %v3122, 109
      %v4431 = vpop.permute.xlu0 %4430
      %4432 = vrot.lane.b32.xlu0 %v3128, 109
      %v4433 = vpop.permute.xlu0 %4432
      %4434 = vrot.lane.b32.xlu0 %v3134, 109
      %v4435 = vpop.permute.xlu0 %4434
      %4436 = vrot.lane.b32.xlu0 %v3140, 109
      %v4437 = vpop.permute.xlu0 %4436
      %4438 = vrot.lane.b32.xlu0 %v3146, 109
      %v4439 = vpop.permute.xlu0 %4438
      %4440 = vrot.lane.b32.xlu0 %v3152, 109
      %v4441 = vpop.permute.xlu0 %4440
      %4442 = vrot.lane.b32.xlu0 %v3158, 109
      %v4443 = vpop.permute.xlu0 %4442
      %4444 = vrot.lane.b32.xlu0 %v3164, 109
      %v4445 = vpop.permute.xlu0 %4444
      %4446 = vrot.lane.b32.xlu0 %v3123, 109
      %v4447 = vpop.permute.xlu0 %4446
      %4448 = vrot.lane.b32.xlu0 %v3129, 109
      %v4449 = vpop.permute.xlu0 %4448
      %4450 = vrot.lane.b32.xlu0 %v3135, 109
      %v4451 = vpop.permute.xlu0 %4450
      %4452 = vrot.lane.b32.xlu0 %v3141, 109
      %v4453 = vpop.permute.xlu0 %4452
      %4454 = vrot.lane.b32.xlu0 %v3147, 109
      %v4455 = vpop.permute.xlu0 %4454
      %4456 = vrot.lane.b32.xlu0 %v3153, 109
      %v4457 = vpop.permute.xlu0 %4456
      %4458 = vrot.lane.b32.xlu0 %v3159, 109
      %v4459 = vpop.permute.xlu0 %4458
      %4460 = vrot.lane.b32.xlu0 %v3165, 109
      %v4461 = vpop.permute.xlu0 %4460
      %v4462 = vsel %vm980, %v4431, %v4447
      %v4463 = vsel %vm980, %v4433, %v4449
      %v4464 = vsel %vm980, %v4435, %v4451
      %v4465 = vsel %vm980, %v4437, %v4453
      %v4466 = vsel %vm980, %v4439, %v4455
      %v4467 = vsel %vm980, %v4441, %v4457
      %v4468 = vsel %vm980, %v4443, %v4459
      %v4469 = vsel %vm980, %v4445, %v4461
      %v4470 = vsel %vm980, %v4415, %v4431
      %v4471 = vsel %vm980, %v4417, %v4433
      %v4472 = vsel %vm980, %v4419, %v4435
      %v4473 = vsel %vm980, %v4421, %v4437
      %v4474 = vsel %vm980, %v4423, %v4439
      %v4475 = vsel %vm980, %v4425, %v4441
      %v4476 = vsel %vm980, %v4427, %v4443
      %v4477 = vsel %vm980, %v4429, %v4445
      %v4478 = vsel %vm980, %v4399, %v4415
      %v4479 = vsel %vm980, %v4401, %v4417
      %v4480 = vsel %vm980, %v4403, %v4419
      %v4481 = vsel %vm980, %v4405, %v4421
      %v4482 = vsel %vm980, %v4407, %v4423
      %v4483 = vsel %vm980, %v4409, %v4425
      %v4484 = vsel %vm980, %v4411, %v4427
      %v4485 = vsel %vm980, %v4413, %v4429
      %v4486 = vsel %vm980, %v4383, %v4399
      %v4487 = vsel %vm980, %v4385, %v4401
      %v4488 = vsel %vm980, %v4387, %v4403
      %v4489 = vsel %vm980, %v4389, %v4405
      %v4490 = vsel %vm980, %v4391, %v4407
      %v4491 = vsel %vm980, %v4393, %v4409
      %v4492 = vsel %vm980, %v4395, %v4411
      %v4493 = vsel %vm980, %v4397, %v4413
      %v4494 = vsel %vm980, %v4367, %v4383
      %v4495 = vsel %vm980, %v4369, %v4385
      %v4496 = vsel %vm980, %v4371, %v4387
      %v4497 = vsel %vm980, %v4373, %v4389
      %v4498 = vsel %vm980, %v4375, %v4391
      %v4499 = vsel %vm980, %v4377, %v4393
      %v4500 = vsel %vm980, %v4379, %v4395
      %v4501 = vsel %vm980, %v4381, %v4397
      %v4502 = vsel %vm980, %v4447, %v4367
      %v4503 = vsel %vm980, %v4449, %v4369
      %v4504 = vsel %vm980, %v4451, %v4371
      %v4505 = vsel %vm980, %v4453, %v4373
      %v4506 = vsel %vm980, %v4455, %v4375
      %v4507 = vsel %vm980, %v4457, %v4377
      %v4508 = vsel %vm980, %v4459, %v4379
      %v4509 = vsel %vm980, %v4461, %v4381
      %v4510 = vpack.c.bf16 %v4495, %v4494
      %v4511 = vpack.c.bf16 %v4487, %v4486
      %v4512 = vpack.c.bf16 %v4479, %v4478
      %v4513 = vpack.c.bf16 %v4471, %v4470
      %v4514 = vpack.c.bf16 %v4463, %v4462
      %v4515 = vpack.c.bf16 %v4503, %v4502
      %v4516 = vpack.c.bf16 %v4497, %v4496
      %v4517 = vpack.c.bf16 %v4489, %v4488
      %v4518 = vpack.c.bf16 %v4481, %v4480
      %v4519 = vpack.c.bf16 %v4473, %v4472
      %v4520 = vpack.c.bf16 %v4465, %v4464
      %v4521 = vpack.c.bf16 %v4505, %v4504
      %v4522 = vpack.c.bf16 %v4499, %v4498
      %v4523 = vpack.c.bf16 %v4491, %v4490
      %v4524 = vpack.c.bf16 %v4483, %v4482
      %v4525 = vpack.c.bf16 %v4475, %v4474
      %v4526 = vpack.c.bf16 %v4467, %v4466
      %v4527 = vpack.c.bf16 %v4507, %v4506
      %v4528 = vpack.c.bf16 %v4501, %v4500
      %v4529 = vpack.c.bf16 %v4493, %v4492
      %v4530 = vpack.c.bf16 %v4485, %v4484
      %v4531 = vpack.c.bf16 %v4477, %v4476
      %v4532 = vpack.c.bf16 %v4469, %v4468
      %v4533 = vpack.c.bf16 %v4509, %v4508
      %v4534 = vld [vmem:[%s609] sm:$0xff]
      %v4535 = vld [vmem:[%s609 + $0x8] sm:$0xff]
      %v4536 = vld [vmem:[%s609 + $0x10] sm:$0xf]
      %v4537 = vld [vmem:[%s609 + $0x14] sm:$0xff]
      %v4538 = vld [vmem:[%s609 + $0x1c] sm:$0xff]
      %v4539 = vld [vmem:[%s609 + $0x24] sm:$0xf]
      %v4540 = vld [vmem:[%s609 + $0x28] sm:$0xff]
      %v4541 = vld [vmem:[%s609 + $0x30] sm:$0xff]
      %v4542 = vld [vmem:[%s609 + $0x38] sm:$0xf]
      %v4543 = vld [vmem:[%s609 + $0x3c] sm:$0xff]
      %v4544 = vld [vmem:[%s609 + $0x44] sm:$0xff]
      %v4545 = vld [vmem:[%s609 + $0x4c] sm:$0xf]
      %v4546 = vld [vmem:[%s614] sm:$0xff]
      %v4547 = vld [vmem:[%s614 + $0x8] sm:$0xff]
      %v4548 = vld [vmem:[%s614 + $0x10] sm:$0xff]
      %v4549 = vld [vmem:[%s614 + $0x18] sm:$0xff]
      %4551 = vset.pattern.permute.xlu0 0
      %4552 = vperm.xlu0 %4551, %v4546
      %v4553 = vpop.permute.xlu0 %4552
      %4556 = vset.pattern.permute.xlu0 0
      %4557 = vperm.xlu0 %4556, %v4547
      %v4558 = vpop.permute.xlu0 %4557
      %4561 = vset.pattern.permute.xlu0 0
      %4562 = vperm.xlu0 %4561, %v4548
      %v4563 = vpop.permute.xlu0 %4562
      %4566 = vset.pattern.permute.xlu0 0
      %4567 = vperm.xlu0 %4566, %v4549
      %v4568 = vpop.permute.xlu0 %4567
      %v4582 = vunpack.c.l.b16 %v4534
      %v4583 = vunpack.c.h.b16 %v4534
      %v4584 = vunpack.c.l.b16 %v4535
      %v4585 = vunpack.c.h.b16 %v4535
      %v4586 = vunpack.c.l.b16 %v4536
      %v4587 = vunpack.c.l.b16 %v4537
      %v4588 = vunpack.c.h.b16 %v4537
      %v4589 = vunpack.c.l.b16 %v4538
      %v4590 = vunpack.c.h.b16 %v4538
      %v4591 = vunpack.c.l.b16 %v4539
      %v4592 = vunpack.c.l.b16 %v4540
      %v4593 = vunpack.c.h.b16 %v4540
      %v4594 = vunpack.c.l.b16 %v4541
      %v4595 = vunpack.c.h.b16 %v4541
      %v4596 = vunpack.c.l.b16 %v4542
      %v4597 = vunpack.c.l.b16 %v4543
      %v4598 = vunpack.c.h.b16 %v4543
      %v4599 = vunpack.c.l.b16 %v4544
      %v4600 = vunpack.c.h.b16 %v4544
      %v4601 = vunpack.c.l.b16 %v4545
      %v4602 = vpack.c.b16 %v4587, %v4582
      %v4603 = vpack.c.b16 %v4588, %v4583
      %v4604 = vpack.c.b16 %v4589, %v4584
      %v4605 = vpack.c.b16 %v4590, %v4585
      %v4606 = vpack.c.b16 %v4591, %v4586
      %v4607 = vpack.c.b16 %v4597, %v4592
      %v4608 = vpack.c.b16 %v4598, %v4593
      %v4609 = vpack.c.b16 %v4599, %v4594
      %v4610 = vpack.c.b16 %v4600, %v4595
      %v4611 = vpack.c.b16 %v4601, %v4596
      %vm4620 = vcmask 523264
      %v4622 = vsel %vm4620, %v4606, 0
      %v4625 = vsel %vm4620, %v4611, 0
      %4627 = vmatprep.subr.bf16.mxu0 %v3497
      %4628 = vmatpush1.bf16.msra.mxu0 %v3496
      %4629 = vmatprep.subr.bf16.mxu0 %v3491
      %4630 = vmatpush1.bf16.msra.mxu0 %v3490
      %4631 = vmatprep.subr.bf16.mxu0 %v3485
      %4632 = vmatpush1.bf16.msra.mxu0 %v3484
      %4633 = vmatprep.subr.bf16.mxu0 %v3479
      %4634 = vmatpush1.bf16.msra.mxu0 %v3478
      %4635 = vmatprep.subr.bf16.mxu0 %v3329
      %4636 = vmatpush1.bf16.msra.mxu0 %v3328
      %4637 = vmatprep.subr.bf16.mxu0 %v3323
      %4638 = vmatpush1.bf16.msra.mxu0 %v3322
      %4639 = vmatprep.subr.bf16.mxu0 %v3317
      %4640 = vmatpush1.bf16.msra.mxu0 %v3316
      %4641 = vmatprep.subr.bf16.mxu0 %v3311
      %4642 = vmatpush1.bf16.msra.mxu0 %v3310
      %4643 = vmatprep.subr.bf16.mxu0 %v3833
      %4644 = vmatpush2.bf16.msra.mxu0 %v3832
      %4645 = vmatprep.subr.bf16.mxu0 %v3827
      %4646 = vmatpush2.bf16.msra.mxu0 %v3826
      %4647 = vmatprep.subr.bf16.mxu0 %v3821
      %4648 = vmatpush2.bf16.msra.mxu0 %v3820
      %4649 = vmatprep.subr.bf16.mxu0 %v3815
      %4650 = vmatpush2.bf16.msra.mxu0 %v3814
      %4651 = vmatprep.subr.bf16.mxu0 %v3665
      %4652 = vmatpush2.bf16.msra.mxu0 %v3664
      %4653 = vmatprep.subr.bf16.mxu0 %v3659
      %4654 = vmatpush2.bf16.msra.mxu0 %v3658
      %4655 = vmatprep.subr.bf16.mxu0 %v3653
      %4656 = vmatpush2.bf16.msra.mxu0 %v3652
      %4657 = vmatprep.subr.bf16.mxu0 %v3647
      %4658 = vmatpush2.bf16.msra.mxu0 %v3646
      %4659 = vmatprep.mubr.bf16.mxu0 %v4603
      %4660 = vmatmul.mubr.bf16.gmra.mxu0 %v4602
      %v4661 = vpop.f32.mrf.mxu0
      %v4662 = vadd.f32 %v4553, %v4661
      %v4663 = vpop.f32.mrf.mxu0
      %v4664 = vadd.f32 %v4553, %v4663
      %v4665 = vpop.f32.mrf.mxu0
      %v4666 = vadd.f32 %v4558, %v4665
      %v4667 = vpop.f32.mrf.mxu0
      %v4668 = vadd.f32 %v4558, %v4667
      %4669 = vmatprep.mubr.bf16.mxu0 %v4608
      %4670 = vmatmul.mubr.bf16.gmra.mxu0 %v4607
      %v4671 = vpop.f32.mrf.mxu0
      %v4672 = vadd.f32 %v4563, %v4671
      %v4673 = vpop.f32.mrf.mxu0
      %v4674 = vadd.f32 %v4563, %v4673
      %v4675 = vpop.f32.mrf.mxu0
      %v4676 = vadd.f32 %v4568, %v4675
      %v4677 = vpop.f32.mrf.mxu0
      %v4678 = vadd.f32 %v4568, %v4677
      %4679 = vdwg.mxu0
      %4680 = vmatprep.subr.bf16.mxu0 %v4025
      %4681 = vmatpush1.bf16.msra.mxu0 %v4024
      %4682 = vmatprep.subr.bf16.mxu0 %v4019
      %4683 = vmatpush1.bf16.msra.mxu0 %v4018
      %4684 = vmatprep.subr.bf16.mxu0 %v4013
      %4685 = vmatpush1.bf16.msra.mxu0 %v4012
      %4686 = vmatprep.subr.bf16.mxu0 %v4007
      %4687 = vmatpush1.bf16.msra.mxu0 %v4006
      %4688 = vmatprep.subr.bf16.mxu0 %v3857
      %4689 = vmatpush1.bf16.msra.mxu0 %v3856
      %4690 = vmatprep.subr.bf16.mxu0 %v3851
      %4691 = vmatpush1.bf16.msra.mxu0 %v3850
      %4692 = vmatprep.subr.bf16.mxu0 %v3845
      %4693 = vmatpush1.bf16.msra.mxu0 %v3844
      %4694 = vmatprep.subr.bf16.mxu0 %v3839
      %4695 = vmatpush1.bf16.msra.mxu0 %v3838
      %4696 = vmatprep.subr.bf16.mxu0 %v4361
      %4697 = vmatpush2.bf16.msra.mxu0 %v4360
      %4698 = vmatprep.subr.bf16.mxu0 %v4355
      %4699 = vmatpush2.bf16.msra.mxu0 %v4354
      %4700 = vmatprep.subr.bf16.mxu0 %v4349
      %4701 = vmatpush2.bf16.msra.mxu0 %v4348
      %4702 = vmatprep.subr.bf16.mxu0 %v4343
      %4703 = vmatpush2.bf16.msra.mxu0 %v4342
      %4704 = vmatprep.subr.bf16.mxu0 %v4193
      %4705 = vmatpush2.bf16.msra.mxu0 %v4192
      %4706 = vmatprep.subr.bf16.mxu0 %v4187
      %4707 = vmatpush2.bf16.msra.mxu0 %v4186
      %4708 = vmatprep.subr.bf16.mxu0 %v4181
      %4709 = vmatpush2.bf16.msra.mxu0 %v4180
      %4710 = vmatprep.subr.bf16.mxu0 %v4175
      %4711 = vmatpush2.bf16.msra.mxu0 %v4174
      %4712 = vmatprep.mubr.bf16.mxu0 %v4605
      %4713 = vmatmul.mubr.bf16.gmra.mxu0 %v4604
      %v4714 = vpop.f32.mrf.mxu0
      %v4715 = vadd.f32 %v4662, %v4714
      %v4716 = vpop.f32.mrf.mxu0
      %v4717 = vadd.f32 %v4664, %v4716
      %v4718 = vpop.f32.mrf.mxu0
      %v4719 = vadd.f32 %v4666, %v4718
      %v4720 = vpop.f32.mrf.mxu0
      %v4721 = vadd.f32 %v4668, %v4720
      %4722 = vmatprep.mubr.bf16.mxu0 %v4610
      %4723 = vmatmul.mubr.bf16.gmra.mxu0 %v4609
      %v4724 = vpop.f32.mrf.mxu0
      %v4725 = vadd.f32 %v4672, %v4724
      %v4726 = vpop.f32.mrf.mxu0
      %v4727 = vadd.f32 %v4674, %v4726
      %v4728 = vpop.f32.mrf.mxu0
      %v4729 = vadd.f32 %v4676, %v4728
      %v4730 = vpop.f32.mrf.mxu0
      %v4731 = vadd.f32 %v4678, %v4730
      %4732 = vdwg.mxu0
      %4733 = vmatprep.subr.bf16.mxu0 0
      %4734 = vmatpush1.bf16.msra.mxu0 0
      %4735 = vmatprep.subr.bf16.mxu0 0
      %4736 = vmatpush1.bf16.msra.mxu0 0
      %4737 = vmatprep.subr.bf16.mxu0 0
      %4738 = vmatpush1.bf16.msra.mxu0 0
      %4739 = vmatprep.subr.bf16.mxu0 0
      %4740 = vmatpush1.bf16.msra.mxu0 0
      %4741 = vmatprep.subr.bf16.mxu0 %v4529
      %4742 = vmatpush1.bf16.msra.mxu0 %v4528
      %4743 = vmatprep.subr.bf16.mxu0 %v4523
      %4744 = vmatpush1.bf16.msra.mxu0 %v4522
      %4745 = vmatprep.subr.bf16.mxu0 %v4517
      %4746 = vmatpush1.bf16.msra.mxu0 %v4516
      %4747 = vmatprep.subr.bf16.mxu0 %v4511
      %4748 = vmatpush1.bf16.msra.mxu0 %v4510
      %4749 = vmatprep.subr.bf16.mxu0 0
      %4750 = vmatpush2.bf16.msra.mxu0 0
      %4751 = vmatprep.subr.bf16.mxu0 0
      %4752 = vmatpush2.bf16.msra.mxu0 0
      %4753 = vmatprep.subr.bf16.mxu0 0
      %4754 = vmatpush2.bf16.msra.mxu0 0
      %4755 = vmatprep.subr.bf16.mxu0 0
      %4756 = vmatpush2.bf16.msra.mxu0 0
      %4757 = vmatprep.subr.bf16.mxu0 0
      %4758 = vmatpush2.bf16.msra.mxu0 0
      %4759 = vmatprep.subr.bf16.mxu0 0
      %4760 = vmatpush2.bf16.msra.mxu0 0
      %4761 = vmatprep.subr.bf16.mxu0 0
      %4762 = vmatpush2.bf16.msra.mxu0 0
      %4763 = vmatprep.subr.bf16.mxu0 0
      %4764 = vmatpush2.bf16.msra.mxu0 0
      %4765 = vmatprep.mubr.bf16.mxu0 0
      %4766 = vmatmul.mubr.bf16.gmra.mxu0 %v4622
      %v4767 = vpop.f32.mrf.mxu0
      %v4768 = vadd.f32 %v4715, %v4767
      %v4769 = vpop.f32.mrf.mxu0
      %v4770 = vadd.f32 %v4717, %v4769
      %v4771 = vpop.f32.mrf.mxu0
      %v4772 = vadd.f32 %v4719, %v4771
      %v4773 = vpop.f32.mrf.mxu0
      %v4774 = vadd.f32 %v4721, %v4773
      %4775 = vmatprep.mubr.bf16.mxu0 0
      %4776 = vmatmul.mubr.bf16.gmra.mxu0 %v4625
      %v4777 = vpop.f32.mrf.mxu0
      %v4778 = vadd.f32 %v4725, %v4777
      %v4779 = vpop.f32.mrf.mxu0
      %v4780 = vadd.f32 %v4727, %v4779
      %v4781 = vpop.f32.mrf.mxu0
      %v4782 = vadd.f32 %v4729, %v4781
      %v4783 = vpop.f32.mrf.mxu0
      %v4784 = vadd.f32 %v4731, %v4783
      %4785 = vdwg.mxu0
      %4786 = vmatprep.subr.bf16.mxu0 %v3499
      %4787 = vmatpush1.bf16.msra.mxu0 %v3498
      %4788 = vmatprep.subr.bf16.mxu0 %v3493
      %4789 = vmatpush1.bf16.msra.mxu0 %v3492
      %4790 = vmatprep.subr.bf16.mxu0 %v3487
      %4791 = vmatpush1.bf16.msra.mxu0 %v3486
      %4792 = vmatprep.subr.bf16.mxu0 %v3481
      %4793 = vmatpush1.bf16.msra.mxu0 %v3480
      %4794 = vmatprep.subr.bf16.mxu0 %v3331
      %4795 = vmatpush1.bf16.msra.mxu0 %v3330
      %4796 = vmatprep.subr.bf16.mxu0 %v3325
      %4797 = vmatpush1.bf16.msra.mxu0 %v3324
      %4798 = vmatprep.subr.bf16.mxu0 %v3319
      %4799 = vmatpush1.bf16.msra.mxu0 %v3318
      %4800 = vmatprep.subr.bf16.mxu0 %v3313
      %4801 = vmatpush1.bf16.msra.mxu0 %v3312
      %4802 = vmatprep.subr.bf16.mxu0 %v3835
      %4803 = vmatpush2.bf16.msra.mxu0 %v3834
      %4804 = vmatprep.subr.bf16.mxu0 %v3829
      %4805 = vmatpush2.bf16.msra.mxu0 %v3828
      %4806 = vmatprep.subr.bf16.mxu0 %v3823
      %4807 = vmatpush2.bf16.msra.mxu0 %v3822
      %4808 = vmatprep.subr.bf16.mxu0 %v3817
      %4809 = vmatpush2.bf16.msra.mxu0 %v3816
      %4810 = vmatprep.subr.bf16.mxu0 %v3667
      %4811 = vmatpush2.bf16.msra.mxu0 %v3666
      %4812 = vmatprep.subr.bf16.mxu0 %v3661
      %4813 = vmatpush2.bf16.msra.mxu0 %v3660
      %4814 = vmatprep.subr.bf16.mxu0 %v3655
      %4815 = vmatpush2.bf16.msra.mxu0 %v3654
      %4816 = vmatprep.subr.bf16.mxu0 %v3649
      %4817 = vmatpush2.bf16.msra.mxu0 %v3648
      %4818 = vmatprep.mubr.bf16.mxu0 %v4603
      %4819 = vmatmul.mubr.bf16.gmra.mxu0 %v4602
      %v4820 = vpop.f32.mrf.mxu0
      %v4821 = vadd.f32 %v4553, %v4820
      %v4822 = vpop.f32.mrf.mxu0
      %v4823 = vadd.f32 %v4553, %v4822
      %v4824 = vpop.f32.mrf.mxu0
      %v4825 = vadd.f32 %v4558, %v4824
      %v4826 = vpop.f32.mrf.mxu0
      %v4827 = vadd.f32 %v4558, %v4826
      %4828 = vmatprep.mubr.bf16.mxu0 %v4608
      %4829 = vmatmul.mubr.bf16.gmra.mxu0 %v4607
      %v4830 = vpop.f32.mrf.mxu0
      %v4831 = vadd.f32 %v4563, %v4830
      %v4832 = vpop.f32.mrf.mxu0
      %v4833 = vadd.f32 %v4563, %v4832
      %v4834 = vpop.f32.mrf.mxu0
      %v4835 = vadd.f32 %v4568, %v4834
      %v4836 = vpop.f32.mrf.mxu0
      %v4837 = vadd.f32 %v4568, %v4836
      %4838 = vdwg.mxu0
      %4839 = vmatprep.subr.bf16.mxu0 %v4027
      %4840 = vmatpush1.bf16.msra.mxu0 %v4026
      %4841 = vmatprep.subr.bf16.mxu0 %v4021
      %4842 = vmatpush1.bf16.msra.mxu0 %v4020
      %4843 = vmatprep.subr.bf16.mxu0 %v4015
      %4844 = vmatpush1.bf16.msra.mxu0 %v4014
      %4845 = vmatprep.subr.bf16.mxu0 %v4009
      %4846 = vmatpush1.bf16.msra.mxu0 %v4008
      %4847 = vmatprep.subr.bf16.mxu0 %v3859
      %4848 = vmatpush1.bf16.msra.mxu0 %v3858
      %4849 = vmatprep.subr.bf16.mxu0 %v3853
      %4850 = vmatpush1.bf16.msra.mxu0 %v3852
      %4851 = vmatprep.subr.bf16.mxu0 %v3847
      %4852 = vmatpush1.bf16.msra.mxu0 %v3846
      %4853 = vmatprep.subr.bf16.mxu0 %v3841
      %4854 = vmatpush1.bf16.msra.mxu0 %v3840
      %4855 = vmatprep.subr.bf16.mxu0 %v4363
      %4856 = vmatpush2.bf16.msra.mxu0 %v4362
      %4857 = vmatprep.subr.bf16.mxu0 %v4357
      %4858 = vmatpush2.bf16.msra.mxu0 %v4356
      %4859 = vmatprep.subr.bf16.mxu0 %v4351
      %4860 = vmatpush2.bf16.msra.mxu0 %v4350
      %4861 = vmatprep.subr.bf16.mxu0 %v4345
      %4862 = vmatpush2.bf16.msra.mxu0 %v4344
      %4863 = vmatprep.subr.bf16.mxu0 %v4195
      %4864 = vmatpush2.bf16.msra.mxu0 %v4194
      %4865 = vmatprep.subr.bf16.mxu0 %v4189
      %4866 = vmatpush2.bf16.msra.mxu0 %v4188
      %4867 = vmatprep.subr.bf16.mxu0 %v4183
      %4868 = vmatpush2.bf16.msra.mxu0 %v4182
      %4869 = vmatprep.subr.bf16.mxu0 %v4177
      %4870 = vmatpush2.bf16.msra.mxu0 %v4176
      %4871 = vmatprep.mubr.bf16.mxu0 %v4605
      %4872 = vmatmul.mubr.bf16.gmra.mxu0 %v4604
      %v4873 = vpop.f32.mrf.mxu0
      %v4874 = vadd.f32 %v4821, %v4873
      %v4875 = vpop.f32.mrf.mxu0
      %v4876 = vadd.f32 %v4823, %v4875
      %v4877 = vpop.f32.mrf.mxu0
      %v4878 = vadd.f32 %v4825, %v4877
      %v4879 = vpop.f32.mrf.mxu0
      %v4880 = vadd.f32 %v4827, %v4879
      %4881 = vmatprep.mubr.bf16.mxu0 %v4610
      %4882 = vmatmul.mubr.bf16.gmra.mxu0 %v4609
      %v4883 = vpop.f32.mrf.mxu0
      %v4884 = vadd.f32 %v4831, %v4883
      %v4885 = vpop.f32.mrf.mxu0
      %v4886 = vadd.f32 %v4833, %v4885
      %v4887 = vpop.f32.mrf.mxu0
      %v4888 = vadd.f32 %v4835, %v4887
      %v4889 = vpop.f32.mrf.mxu0
      %v4890 = vadd.f32 %v4837, %v4889
      %4891 = vdwg.mxu0
      %4892 = vmatprep.subr.bf16.mxu0 0
      %4893 = vmatpush1.bf16.msra.mxu0 0
      %4894 = vmatprep.subr.bf16.mxu0 0
      %4895 = vmatpush1.bf16.msra.mxu0 0
      %4896 = vmatprep.subr.bf16.mxu0 0
      %4897 = vmatpush1.bf16.msra.mxu0 0
      %4898 = vmatprep.subr.bf16.mxu0 0
      %4899 = vmatpush1.bf16.msra.mxu0 0
      %4900 = vmatprep.subr.bf16.mxu0 %v4531
      %4901 = vmatpush1.bf16.msra.mxu0 %v4530
      %4902 = vmatprep.subr.bf16.mxu0 %v4525
      %4903 = vmatpush1.bf16.msra.mxu0 %v4524
      %4904 = vmatprep.subr.bf16.mxu0 %v4519
      %4905 = vmatpush1.bf16.msra.mxu0 %v4518
      %4906 = vmatprep.subr.bf16.mxu0 %v4513
      %4907 = vmatpush1.bf16.msra.mxu0 %v4512
      %4908 = vmatprep.subr.bf16.mxu0 0
      %4909 = vmatpush2.bf16.msra.mxu0 0
      %4910 = vmatprep.subr.bf16.mxu0 0
      %4911 = vmatpush2.bf16.msra.mxu0 0
      %4912 = vmatprep.subr.bf16.mxu0 0
      %4913 = vmatpush2.bf16.msra.mxu0 0
      %4914 = vmatprep.subr.bf16.mxu0 0
      %4915 = vmatpush2.bf16.msra.mxu0 0
      %4916 = vmatprep.subr.bf16.mxu0 0
      %4917 = vmatpush2.bf16.msra.mxu0 0
      %4918 = vmatprep.subr.bf16.mxu0 0
      %4919 = vmatpush2.bf16.msra.mxu0 0
      %4920 = vmatprep.subr.bf16.mxu0 0
      %4921 = vmatpush2.bf16.msra.mxu0 0
      %4922 = vmatprep.subr.bf16.mxu0 0
      %4923 = vmatpush2.bf16.msra.mxu0 0
      %4924 = vmatprep.mubr.bf16.mxu0 0
      %4925 = vmatmul.mubr.bf16.gmra.mxu0 %v4622
      %v4926 = vpop.f32.mrf.mxu0
      %v4927 = vadd.f32 %v4874, %v4926
      %v4928 = vpop.f32.mrf.mxu0
      %v4929 = vadd.f32 %v4876, %v4928
      %v4930 = vpop.f32.mrf.mxu0
      %v4931 = vadd.f32 %v4878, %v4930
      %v4932 = vpop.f32.mrf.mxu0
      %v4933 = vadd.f32 %v4880, %v4932
      %4934 = vmatprep.mubr.bf16.mxu0 0
      %4935 = vmatmul.mubr.bf16.gmra.mxu0 %v4625
      %v4936 = vpop.f32.mrf.mxu0
      %v4937 = vadd.f32 %v4884, %v4936
      %v4938 = vpop.f32.mrf.mxu0
      %v4939 = vadd.f32 %v4886, %v4938
      %v4940 = vpop.f32.mrf.mxu0
      %v4941 = vadd.f32 %v4888, %v4940
      %v4942 = vpop.f32.mrf.mxu0
      %v4943 = vadd.f32 %v4890, %v4942
      %4944 = vdwg.mxu0
      %4945 = vmatprep.subr.bf16.mxu0 %v3501
      %4946 = vmatpush1.bf16.msra.mxu0 %v3500
      %4947 = vmatprep.subr.bf16.mxu0 %v3495
      %4948 = vmatpush1.bf16.msra.mxu0 %v3494
      %4949 = vmatprep.subr.bf16.mxu0 %v3489
      %4950 = vmatpush1.bf16.msra.mxu0 %v3488
      %4951 = vmatprep.subr.bf16.mxu0 %v3483
      %4952 = vmatpush1.bf16.msra.mxu0 %v3482
      %4953 = vmatprep.subr.bf16.mxu0 %v3333
      %4954 = vmatpush1.bf16.msra.mxu0 %v3332
      %4955 = vmatprep.subr.bf16.mxu0 %v3327
      %4956 = vmatpush1.bf16.msra.mxu0 %v3326
      %4957 = vmatprep.subr.bf16.mxu0 %v3321
      %4958 = vmatpush1.bf16.msra.mxu0 %v3320
      %4959 = vmatprep.subr.bf16.mxu0 %v3315
      %4960 = vmatpush1.bf16.msra.mxu0 %v3314
      %4961 = vmatprep.subr.bf16.mxu0 %v3837
      %4962 = vmatpush2.bf16.msra.mxu0 %v3836
      %4963 = vmatprep.subr.bf16.mxu0 %v3831
      %4964 = vmatpush2.bf16.msra.mxu0 %v3830
      %4965 = vmatprep.subr.bf16.mxu0 %v3825
      %4966 = vmatpush2.bf16.msra.mxu0 %v3824
      %4967 = vmatprep.subr.bf16.mxu0 %v3819
      %4968 = vmatpush2.bf16.msra.mxu0 %v3818
      %4969 = vmatprep.subr.bf16.mxu0 %v3669
      %4970 = vmatpush2.bf16.msra.mxu0 %v3668
      %4971 = vmatprep.subr.bf16.mxu0 %v3663
      %4972 = vmatpush2.bf16.msra.mxu0 %v3662
      %4973 = vmatprep.subr.bf16.mxu0 %v3657
      %4974 = vmatpush2.bf16.msra.mxu0 %v3656
      %4975 = vmatprep.subr.bf16.mxu0 %v3651
      %4976 = vmatpush2.bf16.msra.mxu0 %v3650
      %4977 = vmatprep.mubr.bf16.mxu0 %v4603
      %4978 = vmatmul.mubr.bf16.gmra.mxu0 %v4602
      %v4979 = vpop.f32.mrf.mxu0
      %v4980 = vadd.f32 %v4553, %v4979
      %v4981 = vpop.f32.mrf.mxu0
      %v4982 = vadd.f32 %v4553, %v4981
      %v4983 = vpop.f32.mrf.mxu0
      %v4984 = vadd.f32 %v4558, %v4983
      %v4985 = vpop.f32.mrf.mxu0
      %v4986 = vadd.f32 %v4558, %v4985
      %4987 = vmatprep.mubr.bf16.mxu0 %v4608
      %4988 = vmatmul.mubr.bf16.gmra.mxu0 %v4607
      %v4989 = vpop.f32.mrf.mxu0
      %v4990 = vadd.f32 %v4563, %v4989
      %v4991 = vpop.f32.mrf.mxu0
      %v4992 = vadd.f32 %v4563, %v4991
      %v4993 = vpop.f32.mrf.mxu0
      %v4994 = vadd.f32 %v4568, %v4993
      %v4995 = vpop.f32.mrf.mxu0
      %v4996 = vadd.f32 %v4568, %v4995
      %4997 = vdwg.mxu0
      %4998 = vmatprep.subr.bf16.mxu0 %v4029
      %4999 = vmatpush1.bf16.msra.mxu0 %v4028
      %5000 = vmatprep.subr.bf16.mxu0 %v4023
      %5001 = vmatpush1.bf16.msra.mxu0 %v4022
      %5002 = vmatprep.subr.bf16.mxu0 %v4017
      %5003 = vmatpush1.bf16.msra.mxu0 %v4016
      %5004 = vmatprep.subr.bf16.mxu0 %v4011
      %5005 = vmatpush1.bf16.msra.mxu0 %v4010
      %5006 = vmatprep.subr.bf16.mxu0 %v3861
      %5007 = vmatpush1.bf16.msra.mxu0 %v3860
      %5008 = vmatprep.subr.bf16.mxu0 %v3855
      %5009 = vmatpush1.bf16.msra.mxu0 %v3854
      %5010 = vmatprep.subr.bf16.mxu0 %v3849
      %5011 = vmatpush1.bf16.msra.mxu0 %v3848
      %5012 = vmatprep.subr.bf16.mxu0 %v3843
      %5013 = vmatpush1.bf16.msra.mxu0 %v3842
      %5014 = vmatprep.subr.bf16.mxu0 %v4365
      %5015 = vmatpush2.bf16.msra.mxu0 %v4364
      %5016 = vmatprep.subr.bf16.mxu0 %v4359
      %5017 = vmatpush2.bf16.msra.mxu0 %v4358
      %5018 = vmatprep.subr.bf16.mxu0 %v4353
      %5019 = vmatpush2.bf16.msra.mxu0 %v4352
      %5020 = vmatprep.subr.bf16.mxu0 %v4347
      %5021 = vmatpush2.bf16.msra.mxu0 %v4346
      %5022 = vmatprep.subr.bf16.mxu0 %v4197
      %5023 = vmatpush2.bf16.msra.mxu0 %v4196
      %5024 = vmatprep.subr.bf16.mxu0 %v4191
      %5025 = vmatpush2.bf16.msra.mxu0 %v4190
      %5026 = vmatprep.subr.bf16.mxu0 %v4185
      %5027 = vmatpush2.bf16.msra.mxu0 %v4184
      %5028 = vmatprep.subr.bf16.mxu0 %v4179
      %5029 = vmatpush2.bf16.msra.mxu0 %v4178
      %5030 = vmatprep.mubr.bf16.mxu0 %v4605
      %5031 = vmatmul.mubr.bf16.gmra.mxu0 %v4604
      %v5032 = vpop.f32.mrf.mxu0
      %v5033 = vadd.f32 %v4980, %v5032
      %v5034 = vpop.f32.mrf.mxu0
      %v5035 = vadd.f32 %v4982, %v5034
      %v5036 = vpop.f32.mrf.mxu0
      %v5037 = vadd.f32 %v4984, %v5036
      %v5038 = vpop.f32.mrf.mxu0
      %v5039 = vadd.f32 %v4986, %v5038
      %5040 = vmatprep.mubr.bf16.mxu0 %v4610
      %5041 = vmatmul.mubr.bf16.gmra.mxu0 %v4609
      %v5042 = vpop.f32.mrf.mxu0
      %v5043 = vadd.f32 %v4990, %v5042
      %v5044 = vpop.f32.mrf.mxu0
      %v5045 = vadd.f32 %v4992, %v5044
      %v5046 = vpop.f32.mrf.mxu0
      %v5047 = vadd.f32 %v4994, %v5046
      %v5048 = vpop.f32.mrf.mxu0
      %v5049 = vadd.f32 %v4996, %v5048
      %5050 = vdwg.mxu0
      %5051 = vmatprep.subr.bf16.mxu0 0
      %5052 = vmatpush1.bf16.msra.mxu0 0
      %5053 = vmatprep.subr.bf16.mxu0 0
      %5054 = vmatpush1.bf16.msra.mxu0 0
      %5055 = vmatprep.subr.bf16.mxu0 0
      %5056 = vmatpush1.bf16.msra.mxu0 0
      %5057 = vmatprep.subr.bf16.mxu0 0
      %5058 = vmatpush1.bf16.msra.mxu0 0
      %5059 = vmatprep.subr.bf16.mxu0 %v4533
      %5060 = vmatpush1.bf16.msra.mxu0 %v4532
      %5061 = vmatprep.subr.bf16.mxu0 %v4527
      %5062 = vmatpush1.bf16.msra.mxu0 %v4526
      %5063 = vmatprep.subr.bf16.mxu0 %v4521
      %5064 = vmatpush1.bf16.msra.mxu0 %v4520
      %5065 = vmatprep.subr.bf16.mxu0 %v4515
      %5066 = vmatpush1.bf16.msra.mxu0 %v4514
      %5067 = vmatprep.subr.bf16.mxu0 0
      %5068 = vmatpush2.bf16.msra.mxu0 0
      %5069 = vmatprep.subr.bf16.mxu0 0
      %5070 = vmatpush2.bf16.msra.mxu0 0
      %5071 = vmatprep.subr.bf16.mxu0 0
      %5072 = vmatpush2.bf16.msra.mxu0 0
      %5073 = vmatprep.subr.bf16.mxu0 0
      %5074 = vmatpush2.bf16.msra.mxu0 0
      %5075 = vmatprep.subr.bf16.mxu0 0
      %5076 = vmatpush2.bf16.msra.mxu0 0
      %5077 = vmatprep.subr.bf16.mxu0 0
      %5078 = vmatpush2.bf16.msra.mxu0 0
      %5079 = vmatprep.subr.bf16.mxu0 0
      %5080 = vmatpush2.bf16.msra.mxu0 0
      %5081 = vmatprep.subr.bf16.mxu0 0
      %5082 = vmatpush2.bf16.msra.mxu0 0
      %5083 = vmatprep.mubr.bf16.mxu0 0
      %5084 = vmatmul.mubr.bf16.gmra.mxu0 %v4622
      %v5085 = vpop.f32.mrf.mxu0
      %v5086 = vadd.f32 %v5033, %v5085
      %v5087 = vpop.f32.mrf.mxu0
      %v5088 = vadd.f32 %v5035, %v5087
      %v5089 = vpop.f32.mrf.mxu0
      %v5090 = vadd.f32 %v5037, %v5089
      %v5091 = vpop.f32.mrf.mxu0
      %v5092 = vadd.f32 %v5039, %v5091
      %5093 = vmatprep.mubr.bf16.mxu0 0
      %5094 = vmatmul.mubr.bf16.gmra.mxu0 %v4625
      %v5095 = vpop.f32.mrf.mxu0
      %v5096 = vadd.f32 %v5043, %v5095
      %v5097 = vpop.f32.mrf.mxu0
      %v5098 = vadd.f32 %v5045, %v5097
      %v5099 = vpop.f32.mrf.mxu0
      %v5100 = vadd.f32 %v5047, %v5099
      %v5101 = vpop.f32.mrf.mxu0
      %v5102 = vadd.f32 %v5049, %v5101
      %5103 = vdwg.mxu0
      %v5104 = vmax.f32 %v4768, 0.0
      %v5105 = vmax.f32 %v4770, 0.0
      %v5106 = vmax.f32 %v4927, 0.0
      %v5107 = vmax.f32 %v4929, 0.0
      %v5108 = vmax.f32 %v5086, 0.0
      %v5109 = vmax.f32 %v5088, 0.0
      %v5110 = vmax.f32 %v4772, 0.0
      %v5111 = vmax.f32 %v4774, 0.0
      %v5112 = vmax.f32 %v4931, 0.0
      %v5113 = vmax.f32 %v4933, 0.0
      %v5114 = vmax.f32 %v5090, 0.0
      %v5115 = vmax.f32 %v5092, 0.0
      %v5116 = vmax.f32 %v4778, 0.0
      %v5117 = vmax.f32 %v4780, 0.0
      %v5118 = vmax.f32 %v4937, 0.0
      %v5119 = vmax.f32 %v4939, 0.0
      %v5120 = vmax.f32 %v5096, 0.0
      %v5121 = vmax.f32 %v5098, 0.0
      %v5122 = vmax.f32 %v4782, 0.0
      %v5123 = vmax.f32 %v4784, 0.0
      %v5124 = vmax.f32 %v4941, 0.0
      %v5125 = vmax.f32 %v4943, 0.0
      %v5126 = vmax.f32 %v5100, 0.0
      %v5127 = vmax.f32 %v5102, 0.0
      %v5128 = vmul.f32 %v5104, %v1171
      %v5129 = vmul.f32 %v5105, %v1175
      %v5130 = vmul.f32 %v5106, %v1179
      %v5131 = vmul.f32 %v5107, %v1183
      %v5132 = vmul.f32 %v5108, %v1187
      %v5133 = vmul.f32 %v5109, %v1191
      %v5134 = vmul.f32 %v5110, %v1171
      %v5135 = vmul.f32 %v5111, %v1175
      %v5136 = vmul.f32 %v5112, %v1179
      %v5137 = vmul.f32 %v5113, %v1183
      %v5138 = vmul.f32 %v5114, %v1187
      %v5139 = vmul.f32 %v5115, %v1191
      %v5140 = vmul.f32 %v5116, %v1171
      %v5141 = vmul.f32 %v5117, %v1175
      %v5142 = vmul.f32 %v5118, %v1179
      %v5143 = vmul.f32 %v5119, %v1183
      %v5144 = vmul.f32 %v5120, %v1187
      %v5145 = vmul.f32 %v5121, %v1191
      %v5146 = vmul.f32 %v5122, %v1171
      %v5147 = vmul.f32 %v5123, %v1175
      %v5148 = vmul.f32 %v5124, %v1179
      %v5149 = vmul.f32 %v5125, %v1183
      %v5150 = vmul.f32 %v5126, %v1187
      %v5151 = vmul.f32 %v5127, %v1191
      %5152 = vrot.lane.b32.xlu0 %v5128, 19
      %v5153 = vpop.permute.xlu0 %5152
      %5154 = vrot.lane.b32.xlu0 %v5134, 19
      %v5155 = vpop.permute.xlu0 %5154
      %5156 = vrot.lane.b32.xlu0 %v5140, 19
      %v5157 = vpop.permute.xlu0 %5156
      %5158 = vrot.lane.b32.xlu0 %v5146, 19
      %v5159 = vpop.permute.xlu0 %5158
      %5160 = vrot.lane.b32.xlu0 %v5129, 19
      %v5161 = vpop.permute.xlu0 %5160
      %5162 = vrot.lane.b32.xlu0 %v5135, 19
      %v5163 = vpop.permute.xlu0 %5162
      %5164 = vrot.lane.b32.xlu0 %v5141, 19
      %v5165 = vpop.permute.xlu0 %5164
      %5166 = vrot.lane.b32.xlu0 %v5147, 19
      %v5167 = vpop.permute.xlu0 %5166
      %5168 = vrot.lane.b32.xlu0 %v5130, 19
      %v5169 = vpop.permute.xlu0 %5168
      %5170 = vrot.lane.b32.xlu0 %v5136, 19
      %v5171 = vpop.permute.xlu0 %5170
      %5172 = vrot.lane.b32.xlu0 %v5142, 19
      %v5173 = vpop.permute.xlu0 %5172
      %5174 = vrot.lane.b32.xlu0 %v5148, 19
      %v5175 = vpop.permute.xlu0 %5174
      %5176 = vrot.lane.b32.xlu0 %v5131, 19
      %v5177 = vpop.permute.xlu0 %5176
      %5178 = vrot.lane.b32.xlu0 %v5137, 19
      %v5179 = vpop.permute.xlu0 %5178
      %5180 = vrot.lane.b32.xlu0 %v5143, 19
      %v5181 = vpop.permute.xlu0 %5180
      %5182 = vrot.lane.b32.xlu0 %v5149, 19
      %v5183 = vpop.permute.xlu0 %5182
      %5184 = vrot.lane.b32.xlu0 %v5132, 19
      %v5185 = vpop.permute.xlu0 %5184
      %5186 = vrot.lane.b32.xlu0 %v5138, 19
      %v5187 = vpop.permute.xlu0 %5186
      %5188 = vrot.lane.b32.xlu0 %v5144, 19
      %v5189 = vpop.permute.xlu0 %5188
      %5190 = vrot.lane.b32.xlu0 %v5150, 19
      %v5191 = vpop.permute.xlu0 %5190
      %5192 = vrot.lane.b32.xlu0 %v5133, 19
      %v5193 = vpop.permute.xlu0 %5192
      %5194 = vrot.lane.b32.xlu0 %v5139, 19
      %v5195 = vpop.permute.xlu0 %5194
      %5196 = vrot.lane.b32.xlu0 %v5145, 19
      %v5197 = vpop.permute.xlu0 %5196
      %5198 = vrot.lane.b32.xlu0 %v5151, 19
      %v5199 = vpop.permute.xlu0 %5198
      %v5200 = vsel %vm673, %v5185, %v5193
      %v5201 = vsel %vm673, %v5187, %v5195
      %v5202 = vsel %vm673, %v5189, %v5197
      %v5203 = vsel %vm673, %v5191, %v5199
      %v5204 = vsel %vm673, %v5177, %v5185
      %v5205 = vsel %vm673, %v5179, %v5187
      %v5206 = vsel %vm673, %v5181, %v5189
      %v5207 = vsel %vm673, %v5183, %v5191
      %v5208 = vsel %vm673, %v5169, %v5177
      %v5209 = vsel %vm673, %v5171, %v5179
      %v5210 = vsel %vm673, %v5173, %v5181
      %v5211 = vsel %vm673, %v5175, %v5183
      %v5212 = vsel %vm673, %v5161, %v5169
      %v5213 = vsel %vm673, %v5163, %v5171
      %v5214 = vsel %vm673, %v5165, %v5173
      %v5215 = vsel %vm673, %v5167, %v5175
      %v5216 = vsel %vm673, %v5153, %v5161
      %v5217 = vsel %vm673, %v5155, %v5163
      %v5218 = vsel %vm673, %v5157, %v5165
      %v5219 = vsel %vm673, %v5159, %v5167
      %v5220 = vsel %vm673, %v5193, %v5153
      %v5221 = vsel %vm673, %v5195, %v5155
      %v5222 = vsel %vm673, %v5197, %v5157
      %v5223 = vsel %vm673, %v5199, %v5159
      %v5224 = vpack.c.bf16 %v5221, %v5220
      %v5225 = vpack.c.bf16 %v5217, %v5216
      %v5226 = vpack.c.bf16 %v5213, %v5212
      %v5227 = vpack.c.bf16 %v5209, %v5208
      %v5228 = vpack.c.bf16 %v5205, %v5204
      %v5229 = vpack.c.bf16 %v5201, %v5200
      %v5230 = vpack.c.bf16 %v5223, %v5222
      %v5231 = vpack.c.bf16 %v5219, %v5218
      %v5232 = vpack.c.bf16 %v5215, %v5214
      %v5233 = vpack.c.bf16 %v5211, %v5210
      %v5234 = vpack.c.bf16 %v5207, %v5206
      %v5235 = vpack.c.bf16 %v5203, %v5202
      %5236 = vrot.lane.b32.xlu0 %v5128, 18
      %v5237 = vpop.permute.xlu0 %5236
      %5238 = vrot.lane.b32.xlu0 %v5134, 18
      %v5239 = vpop.permute.xlu0 %5238
      %5240 = vrot.lane.b32.xlu0 %v5140, 18
      %v5241 = vpop.permute.xlu0 %5240
      %5242 = vrot.lane.b32.xlu0 %v5146, 18
      %v5243 = vpop.permute.xlu0 %5242
      %5244 = vrot.lane.b32.xlu0 %v5129, 18
      %v5245 = vpop.permute.xlu0 %5244
      %5246 = vrot.lane.b32.xlu0 %v5135, 18
      %v5247 = vpop.permute.xlu0 %5246
      %5248 = vrot.lane.b32.xlu0 %v5141, 18
      %v5249 = vpop.permute.xlu0 %5248
      %5250 = vrot.lane.b32.xlu0 %v5147, 18
      %v5251 = vpop.permute.xlu0 %5250
      %5252 = vrot.lane.b32.xlu0 %v5130, 18
      %v5253 = vpop.permute.xlu0 %5252
      %5254 = vrot.lane.b32.xlu0 %v5136, 18
      %v5255 = vpop.permute.xlu0 %5254
      %5256 = vrot.lane.b32.xlu0 %v5142, 18
      %v5257 = vpop.permute.xlu0 %5256
      %5258 = vrot.lane.b32.xlu0 %v5148, 18
      %v5259 = vpop.permute.xlu0 %5258
      %5260 = vrot.lane.b32.xlu0 %v5131, 18
      %v5261 = vpop.permute.xlu0 %5260
      %5262 = vrot.lane.b32.xlu0 %v5137, 18
      %v5263 = vpop.permute.xlu0 %5262
      %5264 = vrot.lane.b32.xlu0 %v5143, 18
      %v5265 = vpop.permute.xlu0 %5264
      %5266 = vrot.lane.b32.xlu0 %v5149, 18
      %v5267 = vpop.permute.xlu0 %5266
      %5268 = vrot.lane.b32.xlu0 %v5132, 18
      %v5269 = vpop.permute.xlu0 %5268
      %5270 = vrot.lane.b32.xlu0 %v5138, 18
      %v5271 = vpop.permute.xlu0 %5270
      %5272 = vrot.lane.b32.xlu0 %v5144, 18
      %v5273 = vpop.permute.xlu0 %5272
      %5274 = vrot.lane.b32.xlu0 %v5150, 18
      %v5275 = vpop.permute.xlu0 %5274
      %5276 = vrot.lane.b32.xlu0 %v5133, 18
      %v5277 = vpop.permute.xlu0 %5276
      %5278 = vrot.lane.b32.xlu0 %v5139, 18
      %v5279 = vpop.permute.xlu0 %5278
      %5280 = vrot.lane.b32.xlu0 %v5145, 18
      %v5281 = vpop.permute.xlu0 %5280
      %5282 = vrot.lane.b32.xlu0 %v5151, 18
      %v5283 = vpop.permute.xlu0 %5282
      %v5284 = vsel %vm716, %v5269, %v5277
      %v5285 = vsel %vm716, %v5271, %v5279
      %v5286 = vsel %vm716, %v5273, %v5281
      %v5287 = vsel %vm716, %v5275, %v5283
      %v5288 = vsel %vm716, %v5261, %v5269
      %v5289 = vsel %vm716, %v5263, %v5271
      %v5290 = vsel %vm716, %v5265, %v5273
      %v5291 = vsel %vm716, %v5267, %v5275
      %v5292 = vsel %vm716, %v5253, %v5261
      %v5293 = vsel %vm716, %v5255, %v5263
      %v5294 = vsel %vm716, %v5257, %v5265
      %v5295 = vsel %vm716, %v5259, %v5267
      %v5296 = vsel %vm716, %v5245, %v5253
      %v5297 = vsel %vm716, %v5247, %v5255
      %v5298 = vsel %vm716, %v5249, %v5257
      %v5299 = vsel %vm716, %v5251, %v5259
      %v5300 = vsel %vm716, %v5237, %v5245
      %v5301 = vsel %vm716, %v5239, %v5247
      %v5302 = vsel %vm716, %v5241, %v5249
      %v5303 = vsel %vm716, %v5243, %v5251
      %v5304 = vsel %vm716, %v5277, %v5237
      %v5305 = vsel %vm716, %v5279, %v5239
      %v5306 = vsel %vm716, %v5281, %v5241
      %v5307 = vsel %vm716, %v5283, %v5243
      %v5308 = vpack.c.bf16 %v5305, %v5304
      %v5309 = vpack.c.bf16 %v5301, %v5300
      %v5310 = vpack.c.bf16 %v5297, %v5296
      %v5311 = vpack.c.bf16 %v5293, %v5292
      %v5312 = vpack.c.bf16 %v5289, %v5288
      %v5313 = vpack.c.bf16 %v5285, %v5284
      %v5314 = vpack.c.bf16 %v5307, %v5306
      %v5315 = vpack.c.bf16 %v5303, %v5302
      %v5316 = vpack.c.bf16 %v5299, %v5298
      %v5317 = vpack.c.bf16 %v5295, %v5294
      %v5318 = vpack.c.bf16 %v5291, %v5290
      %v5319 = vpack.c.bf16 %v5287, %v5286
      %5320 = vrot.lane.b32.xlu0 %v5128, 17
      %v5321 = vpop.permute.xlu0 %5320
      %5322 = vrot.lane.b32.xlu0 %v5134, 17
      %v5323 = vpop.permute.xlu0 %5322
      %5324 = vrot.lane.b32.xlu0 %v5140, 17
      %v5325 = vpop.permute.xlu0 %5324
      %5326 = vrot.lane.b32.xlu0 %v5146, 17
      %v5327 = vpop.permute.xlu0 %5326
      %5328 = vrot.lane.b32.xlu0 %v5129, 17
      %v5329 = vpop.permute.xlu0 %5328
      %5330 = vrot.lane.b32.xlu0 %v5135, 17
      %v5331 = vpop.permute.xlu0 %5330
      %5332 = vrot.lane.b32.xlu0 %v5141, 17
      %v5333 = vpop.permute.xlu0 %5332
      %5334 = vrot.lane.b32.xlu0 %v5147, 17
      %v5335 = vpop.permute.xlu0 %5334
      %5336 = vrot.lane.b32.xlu0 %v5130, 17
      %v5337 = vpop.permute.xlu0 %5336
      %5338 = vrot.lane.b32.xlu0 %v5136, 17
      %v5339 = vpop.permute.xlu0 %5338
      %5340 = vrot.lane.b32.xlu0 %v5142, 17
      %v5341 = vpop.permute.xlu0 %5340
      %5342 = vrot.lane.b32.xlu0 %v5148, 17
      %v5343 = vpop.permute.xlu0 %5342
      %5344 = vrot.lane.b32.xlu0 %v5131, 17
      %v5345 = vpop.permute.xlu0 %5344
      %5346 = vrot.lane.b32.xlu0 %v5137, 17
      %v5347 = vpop.permute.xlu0 %5346
      %5348 = vrot.lane.b32.xlu0 %v5143, 17
      %v5349 = vpop.permute.xlu0 %5348
      %5350 = vrot.lane.b32.xlu0 %v5149, 17
      %v5351 = vpop.permute.xlu0 %5350
      %5352 = vrot.lane.b32.xlu0 %v5132, 17
      %v5353 = vpop.permute.xlu0 %5352
      %5354 = vrot.lane.b32.xlu0 %v5138, 17
      %v5355 = vpop.permute.xlu0 %5354
      %5356 = vrot.lane.b32.xlu0 %v5144, 17
      %v5357 = vpop.permute.xlu0 %5356
      %5358 = vrot.lane.b32.xlu0 %v5150, 17
      %v5359 = vpop.permute.xlu0 %5358
      %5360 = vrot.lane.b32.xlu0 %v5133, 17
      %v5361 = vpop.permute.xlu0 %5360
      %5362 = vrot.lane.b32.xlu0 %v5139, 17
      %v5363 = vpop.permute.xlu0 %5362
      %5364 = vrot.lane.b32.xlu0 %v5145, 17
      %v5365 = vpop.permute.xlu0 %5364
      %5366 = vrot.lane.b32.xlu0 %v5151, 17
      %v5367 = vpop.permute.xlu0 %5366
      %v5368 = vsel %vm759, %v5353, %v5361
      %v5369 = vsel %vm759, %v5355, %v5363
      %v5370 = vsel %vm759, %v5357, %v5365
      %v5371 = vsel %vm759, %v5359, %v5367
      %v5372 = vsel %vm759, %v5345, %v5353
      %v5373 = vsel %vm759, %v5347, %v5355
      %v5374 = vsel %vm759, %v5349, %v5357
      %v5375 = vsel %vm759, %v5351, %v5359
      %v5376 = vsel %vm759, %v5337, %v5345
      %v5377 = vsel %vm759, %v5339, %v5347
      %v5378 = vsel %vm759, %v5341, %v5349
      %v5379 = vsel %vm759, %v5343, %v5351
      %v5380 = vsel %vm759, %v5329, %v5337
      %v5381 = vsel %vm759, %v5331, %v5339
      %v5382 = vsel %vm759, %v5333, %v5341
      %v5383 = vsel %vm759, %v5335, %v5343
      %v5384 = vsel %vm759, %v5321, %v5329
      %v5385 = vsel %vm759, %v5323, %v5331
      %v5386 = vsel %vm759, %v5325, %v5333
      %v5387 = vsel %vm759, %v5327, %v5335
      %v5388 = vsel %vm759, %v5361, %v5321
      %v5389 = vsel %vm759, %v5363, %v5323
      %v5390 = vsel %vm759, %v5365, %v5325
      %v5391 = vsel %vm759, %v5367, %v5327
      %v5392 = vpack.c.bf16 %v5389, %v5388
      %v5393 = vpack.c.bf16 %v5385, %v5384
      %v5394 = vpack.c.bf16 %v5381, %v5380
      %v5395 = vpack.c.bf16 %v5377, %v5376
      %v5396 = vpack.c.bf16 %v5373, %v5372
      %v5397 = vpack.c.bf16 %v5369, %v5368
      %v5398 = vpack.c.bf16 %v5391, %v5390
      %v5399 = vpack.c.bf16 %v5387, %v5386
      %v5400 = vpack.c.bf16 %v5383, %v5382
      %v5401 = vpack.c.bf16 %v5379, %v5378
      %v5402 = vpack.c.bf16 %v5375, %v5374
      %v5403 = vpack.c.bf16 %v5371, %v5370
      %5404 = vrot.lane.b32.xlu0 %v5128, 1
      %v5405 = vpop.permute.xlu0 %5404
      %5406 = vrot.lane.b32.xlu0 %v5134, 1
      %v5407 = vpop.permute.xlu0 %5406
      %5408 = vrot.lane.b32.xlu0 %v5140, 1
      %v5409 = vpop.permute.xlu0 %5408
      %5410 = vrot.lane.b32.xlu0 %v5146, 1
      %v5411 = vpop.permute.xlu0 %5410
      %5412 = vrot.lane.b32.xlu0 %v5129, 1
      %v5413 = vpop.permute.xlu0 %5412
      %5414 = vrot.lane.b32.xlu0 %v5135, 1
      %v5415 = vpop.permute.xlu0 %5414
      %5416 = vrot.lane.b32.xlu0 %v5141, 1
      %v5417 = vpop.permute.xlu0 %5416
      %5418 = vrot.lane.b32.xlu0 %v5147, 1
      %v5419 = vpop.permute.xlu0 %5418
      %5420 = vrot.lane.b32.xlu0 %v5130, 1
      %v5421 = vpop.permute.xlu0 %5420
      %5422 = vrot.lane.b32.xlu0 %v5136, 1
      %v5423 = vpop.permute.xlu0 %5422
      %5424 = vrot.lane.b32.xlu0 %v5142, 1
      %v5425 = vpop.permute.xlu0 %5424
      %5426 = vrot.lane.b32.xlu0 %v5148, 1
      %v5427 = vpop.permute.xlu0 %5426
      %5428 = vrot.lane.b32.xlu0 %v5131, 1
      %v5429 = vpop.permute.xlu0 %5428
      %5430 = vrot.lane.b32.xlu0 %v5137, 1
      %v5431 = vpop.permute.xlu0 %5430
      %5432 = vrot.lane.b32.xlu0 %v5143, 1
      %v5433 = vpop.permute.xlu0 %5432
      %5434 = vrot.lane.b32.xlu0 %v5149, 1
      %v5435 = vpop.permute.xlu0 %5434
      %5436 = vrot.lane.b32.xlu0 %v5132, 1
      %v5437 = vpop.permute.xlu0 %5436
      %5438 = vrot.lane.b32.xlu0 %v5138, 1
      %v5439 = vpop.permute.xlu0 %5438
      %5440 = vrot.lane.b32.xlu0 %v5144, 1
      %v5441 = vpop.permute.xlu0 %5440
      %5442 = vrot.lane.b32.xlu0 %v5150, 1
      %v5443 = vpop.permute.xlu0 %5442
      %5444 = vrot.lane.b32.xlu0 %v5133, 1
      %v5445 = vpop.permute.xlu0 %5444
      %5446 = vrot.lane.b32.xlu0 %v5139, 1
      %v5447 = vpop.permute.xlu0 %5446
      %5448 = vrot.lane.b32.xlu0 %v5145, 1
      %v5449 = vpop.permute.xlu0 %5448
      %5450 = vrot.lane.b32.xlu0 %v5151, 1
      %v5451 = vpop.permute.xlu0 %5450
      %v5452 = vsel %vm802, %v5437, %v5445
      %v5453 = vsel %vm802, %v5439, %v5447
      %v5454 = vsel %vm802, %v5441, %v5449
      %v5455 = vsel %vm802, %v5443, %v5451
      %v5456 = vsel %vm802, %v5429, %v5437
      %v5457 = vsel %vm802, %v5431, %v5439
      %v5458 = vsel %vm802, %v5433, %v5441
      %v5459 = vsel %vm802, %v5435, %v5443
      %v5460 = vsel %vm802, %v5421, %v5429
      %v5461 = vsel %vm802, %v5423, %v5431
      %v5462 = vsel %vm802, %v5425, %v5433
      %v5463 = vsel %vm802, %v5427, %v5435
      %v5464 = vsel %vm802, %v5413, %v5421
      %v5465 = vsel %vm802, %v5415, %v5423
      %v5466 = vsel %vm802, %v5417, %v5425
      %v5467 = vsel %vm802, %v5419, %v5427
      %v5468 = vsel %vm802, %v5405, %v5413
      %v5469 = vsel %vm802, %v5407, %v5415
      %v5470 = vsel %vm802, %v5409, %v5417
      %v5471 = vsel %vm802, %v5411, %v5419
      %v5472 = vsel %vm802, %v5445, %v5405
      %v5473 = vsel %vm802, %v5447, %v5407
      %v5474 = vsel %vm802, %v5449, %v5409
      %v5475 = vsel %vm802, %v5451, %v5411
      %v5476 = vpack.c.bf16 %v5473, %v5472
      %v5477 = vpack.c.bf16 %v5469, %v5468
      %v5478 = vpack.c.bf16 %v5465, %v5464
      %v5479 = vpack.c.bf16 %v5461, %v5460
      %v5480 = vpack.c.bf16 %v5457, %v5456
      %v5481 = vpack.c.bf16 %v5453, %v5452
      %v5482 = vpack.c.bf16 %v5475, %v5474
      %v5483 = vpack.c.bf16 %v5471, %v5470
      %v5484 = vpack.c.bf16 %v5467, %v5466
      %v5485 = vpack.c.bf16 %v5463, %v5462
      %v5486 = vpack.c.bf16 %v5459, %v5458
      %v5487 = vpack.c.bf16 %v5455, %v5454
      %v5488 = vpack.c.bf16 %v5134, %v5128
      %v5489 = vpack.c.bf16 %v5135, %v5129
      %v5490 = vpack.c.bf16 %v5136, %v5130
      %v5491 = vpack.c.bf16 %v5137, %v5131
      %v5492 = vpack.c.bf16 %v5138, %v5132
      %v5493 = vpack.c.bf16 %v5139, %v5133
      %v5494 = vpack.c.bf16 %v5146, %v5140
      %v5495 = vpack.c.bf16 %v5147, %v5141
      %v5496 = vpack.c.bf16 %v5148, %v5142
      %v5497 = vpack.c.bf16 %v5149, %v5143
      %v5498 = vpack.c.bf16 %v5150, %v5144
      %v5499 = vpack.c.bf16 %v5151, %v5145
      %5500 = vrot.lane.b32.xlu0 %v5128, 127
      %v5501 = vpop.permute.xlu0 %5500
      %5502 = vrot.lane.b32.xlu0 %v5134, 127
      %v5503 = vpop.permute.xlu0 %5502
      %5504 = vrot.lane.b32.xlu0 %v5140, 127
      %v5505 = vpop.permute.xlu0 %5504
      %5506 = vrot.lane.b32.xlu0 %v5146, 127
      %v5507 = vpop.permute.xlu0 %5506
      %5508 = vrot.lane.b32.xlu0 %v5129, 127
      %v5509 = vpop.permute.xlu0 %5508
      %5510 = vrot.lane.b32.xlu0 %v5135, 127
      %v5511 = vpop.permute.xlu0 %5510
      %5512 = vrot.lane.b32.xlu0 %v5141, 127
      %v5513 = vpop.permute.xlu0 %5512
      %5514 = vrot.lane.b32.xlu0 %v5147, 127
      %v5515 = vpop.permute.xlu0 %5514
      %5516 = vrot.lane.b32.xlu0 %v5130, 127
      %v5517 = vpop.permute.xlu0 %5516
      %5518 = vrot.lane.b32.xlu0 %v5136, 127
      %v5519 = vpop.permute.xlu0 %5518
      %5520 = vrot.lane.b32.xlu0 %v5142, 127
      %v5521 = vpop.permute.xlu0 %5520
      %5522 = vrot.lane.b32.xlu0 %v5148, 127
      %v5523 = vpop.permute.xlu0 %5522
      %5524 = vrot.lane.b32.xlu0 %v5131, 127
      %v5525 = vpop.permute.xlu0 %5524
      %5526 = vrot.lane.b32.xlu0 %v5137, 127
      %v5527 = vpop.permute.xlu0 %5526
      %5528 = vrot.lane.b32.xlu0 %v5143, 127
      %v5529 = vpop.permute.xlu0 %5528
      %5530 = vrot.lane.b32.xlu0 %v5149, 127
      %v5531 = vpop.permute.xlu0 %5530
      %5532 = vrot.lane.b32.xlu0 %v5132, 127
      %v5533 = vpop.permute.xlu0 %5532
      %5534 = vrot.lane.b32.xlu0 %v5138, 127
      %v5535 = vpop.permute.xlu0 %5534
      %5536 = vrot.lane.b32.xlu0 %v5144, 127
      %v5537 = vpop.permute.xlu0 %5536
      %5538 = vrot.lane.b32.xlu0 %v5150, 127
      %v5539 = vpop.permute.xlu0 %5538
      %5540 = vrot.lane.b32.xlu0 %v5133, 127
      %v5541 = vpop.permute.xlu0 %5540
      %5542 = vrot.lane.b32.xlu0 %v5139, 127
      %v5543 = vpop.permute.xlu0 %5542
      %5544 = vrot.lane.b32.xlu0 %v5145, 127
      %v5545 = vpop.permute.xlu0 %5544
      %5546 = vrot.lane.b32.xlu0 %v5151, 127
      %v5547 = vpop.permute.xlu0 %5546
      %v5548 = vsel %vm851, %v5533, %v5541
      %v5549 = vsel %vm851, %v5535, %v5543
      %v5550 = vsel %vm851, %v5537, %v5545
      %v5551 = vsel %vm851, %v5539, %v5547
      %v5552 = vsel %vm851, %v5525, %v5533
      %v5553 = vsel %vm851, %v5527, %v5535
      %v5554 = vsel %vm851, %v5529, %v5537
      %v5555 = vsel %vm851, %v5531, %v5539
      %v5556 = vsel %vm851, %v5517, %v5525
      %v5557 = vsel %vm851, %v5519, %v5527
      %v5558 = vsel %vm851, %v5521, %v5529
      %v5559 = vsel %vm851, %v5523, %v5531
      %v5560 = vsel %vm851, %v5509, %v5517
      %v5561 = vsel %vm851, %v5511, %v5519
      %v5562 = vsel %vm851, %v5513, %v5521
      %v5563 = vsel %vm851, %v5515, %v5523
      %v5564 = vsel %vm851, %v5501, %v5509
      %v5565 = vsel %vm851, %v5503, %v5511
      %v5566 = vsel %vm851, %v5505, %v5513
      %v5567 = vsel %vm851, %v5507, %v5515
      %v5568 = vsel %vm851, %v5541, %v5501
      %v5569 = vsel %vm851, %v5543, %v5503
      %v5570 = vsel %vm851, %v5545, %v5505
      %v5571 = vsel %vm851, %v5547, %v5507
      %v5572 = vpack.c.bf16 %v5565, %v5564
      %v5573 = vpack.c.bf16 %v5561, %v5560
      %v5574 = vpack.c.bf16 %v5557, %v5556
      %v5575 = vpack.c.bf16 %v5553, %v5552
      %v5576 = vpack.c.bf16 %v5549, %v5548
      %v5577 = vpack.c.bf16 %v5569, %v5568
      %v5578 = vpack.c.bf16 %v5567, %v5566
      %v5579 = vpack.c.bf16 %v5563, %v5562
      %v5580 = vpack.c.bf16 %v5559, %v5558
      %v5581 = vpack.c.bf16 %v5555, %v5554
      %v5582 = vpack.c.bf16 %v5551, %v5550
      %v5583 = vpack.c.bf16 %v5571, %v5570
      %5584 = vrot.lane.b32.xlu0 %v5128, 111
      %v5585 = vpop.permute.xlu0 %5584
      %5586 = vrot.lane.b32.xlu0 %v5134, 111
      %v5587 = vpop.permute.xlu0 %5586
      %5588 = vrot.lane.b32.xlu0 %v5140, 111
      %v5589 = vpop.permute.xlu0 %5588
      %5590 = vrot.lane.b32.xlu0 %v5146, 111
      %v5591 = vpop.permute.xlu0 %5590
      %5592 = vrot.lane.b32.xlu0 %v5129, 111
      %v5593 = vpop.permute.xlu0 %5592
      %5594 = vrot.lane.b32.xlu0 %v5135, 111
      %v5595 = vpop.permute.xlu0 %5594
      %5596 = vrot.lane.b32.xlu0 %v5141, 111
      %v5597 = vpop.permute.xlu0 %5596
      %5598 = vrot.lane.b32.xlu0 %v5147, 111
      %v5599 = vpop.permute.xlu0 %5598
      %5600 = vrot.lane.b32.xlu0 %v5130, 111
      %v5601 = vpop.permute.xlu0 %5600
      %5602 = vrot.lane.b32.xlu0 %v5136, 111
      %v5603 = vpop.permute.xlu0 %5602
      %5604 = vrot.lane.b32.xlu0 %v5142, 111
      %v5605 = vpop.permute.xlu0 %5604
      %5606 = vrot.lane.b32.xlu0 %v5148, 111
      %v5607 = vpop.permute.xlu0 %5606
      %5608 = vrot.lane.b32.xlu0 %v5131, 111
      %v5609 = vpop.permute.xlu0 %5608
      %5610 = vrot.lane.b32.xlu0 %v5137, 111
      %v5611 = vpop.permute.xlu0 %5610
      %5612 = vrot.lane.b32.xlu0 %v5143, 111
      %v5613 = vpop.permute.xlu0 %5612
      %5614 = vrot.lane.b32.xlu0 %v5149, 111
      %v5615 = vpop.permute.xlu0 %5614
      %5616 = vrot.lane.b32.xlu0 %v5132, 111
      %v5617 = vpop.permute.xlu0 %5616
      %5618 = vrot.lane.b32.xlu0 %v5138, 111
      %v5619 = vpop.permute.xlu0 %5618
      %5620 = vrot.lane.b32.xlu0 %v5144, 111
      %v5621 = vpop.permute.xlu0 %5620
      %5622 = vrot.lane.b32.xlu0 %v5150, 111
      %v5623 = vpop.permute.xlu0 %5622
      %5624 = vrot.lane.b32.xlu0 %v5133, 111
      %v5625 = vpop.permute.xlu0 %5624
      %5626 = vrot.lane.b32.xlu0 %v5139, 111
      %v5627 = vpop.permute.xlu0 %5626
      %5628 = vrot.lane.b32.xlu0 %v5145, 111
      %v5629 = vpop.permute.xlu0 %5628
      %5630 = vrot.lane.b32.xlu0 %v5151, 111
      %v5631 = vpop.permute.xlu0 %5630
      %v5632 = vsel %vm894, %v5617, %v5625
      %v5633 = vsel %vm894, %v5619, %v5627
      %v5634 = vsel %vm894, %v5621, %v5629
      %v5635 = vsel %vm894, %v5623, %v5631
      %v5636 = vsel %vm894, %v5609, %v5617
      %v5637 = vsel %vm894, %v5611, %v5619
      %v5638 = vsel %vm894, %v5613, %v5621
      %v5639 = vsel %vm894, %v5615, %v5623
      %v5640 = vsel %vm894, %v5601, %v5609
      %v5641 = vsel %vm894, %v5603, %v5611
      %v5642 = vsel %vm894, %v5605, %v5613
      %v5643 = vsel %vm894, %v5607, %v5615
      %v5644 = vsel %vm894, %v5593, %v5601
      %v5645 = vsel %vm894, %v5595, %v5603
      %v5646 = vsel %vm894, %v5597, %v5605
      %v5647 = vsel %vm894, %v5599, %v5607
      %v5648 = vsel %vm894, %v5585, %v5593
      %v5649 = vsel %vm894, %v5587, %v5595
      %v5650 = vsel %vm894, %v5589, %v5597
      %v5651 = vsel %vm894, %v5591, %v5599
      %v5652 = vsel %vm894, %v5625, %v5585
      %v5653 = vsel %vm894, %v5627, %v5587
      %v5654 = vsel %vm894, %v5629, %v5589
      %v5655 = vsel %vm894, %v5631, %v5591
      %v5656 = vpack.c.bf16 %v5649, %v5648
      %v5657 = vpack.c.bf16 %v5645, %v5644
      %v5658 = vpack.c.bf16 %v5641, %v5640
      %v5659 = vpack.c.bf16 %v5637, %v5636
      %v5660 = vpack.c.bf16 %v5633, %v5632
      %v5661 = vpack.c.bf16 %v5653, %v5652
      %v5662 = vpack.c.bf16 %v5651, %v5650
      %v5663 = vpack.c.bf16 %v5647, %v5646
      %v5664 = vpack.c.bf16 %v5643, %v5642
      %v5665 = vpack.c.bf16 %v5639, %v5638
      %v5666 = vpack.c.bf16 %v5635, %v5634
      %v5667 = vpack.c.bf16 %v5655, %v5654
      %5668 = vrot.lane.b32.xlu0 %v5128, 110
      %v5669 = vpop.permute.xlu0 %5668
      %5670 = vrot.lane.b32.xlu0 %v5134, 110
      %v5671 = vpop.permute.xlu0 %5670
      %5672 = vrot.lane.b32.xlu0 %v5140, 110
      %v5673 = vpop.permute.xlu0 %5672
      %5674 = vrot.lane.b32.xlu0 %v5146, 110
      %v5675 = vpop.permute.xlu0 %5674
      %5676 = vrot.lane.b32.xlu0 %v5129, 110
      %v5677 = vpop.permute.xlu0 %5676
      %5678 = vrot.lane.b32.xlu0 %v5135, 110
      %v5679 = vpop.permute.xlu0 %5678
      %5680 = vrot.lane.b32.xlu0 %v5141, 110
      %v5681 = vpop.permute.xlu0 %5680
      %5682 = vrot.lane.b32.xlu0 %v5147, 110
      %v5683 = vpop.permute.xlu0 %5682
      %5684 = vrot.lane.b32.xlu0 %v5130, 110
      %v5685 = vpop.permute.xlu0 %5684
      %5686 = vrot.lane.b32.xlu0 %v5136, 110
      %v5687 = vpop.permute.xlu0 %5686
      %5688 = vrot.lane.b32.xlu0 %v5142, 110
      %v5689 = vpop.permute.xlu0 %5688
      %5690 = vrot.lane.b32.xlu0 %v5148, 110
      %v5691 = vpop.permute.xlu0 %5690
      %5692 = vrot.lane.b32.xlu0 %v5131, 110
      %v5693 = vpop.permute.xlu0 %5692
      %5694 = vrot.lane.b32.xlu0 %v5137, 110
      %v5695 = vpop.permute.xlu0 %5694
      %5696 = vrot.lane.b32.xlu0 %v5143, 110
      %v5697 = vpop.permute.xlu0 %5696
      %5698 = vrot.lane.b32.xlu0 %v5149, 110
      %v5699 = vpop.permute.xlu0 %5698
      %5700 = vrot.lane.b32.xlu0 %v5132, 110
      %v5701 = vpop.permute.xlu0 %5700
      %5702 = vrot.lane.b32.xlu0 %v5138, 110
      %v5703 = vpop.permute.xlu0 %5702
      %5704 = vrot.lane.b32.xlu0 %v5144, 110
      %v5705 = vpop.permute.xlu0 %5704
      %5706 = vrot.lane.b32.xlu0 %v5150, 110
      %v5707 = vpop.permute.xlu0 %5706
      %5708 = vrot.lane.b32.xlu0 %v5133, 110
      %v5709 = vpop.permute.xlu0 %5708
      %5710 = vrot.lane.b32.xlu0 %v5139, 110
      %v5711 = vpop.permute.xlu0 %5710
      %5712 = vrot.lane.b32.xlu0 %v5145, 110
      %v5713 = vpop.permute.xlu0 %5712
      %5714 = vrot.lane.b32.xlu0 %v5151, 110
      %v5715 = vpop.permute.xlu0 %5714
      %v5716 = vsel %vm937, %v5701, %v5709
      %v5717 = vsel %vm937, %v5703, %v5711
      %v5718 = vsel %vm937, %v5705, %v5713
      %v5719 = vsel %vm937, %v5707, %v5715
      %v5720 = vsel %vm937, %v5693, %v5701
      %v5721 = vsel %vm937, %v5695, %v5703
      %v5722 = vsel %vm937, %v5697, %v5705
      %v5723 = vsel %vm937, %v5699, %v5707
      %v5724 = vsel %vm937, %v5685, %v5693
      %v5725 = vsel %vm937, %v5687, %v5695
      %v5726 = vsel %vm937, %v5689, %v5697
      %v5727 = vsel %vm937, %v5691, %v5699
      %v5728 = vsel %vm937, %v5677, %v5685
      %v5729 = vsel %vm937, %v5679, %v5687
      %v5730 = vsel %vm937, %v5681, %v5689
      %v5731 = vsel %vm937, %v5683, %v5691
      %v5732 = vsel %vm937, %v5669, %v5677
      %v5733 = vsel %vm937, %v5671, %v5679
      %v5734 = vsel %vm937, %v5673, %v5681
      %v5735 = vsel %vm937, %v5675, %v5683
      %v5736 = vsel %vm937, %v5709, %v5669
      %v5737 = vsel %vm937, %v5711, %v5671
      %v5738 = vsel %vm937, %v5713, %v5673
      %v5739 = vsel %vm937, %v5715, %v5675
      %v5740 = vpack.c.bf16 %v5733, %v5732
      %v5741 = vpack.c.bf16 %v5729, %v5728
      %v5742 = vpack.c.bf16 %v5725, %v5724
      %v5743 = vpack.c.bf16 %v5721, %v5720
      %v5744 = vpack.c.bf16 %v5717, %v5716
      %v5745 = vpack.c.bf16 %v5737, %v5736
      %v5746 = vpack.c.bf16 %v5735, %v5734
      %v5747 = vpack.c.bf16 %v5731, %v5730
      %v5748 = vpack.c.bf16 %v5727, %v5726
      %v5749 = vpack.c.bf16 %v5723, %v5722
      %v5750 = vpack.c.bf16 %v5719, %v5718
      %v5751 = vpack.c.bf16 %v5739, %v5738
      %5752 = vrot.lane.b32.xlu0 %v5128, 109
      %v5753 = vpop.permute.xlu0 %5752
      %5754 = vrot.lane.b32.xlu0 %v5134, 109
      %v5755 = vpop.permute.xlu0 %5754
      %5756 = vrot.lane.b32.xlu0 %v5140, 109
      %v5757 = vpop.permute.xlu0 %5756
      %5758 = vrot.lane.b32.xlu0 %v5146, 109
      %v5759 = vpop.permute.xlu0 %5758
      %5760 = vrot.lane.b32.xlu0 %v5129, 109
      %v5761 = vpop.permute.xlu0 %5760
      %5762 = vrot.lane.b32.xlu0 %v5135, 109
      %v5763 = vpop.permute.xlu0 %5762
      %5764 = vrot.lane.b32.xlu0 %v5141, 109
      %v5765 = vpop.permute.xlu0 %5764
      %5766 = vrot.lane.b32.xlu0 %v5147, 109
      %v5767 = vpop.permute.xlu0 %5766
      %5768 = vrot.lane.b32.xlu0 %v5130, 109
      %v5769 = vpop.permute.xlu0 %5768
      %5770 = vrot.lane.b32.xlu0 %v5136, 109
      %v5771 = vpop.permute.xlu0 %5770
      %5772 = vrot.lane.b32.xlu0 %v5142, 109
      %v5773 = vpop.permute.xlu0 %5772
      %5774 = vrot.lane.b32.xlu0 %v5148, 109
      %v5775 = vpop.permute.xlu0 %5774
      %5776 = vrot.lane.b32.xlu0 %v5131, 109
      %v5777 = vpop.permute.xlu0 %5776
      %5778 = vrot.lane.b32.xlu0 %v5137, 109
      %v5779 = vpop.permute.xlu0 %5778
      %5780 = vrot.lane.b32.xlu0 %v5143, 109
      %v5781 = vpop.permute.xlu0 %5780
      %5782 = vrot.lane.b32.xlu0 %v5149, 109
      %v5783 = vpop.permute.xlu0 %5782
      %5784 = vrot.lane.b32.xlu0 %v5132, 109
      %v5785 = vpop.permute.xlu0 %5784
      %5786 = vrot.lane.b32.xlu0 %v5138, 109
      %v5787 = vpop.permute.xlu0 %5786
      %5788 = vrot.lane.b32.xlu0 %v5144, 109
      %v5789 = vpop.permute.xlu0 %5788
      %5790 = vrot.lane.b32.xlu0 %v5150, 109
      %v5791 = vpop.permute.xlu0 %5790
      %5792 = vrot.lane.b32.xlu0 %v5133, 109
      %v5793 = vpop.permute.xlu0 %5792
      %5794 = vrot.lane.b32.xlu0 %v5139, 109
      %v5795 = vpop.permute.xlu0 %5794
      %5796 = vrot.lane.b32.xlu0 %v5145, 109
      %v5797 = vpop.permute.xlu0 %5796
      %5798 = vrot.lane.b32.xlu0 %v5151, 109
      %v5799 = vpop.permute.xlu0 %5798
      %v5800 = vsel %vm980, %v5785, %v5793
      %v5801 = vsel %vm980, %v5787, %v5795
      %v5802 = vsel %vm980, %v5789, %v5797
      %v5803 = vsel %vm980, %v5791, %v5799
      %v5804 = vsel %vm980, %v5777, %v5785
      %v5805 = vsel %vm980, %v5779, %v5787
      %v5806 = vsel %vm980, %v5781, %v5789
      %v5807 = vsel %vm980, %v5783, %v5791
      %v5808 = vsel %vm980, %v5769, %v5777
      %v5809 = vsel %vm980, %v5771, %v5779
      %v5810 = vsel %vm980, %v5773, %v5781
      %v5811 = vsel %vm980, %v5775, %v5783
      %v5812 = vsel %vm980, %v5761, %v5769
      %v5813 = vsel %vm980, %v5763, %v5771
      %v5814 = vsel %vm980, %v5765, %v5773
      %v5815 = vsel %vm980, %v5767, %v5775
      %v5816 = vsel %vm980, %v5753, %v5761
      %v5817 = vsel %vm980, %v5755, %v5763
      %v5818 = vsel %vm980, %v5757, %v5765
      %v5819 = vsel %vm980, %v5759, %v5767
      %v5820 = vsel %vm980, %v5793, %v5753
      %v5821 = vsel %vm980, %v5795, %v5755
      %v5822 = vsel %vm980, %v5797, %v5757
      %v5823 = vsel %vm980, %v5799, %v5759
      %v5824 = vpack.c.bf16 %v5817, %v5816
      %v5825 = vpack.c.bf16 %v5813, %v5812
      %v5826 = vpack.c.bf16 %v5809, %v5808
      %v5827 = vpack.c.bf16 %v5805, %v5804
      %v5828 = vpack.c.bf16 %v5801, %v5800
      %v5829 = vpack.c.bf16 %v5821, %v5820
      %v5830 = vpack.c.bf16 %v5819, %v5818
      %v5831 = vpack.c.bf16 %v5815, %v5814
      %v5832 = vpack.c.bf16 %v5811, %v5810
      %v5833 = vpack.c.bf16 %v5807, %v5806
      %v5834 = vpack.c.bf16 %v5803, %v5802
      %v5835 = vpack.c.bf16 %v5823, %v5822
      %v5836 = vld [vmem:[%s619] sm:$0xff]
      %v5837 = vld [vmem:[%s619 + $0x8] sm:$0xf]
      %v5838 = vld [vmem:[%s623] sm:$0xff]
      %5840 = vset.pattern.permute.xlu0 0
      %5841 = vperm.xlu0 %5840, %v5838
      %v5842 = vpop.permute.xlu0 %5841
      %v5846 = vunpack.c.l.b16 %v5836
      %v5847 = vunpack.c.h.b16 %v5836
      %v5848 = vunpack.c.l.b16 %v5837
      %v5849 = vpack.c.b16 %v5846, %v5846
      %v5850 = vpack.c.b16 %v5847, %v5847
      %v5851 = vpack.c.b16 %v5848, %v5848
      %v5855 = vsel %vm2619, %v5851, 0
      %5857 = vmatprep.subr.bf16.mxu0 %v5483
      %5858 = vmatpush1.bf16.msra.mxu0 %v5482
      %5859 = vmatprep.subr.bf16.mxu0 %v5477
      %5860 = vmatpush1.bf16.msra.mxu0 %v5476
      %5861 = vmatprep.subr.bf16.mxu0 %v5399
      %5862 = vmatpush1.bf16.msra.mxu0 %v5398
      %5863 = vmatprep.subr.bf16.mxu0 %v5393
      %5864 = vmatpush1.bf16.msra.mxu0 %v5392
      %5865 = vmatprep.subr.bf16.mxu0 %v5315
      %5866 = vmatpush1.bf16.msra.mxu0 %v5314
      %5867 = vmatprep.subr.bf16.mxu0 %v5309
      %5868 = vmatpush1.bf16.msra.mxu0 %v5308
      %5869 = vmatprep.subr.bf16.mxu0 %v5231
      %5870 = vmatpush1.bf16.msra.mxu0 %v5230
      %5871 = vmatprep.subr.bf16.mxu0 %v5225
      %5872 = vmatpush1.bf16.msra.mxu0 %v5224
      %5873 = vmatprep.subr.bf16.mxu0 %v5747
      %5874 = vmatpush2.bf16.msra.mxu0 %v5746
      %5875 = vmatprep.subr.bf16.mxu0 %v5741
      %5876 = vmatpush2.bf16.msra.mxu0 %v5740
      %5877 = vmatprep.subr.bf16.mxu0 %v5663
      %5878 = vmatpush2.bf16.msra.mxu0 %v5662
      %5879 = vmatprep.subr.bf16.mxu0 %v5657
      %5880 = vmatpush2.bf16.msra.mxu0 %v5656
      %5881 = vmatprep.subr.bf16.mxu0 %v5579
      %5882 = vmatpush2.bf16.msra.mxu0 %v5578
      %5883 = vmatprep.subr.bf16.mxu0 %v5573
      %5884 = vmatpush2.bf16.msra.mxu0 %v5572
      %5885 = vmatprep.subr.bf16.mxu0 %v5495
      %5886 = vmatpush2.bf16.msra.mxu0 %v5494
      %5887 = vmatprep.subr.bf16.mxu0 %v5489
      %5888 = vmatpush2.bf16.msra.mxu0 %v5488
      %5889 = vmatprep.mubr.bf16.mxu0 %v5850
      %5890 = vmatmul.mubr.bf16.gmra.mxu0 %v5849
      %v5891 = vpop.f32.mrf.mxu0
      %v5892 = vadd.f32 %v5842, %v5891
      %v5893 = vpop.f32.mrf.mxu0
      %v5894 = vadd.f32 %v5842, %v5893
      %v5895 = vpop.f32.mrf.mxu0
      %v5896 = vpop.f32.mrf.mxu0
      %5897 = vdwg.mxu0
      %5898 = vmatprep.subr.bf16.mxu0 0
      %5899 = vmatpush1.bf16.msra.mxu0 0
      %5900 = vmatprep.subr.bf16.mxu0 0
      %5901 = vmatpush1.bf16.msra.mxu0 0
      %5902 = vmatprep.subr.bf16.mxu0 0
      %5903 = vmatpush1.bf16.msra.mxu0 0
      %5904 = vmatprep.subr.bf16.mxu0 0
      %5905 = vmatpush1.bf16.msra.mxu0 0
      %5906 = vmatprep.subr.bf16.mxu0 0
      %5907 = vmatpush1.bf16.msra.mxu0 0
      %5908 = vmatprep.subr.bf16.mxu0 0
      %5909 = vmatpush1.bf16.msra.mxu0 0
      %5910 = vmatprep.subr.bf16.mxu0 %v5831
      %5911 = vmatpush1.bf16.msra.mxu0 %v5830
      %5912 = vmatprep.subr.bf16.mxu0 %v5825
      %5913 = vmatpush1.bf16.msra.mxu0 %v5824
      %5914 = vmatprep.subr.bf16.mxu0 0
      %5915 = vmatpush2.bf16.msra.mxu0 0
      %5916 = vmatprep.subr.bf16.mxu0 0
      %5917 = vmatpush2.bf16.msra.mxu0 0
      %5918 = vmatprep.subr.bf16.mxu0 0
      %5919 = vmatpush2.bf16.msra.mxu0 0
      %5920 = vmatprep.subr.bf16.mxu0 0
      %5921 = vmatpush2.bf16.msra.mxu0 0
      %5922 = vmatprep.subr.bf16.mxu0 0
      %5923 = vmatpush2.bf16.msra.mxu0 0
      %5924 = vmatprep.subr.bf16.mxu0 0
      %5925 = vmatpush2.bf16.msra.mxu0 0
      %5926 = vmatprep.subr.bf16.mxu0 0
      %5927 = vmatpush2.bf16.msra.mxu0 0
      %5928 = vmatprep.subr.bf16.mxu0 0
      %5929 = vmatpush2.bf16.msra.mxu0 0
      %5930 = vmatprep.mubr.bf16.mxu0 0
      %5931 = vmatmul.mubr.bf16.gmra.mxu0 %v5855
      %v5932 = vpop.f32.mrf.mxu0
      %v5933 = vadd.f32 %v5892, %v5932
      %v5934 = vpop.f32.mrf.mxu0
      %v5935 = vadd.f32 %v5894, %v5934
      %v5936 = vpop.f32.mrf.mxu0
      %v5937 = vpop.f32.mrf.mxu0
      %5938 = vdwg.mxu0
      %5939 = vmatprep.subr.bf16.mxu0 %v5485
      %5940 = vmatpush1.bf16.msra.mxu0 %v5484
      %5941 = vmatprep.subr.bf16.mxu0 %v5479
      %5942 = vmatpush1.bf16.msra.mxu0 %v5478
      %5943 = vmatprep.subr.bf16.mxu0 %v5401
      %5944 = vmatpush1.bf16.msra.mxu0 %v5400
      %5945 = vmatprep.subr.bf16.mxu0 %v5395
      %5946 = vmatpush1.bf16.msra.mxu0 %v5394
      %5947 = vmatprep.subr.bf16.mxu0 %v5317
      %5948 = vmatpush1.bf16.msra.mxu0 %v5316
      %5949 = vmatprep.subr.bf16.mxu0 %v5311
      %5950 = vmatpush1.bf16.msra.mxu0 %v5310
      %5951 = vmatprep.subr.bf16.mxu0 %v5233
      %5952 = vmatpush1.bf16.msra.mxu0 %v5232
      %5953 = vmatprep.subr.bf16.mxu0 %v5227
      %5954 = vmatpush1.bf16.msra.mxu0 %v5226
      %5955 = vmatprep.subr.bf16.mxu0 %v5749
      %5956 = vmatpush2.bf16.msra.mxu0 %v5748
      %5957 = vmatprep.subr.bf16.mxu0 %v5743
      %5958 = vmatpush2.bf16.msra.mxu0 %v5742
      %5959 = vmatprep.subr.bf16.mxu0 %v5665
      %5960 = vmatpush2.bf16.msra.mxu0 %v5664
      %5961 = vmatprep.subr.bf16.mxu0 %v5659
      %5962 = vmatpush2.bf16.msra.mxu0 %v5658
      %5963 = vmatprep.subr.bf16.mxu0 %v5581
      %5964 = vmatpush2.bf16.msra.mxu0 %v5580
      %5965 = vmatprep.subr.bf16.mxu0 %v5575
      %5966 = vmatpush2.bf16.msra.mxu0 %v5574
      %5967 = vmatprep.subr.bf16.mxu0 %v5497
      %5968 = vmatpush2.bf16.msra.mxu0 %v5496
      %5969 = vmatprep.subr.bf16.mxu0 %v5491
      %5970 = vmatpush2.bf16.msra.mxu0 %v5490
      %5971 = vmatprep.mubr.bf16.mxu0 %v5850
      %5972 = vmatmul.mubr.bf16.gmra.mxu0 %v5849
      %v5973 = vpop.f32.mrf.mxu0
      %v5974 = vadd.f32 %v5842, %v5973
      %v5975 = vpop.f32.mrf.mxu0
      %v5976 = vadd.f32 %v5842, %v5975
      %v5977 = vpop.f32.mrf.mxu0
      %v5978 = vpop.f32.mrf.mxu0
      %5979 = vdwg.mxu0
      %5980 = vmatprep.subr.bf16.mxu0 0
      %5981 = vmatpush1.bf16.msra.mxu0 0
      %5982 = vmatprep.subr.bf16.mxu0 0
      %5983 = vmatpush1.bf16.msra.mxu0 0
      %5984 = vmatprep.subr.bf16.mxu0 0
      %5985 = vmatpush1.bf16.msra.mxu0 0
      %5986 = vmatprep.subr.bf16.mxu0 0
      %5987 = vmatpush1.bf16.msra.mxu0 0
      %5988 = vmatprep.subr.bf16.mxu0 0
      %5989 = vmatpush1.bf16.msra.mxu0 0
      %5990 = vmatprep.subr.bf16.mxu0 0
      %5991 = vmatpush1.bf16.msra.mxu0 0
      %5992 = vmatprep.subr.bf16.mxu0 %v5833
      %5993 = vmatpush1.bf16.msra.mxu0 %v5832
      %5994 = vmatprep.subr.bf16.mxu0 %v5827
      %5995 = vmatpush1.bf16.msra.mxu0 %v5826
      %5996 = vmatprep.subr.bf16.mxu0 0
      %5997 = vmatpush2.bf16.msra.mxu0 0
      %5998 = vmatprep.subr.bf16.mxu0 0
      %5999 = vmatpush2.bf16.msra.mxu0 0
      %6000 = vmatprep.subr.bf16.mxu0 0
      %6001 = vmatpush2.bf16.msra.mxu0 0
      %6002 = vmatprep.subr.bf16.mxu0 0
      %6003 = vmatpush2.bf16.msra.mxu0 0
      %6004 = vmatprep.subr.bf16.mxu0 0
      %6005 = vmatpush2.bf16.msra.mxu0 0
      %6006 = vmatprep.subr.bf16.mxu0 0
      %6007 = vmatpush2.bf16.msra.mxu0 0
      %6008 = vmatprep.subr.bf16.mxu0 0
      %6009 = vmatpush2.bf16.msra.mxu0 0
      %6010 = vmatprep.subr.bf16.mxu0 0
      %6011 = vmatpush2.bf16.msra.mxu0 0
      %6012 = vmatprep.mubr.bf16.mxu0 0
      %6013 = vmatmul.mubr.bf16.gmra.mxu0 %v5855
      %v6014 = vpop.f32.mrf.mxu0
      %v6015 = vadd.f32 %v5974, %v6014
      %v6016 = vpop.f32.mrf.mxu0
      %v6017 = vadd.f32 %v5976, %v6016
      %v6018 = vpop.f32.mrf.mxu0
      %v6019 = vpop.f32.mrf.mxu0
      %6020 = vdwg.mxu0
      %6021 = vmatprep.subr.bf16.mxu0 %v5487
      %6022 = vmatpush1.bf16.msra.mxu0 %v5486
      %6023 = vmatprep.subr.bf16.mxu0 %v5481
      %6024 = vmatpush1.bf16.msra.mxu0 %v5480
      %6025 = vmatprep.subr.bf16.mxu0 %v5403
      %6026 = vmatpush1.bf16.msra.mxu0 %v5402
      %6027 = vmatprep.subr.bf16.mxu0 %v5397
      %6028 = vmatpush1.bf16.msra.mxu0 %v5396
      %6029 = vmatprep.subr.bf16.mxu0 %v5319
      %6030 = vmatpush1.bf16.msra.mxu0 %v5318
      %6031 = vmatprep.subr.bf16.mxu0 %v5313
      %6032 = vmatpush1.bf16.msra.mxu0 %v5312
      %6033 = vmatprep.subr.bf16.mxu0 %v5235
      %6034 = vmatpush1.bf16.msra.mxu0 %v5234
      %6035 = vmatprep.subr.bf16.mxu0 %v5229
      %6036 = vmatpush1.bf16.msra.mxu0 %v5228
      %6037 = vmatprep.subr.bf16.mxu0 %v5751
      %6038 = vmatpush2.bf16.msra.mxu0 %v5750
      %6039 = vmatprep.subr.bf16.mxu0 %v5745
      %6040 = vmatpush2.bf16.msra.mxu0 %v5744
      %6041 = vmatprep.subr.bf16.mxu0 %v5667
      %6042 = vmatpush2.bf16.msra.mxu0 %v5666
      %6043 = vmatprep.subr.bf16.mxu0 %v5661
      %6044 = vmatpush2.bf16.msra.mxu0 %v5660
      %6045 = vmatprep.subr.bf16.mxu0 %v5583
      %6046 = vmatpush2.bf16.msra.mxu0 %v5582
      %6047 = vmatprep.subr.bf16.mxu0 %v5577
      %6048 = vmatpush2.bf16.msra.mxu0 %v5576
      %6049 = vmatprep.subr.bf16.mxu0 %v5499
      %6050 = vmatpush2.bf16.msra.mxu0 %v5498
      %6051 = vmatprep.subr.bf16.mxu0 %v5493
      %6052 = vmatpush2.bf16.msra.mxu0 %v5492
      %6053 = vmatprep.mubr.bf16.mxu0 %v5850
      %6054 = vmatmul.mubr.bf16.gmra.mxu0 %v5849
      %v6055 = vpop.f32.mrf.mxu0
      %v6056 = vadd.f32 %v5842, %v6055
      %v6057 = vpop.f32.mrf.mxu0
      %v6058 = vadd.f32 %v5842, %v6057
      %v6059 = vpop.f32.mrf.mxu0
      %v6060 = vpop.f32.mrf.mxu0
      %6061 = vdwg.mxu0
      %6062 = vmatprep.subr.bf16.mxu0 0
      %6063 = vmatpush1.bf16.msra.mxu0 0
      %6064 = vmatprep.subr.bf16.mxu0 0
      %6065 = vmatpush1.bf16.msra.mxu0 0
      %6066 = vmatprep.subr.bf16.mxu0 0
      %6067 = vmatpush1.bf16.msra.mxu0 0
      %6068 = vmatprep.subr.bf16.mxu0 0
      %6069 = vmatpush1.bf16.msra.mxu0 0
      %6070 = vmatprep.subr.bf16.mxu0 0
      %6071 = vmatpush1.bf16.msra.mxu0 0
      %6072 = vmatprep.subr.bf16.mxu0 0
      %6073 = vmatpush1.bf16.msra.mxu0 0
      %6074 = vmatprep.subr.bf16.mxu0 %v5835
      %6075 = vmatpush1.bf16.msra.mxu0 %v5834
      %6076 = vmatprep.subr.bf16.mxu0 %v5829
      %6077 = vmatpush1.bf16.msra.mxu0 %v5828
      %6078 = vmatprep.subr.bf16.mxu0 0
      %6079 = vmatpush2.bf16.msra.mxu0 0
      %6080 = vmatprep.subr.bf16.mxu0 0
      %6081 = vmatpush2.bf16.msra.mxu0 0
      %6082 = vmatprep.subr.bf16.mxu0 0
      %6083 = vmatpush2.bf16.msra.mxu0 0
      %6084 = vmatprep.subr.bf16.mxu0 0
      %6085 = vmatpush2.bf16.msra.mxu0 0
      %6086 = vmatprep.subr.bf16.mxu0 0
      %6087 = vmatpush2.bf16.msra.mxu0 0
      %6088 = vmatprep.subr.bf16.mxu0 0
      %6089 = vmatpush2.bf16.msra.mxu0 0
      %6090 = vmatprep.subr.bf16.mxu0 0
      %6091 = vmatpush2.bf16.msra.mxu0 0
      %6092 = vmatprep.subr.bf16.mxu0 0
      %6093 = vmatpush2.bf16.msra.mxu0 0
      %6094 = vmatprep.mubr.bf16.mxu0 0
      %6095 = vmatmul.mubr.bf16.gmra.mxu0 %v5855
      %v6096 = vpop.f32.mrf.mxu0
      %v6097 = vadd.f32 %v6056, %v6096
      %v6098 = vpop.f32.mrf.mxu0
      %v6099 = vadd.f32 %v6058, %v6098
      %v6100 = vpop.f32.mrf.mxu0
      %v6101 = vpop.f32.mrf.mxu0
      %6102 = vdwg.mxu0
      %p6103 = scmp.eq.s32.totalorder %s27, 2
      // Predicated region
      $region69: #{fineture_lumin_forward.1} parent=67 // pred_check
        %p6104 = pneg %p6103
      $region70: #{fineture_lumin_forward.1} parent=67 // pred_check_branch
        %6106 = sbr.rel (%p6104) target = $region72
      $region71: #{fineture_lumin_forward.1} parent=67 // pred_region
        %v6107 = vtanh.pop %v5933
        %v6108 = vtanh.pop %v5935
        %v6109 = vtanh.pop %v6015
        %v6110 = vtanh.pop %v6017
        %v6111 = vtanh.pop %v6097
        %v6112 = vtanh.pop %v6099
        %6113 = vst [vmem:[%s632] sm:$0xff] %v6107
        %6114 = vst [vmem:[%s632 + $0x8] sm:$0xff] %v6108
        %6115 = vst [vmem:[%s632 + $0x10] sm:$0xff] %v6109
        %6116 = vst [vmem:[%s632 + $0x18] sm:$0xff] %v6110
        %6117 = vst [vmem:[%s632 + $0x20] sm:$0xff] %v6111
        %6118 = vst [vmem:[%s632 + $0x28] sm:$0xff] %v6112
      $region72: #{fineture_lumin_forward.1} parent=67 // pred_fallthru
        _
      %p6119 = scmp.ne.s32.totalorder %s27, 2
      // Predicated region
      $region73: #{fineture_lumin_forward.1} parent=67 // pred_check
        %p6120 = pneg %p6119
      $region74: #{fineture_lumin_forward.1} parent=67 // pred_check_branch
        %6122 = sbr.rel (%p6120) target = $region76
      $region75: #{fineture_lumin_forward.1} parent=67 // pred_region
        %v6123 = vxor.u32 %v5933, 2147483648
        %v6124 = vxor.u32 %v5935, 2147483648
        %v6125 = vxor.u32 %v6015, 2147483648
        %v6126 = vxor.u32 %v6017, 2147483648
        %v6127 = vxor.u32 %v6097, 2147483648
        %v6128 = vxor.u32 %v6099, 2147483648
        %v6129 = vmul.f32 %v6123, 1.442695
        %v6130 = vpow.pop %v6129
        %v6131 = vmul.f32 %v6124, 1.442695
        %v6132 = vpow.pop %v6131
        %v6133 = vmul.f32 %v6125, 1.442695
        %v6134 = vpow.pop %v6133
        %v6135 = vmul.f32 %v6126, 1.442695
        %v6136 = vpow.pop %v6135
        %v6137 = vmul.f32 %v6127, 1.442695
        %v6138 = vpow.pop %v6137
        %v6139 = vmul.f32 %v6128, 1.442695
        %v6140 = vpow.pop %v6139
        %v6141 = vadd.f32 %v6130, 1.0
        %v6142 = vadd.f32 %v6132, 1.0
        %v6143 = vadd.f32 %v6134, 1.0
        %v6144 = vadd.f32 %v6136, 1.0
        %v6145 = vadd.f32 %v6138, 1.0
        %v6146 = vadd.f32 %v6140, 1.0
        %v6147 = vrcp.pop %v6141
        %v6148 = vmul.f32 1.0, %v6147
        %v6149 = vrcp.pop %v6142
        %v6150 = vmul.f32 1.0, %v6149
        %v6151 = vrcp.pop %v6143
        %v6152 = vmul.f32 1.0, %v6151
        %v6153 = vrcp.pop %v6144
        %v6154 = vmul.f32 1.0, %v6153
        %v6155 = vrcp.pop %v6145
        %v6156 = vmul.f32 1.0, %v6155
        %v6157 = vrcp.pop %v6146
        %v6158 = vmul.f32 1.0, %v6157
        %6159 = vst [vmem:[%s632] sm:$0xff] %v6148
        %6160 = vst [vmem:[%s632 + $0x8] sm:$0xff] %v6150
        %6161 = vst [vmem:[%s632 + $0x10] sm:$0xff] %v6152
        %6162 = vst [vmem:[%s632 + $0x18] sm:$0xff] %v6154
        %6163 = vst [vmem:[%s632 + $0x20] sm:$0xff] %v6156
        %6164 = vst [vmem:[%s632 + $0x28] sm:$0xff] %v6158
      $region76: #{fineture_lumin_forward.1} parent=67 // pred_fallthru
        _
      %p6165 = scmp.lt.s32.totalorder %s27, 2
      %s6166 = scalar_select %p6165, %s27, 2
      %p6167 = scmp.lt.s32.totalorder %s28, 0
      %s6168 = scalar_select %p6167, %s28, 0
      %s6169 = smul.addr %s6168, 6
      %s6170 = smul.addr %s6166, 6
      %s6171 = sadd.s32 %s6169, %s6170
      %s6172 = smul.addr %s6171, 8
      %s6173 = scalar_lea.vmem %s12, %s6172
      // Predicated region
      $region77: #{fineture_lumin_forward.1} parent=67 // pred_check
        %p6174 = pneg %p362
      $region78: #{fineture_lumin_forward.1} parent=67 // pred_check_branch
        %6176 = sbr.rel (%p6174) target = $region80
      $region79: #{fineture_lumin_forward.1} parent=67 // pred_region
        _
      $region80: #{fineture_lumin_forward.1} parent=67 // pred_fallthru
        _
    $region68: #{fineture_lumin_forward.1} parent=5 // pred_fallthru
      _
    %p6177 = scmp.le.s32.totalorder 2, %s18
    // Predicated region
    $region81: #{fineture_lumin_forward.1} parent=5 // pred_check
      %p6178 = pneg %p6177
    $region82: #{fineture_lumin_forward.1} parent=5 // pred_check_branch
      %6180 = sbr.rel (%p6178) target = $region84
    $region83: #{fineture_lumin_forward.1} parent=5 // pred_region
      %s6181 = ssub.s32 %s18, 2
      // Predicated region
      $region85: #{fineture_lumin_forward.1} parent=83 // pred_check
        %p6182 = pneg %p368
      $region86: #{fineture_lumin_forward.1} parent=83 // pred_check_branch
        %6184 = sbr.rel (%p6182) target = $region88
      $region87: #{fineture_lumin_forward.1} parent=83 // pred_region
        %p6185 = scmp.lt.s32.totalorder %s29, 2
        %s6186 = scalar_select %p6185, %s29, 2
        %p6187 = scmp.lt.s32.totalorder %s30, 0
        %s6188 = scalar_select %p6187, %s30, 0
        %s6189 = smul.addr %s6188, 6
        %s6190 = smul.addr %s6186, 6
        %s6191 = sadd.s32 %s6189, %s6190
        %s6192 = smul.addr %s6191, 8
        %s6193 = scalar_lea.vmem %s12, %s6192
      $region88: #{fineture_lumin_forward.1} parent=83 // pred_fallthru
        _
    $region84: #{fineture_lumin_forward.1} parent=5 // pred_fallthru
      _
  $region6: #{fineture_lumin_forward.1} parent=0 // loop_footer
    %s22 = sadd.s32 1, %s18
  $region7: #{fineture_lumin_forward.1} parent=0 // loop_footer_branch
    %17 = sbr.rel target = $region3
  $region8: #{fineture_lumin_forward.1} parent=0 // loop_exit
    _

</llo_original>
